<compile_context>
chip_gen: v5e
topology: v5e:2x2
jax: 0.10.0
libtpu: 0.0.40
codegen_flags: <defaults>
</compile_context>

<pallas_src>
import math
import functools

import jax
import jax.numpy as jnp
from jax.experimental import pallas as pl
from jax.experimental.pallas import tpu as pltpu


def _head_feat_kernel(x_ref, w_ref, o_ref, zb_ref, t_ref, acc_ref,
                      *, H, W, Cin, Cout, scale, eps):
    """One grid step == one sample.

    x_ref:   (1, H, W, Cin)        bf16 NHWC input tile (unpadded)
    w_ref:   (3, 3*Cin, Cout)      bf16 weight, lane-stacked over the dw taps
    o_ref:   (1, H, W, Cout)       output tile
    zb_ref:  ((H+2)*(W+2), 3*Cin)  bf16 scratch: flattened padded grid, 3 dw-shifted copies
    t_ref:   ((H+2)*(W+2), Cout)   f32 scratch: per-dh matmul result
    acc_ref: (H*(W+2), Cout)       f32 scratch: padded-grid accumulator
    """
    Wp = W + 2
    M = H * Wp  # accumulated rows; covers every valid output pixel p = h*Wp + w (w < W)

    # Build the zero-padded, lane-concatenated slab:
    #   zb[p, dw*Cin + ci] = x_padded_flat[p + dw, ci]  (zero on the padding)
    # Re-zeroed every step (scratch is per-core; do not gate on program_id==0).
    zb_ref[...] = jnp.zeros_like(zb_ref)
    for h in range(H):
        row = x_ref[0, h]                      # (W, Cin)
        base = (h + 1) * Wp + 1                # flat row of pixel (h, 0) in the padded grid
        for dw in range(3):
            zb_ref[pl.ds(base - dw, W), dw * Cin:(dw + 1) * Cin] = row

    # 3x3 conv == 3 matmuls with K = 3*Cin (native bf16 MXU path, f32 accumulation).
    # The dh tap offset is applied as a row shift of the (P, Cout) result, which is
    # 4x less shift traffic than shifting the Cin-wide input at real ToMP shapes.
    for dh in range(3):
        t_ref[...] = jnp.dot(zb_ref[...], w_ref[dh],
                             preferred_element_type=jnp.float32)
        shifted = t_ref[pl.ds(dh * Wp, M), :]
        if dh == 0:
            acc_ref[...] = shifted
        else:
            acc_ref[...] = acc_ref[...] + shifted

    # Drop the two padded columns, then InstanceL2Norm (size_average form):
    #   y * scale * sqrt(C*H*W / (sum(y^2 over C,H,W) + eps))  per sample.
    y = acc_ref[...].reshape(H, Wp, Cout)[:, :W, :]            # (H, W, Cout) f32
    ssq = jnp.sum(y * y)
    nrm = (scale * math.sqrt(Cout * H * W)) * jax.lax.rsqrt(ssq + eps)
    o_ref[0] = (y * nrm).astype(o_ref.dtype)


def head_feature_extractor_pallas(feat_nchw, weight_oihw, *, scale, eps=1e-5):
    """Conv2d(3x3, pad=1, no bias) + InstanceL2Norm. NCHW in / NCHW out."""
    N, Cin, H, W = feat_nchw.shape
    Cout = weight_oihw.shape[0]
    assert weight_oihw.shape[1:] == (Cin, 3, 3), weight_oihw.shape
    P = (H + 2) * (W + 2)
    M = H * (W + 2)

    # Layout glue in plain JAX (fuses into a single transpose+cast producer per array).
    # TODO(synk): accept NHWC activations directly from the backbone to drop this HBM pass.
    x = jnp.transpose(feat_nchw, (0, 2, 3, 1)).astype(jnp.bfloat16)       # NCHW -> NHWC bf16
    w3 = jnp.transpose(weight_oihw, (2, 3, 1, 0)).reshape(3, 3 * Cin, Cout)
    w3 = w3.astype(jnp.bfloat16)                                          # (3, 3*Cin, Cout)

    kernel = functools.partial(
        _head_feat_kernel, H=H, W=W, Cin=Cin, Cout=Cout,
        scale=float(scale), eps=float(eps),
    )

    out_nhwc = pl.pallas_call(
        kernel,
        out_shape=jax.ShapeDtypeStruct((N, H, W, Cout), feat_nchw.dtype),
        grid_spec=pltpu.PrefetchScalarGridSpec(
            num_scalar_prefetch=0,
            grid=(N,),
            in_specs=[
                pl.BlockSpec((1, H, W, Cin), lambda n: (n, 0, 0, 0)),
                # constant index_map: the weight block is fetched once and reused.
                pl.BlockSpec((3, 3 * Cin, Cout), lambda n: (0, 0, 0)),
            ],
            out_specs=pl.BlockSpec((1, H, W, Cout), lambda n: (n, 0, 0, 0)),
            scratch_shapes=[
                pltpu.VMEM((P, 3 * Cin), jnp.bfloat16),   # padded-grid slab
                pltpu.VMEM((P, Cout), jnp.float32),       # per-dh matmul result
                pltpu.VMEM((M, Cout), jnp.float32),       # accumulator
            ],
        ),
        compiler_params=pltpu.CompilerParams(
            # N is frames*sequences (>=2 in practice) so both v7x TensorCores get work.
            dimension_semantics=("parallel",),
            # Explicit budget; ~15 MiB is enough at real ToMP shapes (Cin=1024, 18x18)
            # and fits v7x's 64 MiB VMEM with double-buffering intact.
            vmem_limit_bytes=32 * 1024 * 1024,
        ),
    )(x, w3)

    # TODO(synk): fuse this NHWC->NCHW transpose into the consumer (tomp_head) instead.
    return jnp.transpose(out_nhwc, (0, 3, 1, 2))


class LSToMPNetPallas:
    """Minimal JAX/Pallas port of LSToMPNet's implemented compute path."""

    def __init__(self, conv_weight_oihw, norm_scale, eps=1e-5):
        self.conv_weight = conv_weight_oihw  # (Cout, Cin, 3, 3)
        self.norm_scale = norm_scale
        self.eps = eps
        # TODO(synk): backbone_feature_extractor, tomp_head.get_filter_and_features and
        # lstm_net are externally injected submodules (not defined in the spec file);
        # only the documented head feature extractor (conv + InstanceL2Norm) is ported.

    def extract_head_feat(self, feat_nchw, num_sequences=None):
        out = head_feature_extractor_pallas(
            feat_nchw, self.conv_weight, scale=self.norm_scale, eps=self.eps)
        if num_sequences is None:
            return out
        return out.reshape(-1, num_sequences, *out.shape[-3:])


def _reference(feat_nchw, weight_oihw, scale, eps=1e-5):
    y = jax.lax.conv_general_dilated(
        feat_nchw, weight_oihw, window_strides=(1, 1),
        padding=((1, 1), (1, 1)),
        dimension_numbers=("NCHW", "OIHW", "NCHW"),
        precision=jax.lax.Precision.HIGHEST,
    )
    C, H, W = y.shape[1:]
    ssq = jnp.sum(y * y, axis=(1, 2, 3), keepdims=True)
    return y * (scale * jnp.sqrt((C * H * W) / (ssq + eps)))


if __name__ == "__main__":
    # Small shapes consistent with the forward: feat is (num_frames*num_sequences, Cin, H, W);
    # Cout=256 matches the real ToMP head (lane-dense output); Cin kept small but 128-aligned.
    num_frames, num_sequences = 2, 2
    Cin, Cout, H, W = 128, 256, 16, 16
    N = num_frames * num_sequences

    key = jax.random.PRNGKey(0)
    k_feat, k_w = jax.random.split(key)
    feat = jax.random.normal(k_feat, (N, Cin, H, W), dtype=jnp.float32)
    conv_w = 0.05 * jax.random.normal(k_w, (Cout, Cin, 3, 3), dtype=jnp.float32)

    # InstanceL2Norm scale (ToMP uses sqrt(1/(out_dim * filter_size^2)); filter_size=1 here)
    norm_scale = math.sqrt(1.0 / (Cout * 1 * 1))

    net = LSToMPNetPallas(conv_w, norm_scale)
    out = net.extract_head_feat(feat, num_sequences)
    out = jax.block_until_ready(out)
    assert out.shape == (num_frames, num_sequences, Cout, H, W), out.shape

    # (1) Structural check: compare against an f32 reference fed the same bf16-rounded
    #     operands the kernel uses -> should match to f32 accumulation-order noise.
    feat_q = feat.astype(jnp.bfloat16).astype(jnp.float32)
    w_q = conv_w.astype(jnp.bfloat16).astype(jnp.float32)
    ref_q = _reference(feat_q, w_q, norm_scale).reshape(
        num_frames, num_sequences, Cout, H, W)
    err_q = float(jnp.max(jnp.abs(out - ref_q)))
    assert err_q < 2e-3, err_q

    # (2) End-to-end check vs. the full-f32 reference: difference is bounded by the
    #     deliberate bf16 input quantization (outputs have RMS ~= norm_scale ~= 0.06).
    ref = _reference(feat, conv_w, norm_scale).reshape(
        num_frames, num_sequences, Cout, H, W)
    err = float(jnp.max(jnp.abs(out - ref)))
    assert err < 1e-2, err

    print("KERNEL_OK")
</pallas_src>

<mosaic_0001>
module attributes {stable_mosaic.version = 11 : i64} {
  func.func @_head_feat_kernel(%arg0: i32, %arg1: memref<1x16x16x128xbf16, #tpu.memory_space<vmem>>, %arg2: memref<3x384x256xbf16, #tpu.memory_space<vmem>>, %arg3: memref<1x16x16x256xf32, #tpu.memory_space<vmem>>, %arg4: memref<324x384xbf16, #tpu.memory_space<vmem>>, %arg5: memref<324x256xf32, #tpu.memory_space<vmem>>, %arg6: memref<288x256xf32, #tpu.memory_space<vmem>>) attributes {dimension_semantics = [#tpu.dimension_semantics<parallel>], iteration_bounds = array<i64: 4>, scalar_prefetch = 0 : i64, scratch_operands = 3 : i64, tpu.core_type = #tpu.core_type<tc>, window_params = [{transform_indices = @transform_0, window_bounds = array<i64: 1, 16, 16, 128>}, {pipeline_mode = #tpu.pipeline_mode<synchronous>, transform_indices = @transform_1, window_bounds = array<i64: 3, 384, 256>}, {transform_indices = @transform_2, window_bounds = array<i64: 1, 16, 16, 256>}]} {
    %cst = arith.constant 0.000000e+00 : bf16
    %0 = vector.broadcast %cst : bf16 to vector<324x384xbf16>
    %c0 = arith.constant 0 : index
    %c0_0 = arith.constant 0 : index
    %1 = vector.load %arg4[%c0, %c0_0] : memref<324x384xbf16, #tpu.memory_space<vmem>>, vector<324x384xbf16>
    tpu.vector_store %arg4[%c0, %c0_0], %0 {strides = array<i32>} : memref<324x384xbf16, #tpu.memory_space<vmem>>, vector<324x384xbf16>,
    %c0_1 = arith.constant 0 : index
    %c0_2 = arith.constant 0 : index
    %c0_3 = arith.constant 0 : index
    %c0_4 = arith.constant 0 : index
    %2 = vector.load %arg1[%c0_1, %c0_2, %c0_3, %c0_4] : memref<1x16x16x128xbf16, #tpu.memory_space<vmem>>, vector<1x1x16x128xbf16>
    %3 = vector.shape_cast %2 : vector<1x1x16x128xbf16> to vector<16x128xbf16>
    %c19 = arith.constant 19 : index
    %c0_5 = arith.constant 0 : index
    %4 = vector.load %arg4[%c19, %c0_5] : memref<324x384xbf16, #tpu.memory_space<vmem>>, vector<16x128xbf16>
    tpu.vector_store %arg4[%c19, %c0_5], %3 {strides = array<i32>} : memref<324x384xbf16, #tpu.memory_space<vmem>>, vector<16x128xbf16>,
    %c18 = arith.constant 18 : index
    %c128 = arith.constant 128 : index
    %5 = vector.load %arg4[%c18, %c128] : memref<324x384xbf16, #tpu.memory_space<vmem>>, vector<16x128xbf16>
    tpu.vector_store %arg4[%c18, %c128], %3 {strides = array<i32>} : memref<324x384xbf16, #tpu.memory_space<vmem>>, vector<16x128xbf16>,
    %c17 = arith.constant 17 : index
    %c256 = arith.constant 256 : index
    %6 = vector.load %arg4[%c17, %c256] : memref<324x384xbf16, #tpu.memory_space<vmem>>, vector<16x128xbf16>
    tpu.vector_store %arg4[%c17, %c256], %3 {strides = array<i32>} : memref<324x384xbf16, #tpu.memory_space<vmem>>, vector<16x128xbf16>,
    %c0_6 = arith.constant 0 : index
    %c1 = arith.constant 1 : index
    %c0_7 = arith.constant 0 : index
    %c0_8 = arith.constant 0 : index
    %7 = vector.load %arg1[%c0_6, %c1, %c0_7, %c0_8] : memref<1x16x16x128xbf16, #tpu.memory_space<vmem>>, vector<1x1x16x128xbf16>
    %8 = vector.shape_cast %7 : vector<1x1x16x128xbf16> to vector<16x128xbf16>
    %c37 = arith.constant 37 : index
    %c0_9 = arith.constant 0 : index
    %9 = vector.load %arg4[%c37, %c0_9] : memref<324x384xbf16, #tpu.memory_space<vmem>>, vector<16x128xbf16>
    tpu.vector_store %arg4[%c37, %c0_9], %8 {strides = array<i32>} : memref<324x384xbf16, #tpu.memory_space<vmem>>, vector<16x128xbf16>,
    %c36 = arith.constant 36 : index
    %c128_10 = arith.constant 128 : index
    %10 = vector.load %arg4[%c36, %c128_10] : memref<324x384xbf16, #tpu.memory_space<vmem>>, vector<16x128xbf16>
    tpu.vector_store %arg4[%c36, %c128_10], %8 {strides = array<i32>} : memref<324x384xbf16, #tpu.memory_space<vmem>>, vector<16x128xbf16>,
    %c35 = arith.constant 35 : index
    %c256_11 = arith.constant 256 : index
    %11 = vector.load %arg4[%c35, %c256_11] : memref<324x384xbf16, #tpu.memory_space<vmem>>, vector<16x128xbf16>
    tpu.vector_store %arg4[%c35, %c256_11], %8 {strides = array<i32>} : memref<324x384xbf16, #tpu.memory_space<vmem>>, vector<16x128xbf16>,
    %c0_12 = arith.constant 0 : index
    %c2 = arith.constant 2 : index
    %c0_13 = arith.constant 0 : index
    %c0_14 = arith.constant 0 : index
    %12 = vector.load %arg1[%c0_12, %c2, %c0_13, %c0_14] : memref<1x16x16x128xbf16, #tpu.memory_space<vmem>>, vector<1x1x16x128xbf16>
    %13 = vector.shape_cast %12 : vector<1x1x16x128xbf16> to vector<16x128xbf16>
    %c55 = arith.constant 55 : index
    %c0_15 = arith.constant 0 : index
    %14 = vector.load %arg4[%c55, %c0_15] : memref<324x384xbf16, #tpu.memory_space<vmem>>, vector<16x128xbf16>
    tpu.vector_store %arg4[%c55, %c0_15], %13 {strides = array<i32>} : memref<324x384xbf16, #tpu.memory_space<vmem>>, vector<16x128xbf16>,
    %c54 = arith.constant 54 : index
    %c128_16 = arith.constant 128 : index
    %15 = vector.load %arg4[%c54, %c128_16] : memref<324x384xbf16, #tpu.memory_space<vmem>>, vector<16x128xbf16>
    tpu.vector_store %arg4[%c54, %c128_16], %13 {strides = array<i32>} : memref<324x384xbf16, #tpu.memory_space<vmem>>, vector<16x128xbf16>,
    %c53 = arith.constant 53 : index
    %c256_17 = arith.constant 256 : index
    %16 = vector.load %arg4[%c53, %c256_17] : memref<324x384xbf16, #tpu.memory_space<vmem>>, vector<16x128xbf16>
    tpu.vector_store %arg4[%c53, %c256_17], %13 {strides = array<i32>} : memref<324x384xbf16, #tpu.memory_space<vmem>>, vector<16x128xbf16>,
    %c0_18 = arith.constant 0 : index
    %c3 = arith.constant 3 : index
    %c0_19 = arith.constant 0 : index
    %c0_20 = arith.constant 0 : index
    %17 = vector.load %arg1[%c0_18, %c3, %c0_19, %c0_20] : memref<1x16x16x128xbf16, #tpu.memory_space<vmem>>, vector<1x1x16x128xbf16>
    %18 = vector.shape_cast %17 : vector<1x1x16x128xbf16> to vector<16x128xbf16>
    %c73 = arith.constant 73 : index
    %c0_21 = arith.constant 0 : index
    %19 = vector.load %arg4[%c73, %c0_21] : memref<324x384xbf16, #tpu.memory_space<vmem>>, vector<16x128xbf16>
    tpu.vector_store %arg4[%c73, %c0_21], %18 {strides = array<i32>} : memref<324x384xbf16, #tpu.memory_space<vmem>>, vector<16x128xbf16>,
    %c72 = arith.constant 72 : index
    %c128_22 = arith.constant 128 : index
    %20 = vector.load %arg4[%c72, %c128_22] : memref<324x384xbf16, #tpu.memory_space<vmem>>, vector<16x128xbf16>
    tpu.vector_store %arg4[%c72, %c128_22], %18 {strides = array<i32>} : memref<324x384xbf16, #tpu.memory_space<vmem>>, vector<16x128xbf16>,
    %c71 = arith.constant 71 : index
    %c256_23 = arith.constant 256 : index
    %21 = vector.load %arg4[%c71, %c256_23] : memref<324x384xbf16, #tpu.memory_space<vmem>>, vector<16x128xbf16>
    tpu.vector_store %arg4[%c71, %c256_23], %18 {strides = array<i32>} : memref<324x384xbf16, #tpu.memory_space<vmem>>, vector<16x128xbf16>,
    %c0_24 = arith.constant 0 : index
    %c4 = arith.constant 4 : index
    %c0_25 = arith.constant 0 : index
    %c0_26 = arith.constant 0 : index
    %22 = vector.load %arg1[%c0_24, %c4, %c0_25, %c0_26] : memref<1x16x16x128xbf16, #tpu.memory_space<vmem>>, vector<1x1x16x128xbf16>
    %23 = vector.shape_cast %22 : vector<1x1x16x128xbf16> to vector<16x128xbf16>
    %c91 = arith.constant 91 : index
    %c0_27 = arith.constant 0 : index
    %24 = vector.load %arg4[%c91, %c0_27] : memref<324x384xbf16, #tpu.memory_space<vmem>>, vector<16x128xbf16>
    tpu.vector_store %arg4[%c91, %c0_27], %23 {strides = array<i32>} : memref<324x384xbf16, #tpu.memory_space<vmem>>, vector<16x128xbf16>,
    %c90 = arith.constant 90 : index
    %c128_28 = arith.constant 128 : index
    %25 = vector.load %arg4[%c90, %c128_28] : memref<324x384xbf16, #tpu.memory_space<vmem>>, vector<16x128xbf16>
    tpu.vector_store %arg4[%c90, %c128_28], %23 {strides = array<i32>} : memref<324x384xbf16, #tpu.memory_space<vmem>>, vector<16x128xbf16>,
    %c89 = arith.constant 89 : index
    %c256_29 = arith.constant 256 : index
    %26 = vector.load %arg4[%c89, %c256_29] : memref<324x384xbf16, #tpu.memory_space<vmem>>, vector<16x128xbf16>
    tpu.vector_store %arg4[%c89, %c256_29], %23 {strides = array<i32>} : memref<324x384xbf16, #tpu.memory_space<vmem>>, vector<16x128xbf16>,
    %c0_30 = arith.constant 0 : index
    %c5 = arith.constant 5 : index
    %c0_31 = arith.constant 0 : index
    %c0_32 = arith.constant 0 : index
    %27 = vector.load %arg1[%c0_30, %c5, %c0_31, %c0_32] : memref<1x16x16x128xbf16, #tpu.memory_space<vmem>>, vector<1x1x16x128xbf16>
    %28 = vector.shape_cast %27 : vector<1x1x16x128xbf16> to vector<16x128xbf16>
    %c109 = arith.constant 109 : index
    %c0_33 = arith.constant 0 : index
    %29 = vector.load %arg4[%c109, %c0_33] : memref<324x384xbf16, #tpu.memory_space<vmem>>, vector<16x128xbf16>
    tpu.vector_store %arg4[%c109, %c0_33], %28 {strides = array<i32>} : memref<324x384xbf16, #tpu.memory_space<vmem>>, vector<16x128xbf16>,
    %c108 = arith.constant 108 : index
    %c128_34 = arith.constant 128 : index
    %30 = vector.load %arg4[%c108, %c128_34] : memref<324x384xbf16, #tpu.memory_space<vmem>>, vector<16x128xbf16>
    tpu.vector_store %arg4[%c108, %c128_34], %28 {strides = array<i32>} : memref<324x384xbf16, #tpu.memory_space<vmem>>, vector<16x128xbf16>,
    %c107 = arith.constant 107 : index
    %c256_35 = arith.constant 256 : index
    %31 = vector.load %arg4[%c107, %c256_35] : memref<324x384xbf16, #tpu.memory_space<vmem>>, vector<16x128xbf16>
    tpu.vector_store %arg4[%c107, %c256_35], %28 {strides = array<i32>} : memref<324x384xbf16, #tpu.memory_space<vmem>>, vector<16x128xbf16>,
    %c0_36 = arith.constant 0 : index
    %c6 = arith.constant 6 : index
    %c0_37 = arith.constant 0 : index
    %c0_38 = arith.constant 0 : index
    %32 = vector.load %arg1[%c0_36, %c6, %c0_37, %c0_38] : memref<1x16x16x128xbf16, #tpu.memory_space<vmem>>, vector<1x1x16x128xbf16>
    %33 = vector.shape_cast %32 : vector<1x1x16x128xbf16> to vector<16x128xbf16>
    %c127 = arith.constant 127 : index
    %c0_39 = arith.constant 0 : index
    %34 = vector.load %arg4[%c127, %c0_39] : memref<324x384xbf16, #tpu.memory_space<vmem>>, vector<16x128xbf16>
    tpu.vector_store %arg4[%c127, %c0_39], %33 {strides = array<i32>} : memref<324x384xbf16, #tpu.memory_space<vmem>>, vector<16x128xbf16>,
    %c126 = arith.constant 126 : index
    %c128_40 = arith.constant 128 : index
    %35 = vector.load %arg4[%c126, %c128_40] : memref<324x384xbf16, #tpu.memory_space<vmem>>, vector<16x128xbf16>
    tpu.vector_store %arg4[%c126, %c128_40], %33 {strides = array<i32>} : memref<324x384xbf16, #tpu.memory_space<vmem>>, vector<16x128xbf16>,
    %c125 = arith.constant 125 : index
    %c256_41 = arith.constant 256 : index
    %36 = vector.load %arg4[%c125, %c256_41] : memref<324x384xbf16, #tpu.memory_space<vmem>>, vector<16x128xbf16>
    tpu.vector_store %arg4[%c125, %c256_41], %33 {strides = array<i32>} : memref<324x384xbf16, #tpu.memory_space<vmem>>, vector<16x128xbf16>,
    %c0_42 = arith.constant 0 : index
    %c7 = arith.constant 7 : index
    %c0_43 = arith.constant 0 : index
    %c0_44 = arith.constant 0 : index
    %37 = vector.load %arg1[%c0_42, %c7, %c0_43, %c0_44] : memref<1x16x16x128xbf16, #tpu.memory_space<vmem>>, vector<1x1x16x128xbf16>
    %38 = vector.shape_cast %37 : vector<1x1x16x128xbf16> to vector<16x128xbf16>
    %c145 = arith.constant 145 : index
    %c0_45 = arith.constant 0 : index
    %39 = vector.load %arg4[%c145, %c0_45] : memref<324x384xbf16, #tpu.memory_space<vmem>>, vector<16x128xbf16>
    tpu.vector_store %arg4[%c145, %c0_45], %38 {strides = array<i32>} : memref<324x384xbf16, #tpu.memory_space<vmem>>, vector<16x128xbf16>,
    %c144 = arith.constant 144 : index
    %c128_46 = arith.constant 128 : index
    %40 = vector.load %arg4[%c144, %c128_46] : memref<324x384xbf16, #tpu.memory_space<vmem>>, vector<16x128xbf16>
    tpu.vector_store %arg4[%c144, %c128_46], %38 {strides = array<i32>} : memref<324x384xbf16, #tpu.memory_space<vmem>>, vector<16x128xbf16>,
    %c143 = arith.constant 143 : index
    %c256_47 = arith.constant 256 : index
    %41 = vector.load %arg4[%c143, %c256_47] : memref<324x384xbf16, #tpu.memory_space<vmem>>, vector<16x128xbf16>
    tpu.vector_store %arg4[%c143, %c256_47], %38 {strides = array<i32>} : memref<324x384xbf16, #tpu.memory_space<vmem>>, vector<16x128xbf16>,
    %c0_48 = arith.constant 0 : index
    %c8 = arith.constant 8 : index
    %c0_49 = arith.constant 0 : index
    %c0_50 = arith.constant 0 : index
    %42 = vector.load %arg1[%c0_48, %c8, %c0_49, %c0_50] : memref<1x16x16x128xbf16, #tpu.memory_space<vmem>>, vector<1x1x16x128xbf16>
    %43 = vector.shape_cast %42 : vector<1x1x16x128xbf16> to vector<16x128xbf16>
    %c163 = arith.constant 163 : index
    %c0_51 = arith.constant 0 : index
    %44 = vector.load %arg4[%c163, %c0_51] : memref<324x384xbf16, #tpu.memory_space<vmem>>, vector<16x128xbf16>
    tpu.vector_store %arg4[%c163, %c0_51], %43 {strides = array<i32>} : memref<324x384xbf16, #tpu.memory_space<vmem>>, vector<16x128xbf16>,
    %c162 = arith.constant 162 : index
    %c128_52 = arith.constant 128 : index
    %45 = vector.load %arg4[%c162, %c128_52] : memref<324x384xbf16, #tpu.memory_space<vmem>>, vector<16x128xbf16>
    tpu.vector_store %arg4[%c162, %c128_52], %43 {strides = array<i32>} : memref<324x384xbf16, #tpu.memory_space<vmem>>, vector<16x128xbf16>,
    %c161 = arith.constant 161 : index
    %c256_53 = arith.constant 256 : index
    %46 = vector.load %arg4[%c161, %c256_53] : memref<324x384xbf16, #tpu.memory_space<vmem>>, vector<16x128xbf16>
    tpu.vector_store %arg4[%c161, %c256_53], %43 {strides = array<i32>} : memref<324x384xbf16, #tpu.memory_space<vmem>>, vector<16x128xbf16>,
    %c0_54 = arith.constant 0 : index
    %c9 = arith.constant 9 : index
    %c0_55 = arith.constant 0 : index
    %c0_56 = arith.constant 0 : index
    %47 = vector.load %arg1[%c0_54, %c9, %c0_55, %c0_56] : memref<1x16x16x128xbf16, #tpu.memory_space<vmem>>, vector<1x1x16x128xbf16>
    %48 = vector.shape_cast %47 : vector<1x1x16x128xbf16> to vector<16x128xbf16>
    %c181 = arith.constant 181 : index
    %c0_57 = arith.constant 0 : index
    %49 = vector.load %arg4[%c181, %c0_57] : memref<324x384xbf16, #tpu.memory_space<vmem>>, vector<16x128xbf16>
    tpu.vector_store %arg4[%c181, %c0_57], %48 {strides = array<i32>} : memref<324x384xbf16, #tpu.memory_space<vmem>>, vector<16x128xbf16>,
    %c180 = arith.constant 180 : index
    %c128_58 = arith.constant 128 : index
    %50 = vector.load %arg4[%c180, %c128_58] : memref<324x384xbf16, #tpu.memory_space<vmem>>, vector<16x128xbf16>
    tpu.vector_store %arg4[%c180, %c128_58], %48 {strides = array<i32>} : memref<324x384xbf16, #tpu.memory_space<vmem>>, vector<16x128xbf16>,
    %c179 = arith.constant 179 : index
    %c256_59 = arith.constant 256 : index
    %51 = vector.load %arg4[%c179, %c256_59] : memref<324x384xbf16, #tpu.memory_space<vmem>>, vector<16x128xbf16>
    tpu.vector_store %arg4[%c179, %c256_59], %48 {strides = array<i32>} : memref<324x384xbf16, #tpu.memory_space<vmem>>, vector<16x128xbf16>,
    %c0_60 = arith.constant 0 : index
    %c10 = arith.constant 10 : index
    %c0_61 = arith.constant 0 : index
    %c0_62 = arith.constant 0 : index
    %52 = vector.load %arg1[%c0_60, %c10, %c0_61, %c0_62] : memref<1x16x16x128xbf16, #tpu.memory_space<vmem>>, vector<1x1x16x128xbf16>
    %53 = vector.shape_cast %52 : vector<1x1x16x128xbf16> to vector<16x128xbf16>
    %c199 = arith.constant 199 : index
    %c0_63 = arith.constant 0 : index
    %54 = vector.load %arg4[%c199, %c0_63] : memref<324x384xbf16, #tpu.memory_space<vmem>>, vector<16x128xbf16>
    tpu.vector_store %arg4[%c199, %c0_63], %53 {strides = array<i32>} : memref<324x384xbf16, #tpu.memory_space<vmem>>, vector<16x128xbf16>,
    %c198 = arith.constant 198 : index
    %c128_64 = arith.constant 128 : index
    %55 = vector.load %arg4[%c198, %c128_64] : memref<324x384xbf16, #tpu.memory_space<vmem>>, vector<16x128xbf16>
    tpu.vector_store %arg4[%c198, %c128_64], %53 {strides = array<i32>} : memref<324x384xbf16, #tpu.memory_space<vmem>>, vector<16x128xbf16>,
    %c197 = arith.constant 197 : index
    %c256_65 = arith.constant 256 : index
    %56 = vector.load %arg4[%c197, %c256_65] : memref<324x384xbf16, #tpu.memory_space<vmem>>, vector<16x128xbf16>
    tpu.vector_store %arg4[%c197, %c256_65], %53 {strides = array<i32>} : memref<324x384xbf16, #tpu.memory_space<vmem>>, vector<16x128xbf16>,
    %c0_66 = arith.constant 0 : index
    %c11 = arith.constant 11 : index
    %c0_67 = arith.constant 0 : index
    %c0_68 = arith.constant 0 : index
    %57 = vector.load %arg1[%c0_66, %c11, %c0_67, %c0_68] : memref<1x16x16x128xbf16, #tpu.memory_space<vmem>>, vector<1x1x16x128xbf16>
    %58 = vector.shape_cast %57 : vector<1x1x16x128xbf16> to vector<16x128xbf16>
    %c217 = arith.constant 217 : index
    %c0_69 = arith.constant 0 : index
    %59 = vector.load %arg4[%c217, %c0_69] : memref<324x384xbf16, #tpu.memory_space<vmem>>, vector<16x128xbf16>
    tpu.vector_store %arg4[%c217, %c0_69], %58 {strides = array<i32>} : memref<324x384xbf16, #tpu.memory_space<vmem>>, vector<16x128xbf16>,
    %c216 = arith.constant 216 : index
    %c128_70 = arith.constant 128 : index
    %60 = vector.load %arg4[%c216, %c128_70] : memref<324x384xbf16, #tpu.memory_space<vmem>>, vector<16x128xbf16>
    tpu.vector_store %arg4[%c216, %c128_70], %58 {strides = array<i32>} : memref<324x384xbf16, #tpu.memory_space<vmem>>, vector<16x128xbf16>,
    %c215 = arith.constant 215 : index
    %c256_71 = arith.constant 256 : index
    %61 = vector.load %arg4[%c215, %c256_71] : memref<324x384xbf16, #tpu.memory_space<vmem>>, vector<16x128xbf16>
    tpu.vector_store %arg4[%c215, %c256_71], %58 {strides = array<i32>} : memref<324x384xbf16, #tpu.memory_space<vmem>>, vector<16x128xbf16>,
    %c0_72 = arith.constant 0 : index
    %c12 = arith.constant 12 : index
    %c0_73 = arith.constant 0 : index
    %c0_74 = arith.constant 0 : index
    %62 = vector.load %arg1[%c0_72, %c12, %c0_73, %c0_74] : memref<1x16x16x128xbf16, #tpu.memory_space<vmem>>, vector<1x1x16x128xbf16>
    %63 = vector.shape_cast %62 : vector<1x1x16x128xbf16> to vector<16x128xbf16>
    %c235 = arith.constant 235 : index
    %c0_75 = arith.constant 0 : index
    %64 = vector.load %arg4[%c235, %c0_75] : memref<324x384xbf16, #tpu.memory_space<vmem>>, vector<16x128xbf16>
    tpu.vector_store %arg4[%c235, %c0_75], %63 {strides = array<i32>} : memref<324x384xbf16, #tpu.memory_space<vmem>>, vector<16x128xbf16>,
    %c234 = arith.constant 234 : index
    %c128_76 = arith.constant 128 : index
    %65 = vector.load %arg4[%c234, %c128_76] : memref<324x384xbf16, #tpu.memory_space<vmem>>, vector<16x128xbf16>
    tpu.vector_store %arg4[%c234, %c128_76], %63 {strides = array<i32>} : memref<324x384xbf16, #tpu.memory_space<vmem>>, vector<16x128xbf16>,
    %c233 = arith.constant 233 : index
    %c256_77 = arith.constant 256 : index
    %66 = vector.load %arg4[%c233, %c256_77] : memref<324x384xbf16, #tpu.memory_space<vmem>>, vector<16x128xbf16>
    tpu.vector_store %arg4[%c233, %c256_77], %63 {strides = array<i32>} : memref<324x384xbf16, #tpu.memory_space<vmem>>, vector<16x128xbf16>,
    %c0_78 = arith.constant 0 : index
    %c13 = arith.constant 13 : index
    %c0_79 = arith.constant 0 : index
    %c0_80 = arith.constant 0 : index
    %67 = vector.load %arg1[%c0_78, %c13, %c0_79, %c0_80] : memref<1x16x16x128xbf16, #tpu.memory_space<vmem>>, vector<1x1x16x128xbf16>
    %68 = vector.shape_cast %67 : vector<1x1x16x128xbf16> to vector<16x128xbf16>
    %c253 = arith.constant 253 : index
    %c0_81 = arith.constant 0 : index
    %69 = vector.load %arg4[%c253, %c0_81] : memref<324x384xbf16, #tpu.memory_space<vmem>>, vector<16x128xbf16>
    tpu.vector_store %arg4[%c253, %c0_81], %68 {strides = array<i32>} : memref<324x384xbf16, #tpu.memory_space<vmem>>, vector<16x128xbf16>,
    %c252 = arith.constant 252 : index
    %c128_82 = arith.constant 128 : index
    %70 = vector.load %arg4[%c252, %c128_82] : memref<324x384xbf16, #tpu.memory_space<vmem>>, vector<16x128xbf16>
    tpu.vector_store %arg4[%c252, %c128_82], %68 {strides = array<i32>} : memref<324x384xbf16, #tpu.memory_space<vmem>>, vector<16x128xbf16>,
    %c251 = arith.constant 251 : index
    %c256_83 = arith.constant 256 : index
    %71 = vector.load %arg4[%c251, %c256_83] : memref<324x384xbf16, #tpu.memory_space<vmem>>, vector<16x128xbf16>
    tpu.vector_store %arg4[%c251, %c256_83], %68 {strides = array<i32>} : memref<324x384xbf16, #tpu.memory_space<vmem>>, vector<16x128xbf16>,
    %c0_84 = arith.constant 0 : index
    %c14 = arith.constant 14 : index
    %c0_85 = arith.constant 0 : index
    %c0_86 = arith.constant 0 : index
    %72 = vector.load %arg1[%c0_84, %c14, %c0_85, %c0_86] : memref<1x16x16x128xbf16, #tpu.memory_space<vmem>>, vector<1x1x16x128xbf16>
    %73 = vector.shape_cast %72 : vector<1x1x16x128xbf16> to vector<16x128xbf16>
    %c271 = arith.constant 271 : index
    %c0_87 = arith.constant 0 : index
    %74 = vector.load %arg4[%c271, %c0_87] : memref<324x384xbf16, #tpu.memory_space<vmem>>, vector<16x128xbf16>
    tpu.vector_store %arg4[%c271, %c0_87], %73 {strides = array<i32>} : memref<324x384xbf16, #tpu.memory_space<vmem>>, vector<16x128xbf16>,
    %c270 = arith.constant 270 : index
    %c128_88 = arith.constant 128 : index
    %75 = vector.load %arg4[%c270, %c128_88] : memref<324x384xbf16, #tpu.memory_space<vmem>>, vector<16x128xbf16>
    tpu.vector_store %arg4[%c270, %c128_88], %73 {strides = array<i32>} : memref<324x384xbf16, #tpu.memory_space<vmem>>, vector<16x128xbf16>,
    %c269 = arith.constant 269 : index
    %c256_89 = arith.constant 256 : index
    %76 = vector.load %arg4[%c269, %c256_89] : memref<324x384xbf16, #tpu.memory_space<vmem>>, vector<16x128xbf16>
    tpu.vector_store %arg4[%c269, %c256_89], %73 {strides = array<i32>} : memref<324x384xbf16, #tpu.memory_space<vmem>>, vector<16x128xbf16>,
    %c0_90 = arith.constant 0 : index
    %c15 = arith.constant 15 : index
    %c0_91 = arith.constant 0 : index
    %c0_92 = arith.constant 0 : index
    %77 = vector.load %arg1[%c0_90, %c15, %c0_91, %c0_92] : memref<1x16x16x128xbf16, #tpu.memory_space<vmem>>, vector<1x1x16x128xbf16>
    %78 = vector.shape_cast %77 : vector<1x1x16x128xbf16> to vector<16x128xbf16>
    %c289 = arith.constant 289 : index
    %c0_93 = arith.constant 0 : index
    %79 = vector.load %arg4[%c289, %c0_93] : memref<324x384xbf16, #tpu.memory_space<vmem>>, vector<16x128xbf16>
    tpu.vector_store %arg4[%c289, %c0_93], %78 {strides = array<i32>} : memref<324x384xbf16, #tpu.memory_space<vmem>>, vector<16x128xbf16>,
    %c288 = arith.constant 288 : index
    %c128_94 = arith.constant 128 : index
    %80 = vector.load %arg4[%c288, %c128_94] : memref<324x384xbf16, #tpu.memory_space<vmem>>, vector<16x128xbf16>
    tpu.vector_store %arg4[%c288, %c128_94], %78 {strides = array<i32>} : memref<324x384xbf16, #tpu.memory_space<vmem>>, vector<16x128xbf16>,
    %c287 = arith.constant 287 : index
    %c256_95 = arith.constant 256 : index
    %81 = vector.load %arg4[%c287, %c256_95] : memref<324x384xbf16, #tpu.memory_space<vmem>>, vector<16x128xbf16>
    tpu.vector_store %arg4[%c287, %c256_95], %78 {strides = array<i32>} : memref<324x384xbf16, #tpu.memory_space<vmem>>, vector<16x128xbf16>,
    %c0_96 = arith.constant 0 : index
    %c0_97 = arith.constant 0 : index
    %82 = vector.load %arg4[%c0_96, %c0_97] : memref<324x384xbf16, #tpu.memory_space<vmem>>, vector<324x384xbf16>
    %c0_98 = arith.constant 0 : index
    %c0_99 = arith.constant 0 : index
    %c0_100 = arith.constant 0 : index
    %83 = vector.load %arg2[%c0_98, %c0_99, %c0_100] : memref<3x384x256xbf16, #tpu.memory_space<vmem>>, vector<1x384x256xbf16>
    %84 = vector.shape_cast %83 : vector<1x384x256xbf16> to vector<384x256xbf16>
    %cst_101 = arith.constant dense<0.000000e+00> : vector<324x256xf32>
    %85 = tpu.matmul %82, %84, %cst_101 {dimension_numbers = #tpu.dot_dimension_numbers<[1], [0], [0], [1], [0, 0, 1, 1], [], []>} : vector<324x384xbf16>, vector<384x256xbf16>, vector<324x256xf32> -> vector<324x256xf32>
    %c0_102 = arith.constant 0 : index
    %c0_103 = arith.constant 0 : index
    %86 = vector.load %arg5[%c0_102, %c0_103] : memref<324x256xf32, #tpu.memory_space<vmem>>, vector<324x256xf32>
    tpu.vector_store %arg5[%c0_102, %c0_103], %85 {strides = array<i32>} : memref<324x256xf32, #tpu.memory_space<vmem>>, vector<324x256xf32>,
    %c0_104 = arith.constant 0 : index
    %c0_105 = arith.constant 0 : index
    %87 = vector.load %arg5[%c0_104, %c0_105] : memref<324x256xf32, #tpu.memory_space<vmem>>, vector<288x256xf32>
    %c0_106 = arith.constant 0 : index
    %c0_107 = arith.constant 0 : index
    %88 = vector.load %arg6[%c0_106, %c0_107] : memref<288x256xf32, #tpu.memory_space<vmem>>, vector<288x256xf32>
    tpu.vector_store %arg6[%c0_106, %c0_107], %87 {strides = array<i32>} : memref<288x256xf32, #tpu.memory_space<vmem>>, vector<288x256xf32>,
    %c0_108 = arith.constant 0 : index
    %c0_109 = arith.constant 0 : index
    %89 = vector.load %arg4[%c0_108, %c0_109] : memref<324x384xbf16, #tpu.memory_space<vmem>>, vector<324x384xbf16>
    %c1_110 = arith.constant 1 : index
    %c0_111 = arith.constant 0 : index
    %c0_112 = arith.constant 0 : index
    %90 = vector.load %arg2[%c1_110, %c0_111, %c0_112] : memref<3x384x256xbf16, #tpu.memory_space<vmem>>, vector<1x384x256xbf16>
    %91 = vector.shape_cast %90 : vector<1x384x256xbf16> to vector<384x256xbf16>
    %cst_113 = arith.constant dense<0.000000e+00> : vector<324x256xf32>
    %92 = tpu.matmul %89, %91, %cst_113 {dimension_numbers = #tpu.dot_dimension_numbers<[1], [0], [0], [1], [0, 0, 1, 1], [], []>} : vector<324x384xbf16>, vector<384x256xbf16>, vector<324x256xf32> -> vector<324x256xf32>
    %c0_114 = arith.constant 0 : index
    %c0_115 = arith.constant 0 : index
    %93 = vector.load %arg5[%c0_114, %c0_115] : memref<324x256xf32, #tpu.memory_space<vmem>>, vector<324x256xf32>
    tpu.vector_store %arg5[%c0_114, %c0_115], %92 {strides = array<i32>} : memref<324x256xf32, #tpu.memory_space<vmem>>, vector<324x256xf32>,
    %c18_116 = arith.constant 18 : index
    %c0_117 = arith.constant 0 : index
    %94 = vector.load %arg5[%c18_116, %c0_117] : memref<324x256xf32, #tpu.memory_space<vmem>>, vector<288x256xf32>
    %c0_118 = arith.constant 0 : index
    %c0_119 = arith.constant 0 : index
    %95 = vector.load %arg6[%c0_118, %c0_119] : memref<288x256xf32, #tpu.memory_space<vmem>>, vector<288x256xf32>
    %96 = arith.addf %95, %94 : vector<288x256xf32>
    %c0_120 = arith.constant 0 : index
    %c0_121 = arith.constant 0 : index
    %97 = vector.load %arg6[%c0_120, %c0_121] : memref<288x256xf32, #tpu.memory_space<vmem>>, vector<288x256xf32>
    tpu.vector_store %arg6[%c0_120, %c0_121], %96 {strides = array<i32>} : memref<288x256xf32, #tpu.memory_space<vmem>>, vector<288x256xf32>,
    %c0_122 = arith.constant 0 : index
    %c0_123 = arith.constant 0 : index
    %98 = vector.load %arg4[%c0_122, %c0_123] : memref<324x384xbf16, #tpu.memory_space<vmem>>, vector<324x384xbf16>
    %c2_124 = arith.constant 2 : index
    %c0_125 = arith.constant 0 : index
    %c0_126 = arith.constant 0 : index
    %99 = vector.load %arg2[%c2_124, %c0_125, %c0_126] : memref<3x384x256xbf16, #tpu.memory_space<vmem>>, vector<1x384x256xbf16>
    %100 = vector.shape_cast %99 : vector<1x384x256xbf16> to vector<384x256xbf16>
    %cst_127 = arith.constant dense<0.000000e+00> : vector<324x256xf32>
    %101 = tpu.matmul %98, %100, %cst_127 {dimension_numbers = #tpu.dot_dimension_numbers<[1], [0], [0], [1], [0, 0, 1, 1], [], []>} : vector<324x384xbf16>, vector<384x256xbf16>, vector<324x256xf32> -> vector<324x256xf32>
    %c0_128 = arith.constant 0 : index
    %c0_129 = arith.constant 0 : index
    %102 = vector.load %arg5[%c0_128, %c0_129] : memref<324x256xf32, #tpu.memory_space<vmem>>, vector<324x256xf32>
    tpu.vector_store %arg5[%c0_128, %c0_129], %101 {strides = array<i32>} : memref<324x256xf32, #tpu.memory_space<vmem>>, vector<324x256xf32>,
    %c36_130 = arith.constant 36 : index
    %c0_131 = arith.constant 0 : index
    %103 = vector.load %arg5[%c36_130, %c0_131] : memref<324x256xf32, #tpu.memory_space<vmem>>, vector<288x256xf32>
    %c0_132 = arith.constant 0 : index
    %c0_133 = arith.constant 0 : index
    %104 = vector.load %arg6[%c0_132, %c0_133] : memref<288x256xf32, #tpu.memory_space<vmem>>, vector<288x256xf32>
    %105 = arith.addf %104, %103 : vector<288x256xf32>
    %c0_134 = arith.constant 0 : index
    %c0_135 = arith.constant 0 : index
    %106 = vector.load %arg6[%c0_134, %c0_135] : memref<288x256xf32, #tpu.memory_space<vmem>>, vector<288x256xf32>
    tpu.vector_store %arg6[%c0_134, %c0_135], %105 {strides = array<i32>} : memref<288x256xf32, #tpu.memory_space<vmem>>, vector<288x256xf32>,
    %c0_136 = arith.constant 0 : index
    %c0_137 = arith.constant 0 : index
    %107 = vector.load %arg6[%c0_136, %c0_137] : memref<288x256xf32, #tpu.memory_space<vmem>>, vector<288x256xf32>
    %108 = vector.shape_cast %107 : vector<288x256xf32> to vector<16x18x256xf32>
    %109 = vector.extract_strided_slice %108 {offsets = [0, 0, 0], sizes = [16, 16, 256], strides = [1, 1, 1]} : vector<16x18x256xf32> to vector<16x16x256xf32>
    %110 = arith.mulf %109, %109 : vector<16x16x256xf32>
    %111 = vector.shape_cast %110 : vector<16x16x256xf32> to vector<1x16x16x256xf32>
    %cst_138 = arith.constant dense<0.000000e+00> : vector<1xf32>
    %112 = vector.multi_reduction <add>, %111, %cst_138 [1, 2, 3] : vector<1x16x16x256xf32> to vector<1xf32>
    %113 = vector.shape_cast %112 : vector<1xf32> to vector<1x1x1x1xf32>
    %114 = vector.extract %113[0, 0, 0, 0] : f32 from vector<1x1x1x1xf32>
    %cst_139 = arith.constant 9.99999974E-6 : f32
    %115 = arith.addf %114, %cst_139 : f32
    %116 = math.rsqrt %115 : f32
    %cst_140 = arith.constant 1.600000e+01 : f32
    %117 = arith.mulf %cst_140, %116 : f32
    %118 = vector.broadcast %117 : f32 to vector<16x16x256xf32>
    %119 = arith.mulf %109, %118 : vector<16x16x256xf32>
    %c0_141 = arith.constant 0 : index
    %c0_142 = arith.constant 0 : index
    %c0_143 = arith.constant 0 : index
    %c0_144 = arith.constant 0 : index
    %120 = vector.load %arg3[%c0_141, %c0_142, %c0_143, %c0_144] : memref<1x16x16x256xf32, #tpu.memory_space<vmem>>, vector<1x16x16x256xf32>
    %121 = vector.shape_cast %120 : vector<1x16x16x256xf32> to vector<16x16x256xf32>
    %122 = vector.shape_cast %119 : vector<16x16x256xf32> to vector<1x16x16x256xf32>
    tpu.vector_store %arg3[%c0_141, %c0_142, %c0_143, %c0_144], %122 {strides = array<i32>} : memref<1x16x16x256xf32, #tpu.memory_space<vmem>>, vector<1x16x16x256xf32>,
    return
  }
  func.func @transform_0(%arg0: i32) -> (i32, i32, i32, i32) {
    %c0_i32 = arith.constant 0 : i32
    %c0_i32_0 = arith.constant 0 : i32
    %c0_i32_1 = arith.constant 0 : i32
    %c0_i32_2 = arith.constant 0 : i32
    return %arg0, %c0_i32, %c0_i32_0, %c0_i32_1 : i32, i32, i32, i32
  }
  func.func @transform_1(%arg0: i32) -> (i32, i32, i32) {
    %c0_i32 = arith.constant 0 : i32
    %c0_i32_0 = arith.constant 0 : i32
    %c0_i32_1 = arith.constant 0 : i32
    %c0_i32_2 = arith.constant 0 : i32
    return %c0_i32, %c0_i32_0, %c0_i32_1 : i32, i32, i32
  }
  func.func @transform_2(%arg0: i32) -> (i32, i32, i32, i32) {
    %c0_i32 = arith.constant 0 : i32
    %c0_i32_0 = arith.constant 0 : i32
    %c0_i32_1 = arith.constant 0 : i32
    %c0_i32_2 = arith.constant 0 : i32
    return %arg0, %c0_i32, %c0_i32_0, %c0_i32_1 : i32, i32, i32, i32
  }
}

</mosaic_0001>

<llo_original>
// kernel: tpu_custom_call.1
$region0: #{tpu_custom_call.1}
  #allocation0 [shape = 'u32[]', space=smem, size = 0x4, offset = 0x4, fixed_abs, tag = 'smem constant byte address 0x4 - core index']
  #allocation1 [shape = 'u32[72,128]{1,0:T(1,128)}', space=vmem, size = 0x9000, scoped, tag = 'internal scratch']
  #allocation2 [shape = 'bf16[324,384]{1,0:T(8,128)(2,1)}', space=vmem, size = 0x3d800, scoped, tag = 'scratch operand']
  #allocation3 [shape = 'f32[324,256]{1,0:T(8,128)}', space=vmem, size = 0x52000, scoped, tag = 'scratch operand']
  #allocation4 [shape = 'f32[288,256]{1,0:T(8,128)}', space=vmem, size = 0x48000, scoped, tag = 'scratch operand']
  %s0 = inlined_call_operand.hbm [shape: bf16[4,16,16,128], index: 0, kind: input, shape index: {}]
  %s1 = inlined_call_operand.hbm [shape: bf16[3,384,256], index: 1, kind: input, shape index: {}]
  %s2 = inlined_call_operand.hbm [shape: f32[4,16,16,256], index: 2, kind: output, shape index: {}]
  %s3 = sld [smem:[#allocation0]]
  $region49: #{tpu_custom_call.1} parent=0
    _
  %s5 = ssub.s32 1, %s3
  %s6 = scalar_select 0, %s5, %s3
  $region1: #{tpu_custom_call.1} parent=0
    #allocation5 [shape = 'u8[131072]{0}', space=vmem, size = 0x20000, scoped, tag = 'input window, operand 0']
    #allocation6 [shape = 's32[2]{0}', space=sflag, size = 0x8, scoped, tag = 'scoped memory for tpu_custom_call.1']
    #allocation7 [shape = 's32[2]{0}', space=sflag, size = 0x8, scoped, tag = 'scoped memory for tpu_custom_call.1']
    #allocation8 [shape = 'u8[589824]{0}', space=vmem, size = 0x90000, scoped, tag = 'input window, operand 1, single buffered']
    #allocation9 [shape = 's32[1]{0}', space=sflag, size = 0x4, scoped, tag = 'scoped memory for tpu_custom_call.1']
    #allocation10 [shape = 'u8[524288]{0}', space=vmem, size = 0x80000, scoped, tag = 'output window, operand 0']
    %7 = vsyncpa [#allocation6], 0
    %s8 = scalar_lea.sflag [#allocation6], 1
    %9 = vsyncpa %s8, 0
    %10 = vsyncpa [#allocation9], 0
    %11 = vsyncpa [#allocation7], 0
    %s12 = scalar_lea.sflag [#allocation7], 1
    %13 = vsyncpa %s12, 0
    loop: start=0, step=1, limit=6
    $region2: #{tpu_custom_call.1} parent=1 // loop_pre_header
      _
    $region3: #{tpu_custom_call.1} parent=1 // loop_header
      %s15 = sphi 0, %s19
      %p16 = scmp.ge.s32.totalorder %s15, 6
      %s25 = sphi 0, %s27
      %s28 = sphi 0, %s25
      %s29 = sphi 0, %s28
      %s45 = sphi 0, %s29
      %s49 = sphi 0, %s49
      %s51 = sphi 0, %s49
      %s52 = sphi 0, %s51
      %s66 = sphi 0, %s52
      %s72 = sphi 0, %s74
      %s75 = sphi 0, %s72
      %s76 = sphi 0, %s75
      %s92 = sphi 0, %s76
    $region4: #{tpu_custom_call.1} parent=1 // loop_header_branch
      %18 = sbr.rel (%p16) target = $region8
    $region5: #{tpu_custom_call.1} parent=1 // loop_body
      %s20 = ssub.s32 %s15, 1
      %s21 = ssub.s32 %s15, 2
      %s22 = sadd.s32 %s15, 1
      %s23 = ssub.s32 %s15, %s22
      %p24 = scmp.eq.s32.totalorder %s23, 0
      %s26 = sadd.s32 %s25, 1
      %s27 = scalar_select %p24, %s25, %s26
      %p30 = pneg %p24
      %p31 = scmp.eq.s32.totalorder %s15, 3
      %p32 = por %p30, %p31
      %p33 = scmp.ne.s32.totalorder %s25, %s28
      %p34 = scmp.eq.s32.totalorder %s15, 0
      %p35 = por %p33, %p34
      %p36 = scmp.ne.s32.totalorder %s25, %s28
      %p37 = scmp.eq.s32.totalorder %s20, 3
      %p38 = por %p36, %p37
      %p39 = scmp.ne.s32.totalorder %s28, %s29
      %p40 = scmp.eq.s32.totalorder %s20, 0
      %p41 = por %p39, %p40
      %p42 = scmp.ne.s32.totalorder %s28, %s29
      %p43 = scmp.eq.s32.totalorder %s21, 3
      %p44 = por %p42, %p43
      %p46 = scmp.ne.s32.totalorder %s29, %s45
      %p47 = scmp.eq.s32.totalorder %s21, 0
      %p48 = por %p46, %p47
      %s50 = sadd.s32 %s49, 1
      %p53 = scmp.eq.s32.totalorder %s15, 3
      %p54 = scmp.ne.s32.totalorder %s49, %s51
      %p55 = scmp.eq.s32.totalorder %s15, 0
      %p56 = por %p54, %p55
      %p57 = scmp.ne.s32.totalorder %s49, %s51
      %p58 = scmp.eq.s32.totalorder %s20, 3
      %p59 = por %p57, %p58
      %p60 = scmp.ne.s32.totalorder %s51, %s52
      %p61 = scmp.eq.s32.totalorder %s20, 0
      %p62 = por %p60, %p61
      %p63 = scmp.ne.s32.totalorder %s51, %s52
      %p64 = scmp.eq.s32.totalorder %s21, 3
      %p65 = por %p63, %p64
      %p67 = scmp.ne.s32.totalorder %s52, %s66
      %p68 = scmp.eq.s32.totalorder %s21, 0
      %p69 = por %p67, %p68
      %s70 = ssub.s32 %s15, %s22
      %p71 = scmp.eq.s32.totalorder %s70, 0
      %s73 = sadd.s32 %s72, 1
      %s74 = scalar_select %p71, %s72, %s73
      %p77 = pneg %p71
      %p78 = scmp.eq.s32.totalorder %s15, 3
      %p79 = por %p77, %p78
      %p80 = scmp.ne.s32.totalorder %s72, %s75
      %p81 = scmp.eq.s32.totalorder %s15, 0
      %p82 = por %p80, %p81
      %p83 = scmp.ne.s32.totalorder %s72, %s75
      %p84 = scmp.eq.s32.totalorder %s20, 3
      %p85 = por %p83, %p84
      %p86 = scmp.ne.s32.totalorder %s75, %s76
      %p87 = scmp.eq.s32.totalorder %s20, 0
      %p88 = por %p86, %p87
      %p89 = scmp.ne.s32.totalorder %s75, %s76
      %p90 = scmp.eq.s32.totalorder %s21, 3
      %p91 = por %p89, %p90
      %p93 = scmp.ne.s32.totalorder %s76, %s92
      %p94 = scmp.eq.s32.totalorder %s21, 0
      %p95 = por %p93, %p94
      %p96 = scmp.le.s32.totalorder 1, %s15
      %p97 = scmp.lt.s32.totalorder %s15, 5
      %p98 = pnand %p96, %p97
      %p99 = pneg %p98
      // Predicated region
      $region9: #{tpu_custom_call.1} parent=5 // pred_check
        _
      $region10: #{tpu_custom_call.1} parent=5 // pred_check_branch
        %101 = sbr.rel (%p98) target = $region12
      $region11: #{tpu_custom_call.1} parent=5 // pred_region
        %s102 = ssub.s32 %s15, 1
        // Predicated region
        $region13: #{tpu_custom_call.1} parent=11 // pred_check
          %p103 = pneg %p62
        $region14: #{tpu_custom_call.1} parent=11 // pred_check_branch
          %105 = sbr.rel (%p103) target = $region16
        $region15: #{tpu_custom_call.1} parent=11 // pred_region
          %107 = vsyncadd [#allocation9], 0
          %s108 = sshll.u32 %s1, 4
          %s109 = int_to_ptr.hbm [resolvable:$true] %s108
          %s110 = sshll.u32 [#allocation8], 4
          %s111 = int_to_ptr.vmem [resolvable:$true] %s110
          %116 = dma.hbm_to_vmem [thread:$0]  %s109, 18432, %s111, [#allocation9], 128, 128, 8
        $region16: #{tpu_custom_call.1} parent=11 // pred_fallthru
          _
      $region12: #{tpu_custom_call.1} parent=5 // pred_fallthru
        _
      %p117 = scmp.lt.s32.totalorder %s15, 4
      // Predicated region
      $region17: #{tpu_custom_call.1} parent=5 // pred_check
        %p118 = pneg %p117
      $region18: #{tpu_custom_call.1} parent=5 // pred_check_branch
        %120 = sbr.rel (%p118) target = $region20
      $region19: #{tpu_custom_call.1} parent=5 // pred_region
        // Predicated region
        $region21: #{tpu_custom_call.1} parent=19 // pred_check
          %p121 = pneg %p35
        $region22: #{tpu_custom_call.1} parent=19 // pred_check_branch
          %123 = sbr.rel (%p121) target = $region24
        $region23: #{tpu_custom_call.1} parent=19 // pred_region
          %s124 = sand.u32 %s25, 1
          %s125 = scalar_lea.sflag [#allocation6], %s124
          %s126 = sand.u32 %s25, 1
          %s127 = smul.addr %s126, 128
          %s128 = scalar_lea.vmem [#allocation5], %s127
          %130 = vsyncadd %s125, 0
          %s131 = smul.addr %s15, 32
          %s132 = smul.addr %s131, 4
          %s133 = scalar_lea.hbm %s0, %s132
          %s134 = sshll.u32 %s133, 4
          %s135 = int_to_ptr.hbm [resolvable:$true] %s134
          %s136 = sshll.u32 %s128, 4
          %s137 = int_to_ptr.vmem [resolvable:$true] %s136
          %142 = dma.hbm_to_vmem [thread:$0]  %s135, 2048, %s137, %s125, 64, 64, 4
        $region24: #{tpu_custom_call.1} parent=19 // pred_fallthru
          _
      $region20: #{tpu_custom_call.1} parent=5 // pred_fallthru
        _
      %p143 = scmp.le.s32.totalorder 1, %s15
      %p144 = scmp.lt.s32.totalorder %s15, 5
      %p145 = pnand %p143, %p144
      %p146 = pneg %p145
      // Predicated region
      $region25: #{tpu_custom_call.1} parent=5 // pred_check
        _
      $region26: #{tpu_custom_call.1} parent=5 // pred_check_branch
        %148 = sbr.rel (%p145) target = $region28
      $region27: #{tpu_custom_call.1} parent=5 // pred_region
        %s149 = ssub.s32 %s15, 1
        %s150 = sand.u32 %s28, 1
        %s151 = scalar_lea.sflag [#allocation6], %s150
        %s152 = sand.u32 %s28, 1
        %s153 = smul.addr %s152, 128
        %s154 = scalar_lea.vmem [#allocation5], %s153
        // Predicated region
        $region29: #{tpu_custom_call.1} parent=27 // pred_check
          %p155 = pneg %p41
        $region30: #{tpu_custom_call.1} parent=27 // pred_check_branch
          %157 = sbr.rel (%p155) target = $region32
        $region31: #{tpu_custom_call.1} parent=27 // pred_region
          %159 = dma.done %s151, 2048
        $region32: #{tpu_custom_call.1} parent=27 // pred_fallthru
          _
        // Predicated region
        $region33: #{tpu_custom_call.1} parent=27 // pred_check
          %p160 = pneg %p62
        $region34: #{tpu_custom_call.1} parent=27 // pred_check_branch
          %162 = sbr.rel (%p160) target = $region36
        $region35: #{tpu_custom_call.1} parent=27 // pred_region
          %164 = dma.done [#allocation9], 18432
        $region36: #{tpu_custom_call.1} parent=27 // pred_fallthru
          _
        %s165 = sand.u32 %s28, 1
        %s166 = scalar_lea.sflag [#allocation6], %s165
        %s167 = sand.u32 %s28, 1
        %s168 = smul.addr %s167, 128
        %s169 = scalar_lea.vmem [#allocation5], %s168
        %p170 = pneg %p41
        %p171 = pneg %p38
        %p172 = pneg %p62
        %p173 = pneg %p59
        %p174 = pneg %p88
        %p175 = pneg %p85
        %s176 = sand.u32 %s75, 1
        %s177 = scalar_lea.sflag [#allocation7], %s176
        %s178 = sand.u32 %s75, 1
        %s179 = smul.addr %s178, 512
        %s180 = scalar_lea.vmem [#allocation10], %s179
        %182 = vst [vmem:[#allocation2] sm:$0xff] 0
        %183 = vst [vmem:[#allocation2 + $0x8] sm:$0xf] 0
        %184 = vst [vmem:[#allocation2 + $0xc] sm:$0xff] 0
        %185 = vst [vmem:[#allocation2 + $0x14] sm:$0xf] 0
        %186 = vst [vmem:[#allocation2 + $0x18] sm:$0xff] 0
        %187 = vst [vmem:[#allocation2 + $0x20] sm:$0xf] 0
        %188 = vst [vmem:[#allocation2 + $0x24] sm:$0xff] 0
        %189 = vst [vmem:[#allocation2 + $0x2c] sm:$0xf] 0
        %190 = vst [vmem:[#allocation2 + $0x30] sm:$0xff] 0
        %191 = vst [vmem:[#allocation2 + $0x38] sm:$0xf] 0
        %192 = vst [vmem:[#allocation2 + $0x3c] sm:$0xff] 0
        %193 = vst [vmem:[#allocation2 + $0x44] sm:$0xf] 0
        %194 = vst [vmem:[#allocation2 + $0x48] sm:$0xff] 0
        %195 = vst [vmem:[#allocation2 + $0x50] sm:$0xf] 0
        %196 = vst [vmem:[#allocation2 + $0x54] sm:$0xff] 0
        %197 = vst [vmem:[#allocation2 + $0x5c] sm:$0xf] 0
        %198 = vst [vmem:[#allocation2 + $0x60] sm:$0xff] 0
        %199 = vst [vmem:[#allocation2 + $0x68] sm:$0xf] 0
        %200 = vst [vmem:[#allocation2 + $0x6c] sm:$0xff] 0
        %201 = vst [vmem:[#allocation2 + $0x74] sm:$0xf] 0
        %202 = vst [vmem:[#allocation2 + $0x78] sm:$0xff] 0
        %203 = vst [vmem:[#allocation2 + $0x80] sm:$0xf] 0
        %204 = vst [vmem:[#allocation2 + $0x84] sm:$0xff] 0
        %205 = vst [vmem:[#allocation2 + $0x8c] sm:$0xf] 0
        %206 = vst [vmem:[#allocation2 + $0x90] sm:$0xff] 0
        %207 = vst [vmem:[#allocation2 + $0x98] sm:$0xf] 0
        %208 = vst [vmem:[#allocation2 + $0x9c] sm:$0xff] 0
        %209 = vst [vmem:[#allocation2 + $0xa4] sm:$0xf] 0
        %210 = vst [vmem:[#allocation2 + $0xa8] sm:$0xff] 0
        %211 = vst [vmem:[#allocation2 + $0xb0] sm:$0xf] 0
        %212 = vst [vmem:[#allocation2 + $0xb4] sm:$0xff] 0
        %213 = vst [vmem:[#allocation2 + $0xbc] sm:$0xf] 0
        %214 = vst [vmem:[#allocation2 + $0xc0] sm:$0xff] 0
        %215 = vst [vmem:[#allocation2 + $0xc8] sm:$0xf] 0
        %216 = vst [vmem:[#allocation2 + $0xcc] sm:$0xff] 0
        %217 = vst [vmem:[#allocation2 + $0xd4] sm:$0xf] 0
        %218 = vst [vmem:[#allocation2 + $0xd8] sm:$0xff] 0
        %219 = vst [vmem:[#allocation2 + $0xe0] sm:$0xf] 0
        %220 = vst [vmem:[#allocation2 + $0xe4] sm:$0xff] 0
        %221 = vst [vmem:[#allocation2 + $0xec] sm:$0xf] 0
        %222 = vst [vmem:[#allocation2 + $0xf0] sm:$0xff] 0
        %223 = vst [vmem:[#allocation2 + $0xf8] sm:$0xf] 0
        %224 = vst [vmem:[#allocation2 + $0xfc] sm:$0xff] 0
        %225 = vst [vmem:[#allocation2 + $0x104] sm:$0xf] 0
        %226 = vst [vmem:[#allocation2 + $0x108] sm:$0xff] 0
        %227 = vst [vmem:[#allocation2 + $0x110] sm:$0xf] 0
        %228 = vst [vmem:[#allocation2 + $0x114] sm:$0xff] 0
        %229 = vst [vmem:[#allocation2 + $0x11c] sm:$0xf] 0
        %230 = vst [vmem:[#allocation2 + $0x120] sm:$0xff] 0
        %231 = vst [vmem:[#allocation2 + $0x128] sm:$0xf] 0
        %232 = vst [vmem:[#allocation2 + $0x12c] sm:$0xff] 0
        %233 = vst [vmem:[#allocation2 + $0x134] sm:$0xf] 0
        %234 = vst [vmem:[#allocation2 + $0x138] sm:$0xff] 0
        %235 = vst [vmem:[#allocation2 + $0x140] sm:$0xf] 0
        %236 = vst [vmem:[#allocation2 + $0x144] sm:$0xff] 0
        %237 = vst [vmem:[#allocation2 + $0x14c] sm:$0xf] 0
        %238 = vst [vmem:[#allocation2 + $0x150] sm:$0xff] 0
        %239 = vst [vmem:[#allocation2 + $0x158] sm:$0xf] 0
        %240 = vst [vmem:[#allocation2 + $0x15c] sm:$0xff] 0
        %241 = vst [vmem:[#allocation2 + $0x164] sm:$0xf] 0
        %242 = vst [vmem:[#allocation2 + $0x168] sm:$0xff] 0
        %243 = vst [vmem:[#allocation2 + $0x170] sm:$0xf] 0
        %244 = vst [vmem:[#allocation2 + $0x174] sm:$0xff] 0
        %245 = vst [vmem:[#allocation2 + $0x17c] sm:$0xf] 0
        %246 = vst [vmem:[#allocation2 + $0x180] sm:$0xff] 0
        %247 = vst [vmem:[#allocation2 + $0x188] sm:$0xf] 0
        %248 = vst [vmem:[#allocation2 + $0x18c] sm:$0xff] 0
        %249 = vst [vmem:[#allocation2 + $0x194] sm:$0xf] 0
        %250 = vst [vmem:[#allocation2 + $0x198] sm:$0xff] 0
        %251 = vst [vmem:[#allocation2 + $0x1a0] sm:$0xf] 0
        %252 = vst [vmem:[#allocation2 + $0x1a4] sm:$0xff] 0
        %253 = vst [vmem:[#allocation2 + $0x1ac] sm:$0xf] 0
        %254 = vst [vmem:[#allocation2 + $0x1b0] sm:$0xff] 0
        %255 = vst [vmem:[#allocation2 + $0x1b8] sm:$0xf] 0
        %256 = vst [vmem:[#allocation2 + $0x1bc] sm:$0xff] 0
        %257 = vst [vmem:[#allocation2 + $0x1c4] sm:$0xf] 0
        %258 = vst [vmem:[#allocation2 + $0x1c8] sm:$0xff] 0
        %259 = vst [vmem:[#allocation2 + $0x1d0] sm:$0xf] 0
        %260 = vst [vmem:[#allocation2 + $0x1d4] sm:$0xff] 0
        %261 = vst [vmem:[#allocation2 + $0x1dc] sm:$0xf] 0
        %262 = vst [vmem:[#allocation2 + $0x1e0] sm:$0x33] 0
        %263 = vst [vmem:[#allocation2 + $0x1e8] sm:$0x3] 0
        %v264 = vld [vmem:[%s154] sm:$0xf]
        %v265 = vld [vmem:[%s154 + $0x4] sm:$0xf]
        %vm266 = vsmask.f32 1280
        %vm267 = vsmask.f32 5392
        %vm268 = vmor %vm266, %vm267
        %v270 = vshrl.u32 %v264, 16
        %v272 = vrot.slane %v270, 6
        %v273 = vshll.u32 %v264, 16
        %v275 = vrot.slane %v273, 7
        %v276 = vor.u32 %v272, %v275
        %v277 = vrot.slane %v276, 4
        %v279 = vshrl.u32 %v265, 16
        %v281 = vrot.slane %v279, 6
        %v282 = vshll.u32 %v265, 16
        %v284 = vrot.slane %v282, 7
        %v285 = vor.u32 %v281, %v284
        %v286 = vsel %vm268, %v277, %v285
        %v287 = vrot.slane %v285, 4
        %vm291 = vcmask 1043457
        %vm292 = vsmask.f32 7942
        %vm293 = vmand %vm291, %vm292
        %v294 = vld [vmem:[#allocation2 + $0x18] sm:$0xe]
        %v295 = vsel %vm293, %v276, %v294
        %296 = vst [vmem:[#allocation2 + $0x18] sm:$0xe] %v295
        %297 = vst [vmem:[#allocation2 + $0x24] sm:$0xf] %v286
        %vm298 = vcmask 1041408
        %vm299 = vmand %vm298, %vm266
        %v300 = vld [vmem:[#allocation2 + $0x30] sm:$0x3]
        %v301 = vsel %vm299, %v287, %v300
        %302 = vst [vmem:[#allocation2 + $0x30] sm:$0x3] %v301
        %vm305 = vcmask 1040384
        %vm306 = vcmask 1044484
        %vm307 = vmor %vm305, %vm306
        %v308 = vrot.slane %v264, 7
        %v309 = vrot.slane %v308, 4
        %v310 = vrot.slane %v265, 7
        %v311 = vsel %vm307, %v309, %v310
        %v312 = vrot.slane %v310, 4
        %316 = vst [vmem:[#allocation2 + $0x1c] sm:$0xe] %v308
        %317 = vst [vmem:[#allocation2 + $0x28] sm:$0xf] %v311
        %318 = vst [vmem:[#allocation2 + $0x34] sm:$0x1] %v312
        %vm319 = vsmask.f32 256
        %vm320 = vsmask.f32 4368
        %vm321 = vmor %vm319, %vm320
        %v322 = vrot.slane %v270, 7
        %v323 = vor.u32 %v322, %v273
        %v324 = vrot.slane %v322, 4
        %v325 = vrot.slane %v279, 7
        %v326 = vor.u32 %v325, %v282
        %v327 = vsel %vm321, %v324, %v326
        %v328 = vrot.slane %v325, 4
        %vm332 = vcmask 1043456
        %vm333 = vsmask.f32 7938
        %vm334 = vmand %vm332, %vm333
        %v335 = vld [vmem:[#allocation2 + $0x20] sm:$0xf]
        %v336 = vsel %vm334, %v323, %v335
        %337 = vst [vmem:[#allocation2 + $0x20] sm:$0xf] %v336
        %338 = vst [vmem:[#allocation2 + $0x2c] sm:$0xf] %v327
        %vm339 = vmand %vm305, %vm319
        %v340 = vld [vmem:[#allocation2 + $0x38] sm:$0x1]
        %v341 = vsel %vm339, %v328, %v340
        %342 = vst [vmem:[#allocation2 + $0x38] sm:$0x1] %v341
        %s343 = scalar_lea.vmem %s154, 8 [#allocation5]
        %v344 = vld [vmem:[%s343] sm:$0xf]
        %v345 = vld [vmem:[%s343 + $0x4] sm:$0xf]
        %vm346 = vsmask.f32 2304
        %vm347 = vsmask.f32 6416
        %vm348 = vmor %vm346, %vm347
        %v350 = vshrl.u32 %v344, 16
        %v352 = vrot.slane %v350, 5
        %v353 = vshll.u32 %v344, 16
        %v355 = vrot.slane %v353, 6
        %v356 = vor.u32 %v352, %v355
        %v357 = vrot.slane %v356, 4
        %v359 = vshrl.u32 %v345, 16
        %v361 = vrot.slane %v359, 5
        %v362 = vshll.u32 %v345, 16
        %v364 = vrot.slane %v362, 6
        %v365 = vor.u32 %v361, %v364
        %v366 = vsel %vm348, %v357, %v365
        %v367 = vrot.slane %v365, 4
        %vm371 = vcmask 1043458
        %vm372 = vsmask.f32 7946
        %vm373 = vmand %vm371, %vm372
        %v374 = vld [vmem:[#allocation2 + $0x30] sm:$0xc]
        %v375 = vsel %vm373, %v356, %v374
        %376 = vst [vmem:[#allocation2 + $0x30] sm:$0xc] %v375
        %377 = vst [vmem:[#allocation2 + $0x3c] sm:$0xf] %v366
        %vm378 = vcmask 1042432
        %vm379 = vmand %vm378, %vm346
        %v380 = vld [vmem:[#allocation2 + $0x48] sm:$0x7]
        %v381 = vsel %vm379, %v367, %v380
        %382 = vst [vmem:[#allocation2 + $0x48] sm:$0x7] %v381
        %vm385 = vcmask 1045508
        %vm386 = vmor %vm298, %vm385
        %v387 = vrot.slane %v344, 6
        %v388 = vrot.slane %v387, 4
        %v389 = vrot.slane %v345, 6
        %v390 = vsel %vm386, %v388, %v389
        %v391 = vrot.slane %v389, 4
        %395 = vst [vmem:[#allocation2 + $0x34] sm:$0xc] %v387
        %396 = vst [vmem:[#allocation2 + $0x40] sm:$0xf] %v390
        %397 = vst [vmem:[#allocation2 + $0x4c] sm:$0x3] %v391
        %v398 = vrot.slane %v350, 6
        %v399 = vrot.slane %v353, 7
        %v400 = vor.u32 %v398, %v399
        %v401 = vrot.slane %v400, 4
        %v402 = vrot.slane %v359, 6
        %v403 = vrot.slane %v362, 7
        %v404 = vor.u32 %v402, %v403
        %v405 = vsel %vm268, %v401, %v404
        %v406 = vrot.slane %v404, 4
        %v410 = vld [vmem:[#allocation2 + $0x38] sm:$0xe]
        %v411 = vsel %vm293, %v400, %v410
        %412 = vst [vmem:[#allocation2 + $0x38] sm:$0xe] %v411
        %413 = vst [vmem:[#allocation2 + $0x44] sm:$0xf] %v405
        %v414 = vld [vmem:[#allocation2 + $0x50] sm:$0x3]
        %v415 = vsel %vm299, %v406, %v414
        %416 = vst [vmem:[#allocation2 + $0x50] sm:$0x3] %v415
        %s417 = scalar_lea.vmem %s154, 16 [#allocation5]
        %v418 = vld [vmem:[%s417] sm:$0xf]
        %v419 = vld [vmem:[%s417 + $0x4] sm:$0xf]
        %vm420 = vsmask.f32 3328
        %vm421 = vsmask.f32 7440
        %vm422 = vmor %vm420, %vm421
        %v424 = vshll.u32 %v418, 16
        %v426 = vrot.slane %v424, 5
        %v427 = vshrl.u32 %v418, 16
        %v429 = vrot.slane %v427, 4
        %v430 = vor.u32 %v429, %v426
        %v431 = vrot.slane %v430, 4
        %v433 = vshll.u32 %v419, 16
        %v435 = vrot.slane %v433, 5
        %v436 = vsel %vm422, %v431, %v435
        %v437 = vshrl.u32 %v419, 16
        %v439 = vrot.slane %v437, 4
        %v440 = vor.u32 %v439, %v435
        %v441 = vrot.slane %v440, 4
        %vm445 = vcmask 1043459
        %vm446 = vsmask.f32 7950
        %vm447 = vmand %vm445, %vm446
        %v448 = vld [vmem:[#allocation2 + $0x48] sm:$0x8]
        %v449 = vsel %vm447, %v426, %v448
        %450 = vst [vmem:[#allocation2 + $0x48] sm:$0x8] %v449
        %451 = vst [vmem:[#allocation2 + $0x54] sm:$0xf] %v436
        %vm452 = vmand %vm332, %vm420
        %v453 = vld [vmem:[#allocation2 + $0x60] sm:$0xf]
        %v454 = vsel %vm452, %v441, %v453
        %455 = vst [vmem:[#allocation2 + $0x60] sm:$0xf] %v454
        %vm458 = vcmask 1046532
        %vm459 = vmor %vm378, %vm458
        %v460 = vrot.slane %v418, 5
        %v461 = vrot.slane %v460, 4
        %v462 = vrot.slane %v419, 5
        %v463 = vsel %vm459, %v461, %v462
        %v464 = vrot.slane %v462, 4
        %468 = vst [vmem:[#allocation2 + $0x4c] sm:$0x8] %v460
        %469 = vst [vmem:[#allocation2 + $0x58] sm:$0xf] %v463
        %470 = vst [vmem:[#allocation2 + $0x64] sm:$0x7] %v464
        %v471 = vrot.slane %v427, 5
        %v472 = vrot.slane %v424, 6
        %v473 = vor.u32 %v471, %v472
        %v474 = vrot.slane %v473, 4
        %v475 = vrot.slane %v437, 5
        %v476 = vrot.slane %v433, 6
        %v477 = vor.u32 %v475, %v476
        %v478 = vsel %vm348, %v474, %v477
        %v479 = vrot.slane %v477, 4
        %v483 = vld [vmem:[#allocation2 + $0x50] sm:$0xc]
        %v484 = vsel %vm373, %v473, %v483
        %485 = vst [vmem:[#allocation2 + $0x50] sm:$0xc] %v484
        %486 = vst [vmem:[#allocation2 + $0x5c] sm:$0xf] %v478
        %v487 = vld [vmem:[#allocation2 + $0x68] sm:$0x7]
        %v488 = vsel %vm379, %v479, %v487
        %489 = vst [vmem:[#allocation2 + $0x68] sm:$0x7] %v488
        %s490 = scalar_lea.vmem %s154, 24 [#allocation5]
        %v491 = vld [vmem:[%s490] sm:$0xf]
        %v492 = vld [vmem:[%s490 + $0x4] sm:$0xf]
        %v494 = vshrl.u32 %v491, 16
        %v496 = vrot.slane %v494, 7
        %v497 = vshll.u32 %v491, 16
        %v499 = vor.u32 %v496, %v497
        %v500 = vrot.slane %v496, 4
        %v502 = vshrl.u32 %v492, 16
        %v504 = vrot.slane %v502, 7
        %v505 = vshll.u32 %v492, 16
        %v507 = vor.u32 %v504, %v505
        %v508 = vsel %vm321, %v500, %v507
        %v509 = vrot.slane %v504, 4
        %v513 = vld [vmem:[#allocation2 + $0x6c] sm:$0xf]
        %v514 = vsel %vm334, %v499, %v513
        %515 = vst [vmem:[#allocation2 + $0x6c] sm:$0xf] %v514
        %516 = vst [vmem:[#allocation2 + $0x78] sm:$0xf] %v508
        %v517 = vld [vmem:[#allocation2 + $0x84] sm:$0x1]
        %v518 = vsel %vm339, %v509, %v517
        %519 = vst [vmem:[#allocation2 + $0x84] sm:$0x1] %v518
        %520 = vst [vmem:[#allocation2 + $0x70] sm:$0xf] %v491
        %521 = vst [vmem:[#allocation2 + $0x7c] sm:$0xf] %v492
        %v522 = vrot.slane %v497, 5
        %v523 = vrot.slane %v494, 4
        %v524 = vor.u32 %v523, %v522
        %v525 = vrot.slane %v524, 4
        %v526 = vrot.slane %v505, 5
        %v527 = vsel %vm422, %v525, %v526
        %v528 = vrot.slane %v502, 4
        %v529 = vor.u32 %v528, %v526
        %v530 = vrot.slane %v529, 4
        %v534 = vld [vmem:[#allocation2 + $0x68] sm:$0x8]
        %v535 = vsel %vm447, %v522, %v534
        %536 = vst [vmem:[#allocation2 + $0x68] sm:$0x8] %v535
        %537 = vst [vmem:[#allocation2 + $0x74] sm:$0xf] %v527
        %v538 = vld [vmem:[#allocation2 + $0x80] sm:$0xf]
        %v539 = vsel %vm452, %v530, %v538
        %540 = vst [vmem:[#allocation2 + $0x80] sm:$0xf] %v539
        %s541 = scalar_lea.vmem %s154, 32 [#allocation5]
        %v542 = vld [vmem:[%s541] sm:$0xf]
        %v543 = vld [vmem:[%s541 + $0x4] sm:$0xf]
        %v545 = vshrl.u32 %v542, 16
        %v547 = vrot.slane %v545, 6
        %v548 = vshll.u32 %v542, 16
        %v550 = vrot.slane %v548, 7
        %v551 = vor.u32 %v547, %v550
        %v552 = vrot.slane %v551, 4
        %v554 = vshrl.u32 %v543, 16
        %v556 = vrot.slane %v554, 6
        %v557 = vshll.u32 %v543, 16
        %v559 = vrot.slane %v557, 7
        %v560 = vor.u32 %v556, %v559
        %v561 = vsel %vm268, %v552, %v560
        %v562 = vrot.slane %v560, 4
        %v566 = vld [vmem:[#allocation2 + $0x84] sm:$0xe]
        %v567 = vsel %vm293, %v551, %v566
        %568 = vst [vmem:[#allocation2 + $0x84] sm:$0xe] %v567
        %569 = vst [vmem:[#allocation2 + $0x90] sm:$0xf] %v561
        %v570 = vld [vmem:[#allocation2 + $0x9c] sm:$0x3]
        %v571 = vsel %vm299, %v562, %v570
        %572 = vst [vmem:[#allocation2 + $0x9c] sm:$0x3] %v571
        %v575 = vrot.slane %v542, 7
        %v576 = vrot.slane %v575, 4
        %v577 = vrot.slane %v543, 7
        %v578 = vsel %vm307, %v576, %v577
        %v579 = vrot.slane %v577, 4
        %583 = vst [vmem:[#allocation2 + $0x88] sm:$0xe] %v575
        %584 = vst [vmem:[#allocation2 + $0x94] sm:$0xf] %v578
        %585 = vst [vmem:[#allocation2 + $0xa0] sm:$0x1] %v579
        %v586 = vrot.slane %v545, 7
        %v587 = vor.u32 %v586, %v548
        %v588 = vrot.slane %v586, 4
        %v589 = vrot.slane %v554, 7
        %v590 = vor.u32 %v589, %v557
        %v591 = vsel %vm321, %v588, %v590
        %v592 = vrot.slane %v589, 4
        %v596 = vld [vmem:[#allocation2 + $0x8c] sm:$0xf]
        %v597 = vsel %vm334, %v587, %v596
        %598 = vst [vmem:[#allocation2 + $0x8c] sm:$0xf] %v597
        %599 = vst [vmem:[#allocation2 + $0x98] sm:$0xf] %v591
        %v600 = vld [vmem:[#allocation2 + $0xa4] sm:$0x1]
        %v601 = vsel %vm339, %v592, %v600
        %602 = vst [vmem:[#allocation2 + $0xa4] sm:$0x1] %v601
        %s603 = scalar_lea.vmem %s154, 40 [#allocation5]
        %v604 = vld [vmem:[%s603] sm:$0xf]
        %v605 = vld [vmem:[%s603 + $0x4] sm:$0xf]
        %v607 = vshrl.u32 %v604, 16
        %v609 = vrot.slane %v607, 5
        %v610 = vshll.u32 %v604, 16
        %v612 = vrot.slane %v610, 6
        %v613 = vor.u32 %v609, %v612
        %v614 = vrot.slane %v613, 4
        %v616 = vshrl.u32 %v605, 16
        %v618 = vrot.slane %v616, 5
        %v619 = vshll.u32 %v605, 16
        %v621 = vrot.slane %v619, 6
        %v622 = vor.u32 %v618, %v621
        %v623 = vsel %vm348, %v614, %v622
        %v624 = vrot.slane %v622, 4
        %v628 = vld [vmem:[#allocation2 + $0x9c] sm:$0xc]
        %v629 = vsel %vm373, %v613, %v628
        %630 = vst [vmem:[#allocation2 + $0x9c] sm:$0xc] %v629
        %631 = vst [vmem:[#allocation2 + $0xa8] sm:$0xf] %v623
        %v632 = vld [vmem:[#allocation2 + $0xb4] sm:$0x7]
        %v633 = vsel %vm379, %v624, %v632
        %634 = vst [vmem:[#allocation2 + $0xb4] sm:$0x7] %v633
        %v637 = vrot.slane %v604, 6
        %v638 = vrot.slane %v637, 4
        %v639 = vrot.slane %v605, 6
        %v640 = vsel %vm386, %v638, %v639
        %v641 = vrot.slane %v639, 4
        %645 = vst [vmem:[#allocation2 + $0xa0] sm:$0xc] %v637
        %646 = vst [vmem:[#allocation2 + $0xac] sm:$0xf] %v640
        %647 = vst [vmem:[#allocation2 + $0xb8] sm:$0x3] %v641
        %v648 = vrot.slane %v607, 6
        %v649 = vrot.slane %v610, 7
        %v650 = vor.u32 %v648, %v649
        %v651 = vrot.slane %v650, 4
        %v652 = vrot.slane %v616, 6
        %v653 = vrot.slane %v619, 7
        %v654 = vor.u32 %v652, %v653
        %v655 = vsel %vm268, %v651, %v654
        %v656 = vrot.slane %v654, 4
        %v660 = vld [vmem:[#allocation2 + $0xa4] sm:$0xe]
        %v661 = vsel %vm293, %v650, %v660
        %662 = vst [vmem:[#allocation2 + $0xa4] sm:$0xe] %v661
        %663 = vst [vmem:[#allocation2 + $0xb0] sm:$0xf] %v655
        %v664 = vld [vmem:[#allocation2 + $0xbc] sm:$0x3]
        %v665 = vsel %vm299, %v656, %v664
        %666 = vst [vmem:[#allocation2 + $0xbc] sm:$0x3] %v665
        %s667 = scalar_lea.vmem %s154, 48 [#allocation5]
        %v668 = vld [vmem:[%s667] sm:$0xf]
        %v669 = vld [vmem:[%s667 + $0x4] sm:$0xf]
        %v671 = vshll.u32 %v668, 16
        %v673 = vrot.slane %v671, 5
        %v674 = vshrl.u32 %v668, 16
        %v676 = vrot.slane %v674, 4
        %v677 = vor.u32 %v676, %v673
        %v678 = vrot.slane %v677, 4
        %v680 = vshll.u32 %v669, 16
        %v682 = vrot.slane %v680, 5
        %v683 = vsel %vm422, %v678, %v682
        %v684 = vshrl.u32 %v669, 16
        %v686 = vrot.slane %v684, 4
        %v687 = vor.u32 %v686, %v682
        %v688 = vrot.slane %v687, 4
        %v692 = vld [vmem:[#allocation2 + $0xb4] sm:$0x8]
        %v693 = vsel %vm447, %v673, %v692
        %694 = vst [vmem:[#allocation2 + $0xb4] sm:$0x8] %v693
        %695 = vst [vmem:[#allocation2 + $0xc0] sm:$0xf] %v683
        %v696 = vld [vmem:[#allocation2 + $0xcc] sm:$0xf]
        %v697 = vsel %vm452, %v688, %v696
        %698 = vst [vmem:[#allocation2 + $0xcc] sm:$0xf] %v697
        %v701 = vrot.slane %v668, 5
        %v702 = vrot.slane %v701, 4
        %v703 = vrot.slane %v669, 5
        %v704 = vsel %vm459, %v702, %v703
        %v705 = vrot.slane %v703, 4
        %709 = vst [vmem:[#allocation2 + $0xb8] sm:$0x8] %v701
        %710 = vst [vmem:[#allocation2 + $0xc4] sm:$0xf] %v704
        %711 = vst [vmem:[#allocation2 + $0xd0] sm:$0x7] %v705
        %v712 = vrot.slane %v674, 5
        %v713 = vrot.slane %v671, 6
        %v714 = vor.u32 %v712, %v713
        %v715 = vrot.slane %v714, 4
        %v716 = vrot.slane %v684, 5
        %v717 = vrot.slane %v680, 6
        %v718 = vor.u32 %v716, %v717
        %v719 = vsel %vm348, %v715, %v718
        %v720 = vrot.slane %v718, 4
        %v724 = vld [vmem:[#allocation2 + $0xbc] sm:$0xc]
        %v725 = vsel %vm373, %v714, %v724
        %726 = vst [vmem:[#allocation2 + $0xbc] sm:$0xc] %v725
        %727 = vst [vmem:[#allocation2 + $0xc8] sm:$0xf] %v719
        %v728 = vld [vmem:[#allocation2 + $0xd4] sm:$0x7]
        %v729 = vsel %vm379, %v720, %v728
        %730 = vst [vmem:[#allocation2 + $0xd4] sm:$0x7] %v729
        %s731 = scalar_lea.vmem %s154, 56 [#allocation5]
        %v732 = vld [vmem:[%s731] sm:$0xf]
        %v733 = vld [vmem:[%s731 + $0x4] sm:$0xf]
        %v735 = vshrl.u32 %v732, 16
        %v737 = vrot.slane %v735, 7
        %v738 = vshll.u32 %v732, 16
        %v740 = vor.u32 %v737, %v738
        %v741 = vrot.slane %v737, 4
        %v743 = vshrl.u32 %v733, 16
        %v745 = vrot.slane %v743, 7
        %v746 = vshll.u32 %v733, 16
        %v748 = vor.u32 %v745, %v746
        %v749 = vsel %vm321, %v741, %v748
        %v750 = vrot.slane %v745, 4
        %v754 = vld [vmem:[#allocation2 + $0xd8] sm:$0xf]
        %v755 = vsel %vm334, %v740, %v754
        %756 = vst [vmem:[#allocation2 + $0xd8] sm:$0xf] %v755
        %757 = vst [vmem:[#allocation2 + $0xe4] sm:$0xf] %v749
        %v758 = vld [vmem:[#allocation2 + $0xf0] sm:$0x1]
        %v759 = vsel %vm339, %v750, %v758
        %760 = vst [vmem:[#allocation2 + $0xf0] sm:$0x1] %v759
        %761 = vst [vmem:[#allocation2 + $0xdc] sm:$0xf] %v732
        %762 = vst [vmem:[#allocation2 + $0xe8] sm:$0xf] %v733
        %v763 = vrot.slane %v738, 5
        %v764 = vrot.slane %v735, 4
        %v765 = vor.u32 %v764, %v763
        %v766 = vrot.slane %v765, 4
        %v767 = vrot.slane %v746, 5
        %v768 = vsel %vm422, %v766, %v767
        %v769 = vrot.slane %v743, 4
        %v770 = vor.u32 %v769, %v767
        %v771 = vrot.slane %v770, 4
        %v775 = vld [vmem:[#allocation2 + $0xd4] sm:$0x8]
        %v776 = vsel %vm447, %v763, %v775
        %777 = vst [vmem:[#allocation2 + $0xd4] sm:$0x8] %v776
        %778 = vst [vmem:[#allocation2 + $0xe0] sm:$0xf] %v768
        %v779 = vld [vmem:[#allocation2 + $0xec] sm:$0xf]
        %v780 = vsel %vm452, %v771, %v779
        %781 = vst [vmem:[#allocation2 + $0xec] sm:$0xf] %v780
        %s782 = scalar_lea.vmem %s154, 64 [#allocation5]
        %v783 = vld [vmem:[%s782] sm:$0xf]
        %v784 = vld [vmem:[%s782 + $0x4] sm:$0xf]
        %v786 = vshrl.u32 %v783, 16
        %v788 = vrot.slane %v786, 6
        %v789 = vshll.u32 %v783, 16
        %v791 = vrot.slane %v789, 7
        %v792 = vor.u32 %v788, %v791
        %v793 = vrot.slane %v792, 4
        %v795 = vshrl.u32 %v784, 16
        %v797 = vrot.slane %v795, 6
        %v798 = vshll.u32 %v784, 16
        %v800 = vrot.slane %v798, 7
        %v801 = vor.u32 %v797, %v800
        %v802 = vsel %vm268, %v793, %v801
        %v803 = vrot.slane %v801, 4
        %v807 = vld [vmem:[#allocation2 + $0xf0] sm:$0xe]
        %v808 = vsel %vm293, %v792, %v807
        %809 = vst [vmem:[#allocation2 + $0xf0] sm:$0xe] %v808
        %810 = vst [vmem:[#allocation2 + $0xfc] sm:$0xf] %v802
        %v811 = vld [vmem:[#allocation2 + $0x108] sm:$0x3]
        %v812 = vsel %vm299, %v803, %v811
        %813 = vst [vmem:[#allocation2 + $0x108] sm:$0x3] %v812
        %v816 = vrot.slane %v783, 7
        %v817 = vrot.slane %v816, 4
        %v818 = vrot.slane %v784, 7
        %v819 = vsel %vm307, %v817, %v818
        %v820 = vrot.slane %v818, 4
        %824 = vst [vmem:[#allocation2 + $0xf4] sm:$0xe] %v816
        %825 = vst [vmem:[#allocation2 + $0x100] sm:$0xf] %v819
        %826 = vst [vmem:[#allocation2 + $0x10c] sm:$0x1] %v820
        %v827 = vrot.slane %v786, 7
        %v828 = vor.u32 %v827, %v789
        %v829 = vrot.slane %v827, 4
        %v830 = vrot.slane %v795, 7
        %v831 = vor.u32 %v830, %v798
        %v832 = vsel %vm321, %v829, %v831
        %v833 = vrot.slane %v830, 4
        %v837 = vld [vmem:[#allocation2 + $0xf8] sm:$0xf]
        %v838 = vsel %vm334, %v828, %v837
        %839 = vst [vmem:[#allocation2 + $0xf8] sm:$0xf] %v838
        %840 = vst [vmem:[#allocation2 + $0x104] sm:$0xf] %v832
        %v841 = vld [vmem:[#allocation2 + $0x110] sm:$0x1]
        %v842 = vsel %vm339, %v833, %v841
        %843 = vst [vmem:[#allocation2 + $0x110] sm:$0x1] %v842
        %s844 = scalar_lea.vmem %s154, 72 [#allocation5]
        %v845 = vld [vmem:[%s844] sm:$0xf]
        %v846 = vld [vmem:[%s844 + $0x4] sm:$0xf]
        %v848 = vshrl.u32 %v845, 16
        %v850 = vrot.slane %v848, 5
        %v851 = vshll.u32 %v845, 16
        %v853 = vrot.slane %v851, 6
        %v854 = vor.u32 %v850, %v853
        %v855 = vrot.slane %v854, 4
        %v857 = vshrl.u32 %v846, 16
        %v859 = vrot.slane %v857, 5
        %v860 = vshll.u32 %v846, 16
        %v862 = vrot.slane %v860, 6
        %v863 = vor.u32 %v859, %v862
        %v864 = vsel %vm348, %v855, %v863
        %v865 = vrot.slane %v863, 4
        %v869 = vld [vmem:[#allocation2 + $0x108] sm:$0xc]
        %v870 = vsel %vm373, %v854, %v869
        %871 = vst [vmem:[#allocation2 + $0x108] sm:$0xc] %v870
        %872 = vst [vmem:[#allocation2 + $0x114] sm:$0xf] %v864
        %v873 = vld [vmem:[#allocation2 + $0x120] sm:$0x7]
        %v874 = vsel %vm379, %v865, %v873
        %875 = vst [vmem:[#allocation2 + $0x120] sm:$0x7] %v874
        %v878 = vrot.slane %v845, 6
        %v879 = vrot.slane %v878, 4
        %v880 = vrot.slane %v846, 6
        %v881 = vsel %vm386, %v879, %v880
        %v882 = vrot.slane %v880, 4
        %886 = vst [vmem:[#allocation2 + $0x10c] sm:$0xc] %v878
        %887 = vst [vmem:[#allocation2 + $0x118] sm:$0xf] %v881
        %888 = vst [vmem:[#allocation2 + $0x124] sm:$0x3] %v882
        %v889 = vrot.slane %v848, 6
        %v890 = vrot.slane %v851, 7
        %v891 = vor.u32 %v889, %v890
        %v892 = vrot.slane %v891, 4
        %v893 = vrot.slane %v857, 6
        %v894 = vrot.slane %v860, 7
        %v895 = vor.u32 %v893, %v894
        %v896 = vsel %vm268, %v892, %v895
        %v897 = vrot.slane %v895, 4
        %v901 = vld [vmem:[#allocation2 + $0x110] sm:$0xe]
        %v902 = vsel %vm293, %v891, %v901
        %903 = vst [vmem:[#allocation2 + $0x110] sm:$0xe] %v902
        %904 = vst [vmem:[#allocation2 + $0x11c] sm:$0xf] %v896
        %v905 = vld [vmem:[#allocation2 + $0x128] sm:$0x3]
        %v906 = vsel %vm299, %v897, %v905
        %907 = vst [vmem:[#allocation2 + $0x128] sm:$0x3] %v906
        %s908 = scalar_lea.vmem %s154, 80 [#allocation5]
        %v909 = vld [vmem:[%s908] sm:$0xf]
        %v910 = vld [vmem:[%s908 + $0x4] sm:$0xf]
        %v912 = vshll.u32 %v909, 16
        %v914 = vrot.slane %v912, 5
        %v915 = vshrl.u32 %v909, 16
        %v917 = vrot.slane %v915, 4
        %v918 = vor.u32 %v917, %v914
        %v919 = vrot.slane %v918, 4
        %v921 = vshll.u32 %v910, 16
        %v923 = vrot.slane %v921, 5
        %v924 = vsel %vm422, %v919, %v923
        %v925 = vshrl.u32 %v910, 16
        %v927 = vrot.slane %v925, 4
        %v928 = vor.u32 %v927, %v923
        %v929 = vrot.slane %v928, 4
        %v933 = vld [vmem:[#allocation2 + $0x120] sm:$0x8]
        %v934 = vsel %vm447, %v914, %v933
        %935 = vst [vmem:[#allocation2 + $0x120] sm:$0x8] %v934
        %936 = vst [vmem:[#allocation2 + $0x12c] sm:$0xf] %v924
        %v937 = vld [vmem:[#allocation2 + $0x138] sm:$0xf]
        %v938 = vsel %vm452, %v929, %v937
        %939 = vst [vmem:[#allocation2 + $0x138] sm:$0xf] %v938
        %v942 = vrot.slane %v909, 5
        %v943 = vrot.slane %v942, 4
        %v944 = vrot.slane %v910, 5
        %v945 = vsel %vm459, %v943, %v944
        %v946 = vrot.slane %v944, 4
        %950 = vst [vmem:[#allocation2 + $0x124] sm:$0x8] %v942
        %951 = vst [vmem:[#allocation2 + $0x130] sm:$0xf] %v945
        %952 = vst [vmem:[#allocation2 + $0x13c] sm:$0x7] %v946
        %v953 = vrot.slane %v915, 5
        %v954 = vrot.slane %v912, 6
        %v955 = vor.u32 %v953, %v954
        %v956 = vrot.slane %v955, 4
        %v957 = vrot.slane %v925, 5
        %v958 = vrot.slane %v921, 6
        %v959 = vor.u32 %v957, %v958
        %v960 = vsel %vm348, %v956, %v959
        %v961 = vrot.slane %v959, 4
        %v965 = vld [vmem:[#allocation2 + $0x128] sm:$0xc]
        %v966 = vsel %vm373, %v955, %v965
        %967 = vst [vmem:[#allocation2 + $0x128] sm:$0xc] %v966
        %968 = vst [vmem:[#allocation2 + $0x134] sm:$0xf] %v960
        %v969 = vld [vmem:[#allocation2 + $0x140] sm:$0x7]
        %v970 = vsel %vm379, %v961, %v969
        %971 = vst [vmem:[#allocation2 + $0x140] sm:$0x7] %v970
        %s972 = scalar_lea.vmem %s154, 88 [#allocation5]
        %v973 = vld [vmem:[%s972] sm:$0xf]
        %v974 = vld [vmem:[%s972 + $0x4] sm:$0xf]
        %v976 = vshrl.u32 %v973, 16
        %v978 = vrot.slane %v976, 7
        %v979 = vshll.u32 %v973, 16
        %v981 = vor.u32 %v978, %v979
        %v982 = vrot.slane %v978, 4
        %v984 = vshrl.u32 %v974, 16
        %v986 = vrot.slane %v984, 7
        %v987 = vshll.u32 %v974, 16
        %v989 = vor.u32 %v986, %v987
        %v990 = vsel %vm321, %v982, %v989
        %v991 = vrot.slane %v986, 4
        %v995 = vld [vmem:[#allocation2 + $0x144] sm:$0xf]
        %v996 = vsel %vm334, %v981, %v995
        %997 = vst [vmem:[#allocation2 + $0x144] sm:$0xf] %v996
        %998 = vst [vmem:[#allocation2 + $0x150] sm:$0xf] %v990
        %v999 = vld [vmem:[#allocation2 + $0x15c] sm:$0x1]
        %v1000 = vsel %vm339, %v991, %v999
        %1001 = vst [vmem:[#allocation2 + $0x15c] sm:$0x1] %v1000
        %1002 = vst [vmem:[#allocation2 + $0x148] sm:$0xf] %v973
        %1003 = vst [vmem:[#allocation2 + $0x154] sm:$0xf] %v974
        %v1004 = vrot.slane %v979, 5
        %v1005 = vrot.slane %v976, 4
        %v1006 = vor.u32 %v1005, %v1004
        %v1007 = vrot.slane %v1006, 4
        %v1008 = vrot.slane %v987, 5
        %v1009 = vsel %vm422, %v1007, %v1008
        %v1010 = vrot.slane %v984, 4
        %v1011 = vor.u32 %v1010, %v1008
        %v1012 = vrot.slane %v1011, 4
        %v1016 = vld [vmem:[#allocation2 + $0x140] sm:$0x8]
        %v1017 = vsel %vm447, %v1004, %v1016
        %1018 = vst [vmem:[#allocation2 + $0x140] sm:$0x8] %v1017
        %1019 = vst [vmem:[#allocation2 + $0x14c] sm:$0xf] %v1009
        %v1020 = vld [vmem:[#allocation2 + $0x158] sm:$0xf]
        %v1021 = vsel %vm452, %v1012, %v1020
        %1022 = vst [vmem:[#allocation2 + $0x158] sm:$0xf] %v1021
        %s1023 = scalar_lea.vmem %s154, 96 [#allocation5]
        %v1024 = vld [vmem:[%s1023] sm:$0xf]
        %v1025 = vld [vmem:[%s1023 + $0x4] sm:$0xf]
        %v1027 = vshrl.u32 %v1024, 16
        %v1029 = vrot.slane %v1027, 6
        %v1030 = vshll.u32 %v1024, 16
        %v1032 = vrot.slane %v1030, 7
        %v1033 = vor.u32 %v1029, %v1032
        %v1034 = vrot.slane %v1033, 4
        %v1036 = vshrl.u32 %v1025, 16
        %v1038 = vrot.slane %v1036, 6
        %v1039 = vshll.u32 %v1025, 16
        %v1041 = vrot.slane %v1039, 7
        %v1042 = vor.u32 %v1038, %v1041
        %v1043 = vsel %vm268, %v1034, %v1042
        %v1044 = vrot.slane %v1042, 4
        %v1048 = vld [vmem:[#allocation2 + $0x15c] sm:$0xe]
        %v1049 = vsel %vm293, %v1033, %v1048
        %1050 = vst [vmem:[#allocation2 + $0x15c] sm:$0xe] %v1049
        %1051 = vst [vmem:[#allocation2 + $0x168] sm:$0xf] %v1043
        %v1052 = vld [vmem:[#allocation2 + $0x174] sm:$0x3]
        %v1053 = vsel %vm299, %v1044, %v1052
        %1054 = vst [vmem:[#allocation2 + $0x174] sm:$0x3] %v1053
        %v1057 = vrot.slane %v1024, 7
        %v1058 = vrot.slane %v1057, 4
        %v1059 = vrot.slane %v1025, 7
        %v1060 = vsel %vm307, %v1058, %v1059
        %v1061 = vrot.slane %v1059, 4
        %1065 = vst [vmem:[#allocation2 + $0x160] sm:$0xe] %v1057
        %1066 = vst [vmem:[#allocation2 + $0x16c] sm:$0xf] %v1060
        %1067 = vst [vmem:[#allocation2 + $0x178] sm:$0x1] %v1061
        %v1068 = vrot.slane %v1027, 7
        %v1069 = vor.u32 %v1068, %v1030
        %v1070 = vrot.slane %v1068, 4
        %v1071 = vrot.slane %v1036, 7
        %v1072 = vor.u32 %v1071, %v1039
        %v1073 = vsel %vm321, %v1070, %v1072
        %v1074 = vrot.slane %v1071, 4
        %v1078 = vld [vmem:[#allocation2 + $0x164] sm:$0xf]
        %v1079 = vsel %vm334, %v1069, %v1078
        %1080 = vst [vmem:[#allocation2 + $0x164] sm:$0xf] %v1079
        %1081 = vst [vmem:[#allocation2 + $0x170] sm:$0xf] %v1073
        %v1082 = vld [vmem:[#allocation2 + $0x17c] sm:$0x1]
        %v1083 = vsel %vm339, %v1074, %v1082
        %1084 = vst [vmem:[#allocation2 + $0x17c] sm:$0x1] %v1083
        %s1085 = scalar_lea.vmem %s154, 104 [#allocation5]
        %v1086 = vld [vmem:[%s1085] sm:$0xf]
        %v1087 = vld [vmem:[%s1085 + $0x4] sm:$0xf]
        %v1089 = vshrl.u32 %v1086, 16
        %v1091 = vrot.slane %v1089, 5
        %v1092 = vshll.u32 %v1086, 16
        %v1094 = vrot.slane %v1092, 6
        %v1095 = vor.u32 %v1091, %v1094
        %v1096 = vrot.slane %v1095, 4
        %v1098 = vshrl.u32 %v1087, 16
        %v1100 = vrot.slane %v1098, 5
        %v1101 = vshll.u32 %v1087, 16
        %v1103 = vrot.slane %v1101, 6
        %v1104 = vor.u32 %v1100, %v1103
        %v1105 = vsel %vm348, %v1096, %v1104
        %v1106 = vrot.slane %v1104, 4
        %v1110 = vld [vmem:[#allocation2 + $0x174] sm:$0xc]
        %v1111 = vsel %vm373, %v1095, %v1110
        %1112 = vst [vmem:[#allocation2 + $0x174] sm:$0xc] %v1111
        %1113 = vst [vmem:[#allocation2 + $0x180] sm:$0xf] %v1105
        %v1114 = vld [vmem:[#allocation2 + $0x18c] sm:$0x7]
        %v1115 = vsel %vm379, %v1106, %v1114
        %1116 = vst [vmem:[#allocation2 + $0x18c] sm:$0x7] %v1115
        %v1119 = vrot.slane %v1086, 6
        %v1120 = vrot.slane %v1119, 4
        %v1121 = vrot.slane %v1087, 6
        %v1122 = vsel %vm386, %v1120, %v1121
        %v1123 = vrot.slane %v1121, 4
        %1127 = vst [vmem:[#allocation2 + $0x178] sm:$0xc] %v1119
        %1128 = vst [vmem:[#allocation2 + $0x184] sm:$0xf] %v1122
        %1129 = vst [vmem:[#allocation2 + $0x190] sm:$0x3] %v1123
        %v1130 = vrot.slane %v1089, 6
        %v1131 = vrot.slane %v1092, 7
        %v1132 = vor.u32 %v1130, %v1131
        %v1133 = vrot.slane %v1132, 4
        %v1134 = vrot.slane %v1098, 6
        %v1135 = vrot.slane %v1101, 7
        %v1136 = vor.u32 %v1134, %v1135
        %v1137 = vsel %vm268, %v1133, %v1136
        %v1138 = vrot.slane %v1136, 4
        %v1142 = vld [vmem:[#allocation2 + $0x17c] sm:$0xe]
        %v1143 = vsel %vm293, %v1132, %v1142
        %1144 = vst [vmem:[#allocation2 + $0x17c] sm:$0xe] %v1143
        %1145 = vst [vmem:[#allocation2 + $0x188] sm:$0xf] %v1137
        %v1146 = vld [vmem:[#allocation2 + $0x194] sm:$0x3]
        %v1147 = vsel %vm299, %v1138, %v1146
        %1148 = vst [vmem:[#allocation2 + $0x194] sm:$0x3] %v1147
        %s1149 = scalar_lea.vmem %s154, 112 [#allocation5]
        %v1150 = vld [vmem:[%s1149] sm:$0xf]
        %v1151 = vld [vmem:[%s1149 + $0x4] sm:$0xf]
        %v1153 = vshll.u32 %v1150, 16
        %v1155 = vrot.slane %v1153, 5
        %v1156 = vshrl.u32 %v1150, 16
        %v1158 = vrot.slane %v1156, 4
        %v1159 = vor.u32 %v1158, %v1155
        %v1160 = vrot.slane %v1159, 4
        %v1162 = vshll.u32 %v1151, 16
        %v1164 = vrot.slane %v1162, 5
        %v1165 = vsel %vm422, %v1160, %v1164
        %v1166 = vshrl.u32 %v1151, 16
        %v1168 = vrot.slane %v1166, 4
        %v1169 = vor.u32 %v1168, %v1164
        %v1170 = vrot.slane %v1169, 4
        %v1174 = vld [vmem:[#allocation2 + $0x18c] sm:$0x8]
        %v1175 = vsel %vm447, %v1155, %v1174
        %1176 = vst [vmem:[#allocation2 + $0x18c] sm:$0x8] %v1175
        %1177 = vst [vmem:[#allocation2 + $0x198] sm:$0xf] %v1165
        %v1178 = vld [vmem:[#allocation2 + $0x1a4] sm:$0xf]
        %v1179 = vsel %vm452, %v1170, %v1178
        %1180 = vst [vmem:[#allocation2 + $0x1a4] sm:$0xf] %v1179
        %v1183 = vrot.slane %v1150, 5
        %v1184 = vrot.slane %v1183, 4
        %v1185 = vrot.slane %v1151, 5
        %v1186 = vsel %vm459, %v1184, %v1185
        %v1187 = vrot.slane %v1185, 4
        %1191 = vst [vmem:[#allocation2 + $0x190] sm:$0x8] %v1183
        %1192 = vst [vmem:[#allocation2 + $0x19c] sm:$0xf] %v1186
        %1193 = vst [vmem:[#allocation2 + $0x1a8] sm:$0x7] %v1187
        %v1194 = vrot.slane %v1156, 5
        %v1195 = vrot.slane %v1153, 6
        %v1196 = vor.u32 %v1194, %v1195
        %v1197 = vrot.slane %v1196, 4
        %v1198 = vrot.slane %v1166, 5
        %v1199 = vrot.slane %v1162, 6
        %v1200 = vor.u32 %v1198, %v1199
        %v1201 = vsel %vm348, %v1197, %v1200
        %v1202 = vrot.slane %v1200, 4
        %v1206 = vld [vmem:[#allocation2 + $0x194] sm:$0xc]
        %v1207 = vsel %vm373, %v1196, %v1206
        %1208 = vst [vmem:[#allocation2 + $0x194] sm:$0xc] %v1207
        %1209 = vst [vmem:[#allocation2 + $0x1a0] sm:$0xf] %v1201
        %v1210 = vld [vmem:[#allocation2 + $0x1ac] sm:$0x7]
        %v1211 = vsel %vm379, %v1202, %v1210
        %1212 = vst [vmem:[#allocation2 + $0x1ac] sm:$0x7] %v1211
        %s1213 = scalar_lea.vmem %s154, 120 [#allocation5]
        %v1214 = vld [vmem:[%s1213] sm:$0xf]
        %v1215 = vld [vmem:[%s1213 + $0x4] sm:$0xf]
        %v1217 = vshrl.u32 %v1214, 16
        %v1219 = vrot.slane %v1217, 7
        %v1220 = vshll.u32 %v1214, 16
        %v1222 = vor.u32 %v1219, %v1220
        %v1223 = vrot.slane %v1219, 4
        %v1225 = vshrl.u32 %v1215, 16
        %v1227 = vrot.slane %v1225, 7
        %v1228 = vshll.u32 %v1215, 16
        %v1230 = vor.u32 %v1227, %v1228
        %v1231 = vsel %vm321, %v1223, %v1230
        %v1232 = vrot.slane %v1227, 4
        %v1236 = vld [vmem:[#allocation2 + $0x1b0] sm:$0xf]
        %v1237 = vsel %vm334, %v1222, %v1236
        %1238 = vst [vmem:[#allocation2 + $0x1b0] sm:$0xf] %v1237
        %1239 = vst [vmem:[#allocation2 + $0x1bc] sm:$0xf] %v1231
        %v1240 = vld [vmem:[#allocation2 + $0x1c8] sm:$0x1]
        %v1241 = vsel %vm339, %v1232, %v1240
        %1242 = vst [vmem:[#allocation2 + $0x1c8] sm:$0x1] %v1241
        %1243 = vst [vmem:[#allocation2 + $0x1b4] sm:$0xf] %v1214
        %1244 = vst [vmem:[#allocation2 + $0x1c0] sm:$0xf] %v1215
        %v1245 = vrot.slane %v1220, 5
        %v1246 = vrot.slane %v1217, 4
        %v1247 = vor.u32 %v1246, %v1245
        %v1248 = vrot.slane %v1247, 4
        %v1249 = vrot.slane %v1228, 5
        %v1250 = vsel %vm422, %v1248, %v1249
        %v1251 = vrot.slane %v1225, 4
        %v1252 = vor.u32 %v1251, %v1249
        %v1253 = vrot.slane %v1252, 4
        %v1257 = vld [vmem:[#allocation2 + $0x1ac] sm:$0x8]
        %v1258 = vsel %vm447, %v1245, %v1257
        %1259 = vst [vmem:[#allocation2 + $0x1ac] sm:$0x8] %v1258
        %1260 = vst [vmem:[#allocation2 + $0x1b8] sm:$0xf] %v1250
        %v1261 = vld [vmem:[#allocation2 + $0x1c4] sm:$0xf]
        %v1262 = vsel %vm452, %v1253, %v1261
        %1263 = vst [vmem:[#allocation2 + $0x1c4] sm:$0xf] %v1262
        %v1264 = vld [vmem:[#allocation2] sm:$0xff]
        %v1265 = vld [vmem:[#allocation2 + $0x8] sm:$0xf]
        %v1266 = vld [vmem:[#allocation2 + $0xc] sm:$0xff]
        %v1267 = vld [vmem:[#allocation2 + $0x14] sm:$0xf]
        %v1268 = vld [vmem:[#allocation2 + $0x18] sm:$0xff]
        %v1269 = vld [vmem:[#allocation2 + $0x20] sm:$0xf]
        %v1270 = vld [vmem:[#allocation2 + $0x24] sm:$0xff]
        %v1271 = vld [vmem:[#allocation2 + $0x2c] sm:$0xf]
        %v1272 = vld [vmem:[#allocation2 + $0x30] sm:$0xff]
        %v1273 = vld [vmem:[#allocation2 + $0x38] sm:$0xf]
        %v1274 = vld [vmem:[#allocation2 + $0x3c] sm:$0xff]
        %v1275 = vld [vmem:[#allocation2 + $0x44] sm:$0xf]
        %v1276 = vld [vmem:[#allocation2 + $0x48] sm:$0xff]
        %v1277 = vld [vmem:[#allocation2 + $0x50] sm:$0xf]
        %v1278 = vld [vmem:[#allocation2 + $0x54] sm:$0xff]
        %v1279 = vld [vmem:[#allocation2 + $0x5c] sm:$0xf]
        %v1280 = vld [vmem:[#allocation2 + $0x60] sm:$0xff]
        %v1281 = vld [vmem:[#allocation2 + $0x68] sm:$0xf]
        %v1282 = vld [vmem:[#allocation2 + $0x6c] sm:$0xff]
        %v1283 = vld [vmem:[#allocation2 + $0x74] sm:$0xf]
        %v1284 = vld [vmem:[#allocation2 + $0x78] sm:$0xff]
        %v1285 = vld [vmem:[#allocation2 + $0x80] sm:$0xf]
        %v1286 = vld [vmem:[#allocation2 + $0x84] sm:$0xff]
        %v1287 = vld [vmem:[#allocation2 + $0x8c] sm:$0xf]
        %v1288 = vld [vmem:[#allocation2 + $0x90] sm:$0xff]
        %v1289 = vld [vmem:[#allocation2 + $0x98] sm:$0xf]
        %v1290 = vld [vmem:[#allocation2 + $0x9c] sm:$0xff]
        %v1291 = vld [vmem:[#allocation2 + $0xa4] sm:$0xf]
        %v1292 = vld [vmem:[#allocation2 + $0xa8] sm:$0xff]
        %v1293 = vld [vmem:[#allocation2 + $0xb0] sm:$0xf]
        %v1294 = vld [vmem:[#allocation2 + $0xb4] sm:$0xff]
        %v1295 = vld [vmem:[#allocation2 + $0xbc] sm:$0xf]
        %v1296 = vld [vmem:[#allocation2 + $0xc0] sm:$0xff]
        %v1297 = vld [vmem:[#allocation2 + $0xc8] sm:$0xf]
        %v1298 = vld [vmem:[#allocation2 + $0xcc] sm:$0xff]
        %v1299 = vld [vmem:[#allocation2 + $0xd4] sm:$0xf]
        %v1300 = vld [vmem:[#allocation2 + $0xd8] sm:$0xff]
        %v1301 = vld [vmem:[#allocation2 + $0xe0] sm:$0xf]
        %v1302 = vld [vmem:[#allocation2 + $0xe4] sm:$0xff]
        %v1303 = vld [vmem:[#allocation2 + $0xec] sm:$0xf]
        %v1304 = vld [vmem:[#allocation2 + $0xf0] sm:$0xff]
        %v1305 = vld [vmem:[#allocation2 + $0xf8] sm:$0xf]
        %v1306 = vld [vmem:[#allocation2 + $0xfc] sm:$0xff]
        %v1307 = vld [vmem:[#allocation2 + $0x104] sm:$0xf]
        %v1308 = vld [vmem:[#allocation2 + $0x108] sm:$0xff]
        %v1309 = vld [vmem:[#allocation2 + $0x110] sm:$0xf]
        %v1310 = vld [vmem:[#allocation2 + $0x114] sm:$0xff]
        %v1311 = vld [vmem:[#allocation2 + $0x11c] sm:$0xf]
        %v1312 = vld [vmem:[#allocation2 + $0x120] sm:$0xff]
        %v1313 = vld [vmem:[#allocation2 + $0x128] sm:$0xf]
        %v1314 = vld [vmem:[#allocation2 + $0x12c] sm:$0xff]
        %v1315 = vld [vmem:[#allocation2 + $0x134] sm:$0xf]
        %v1316 = vld [vmem:[#allocation2 + $0x138] sm:$0xff]
        %v1317 = vld [vmem:[#allocation2 + $0x140] sm:$0xf]
        %v1318 = vld [vmem:[#allocation2 + $0x144] sm:$0xff]
        %v1319 = vld [vmem:[#allocation2 + $0x14c] sm:$0xf]
        %v1320 = vld [vmem:[#allocation2 + $0x150] sm:$0xff]
        %v1321 = vld [vmem:[#allocation2 + $0x158] sm:$0xf]
        %v1322 = vld [vmem:[#allocation2 + $0x15c] sm:$0xff]
        %v1323 = vld [vmem:[#allocation2 + $0x164] sm:$0xf]
        %v1324 = vld [vmem:[#allocation2 + $0x168] sm:$0xff]
        %v1325 = vld [vmem:[#allocation2 + $0x170] sm:$0xf]
        %v1326 = vld [vmem:[#allocation2 + $0x174] sm:$0xff]
        %v1327 = vld [vmem:[#allocation2 + $0x17c] sm:$0xf]
        %v1328 = vld [vmem:[#allocation2 + $0x180] sm:$0xff]
        %v1329 = vld [vmem:[#allocation2 + $0x188] sm:$0xf]
        %v1330 = vld [vmem:[#allocation2 + $0x18c] sm:$0xff]
        %v1331 = vld [vmem:[#allocation2 + $0x194] sm:$0xf]
        %v1332 = vld [vmem:[#allocation2 + $0x198] sm:$0xff]
        %v1333 = vld [vmem:[#allocation2 + $0x1a0] sm:$0xf]
        %v1334 = vld [vmem:[#allocation2 + $0x1a4] sm:$0xff]
        %v1335 = vld [vmem:[#allocation2 + $0x1ac] sm:$0xf]
        %v1336 = vld [vmem:[#allocation2 + $0x1b0] sm:$0xff]
        %v1337 = vld [vmem:[#allocation2 + $0x1b8] sm:$0xf]
        %v1338 = vld [vmem:[#allocation2 + $0x1bc] sm:$0xff]
        %v1339 = vld [vmem:[#allocation2 + $0x1c4] sm:$0xf]
        %v1340 = vld [vmem:[#allocation2 + $0x1c8] sm:$0xff]
        %v1341 = vld [vmem:[#allocation2 + $0x1d0] sm:$0xf]
        %v1342 = vld [vmem:[#allocation2 + $0x1d4] sm:$0xff]
        %v1343 = vld [vmem:[#allocation2 + $0x1dc] sm:$0xf]
        %v1344 = vld [vmem:[#allocation2 + $0x1e0] sm:$0x33]
        %v1345 = vld [vmem:[#allocation2 + $0x1e8] sm:$0x3]
        %v1346 = vld [vmem:[#allocation8] sm:$0xff]
        %v1347 = vld [vmem:[#allocation8 + $0x8] sm:$0xff]
        %v1348 = vld [vmem:[#allocation8 + $0x10] sm:$0xff]
        %v1349 = vld [vmem:[#allocation8 + $0x18] sm:$0xff]
        %v1350 = vld [vmem:[#allocation8 + $0x20] sm:$0xff]
        %v1351 = vld [vmem:[#allocation8 + $0x28] sm:$0xff]
        %v1352 = vld [vmem:[#allocation8 + $0x30] sm:$0xff]
        %v1353 = vld [vmem:[#allocation8 + $0x38] sm:$0xff]
        %v1354 = vld [vmem:[#allocation8 + $0x40] sm:$0xff]
        %v1355 = vld [vmem:[#allocation8 + $0x48] sm:$0xff]
        %v1356 = vld [vmem:[#allocation8 + $0x50] sm:$0xff]
        %v1357 = vld [vmem:[#allocation8 + $0x58] sm:$0xff]
        %v1358 = vld [vmem:[#allocation8 + $0x60] sm:$0xff]
        %v1359 = vld [vmem:[#allocation8 + $0x68] sm:$0xff]
        %v1360 = vld [vmem:[#allocation8 + $0x70] sm:$0xff]
        %v1361 = vld [vmem:[#allocation8 + $0x78] sm:$0xff]
        %v1362 = vld [vmem:[#allocation8 + $0x80] sm:$0xff]
        %v1363 = vld [vmem:[#allocation8 + $0x88] sm:$0xff]
        %v1364 = vld [vmem:[#allocation8 + $0x90] sm:$0xff]
        %v1365 = vld [vmem:[#allocation8 + $0x98] sm:$0xff]
        %v1366 = vld [vmem:[#allocation8 + $0xa0] sm:$0xff]
        %v1367 = vld [vmem:[#allocation8 + $0xa8] sm:$0xff]
        %v1368 = vld [vmem:[#allocation8 + $0xb0] sm:$0xff]
        %v1369 = vld [vmem:[#allocation8 + $0xb8] sm:$0xff]
        %v1370 = vld [vmem:[#allocation8 + $0xc0] sm:$0xff]
        %v1371 = vld [vmem:[#allocation8 + $0xc8] sm:$0xff]
        %v1372 = vld [vmem:[#allocation8 + $0xd0] sm:$0xff]
        %v1373 = vld [vmem:[#allocation8 + $0xd8] sm:$0xff]
        %v1374 = vld [vmem:[#allocation8 + $0xe0] sm:$0xff]
        %v1375 = vld [vmem:[#allocation8 + $0xe8] sm:$0xff]
        %v1376 = vld [vmem:[#allocation8 + $0xf0] sm:$0xff]
        %v1377 = vld [vmem:[#allocation8 + $0xf8] sm:$0xff]
        %v1378 = vld [vmem:[#allocation8 + $0x100] sm:$0xff]
        %v1379 = vld [vmem:[#allocation8 + $0x108] sm:$0xff]
        %v1380 = vld [vmem:[#allocation8 + $0x110] sm:$0xff]
        %v1381 = vld [vmem:[#allocation8 + $0x118] sm:$0xff]
        %v1382 = vld [vmem:[#allocation8 + $0x120] sm:$0xff]
        %v1383 = vld [vmem:[#allocation8 + $0x128] sm:$0xff]
        %v1384 = vld [vmem:[#allocation8 + $0x130] sm:$0xff]
        %v1385 = vld [vmem:[#allocation8 + $0x138] sm:$0xff]
        %v1386 = vld [vmem:[#allocation8 + $0x140] sm:$0xff]
        %v1387 = vld [vmem:[#allocation8 + $0x148] sm:$0xff]
        %v1388 = vld [vmem:[#allocation8 + $0x150] sm:$0xff]
        %v1389 = vld [vmem:[#allocation8 + $0x158] sm:$0xff]
        %v1390 = vld [vmem:[#allocation8 + $0x160] sm:$0xff]
        %v1391 = vld [vmem:[#allocation8 + $0x168] sm:$0xff]
        %v1392 = vld [vmem:[#allocation8 + $0x170] sm:$0xff]
        %v1393 = vld [vmem:[#allocation8 + $0x178] sm:$0xff]
        %v1476 = vunpack.c.l.b16 %v1264
        %v1477 = vunpack.c.h.b16 %v1264
        %v1478 = vunpack.c.l.b16 %v1265
        %v1479 = vunpack.c.l.b16 %v1266
        %v1480 = vunpack.c.h.b16 %v1266
        %v1481 = vunpack.c.l.b16 %v1267
        %v1482 = vunpack.c.l.b16 %v1268
        %v1483 = vunpack.c.h.b16 %v1268
        %v1484 = vunpack.c.l.b16 %v1269
        %v1485 = vunpack.c.l.b16 %v1270
        %v1486 = vunpack.c.h.b16 %v1270
        %v1487 = vunpack.c.l.b16 %v1271
        %v1488 = vunpack.c.l.b16 %v1272
        %v1489 = vunpack.c.h.b16 %v1272
        %v1490 = vunpack.c.l.b16 %v1273
        %v1491 = vunpack.c.l.b16 %v1274
        %v1492 = vunpack.c.h.b16 %v1274
        %v1493 = vunpack.c.l.b16 %v1275
        %v1494 = vunpack.c.l.b16 %v1276
        %v1495 = vunpack.c.h.b16 %v1276
        %v1496 = vunpack.c.l.b16 %v1277
        %v1497 = vunpack.c.l.b16 %v1278
        %v1498 = vunpack.c.h.b16 %v1278
        %v1499 = vunpack.c.l.b16 %v1279
        %v1500 = vunpack.c.l.b16 %v1280
        %v1501 = vunpack.c.h.b16 %v1280
        %v1502 = vunpack.c.l.b16 %v1281
        %v1503 = vunpack.c.l.b16 %v1282
        %v1504 = vunpack.c.h.b16 %v1282
        %v1505 = vunpack.c.l.b16 %v1283
        %v1506 = vunpack.c.l.b16 %v1284
        %v1507 = vunpack.c.h.b16 %v1284
        %v1508 = vunpack.c.l.b16 %v1285
        %v1509 = vunpack.c.l.b16 %v1286
        %v1510 = vunpack.c.h.b16 %v1286
        %v1511 = vunpack.c.l.b16 %v1287
        %v1512 = vunpack.c.l.b16 %v1288
        %v1513 = vunpack.c.h.b16 %v1288
        %v1514 = vunpack.c.l.b16 %v1289
        %v1515 = vunpack.c.l.b16 %v1290
        %v1516 = vunpack.c.h.b16 %v1290
        %v1517 = vunpack.c.l.b16 %v1291
        %v1518 = vunpack.c.l.b16 %v1292
        %v1519 = vunpack.c.h.b16 %v1292
        %v1520 = vunpack.c.l.b16 %v1293
        %v1521 = vunpack.c.l.b16 %v1294
        %v1522 = vunpack.c.h.b16 %v1294
        %v1523 = vunpack.c.l.b16 %v1295
        %v1524 = vunpack.c.l.b16 %v1296
        %v1525 = vunpack.c.h.b16 %v1296
        %v1526 = vunpack.c.l.b16 %v1297
        %v1527 = vunpack.c.l.b16 %v1298
        %v1528 = vunpack.c.h.b16 %v1298
        %v1529 = vunpack.c.l.b16 %v1299
        %v1530 = vunpack.c.l.b16 %v1300
        %v1531 = vunpack.c.h.b16 %v1300
        %v1532 = vunpack.c.l.b16 %v1301
        %v1533 = vunpack.c.l.b16 %v1302
        %v1534 = vunpack.c.h.b16 %v1302
        %v1535 = vunpack.c.l.b16 %v1303
        %v1536 = vunpack.c.l.b16 %v1304
        %v1537 = vunpack.c.h.b16 %v1304
        %v1538 = vunpack.c.l.b16 %v1305
        %v1539 = vunpack.c.l.b16 %v1306
        %v1540 = vunpack.c.h.b16 %v1306
        %v1541 = vunpack.c.l.b16 %v1307
        %v1542 = vunpack.c.l.b16 %v1308
        %v1543 = vunpack.c.h.b16 %v1308
        %v1544 = vunpack.c.l.b16 %v1309
        %v1545 = vunpack.c.l.b16 %v1310
        %v1546 = vunpack.c.h.b16 %v1310
        %v1547 = vunpack.c.l.b16 %v1311
        %v1548 = vunpack.c.l.b16 %v1312
        %v1549 = vunpack.c.h.b16 %v1312
        %v1550 = vunpack.c.l.b16 %v1313
        %v1551 = vunpack.c.l.b16 %v1314
        %v1552 = vunpack.c.h.b16 %v1314
        %v1553 = vunpack.c.l.b16 %v1315
        %v1554 = vunpack.c.l.b16 %v1316
        %v1555 = vunpack.c.h.b16 %v1316
        %v1556 = vunpack.c.l.b16 %v1317
        %v1557 = vunpack.c.l.b16 %v1318
        %v1558 = vunpack.c.h.b16 %v1318
        %v1559 = vunpack.c.l.b16 %v1319
        %v1560 = vunpack.c.l.b16 %v1320
        %v1561 = vunpack.c.h.b16 %v1320
        %v1562 = vunpack.c.l.b16 %v1321
        %v1563 = vunpack.c.l.b16 %v1322
        %v1564 = vunpack.c.h.b16 %v1322
        %v1565 = vunpack.c.l.b16 %v1323
        %v1566 = vunpack.c.l.b16 %v1324
        %v1567 = vunpack.c.h.b16 %v1324
        %v1568 = vunpack.c.l.b16 %v1325
        %v1569 = vunpack.c.l.b16 %v1326
        %v1570 = vunpack.c.h.b16 %v1326
        %v1571 = vunpack.c.l.b16 %v1327
        %v1572 = vunpack.c.l.b16 %v1328
        %v1573 = vunpack.c.h.b16 %v1328
        %v1574 = vunpack.c.l.b16 %v1329
        %v1575 = vunpack.c.l.b16 %v1330
        %v1576 = vunpack.c.h.b16 %v1330
        %v1577 = vunpack.c.l.b16 %v1331
        %v1578 = vunpack.c.l.b16 %v1332
        %v1579 = vunpack.c.h.b16 %v1332
        %v1580 = vunpack.c.l.b16 %v1333
        %v1581 = vunpack.c.l.b16 %v1334
        %v1582 = vunpack.c.h.b16 %v1334
        %v1583 = vunpack.c.l.b16 %v1335
        %v1584 = vunpack.c.l.b16 %v1336
        %v1585 = vunpack.c.h.b16 %v1336
        %v1586 = vunpack.c.l.b16 %v1337
        %v1587 = vunpack.c.l.b16 %v1338
        %v1588 = vunpack.c.h.b16 %v1338
        %v1589 = vunpack.c.l.b16 %v1339
        %v1590 = vunpack.c.l.b16 %v1340
        %v1591 = vunpack.c.h.b16 %v1340
        %v1592 = vunpack.c.l.b16 %v1341
        %v1593 = vunpack.c.l.b16 %v1342
        %v1594 = vunpack.c.h.b16 %v1342
        %v1595 = vunpack.c.l.b16 %v1343
        %v1596 = vunpack.c.l.b16 %v1344
        %v1597 = vunpack.c.h.b16 %v1344
        %v1598 = vunpack.c.l.b16 %v1345
        %v1599 = vpack.c.b16 %v1479, %v1476
        %v1600 = vpack.c.b16 %v1480, %v1477
        %v1601 = vpack.c.b16 %v1481, %v1478
        %v1602 = vpack.c.b16 %v1485, %v1482
        %v1603 = vpack.c.b16 %v1486, %v1483
        %v1604 = vpack.c.b16 %v1487, %v1484
        %v1605 = vpack.c.b16 %v1491, %v1488
        %v1606 = vpack.c.b16 %v1492, %v1489
        %v1607 = vpack.c.b16 %v1493, %v1490
        %v1608 = vpack.c.b16 %v1497, %v1494
        %v1609 = vpack.c.b16 %v1498, %v1495
        %v1610 = vpack.c.b16 %v1499, %v1496
        %v1611 = vpack.c.b16 %v1503, %v1500
        %v1612 = vpack.c.b16 %v1504, %v1501
        %v1613 = vpack.c.b16 %v1505, %v1502
        %v1614 = vpack.c.b16 %v1509, %v1506
        %v1615 = vpack.c.b16 %v1510, %v1507
        %v1616 = vpack.c.b16 %v1511, %v1508
        %v1617 = vpack.c.b16 %v1515, %v1512
        %v1618 = vpack.c.b16 %v1516, %v1513
        %v1619 = vpack.c.b16 %v1517, %v1514
        %v1620 = vpack.c.b16 %v1521, %v1518
        %v1621 = vpack.c.b16 %v1522, %v1519
        %v1622 = vpack.c.b16 %v1523, %v1520
        %v1623 = vpack.c.b16 %v1527, %v1524
        %v1624 = vpack.c.b16 %v1528, %v1525
        %v1625 = vpack.c.b16 %v1529, %v1526
        %v1626 = vpack.c.b16 %v1533, %v1530
        %v1627 = vpack.c.b16 %v1534, %v1531
        %v1628 = vpack.c.b16 %v1535, %v1532
        %v1629 = vpack.c.b16 %v1539, %v1536
        %v1630 = vpack.c.b16 %v1540, %v1537
        %v1631 = vpack.c.b16 %v1541, %v1538
        %v1632 = vpack.c.b16 %v1545, %v1542
        %v1633 = vpack.c.b16 %v1546, %v1543
        %v1634 = vpack.c.b16 %v1547, %v1544
        %v1635 = vpack.c.b16 %v1551, %v1548
        %v1636 = vpack.c.b16 %v1552, %v1549
        %v1637 = vpack.c.b16 %v1553, %v1550
        %v1638 = vpack.c.b16 %v1557, %v1554
        %v1639 = vpack.c.b16 %v1558, %v1555
        %v1640 = vpack.c.b16 %v1559, %v1556
        %v1641 = vpack.c.b16 %v1563, %v1560
        %v1642 = vpack.c.b16 %v1564, %v1561
        %v1643 = vpack.c.b16 %v1565, %v1562
        %v1644 = vpack.c.b16 %v1569, %v1566
        %v1645 = vpack.c.b16 %v1570, %v1567
        %v1646 = vpack.c.b16 %v1571, %v1568
        %v1647 = vpack.c.b16 %v1575, %v1572
        %v1648 = vpack.c.b16 %v1576, %v1573
        %v1649 = vpack.c.b16 %v1577, %v1574
        %v1650 = vpack.c.b16 %v1581, %v1578
        %v1651 = vpack.c.b16 %v1582, %v1579
        %v1652 = vpack.c.b16 %v1583, %v1580
        %v1653 = vpack.c.b16 %v1587, %v1584
        %v1654 = vpack.c.b16 %v1588, %v1585
        %v1655 = vpack.c.b16 %v1589, %v1586
        %v1656 = vpack.c.b16 %v1593, %v1590
        %v1657 = vpack.c.b16 %v1594, %v1591
        %v1658 = vpack.c.b16 %v1595, %v1592
        %v1659 = vpack.c.b16 %v1596, %v1596
        %v1660 = vpack.c.b16 %v1597, %v1597
        %v1661 = vpack.c.b16 %v1598, %v1598
        %v1773 = vunpack.c.l.b16 %v1346
        %v1774 = vunpack.c.h.b16 %v1346
        %v1775 = vunpack.c.l.b16 %v1347
        %v1776 = vunpack.c.h.b16 %v1347
        %v1777 = vunpack.c.l.b16 %v1348
        %v1778 = vunpack.c.h.b16 %v1348
        %v1779 = vunpack.c.l.b16 %v1349
        %v1780 = vunpack.c.h.b16 %v1349
        %v1781 = vunpack.c.l.b16 %v1350
        %v1782 = vunpack.c.h.b16 %v1350
        %v1783 = vunpack.c.l.b16 %v1351
        %v1784 = vunpack.c.h.b16 %v1351
        %v1785 = vunpack.c.l.b16 %v1352
        %v1786 = vunpack.c.h.b16 %v1352
        %v1787 = vunpack.c.l.b16 %v1353
        %v1788 = vunpack.c.h.b16 %v1353
        %v1789 = vunpack.c.l.b16 %v1354
        %v1790 = vunpack.c.h.b16 %v1354
        %v1791 = vunpack.c.l.b16 %v1355
        %v1792 = vunpack.c.h.b16 %v1355
        %v1793 = vunpack.c.l.b16 %v1356
        %v1794 = vunpack.c.h.b16 %v1356
        %v1795 = vunpack.c.l.b16 %v1357
        %v1796 = vunpack.c.h.b16 %v1357
        %v1797 = vunpack.c.l.b16 %v1358
        %v1798 = vunpack.c.h.b16 %v1358
        %v1799 = vunpack.c.l.b16 %v1359
        %v1800 = vunpack.c.h.b16 %v1359
        %v1801 = vunpack.c.l.b16 %v1360
        %v1802 = vunpack.c.h.b16 %v1360
        %v1803 = vunpack.c.l.b16 %v1361
        %v1804 = vunpack.c.h.b16 %v1361
        %v1805 = vunpack.c.l.b16 %v1362
        %v1806 = vunpack.c.h.b16 %v1362
        %v1807 = vunpack.c.l.b16 %v1363
        %v1808 = vunpack.c.h.b16 %v1363
        %v1809 = vunpack.c.l.b16 %v1364
        %v1810 = vunpack.c.h.b16 %v1364
        %v1811 = vunpack.c.l.b16 %v1365
        %v1812 = vunpack.c.h.b16 %v1365
        %v1813 = vunpack.c.l.b16 %v1366
        %v1814 = vunpack.c.h.b16 %v1366
        %v1815 = vunpack.c.l.b16 %v1367
        %v1816 = vunpack.c.h.b16 %v1367
        %v1817 = vunpack.c.l.b16 %v1368
        %v1818 = vunpack.c.h.b16 %v1368
        %v1819 = vunpack.c.l.b16 %v1369
        %v1820 = vunpack.c.h.b16 %v1369
        %v1821 = vunpack.c.l.b16 %v1370
        %v1822 = vunpack.c.h.b16 %v1370
        %v1823 = vunpack.c.l.b16 %v1371
        %v1824 = vunpack.c.h.b16 %v1371
        %v1825 = vunpack.c.l.b16 %v1372
        %v1826 = vunpack.c.h.b16 %v1372
        %v1827 = vunpack.c.l.b16 %v1373
        %v1828 = vunpack.c.h.b16 %v1373
        %v1829 = vunpack.c.l.b16 %v1374
        %v1830 = vunpack.c.h.b16 %v1374
        %v1831 = vunpack.c.l.b16 %v1375
        %v1832 = vunpack.c.h.b16 %v1375
        %v1833 = vunpack.c.l.b16 %v1376
        %v1834 = vunpack.c.h.b16 %v1376
        %v1835 = vunpack.c.l.b16 %v1377
        %v1836 = vunpack.c.h.b16 %v1377
        %v1837 = vunpack.c.l.b16 %v1378
        %v1838 = vunpack.c.h.b16 %v1378
        %v1839 = vunpack.c.l.b16 %v1379
        %v1840 = vunpack.c.h.b16 %v1379
        %v1841 = vunpack.c.l.b16 %v1380
        %v1842 = vunpack.c.h.b16 %v1380
        %v1843 = vunpack.c.l.b16 %v1381
        %v1844 = vunpack.c.h.b16 %v1381
        %v1845 = vunpack.c.l.b16 %v1382
        %v1846 = vunpack.c.h.b16 %v1382
        %v1847 = vunpack.c.l.b16 %v1383
        %v1848 = vunpack.c.h.b16 %v1383
        %v1849 = vunpack.c.l.b16 %v1384
        %v1850 = vunpack.c.h.b16 %v1384
        %v1851 = vunpack.c.l.b16 %v1385
        %v1852 = vunpack.c.h.b16 %v1385
        %v1853 = vunpack.c.l.b16 %v1386
        %v1854 = vunpack.c.h.b16 %v1386
        %v1855 = vunpack.c.l.b16 %v1387
        %v1856 = vunpack.c.h.b16 %v1387
        %v1857 = vunpack.c.l.b16 %v1388
        %v1858 = vunpack.c.h.b16 %v1388
        %v1859 = vunpack.c.l.b16 %v1389
        %v1860 = vunpack.c.h.b16 %v1389
        %v1861 = vunpack.c.l.b16 %v1390
        %v1862 = vunpack.c.h.b16 %v1390
        %v1863 = vunpack.c.l.b16 %v1391
        %v1864 = vunpack.c.h.b16 %v1391
        %v1865 = vunpack.c.l.b16 %v1392
        %v1866 = vunpack.c.h.b16 %v1392
        %v1867 = vunpack.c.l.b16 %v1393
        %v1868 = vunpack.c.h.b16 %v1393
        %v1869 = vpack.c.b16 %v1775, %v1773
        %v1870 = vpack.c.b16 %v1776, %v1774
        %v1871 = vpack.c.b16 %v1779, %v1777
        %v1872 = vpack.c.b16 %v1780, %v1778
        %v1873 = vpack.c.b16 %v1783, %v1781
        %v1874 = vpack.c.b16 %v1784, %v1782
        %v1875 = vpack.c.b16 %v1787, %v1785
        %v1876 = vpack.c.b16 %v1788, %v1786
        %v1877 = vpack.c.b16 %v1791, %v1789
        %v1878 = vpack.c.b16 %v1792, %v1790
        %v1879 = vpack.c.b16 %v1795, %v1793
        %v1880 = vpack.c.b16 %v1796, %v1794
        %v1881 = vpack.c.b16 %v1799, %v1797
        %v1882 = vpack.c.b16 %v1800, %v1798
        %v1883 = vpack.c.b16 %v1803, %v1801
        %v1884 = vpack.c.b16 %v1804, %v1802
        %v1885 = vpack.c.b16 %v1807, %v1805
        %v1886 = vpack.c.b16 %v1808, %v1806
        %v1887 = vpack.c.b16 %v1811, %v1809
        %v1888 = vpack.c.b16 %v1812, %v1810
        %v1889 = vpack.c.b16 %v1815, %v1813
        %v1890 = vpack.c.b16 %v1816, %v1814
        %v1891 = vpack.c.b16 %v1819, %v1817
        %v1892 = vpack.c.b16 %v1820, %v1818
        %v1893 = vpack.c.b16 %v1823, %v1821
        %v1894 = vpack.c.b16 %v1824, %v1822
        %v1895 = vpack.c.b16 %v1827, %v1825
        %v1896 = vpack.c.b16 %v1828, %v1826
        %v1897 = vpack.c.b16 %v1831, %v1829
        %v1898 = vpack.c.b16 %v1832, %v1830
        %v1899 = vpack.c.b16 %v1835, %v1833
        %v1900 = vpack.c.b16 %v1836, %v1834
        %v1901 = vpack.c.b16 %v1839, %v1837
        %v1902 = vpack.c.b16 %v1840, %v1838
        %v1903 = vpack.c.b16 %v1843, %v1841
        %v1904 = vpack.c.b16 %v1844, %v1842
        %v1905 = vpack.c.b16 %v1847, %v1845
        %v1906 = vpack.c.b16 %v1848, %v1846
        %v1907 = vpack.c.b16 %v1851, %v1849
        %v1908 = vpack.c.b16 %v1852, %v1850
        %v1909 = vpack.c.b16 %v1855, %v1853
        %v1910 = vpack.c.b16 %v1856, %v1854
        %v1911 = vpack.c.b16 %v1859, %v1857
        %v1912 = vpack.c.b16 %v1860, %v1858
        %v1913 = vpack.c.b16 %v1863, %v1861
        %v1914 = vpack.c.b16 %v1864, %v1862
        %v1915 = vpack.c.b16 %v1867, %v1865
        %v1916 = vpack.c.b16 %v1868, %v1866
        %1965 = vmatpush.bf16.msra.mxu0 %v1883
        %1966 = vmatpush.bf16.msra.mxu0 %v1881
        %1967 = vmatpush.bf16.msra.mxu0 %v1879
        %1968 = vmatpush.bf16.msra.mxu0 %v1877
        %1969 = vmatpush.bf16.msra.mxu0 %v1875
        %1970 = vmatpush.bf16.msra.mxu0 %v1873
        %1971 = vmatpush.bf16.msra.mxu0 %v1871
        %1972 = vmatpush.bf16.msra.mxu0 %v1869
        %1973 = vmatmul.bf16.gmra.mxu0 %v1599
        %v1974 = vpop.f32.mrf.mxu0
        %v1975 = vadd.f32 0.0, %v1974
        %v1976 = vpop.f32.mrf.mxu0
        %v1977 = vadd.f32 0.0, %v1976
        %1978 = vmatmul.bf16.gmra.mxu0 %v1602
        %v1979 = vpop.f32.mrf.mxu0
        %v1980 = vadd.f32 0.0, %v1979
        %v1981 = vpop.f32.mrf.mxu0
        %v1982 = vadd.f32 0.0, %v1981
        %1983 = vmatmul.bf16.gmra.mxu0 %v1605
        %v1984 = vpop.f32.mrf.mxu0
        %v1985 = vadd.f32 0.0, %v1984
        %v1986 = vpop.f32.mrf.mxu0
        %v1987 = vadd.f32 0.0, %v1986
        %1988 = vmatmul.bf16.gmra.mxu0 %v1608
        %v1989 = vpop.f32.mrf.mxu0
        %v1990 = vadd.f32 0.0, %v1989
        %v1991 = vpop.f32.mrf.mxu0
        %v1992 = vadd.f32 0.0, %v1991
        %1993 = vmatmul.bf16.gmra.mxu0 %v1611
        %v1994 = vpop.f32.mrf.mxu0
        %v1995 = vadd.f32 0.0, %v1994
        %v1996 = vpop.f32.mrf.mxu0
        %v1997 = vadd.f32 0.0, %v1996
        %1998 = vmatmul.bf16.gmra.mxu0 %v1614
        %v1999 = vpop.f32.mrf.mxu0
        %v2000 = vadd.f32 0.0, %v1999
        %v2001 = vpop.f32.mrf.mxu0
        %v2002 = vadd.f32 0.0, %v2001
        %2003 = vmatmul.bf16.gmra.mxu0 %v1617
        %v2004 = vpop.f32.mrf.mxu0
        %v2005 = vadd.f32 0.0, %v2004
        %v2006 = vpop.f32.mrf.mxu0
        %v2007 = vadd.f32 0.0, %v2006
        %2008 = vmatmul.bf16.gmra.mxu0 %v1620
        %v2009 = vpop.f32.mrf.mxu0
        %v2010 = vadd.f32 0.0, %v2009
        %v2011 = vpop.f32.mrf.mxu0
        %v2012 = vadd.f32 0.0, %v2011
        %2013 = vmatmul.bf16.gmra.mxu0 %v1623
        %v2014 = vpop.f32.mrf.mxu0
        %v2015 = vadd.f32 0.0, %v2014
        %v2016 = vpop.f32.mrf.mxu0
        %v2017 = vadd.f32 0.0, %v2016
        %2018 = vmatmul.bf16.gmra.mxu0 %v1626
        %v2019 = vpop.f32.mrf.mxu0
        %v2020 = vadd.f32 0.0, %v2019
        %v2021 = vpop.f32.mrf.mxu0
        %v2022 = vadd.f32 0.0, %v2021
        %2023 = vmatmul.bf16.gmra.mxu0 %v1629
        %v2024 = vpop.f32.mrf.mxu0
        %v2025 = vadd.f32 0.0, %v2024
        %v2026 = vpop.f32.mrf.mxu0
        %v2027 = vadd.f32 0.0, %v2026
        %2028 = vmatmul.bf16.gmra.mxu0 %v1632
        %v2029 = vpop.f32.mrf.mxu0
        %v2030 = vadd.f32 0.0, %v2029
        %v2031 = vpop.f32.mrf.mxu0
        %v2032 = vadd.f32 0.0, %v2031
        %2033 = vmatmul.bf16.gmra.mxu0 %v1635
        %v2034 = vpop.f32.mrf.mxu0
        %v2035 = vadd.f32 0.0, %v2034
        %v2036 = vpop.f32.mrf.mxu0
        %v2037 = vadd.f32 0.0, %v2036
        %2038 = vmatmul.bf16.gmra.mxu0 %v1638
        %v2039 = vpop.f32.mrf.mxu0
        %v2040 = vadd.f32 0.0, %v2039
        %v2041 = vpop.f32.mrf.mxu0
        %v2042 = vadd.f32 0.0, %v2041
        %2043 = vmatmul.bf16.gmra.mxu0 %v1641
        %v2044 = vpop.f32.mrf.mxu0
        %v2045 = vadd.f32 0.0, %v2044
        %v2046 = vpop.f32.mrf.mxu0
        %v2047 = vadd.f32 0.0, %v2046
        %2048 = vmatmul.bf16.gmra.mxu0 %v1644
        %v2049 = vpop.f32.mrf.mxu0
        %v2050 = vadd.f32 0.0, %v2049
        %v2051 = vpop.f32.mrf.mxu0
        %v2052 = vadd.f32 0.0, %v2051
        %2053 = vmatmul.bf16.gmra.mxu0 %v1647
        %v2054 = vpop.f32.mrf.mxu0
        %v2055 = vadd.f32 0.0, %v2054
        %v2056 = vpop.f32.mrf.mxu0
        %v2057 = vadd.f32 0.0, %v2056
        %2058 = vmatmul.bf16.gmra.mxu0 %v1650
        %v2059 = vpop.f32.mrf.mxu0
        %v2060 = vadd.f32 0.0, %v2059
        %v2061 = vpop.f32.mrf.mxu0
        %v2062 = vadd.f32 0.0, %v2061
        %2063 = vmatmul.bf16.gmra.mxu0 %v1653
        %v2064 = vpop.f32.mrf.mxu0
        %v2065 = vadd.f32 0.0, %v2064
        %v2066 = vpop.f32.mrf.mxu0
        %v2067 = vadd.f32 0.0, %v2066
        %2068 = vmatmul.bf16.gmra.mxu0 %v1656
        %v2069 = vpop.f32.mrf.mxu0
        %v2070 = vadd.f32 0.0, %v2069
        %v2071 = vpop.f32.mrf.mxu0
        %v2072 = vadd.f32 0.0, %v2071
        %2073 = vmatmul.bf16.gmra.mxu0 %v1659
        %v2074 = vpop.f32.mrf.mxu0
        %v2075 = vadd.f32 0.0, %v2074
        %v2076 = vpop.f32.mrf.mxu0
        %2077 = vdwg.mxu0
        %2078 = vmatpush.bf16.msra.mxu0 %v1899
        %2079 = vmatpush.bf16.msra.mxu0 %v1897
        %2080 = vmatpush.bf16.msra.mxu0 %v1895
        %2081 = vmatpush.bf16.msra.mxu0 %v1893
        %2082 = vmatpush.bf16.msra.mxu0 %v1891
        %2083 = vmatpush.bf16.msra.mxu0 %v1889
        %2084 = vmatpush.bf16.msra.mxu0 %v1887
        %2085 = vmatpush.bf16.msra.mxu0 %v1885
        %2086 = vmatmul.bf16.gmra.mxu0 %v1600
        %v2087 = vpop.f32.mrf.mxu0
        %v2088 = vadd.f32 %v1975, %v2087
        %v2089 = vpop.f32.mrf.mxu0
        %v2090 = vadd.f32 %v1977, %v2089
        %2091 = vmatmul.bf16.gmra.mxu0 %v1603
        %v2092 = vpop.f32.mrf.mxu0
        %v2093 = vadd.f32 %v1980, %v2092
        %v2094 = vpop.f32.mrf.mxu0
        %v2095 = vadd.f32 %v1982, %v2094
        %2096 = vmatmul.bf16.gmra.mxu0 %v1606
        %v2097 = vpop.f32.mrf.mxu0
        %v2098 = vadd.f32 %v1985, %v2097
        %v2099 = vpop.f32.mrf.mxu0
        %v2100 = vadd.f32 %v1987, %v2099
        %2101 = vmatmul.bf16.gmra.mxu0 %v1609
        %v2102 = vpop.f32.mrf.mxu0
        %v2103 = vadd.f32 %v1990, %v2102
        %v2104 = vpop.f32.mrf.mxu0
        %v2105 = vadd.f32 %v1992, %v2104
        %2106 = vmatmul.bf16.gmra.mxu0 %v1612
        %v2107 = vpop.f32.mrf.mxu0
        %v2108 = vadd.f32 %v1995, %v2107
        %v2109 = vpop.f32.mrf.mxu0
        %v2110 = vadd.f32 %v1997, %v2109
        %2111 = vmatmul.bf16.gmra.mxu0 %v1615
        %v2112 = vpop.f32.mrf.mxu0
        %v2113 = vadd.f32 %v2000, %v2112
        %v2114 = vpop.f32.mrf.mxu0
        %v2115 = vadd.f32 %v2002, %v2114
        %2116 = vmatmul.bf16.gmra.mxu0 %v1618
        %v2117 = vpop.f32.mrf.mxu0
        %v2118 = vadd.f32 %v2005, %v2117
        %v2119 = vpop.f32.mrf.mxu0
        %v2120 = vadd.f32 %v2007, %v2119
        %2121 = vmatmul.bf16.gmra.mxu0 %v1621
        %v2122 = vpop.f32.mrf.mxu0
        %v2123 = vadd.f32 %v2010, %v2122
        %v2124 = vpop.f32.mrf.mxu0
        %v2125 = vadd.f32 %v2012, %v2124
        %2126 = vmatmul.bf16.gmra.mxu0 %v1624
        %v2127 = vpop.f32.mrf.mxu0
        %v2128 = vadd.f32 %v2015, %v2127
        %v2129 = vpop.f32.mrf.mxu0
        %v2130 = vadd.f32 %v2017, %v2129
        %2131 = vmatmul.bf16.gmra.mxu0 %v1627
        %v2132 = vpop.f32.mrf.mxu0
        %v2133 = vadd.f32 %v2020, %v2132
        %v2134 = vpop.f32.mrf.mxu0
        %v2135 = vadd.f32 %v2022, %v2134
        %2136 = vmatmul.bf16.gmra.mxu0 %v1630
        %v2137 = vpop.f32.mrf.mxu0
        %v2138 = vadd.f32 %v2025, %v2137
        %v2139 = vpop.f32.mrf.mxu0
        %v2140 = vadd.f32 %v2027, %v2139
        %2141 = vmatmul.bf16.gmra.mxu0 %v1633
        %v2142 = vpop.f32.mrf.mxu0
        %v2143 = vadd.f32 %v2030, %v2142
        %v2144 = vpop.f32.mrf.mxu0
        %v2145 = vadd.f32 %v2032, %v2144
        %2146 = vmatmul.bf16.gmra.mxu0 %v1636
        %v2147 = vpop.f32.mrf.mxu0
        %v2148 = vadd.f32 %v2035, %v2147
        %v2149 = vpop.f32.mrf.mxu0
        %v2150 = vadd.f32 %v2037, %v2149
        %2151 = vmatmul.bf16.gmra.mxu0 %v1639
        %v2152 = vpop.f32.mrf.mxu0
        %v2153 = vadd.f32 %v2040, %v2152
        %v2154 = vpop.f32.mrf.mxu0
        %v2155 = vadd.f32 %v2042, %v2154
        %2156 = vmatmul.bf16.gmra.mxu0 %v1642
        %v2157 = vpop.f32.mrf.mxu0
        %v2158 = vadd.f32 %v2045, %v2157
        %v2159 = vpop.f32.mrf.mxu0
        %v2160 = vadd.f32 %v2047, %v2159
        %2161 = vmatmul.bf16.gmra.mxu0 %v1645
        %v2162 = vpop.f32.mrf.mxu0
        %v2163 = vadd.f32 %v2050, %v2162
        %v2164 = vpop.f32.mrf.mxu0
        %v2165 = vadd.f32 %v2052, %v2164
        %2166 = vmatmul.bf16.gmra.mxu0 %v1648
        %v2167 = vpop.f32.mrf.mxu0
        %v2168 = vadd.f32 %v2055, %v2167
        %v2169 = vpop.f32.mrf.mxu0
        %v2170 = vadd.f32 %v2057, %v2169
        %2171 = vmatmul.bf16.gmra.mxu0 %v1651
        %v2172 = vpop.f32.mrf.mxu0
        %v2173 = vadd.f32 %v2060, %v2172
        %v2174 = vpop.f32.mrf.mxu0
        %v2175 = vadd.f32 %v2062, %v2174
        %2176 = vmatmul.bf16.gmra.mxu0 %v1654
        %v2177 = vpop.f32.mrf.mxu0
        %v2178 = vadd.f32 %v2065, %v2177
        %v2179 = vpop.f32.mrf.mxu0
        %v2180 = vadd.f32 %v2067, %v2179
        %2181 = vmatmul.bf16.gmra.mxu0 %v1657
        %v2182 = vpop.f32.mrf.mxu0
        %v2183 = vadd.f32 %v2070, %v2182
        %v2184 = vpop.f32.mrf.mxu0
        %v2185 = vadd.f32 %v2072, %v2184
        %2186 = vmatmul.bf16.gmra.mxu0 %v1660
        %v2187 = vpop.f32.mrf.mxu0
        %v2188 = vadd.f32 %v2075, %v2187
        %v2189 = vpop.f32.mrf.mxu0
        %2190 = vdwg.mxu0
        %2191 = vmatpush.bf16.msra.mxu0 %v1915
        %2192 = vmatpush.bf16.msra.mxu0 %v1913
        %2193 = vmatpush.bf16.msra.mxu0 %v1911
        %2194 = vmatpush.bf16.msra.mxu0 %v1909
        %2195 = vmatpush.bf16.msra.mxu0 %v1907
        %2196 = vmatpush.bf16.msra.mxu0 %v1905
        %2197 = vmatpush.bf16.msra.mxu0 %v1903
        %2198 = vmatpush.bf16.msra.mxu0 %v1901
        %2199 = vmatmul.bf16.gmra.mxu0 %v1601
        %v2200 = vpop.f32.mrf.mxu0
        %v2201 = vadd.f32 %v2088, %v2200
        %v2202 = vpop.f32.mrf.mxu0
        %v2203 = vadd.f32 %v2090, %v2202
        %2204 = vmatmul.bf16.gmra.mxu0 %v1604
        %v2205 = vpop.f32.mrf.mxu0
        %v2206 = vadd.f32 %v2093, %v2205
        %v2207 = vpop.f32.mrf.mxu0
        %v2208 = vadd.f32 %v2095, %v2207
        %2209 = vmatmul.bf16.gmra.mxu0 %v1607
        %v2210 = vpop.f32.mrf.mxu0
        %v2211 = vadd.f32 %v2098, %v2210
        %v2212 = vpop.f32.mrf.mxu0
        %v2213 = vadd.f32 %v2100, %v2212
        %2214 = vmatmul.bf16.gmra.mxu0 %v1610
        %v2215 = vpop.f32.mrf.mxu0
        %v2216 = vadd.f32 %v2103, %v2215
        %v2217 = vpop.f32.mrf.mxu0
        %v2218 = vadd.f32 %v2105, %v2217
        %2219 = vmatmul.bf16.gmra.mxu0 %v1613
        %v2220 = vpop.f32.mrf.mxu0
        %v2221 = vadd.f32 %v2108, %v2220
        %v2222 = vpop.f32.mrf.mxu0
        %v2223 = vadd.f32 %v2110, %v2222
        %2224 = vmatmul.bf16.gmra.mxu0 %v1616
        %v2225 = vpop.f32.mrf.mxu0
        %v2226 = vadd.f32 %v2113, %v2225
        %v2227 = vpop.f32.mrf.mxu0
        %v2228 = vadd.f32 %v2115, %v2227
        %2229 = vmatmul.bf16.gmra.mxu0 %v1619
        %v2230 = vpop.f32.mrf.mxu0
        %v2231 = vadd.f32 %v2118, %v2230
        %v2232 = vpop.f32.mrf.mxu0
        %v2233 = vadd.f32 %v2120, %v2232
        %2234 = vmatmul.bf16.gmra.mxu0 %v1622
        %v2235 = vpop.f32.mrf.mxu0
        %v2236 = vadd.f32 %v2123, %v2235
        %v2237 = vpop.f32.mrf.mxu0
        %v2238 = vadd.f32 %v2125, %v2237
        %2239 = vmatmul.bf16.gmra.mxu0 %v1625
        %v2240 = vpop.f32.mrf.mxu0
        %v2241 = vadd.f32 %v2128, %v2240
        %v2242 = vpop.f32.mrf.mxu0
        %v2243 = vadd.f32 %v2130, %v2242
        %2244 = vmatmul.bf16.gmra.mxu0 %v1628
        %v2245 = vpop.f32.mrf.mxu0
        %v2246 = vadd.f32 %v2133, %v2245
        %v2247 = vpop.f32.mrf.mxu0
        %v2248 = vadd.f32 %v2135, %v2247
        %2249 = vmatmul.bf16.gmra.mxu0 %v1631
        %v2250 = vpop.f32.mrf.mxu0
        %v2251 = vadd.f32 %v2138, %v2250
        %v2252 = vpop.f32.mrf.mxu0
        %v2253 = vadd.f32 %v2140, %v2252
        %2254 = vmatmul.bf16.gmra.mxu0 %v1634
        %v2255 = vpop.f32.mrf.mxu0
        %v2256 = vadd.f32 %v2143, %v2255
        %v2257 = vpop.f32.mrf.mxu0
        %v2258 = vadd.f32 %v2145, %v2257
        %2259 = vmatmul.bf16.gmra.mxu0 %v1637
        %v2260 = vpop.f32.mrf.mxu0
        %v2261 = vadd.f32 %v2148, %v2260
        %v2262 = vpop.f32.mrf.mxu0
        %v2263 = vadd.f32 %v2150, %v2262
        %2264 = vmatmul.bf16.gmra.mxu0 %v1640
        %v2265 = vpop.f32.mrf.mxu0
        %v2266 = vadd.f32 %v2153, %v2265
        %v2267 = vpop.f32.mrf.mxu0
        %v2268 = vadd.f32 %v2155, %v2267
        %2269 = vmatmul.bf16.gmra.mxu0 %v1643
        %v2270 = vpop.f32.mrf.mxu0
        %v2271 = vadd.f32 %v2158, %v2270
        %v2272 = vpop.f32.mrf.mxu0
        %v2273 = vadd.f32 %v2160, %v2272
        %2274 = vmatmul.bf16.gmra.mxu0 %v1646
        %v2275 = vpop.f32.mrf.mxu0
        %v2276 = vadd.f32 %v2163, %v2275
        %v2277 = vpop.f32.mrf.mxu0
        %v2278 = vadd.f32 %v2165, %v2277
        %2279 = vmatmul.bf16.gmra.mxu0 %v1649
        %v2280 = vpop.f32.mrf.mxu0
        %v2281 = vadd.f32 %v2168, %v2280
        %v2282 = vpop.f32.mrf.mxu0
        %v2283 = vadd.f32 %v2170, %v2282
        %2284 = vmatmul.bf16.gmra.mxu0 %v1652
        %v2285 = vpop.f32.mrf.mxu0
        %v2286 = vadd.f32 %v2173, %v2285
        %v2287 = vpop.f32.mrf.mxu0
        %v2288 = vadd.f32 %v2175, %v2287
        %2289 = vmatmul.bf16.gmra.mxu0 %v1655
        %v2290 = vpop.f32.mrf.mxu0
        %v2291 = vadd.f32 %v2178, %v2290
        %v2292 = vpop.f32.mrf.mxu0
        %v2293 = vadd.f32 %v2180, %v2292
        %2294 = vmatmul.bf16.gmra.mxu0 %v1658
        %v2295 = vpop.f32.mrf.mxu0
        %v2296 = vadd.f32 %v2183, %v2295
        %v2297 = vpop.f32.mrf.mxu0
        %v2298 = vadd.f32 %v2185, %v2297
        %2299 = vmatmul.bf16.gmra.mxu0 %v1661
        %v2300 = vpop.f32.mrf.mxu0
        %v2301 = vadd.f32 %v2188, %v2300
        %v2302 = vpop.f32.mrf.mxu0
        %2303 = vdwg.mxu0
        %2304 = vmatpush.bf16.msra.mxu0 %v1884
        %2305 = vmatpush.bf16.msra.mxu0 %v1882
        %2306 = vmatpush.bf16.msra.mxu0 %v1880
        %2307 = vmatpush.bf16.msra.mxu0 %v1878
        %2308 = vmatpush.bf16.msra.mxu0 %v1876
        %2309 = vmatpush.bf16.msra.mxu0 %v1874
        %2310 = vmatpush.bf16.msra.mxu0 %v1872
        %2311 = vmatpush.bf16.msra.mxu0 %v1870
        %2312 = vmatmul.bf16.gmra.mxu0 %v1599
        %v2313 = vpop.f32.mrf.mxu0
        %v2314 = vadd.f32 0.0, %v2313
        %v2315 = vpop.f32.mrf.mxu0
        %v2316 = vadd.f32 0.0, %v2315
        %2317 = vmatmul.bf16.gmra.mxu0 %v1602
        %v2318 = vpop.f32.mrf.mxu0
        %v2319 = vadd.f32 0.0, %v2318
        %v2320 = vpop.f32.mrf.mxu0
        %v2321 = vadd.f32 0.0, %v2320
        %2322 = vmatmul.bf16.gmra.mxu0 %v1605
        %v2323 = vpop.f32.mrf.mxu0
        %v2324 = vadd.f32 0.0, %v2323
        %v2325 = vpop.f32.mrf.mxu0
        %v2326 = vadd.f32 0.0, %v2325
        %2327 = vmatmul.bf16.gmra.mxu0 %v1608
        %v2328 = vpop.f32.mrf.mxu0
        %v2329 = vadd.f32 0.0, %v2328
        %v2330 = vpop.f32.mrf.mxu0
        %v2331 = vadd.f32 0.0, %v2330
        %2332 = vmatmul.bf16.gmra.mxu0 %v1611
        %v2333 = vpop.f32.mrf.mxu0
        %v2334 = vadd.f32 0.0, %v2333
        %v2335 = vpop.f32.mrf.mxu0
        %v2336 = vadd.f32 0.0, %v2335
        %2337 = vmatmul.bf16.gmra.mxu0 %v1614
        %v2338 = vpop.f32.mrf.mxu0
        %v2339 = vadd.f32 0.0, %v2338
        %v2340 = vpop.f32.mrf.mxu0
        %v2341 = vadd.f32 0.0, %v2340
        %2342 = vmatmul.bf16.gmra.mxu0 %v1617
        %v2343 = vpop.f32.mrf.mxu0
        %v2344 = vadd.f32 0.0, %v2343
        %v2345 = vpop.f32.mrf.mxu0
        %v2346 = vadd.f32 0.0, %v2345
        %2347 = vmatmul.bf16.gmra.mxu0 %v1620
        %v2348 = vpop.f32.mrf.mxu0
        %v2349 = vadd.f32 0.0, %v2348
        %v2350 = vpop.f32.mrf.mxu0
        %v2351 = vadd.f32 0.0, %v2350
        %2352 = vmatmul.bf16.gmra.mxu0 %v1623
        %v2353 = vpop.f32.mrf.mxu0
        %v2354 = vadd.f32 0.0, %v2353
        %v2355 = vpop.f32.mrf.mxu0
        %v2356 = vadd.f32 0.0, %v2355
        %2357 = vmatmul.bf16.gmra.mxu0 %v1626
        %v2358 = vpop.f32.mrf.mxu0
        %v2359 = vadd.f32 0.0, %v2358
        %v2360 = vpop.f32.mrf.mxu0
        %v2361 = vadd.f32 0.0, %v2360
        %2362 = vmatmul.bf16.gmra.mxu0 %v1629
        %v2363 = vpop.f32.mrf.mxu0
        %v2364 = vadd.f32 0.0, %v2363
        %v2365 = vpop.f32.mrf.mxu0
        %v2366 = vadd.f32 0.0, %v2365
        %2367 = vmatmul.bf16.gmra.mxu0 %v1632
        %v2368 = vpop.f32.mrf.mxu0
        %v2369 = vadd.f32 0.0, %v2368
        %v2370 = vpop.f32.mrf.mxu0
        %v2371 = vadd.f32 0.0, %v2370
        %2372 = vmatmul.bf16.gmra.mxu0 %v1635
        %v2373 = vpop.f32.mrf.mxu0
        %v2374 = vadd.f32 0.0, %v2373
        %v2375 = vpop.f32.mrf.mxu0
        %v2376 = vadd.f32 0.0, %v2375
        %2377 = vmatmul.bf16.gmra.mxu0 %v1638
        %v2378 = vpop.f32.mrf.mxu0
        %v2379 = vadd.f32 0.0, %v2378
        %v2380 = vpop.f32.mrf.mxu0
        %v2381 = vadd.f32 0.0, %v2380
        %2382 = vmatmul.bf16.gmra.mxu0 %v1641
        %v2383 = vpop.f32.mrf.mxu0
        %v2384 = vadd.f32 0.0, %v2383
        %v2385 = vpop.f32.mrf.mxu0
        %v2386 = vadd.f32 0.0, %v2385
        %2387 = vmatmul.bf16.gmra.mxu0 %v1644
        %v2388 = vpop.f32.mrf.mxu0
        %v2389 = vadd.f32 0.0, %v2388
        %v2390 = vpop.f32.mrf.mxu0
        %v2391 = vadd.f32 0.0, %v2390
        %2392 = vmatmul.bf16.gmra.mxu0 %v1647
        %v2393 = vpop.f32.mrf.mxu0
        %v2394 = vadd.f32 0.0, %v2393
        %v2395 = vpop.f32.mrf.mxu0
        %v2396 = vadd.f32 0.0, %v2395
        %2397 = vmatmul.bf16.gmra.mxu0 %v1650
        %v2398 = vpop.f32.mrf.mxu0
        %v2399 = vadd.f32 0.0, %v2398
        %v2400 = vpop.f32.mrf.mxu0
        %v2401 = vadd.f32 0.0, %v2400
        %2402 = vmatmul.bf16.gmra.mxu0 %v1653
        %v2403 = vpop.f32.mrf.mxu0
        %v2404 = vadd.f32 0.0, %v2403
        %v2405 = vpop.f32.mrf.mxu0
        %v2406 = vadd.f32 0.0, %v2405
        %2407 = vmatmul.bf16.gmra.mxu0 %v1656
        %v2408 = vpop.f32.mrf.mxu0
        %v2409 = vadd.f32 0.0, %v2408
        %v2410 = vpop.f32.mrf.mxu0
        %v2411 = vadd.f32 0.0, %v2410
        %2412 = vmatmul.bf16.gmra.mxu0 %v1659
        %v2413 = vpop.f32.mrf.mxu0
        %v2414 = vadd.f32 0.0, %v2413
        %v2415 = vpop.f32.mrf.mxu0
        %2416 = vdwg.mxu0
        %2417 = vmatpush.bf16.msra.mxu0 %v1900
        %2418 = vmatpush.bf16.msra.mxu0 %v1898
        %2419 = vmatpush.bf16.msra.mxu0 %v1896
        %2420 = vmatpush.bf16.msra.mxu0 %v1894
        %2421 = vmatpush.bf16.msra.mxu0 %v1892
        %2422 = vmatpush.bf16.msra.mxu0 %v1890
        %2423 = vmatpush.bf16.msra.mxu0 %v1888
        %2424 = vmatpush.bf16.msra.mxu0 %v1886
        %2425 = vmatmul.bf16.gmra.mxu0 %v1600
        %v2426 = vpop.f32.mrf.mxu0
        %v2427 = vadd.f32 %v2314, %v2426
        %v2428 = vpop.f32.mrf.mxu0
        %v2429 = vadd.f32 %v2316, %v2428
        %2430 = vmatmul.bf16.gmra.mxu0 %v1603
        %v2431 = vpop.f32.mrf.mxu0
        %v2432 = vadd.f32 %v2319, %v2431
        %v2433 = vpop.f32.mrf.mxu0
        %v2434 = vadd.f32 %v2321, %v2433
        %2435 = vmatmul.bf16.gmra.mxu0 %v1606
        %v2436 = vpop.f32.mrf.mxu0
        %v2437 = vadd.f32 %v2324, %v2436
        %v2438 = vpop.f32.mrf.mxu0
        %v2439 = vadd.f32 %v2326, %v2438
        %2440 = vmatmul.bf16.gmra.mxu0 %v1609
        %v2441 = vpop.f32.mrf.mxu0
        %v2442 = vadd.f32 %v2329, %v2441
        %v2443 = vpop.f32.mrf.mxu0
        %v2444 = vadd.f32 %v2331, %v2443
        %2445 = vmatmul.bf16.gmra.mxu0 %v1612
        %v2446 = vpop.f32.mrf.mxu0
        %v2447 = vadd.f32 %v2334, %v2446
        %v2448 = vpop.f32.mrf.mxu0
        %v2449 = vadd.f32 %v2336, %v2448
        %2450 = vmatmul.bf16.gmra.mxu0 %v1615
        %v2451 = vpop.f32.mrf.mxu0
        %v2452 = vadd.f32 %v2339, %v2451
        %v2453 = vpop.f32.mrf.mxu0
        %v2454 = vadd.f32 %v2341, %v2453
        %2455 = vmatmul.bf16.gmra.mxu0 %v1618
        %v2456 = vpop.f32.mrf.mxu0
        %v2457 = vadd.f32 %v2344, %v2456
        %v2458 = vpop.f32.mrf.mxu0
        %v2459 = vadd.f32 %v2346, %v2458
        %2460 = vmatmul.bf16.gmra.mxu0 %v1621
        %v2461 = vpop.f32.mrf.mxu0
        %v2462 = vadd.f32 %v2349, %v2461
        %v2463 = vpop.f32.mrf.mxu0
        %v2464 = vadd.f32 %v2351, %v2463
        %2465 = vmatmul.bf16.gmra.mxu0 %v1624
        %v2466 = vpop.f32.mrf.mxu0
        %v2467 = vadd.f32 %v2354, %v2466
        %v2468 = vpop.f32.mrf.mxu0
        %v2469 = vadd.f32 %v2356, %v2468
        %2470 = vmatmul.bf16.gmra.mxu0 %v1627
        %v2471 = vpop.f32.mrf.mxu0
        %v2472 = vadd.f32 %v2359, %v2471
        %v2473 = vpop.f32.mrf.mxu0
        %v2474 = vadd.f32 %v2361, %v2473
        %2475 = vmatmul.bf16.gmra.mxu0 %v1630
        %v2476 = vpop.f32.mrf.mxu0
        %v2477 = vadd.f32 %v2364, %v2476
        %v2478 = vpop.f32.mrf.mxu0
        %v2479 = vadd.f32 %v2366, %v2478
        %2480 = vmatmul.bf16.gmra.mxu0 %v1633
        %v2481 = vpop.f32.mrf.mxu0
        %v2482 = vadd.f32 %v2369, %v2481
        %v2483 = vpop.f32.mrf.mxu0
        %v2484 = vadd.f32 %v2371, %v2483
        %2485 = vmatmul.bf16.gmra.mxu0 %v1636
        %v2486 = vpop.f32.mrf.mxu0
        %v2487 = vadd.f32 %v2374, %v2486
        %v2488 = vpop.f32.mrf.mxu0
        %v2489 = vadd.f32 %v2376, %v2488
        %2490 = vmatmul.bf16.gmra.mxu0 %v1639
        %v2491 = vpop.f32.mrf.mxu0
        %v2492 = vadd.f32 %v2379, %v2491
        %v2493 = vpop.f32.mrf.mxu0
        %v2494 = vadd.f32 %v2381, %v2493
        %2495 = vmatmul.bf16.gmra.mxu0 %v1642
        %v2496 = vpop.f32.mrf.mxu0
        %v2497 = vadd.f32 %v2384, %v2496
        %v2498 = vpop.f32.mrf.mxu0
        %v2499 = vadd.f32 %v2386, %v2498
        %2500 = vmatmul.bf16.gmra.mxu0 %v1645
        %v2501 = vpop.f32.mrf.mxu0
        %v2502 = vadd.f32 %v2389, %v2501
        %v2503 = vpop.f32.mrf.mxu0
        %v2504 = vadd.f32 %v2391, %v2503
        %2505 = vmatmul.bf16.gmra.mxu0 %v1648
        %v2506 = vpop.f32.mrf.mxu0
        %v2507 = vadd.f32 %v2394, %v2506
        %v2508 = vpop.f32.mrf.mxu0
        %v2509 = vadd.f32 %v2396, %v2508
        %2510 = vmatmul.bf16.gmra.mxu0 %v1651
        %v2511 = vpop.f32.mrf.mxu0
        %v2512 = vadd.f32 %v2399, %v2511
        %v2513 = vpop.f32.mrf.mxu0
        %v2514 = vadd.f32 %v2401, %v2513
        %2515 = vmatmul.bf16.gmra.mxu0 %v1654
        %v2516 = vpop.f32.mrf.mxu0
        %v2517 = vadd.f32 %v2404, %v2516
        %v2518 = vpop.f32.mrf.mxu0
        %v2519 = vadd.f32 %v2406, %v2518
        %2520 = vmatmul.bf16.gmra.mxu0 %v1657
        %v2521 = vpop.f32.mrf.mxu0
        %v2522 = vadd.f32 %v2409, %v2521
        %v2523 = vpop.f32.mrf.mxu0
        %v2524 = vadd.f32 %v2411, %v2523
        %2525 = vmatmul.bf16.gmra.mxu0 %v1660
        %v2526 = vpop.f32.mrf.mxu0
        %v2527 = vadd.f32 %v2414, %v2526
        %v2528 = vpop.f32.mrf.mxu0
        %2529 = vdwg.mxu0
        %2530 = vmatpush.bf16.msra.mxu0 %v1916
        %2531 = vmatpush.bf16.msra.mxu0 %v1914
        %2532 = vmatpush.bf16.msra.mxu0 %v1912
        %2533 = vmatpush.bf16.msra.mxu0 %v1910
        %2534 = vmatpush.bf16.msra.mxu0 %v1908
        %2535 = vmatpush.bf16.msra.mxu0 %v1906
        %2536 = vmatpush.bf16.msra.mxu0 %v1904
        %2537 = vmatpush.bf16.msra.mxu0 %v1902
        %2538 = vmatmul.bf16.gmra.mxu0 %v1601
        %v2539 = vpop.f32.mrf.mxu0
        %v2540 = vadd.f32 %v2427, %v2539
        %v2541 = vpop.f32.mrf.mxu0
        %v2542 = vadd.f32 %v2429, %v2541
        %2543 = vmatmul.bf16.gmra.mxu0 %v1604
        %v2544 = vpop.f32.mrf.mxu0
        %v2545 = vadd.f32 %v2432, %v2544
        %v2546 = vpop.f32.mrf.mxu0
        %v2547 = vadd.f32 %v2434, %v2546
        %2548 = vmatmul.bf16.gmra.mxu0 %v1607
        %v2549 = vpop.f32.mrf.mxu0
        %v2550 = vadd.f32 %v2437, %v2549
        %v2551 = vpop.f32.mrf.mxu0
        %v2552 = vadd.f32 %v2439, %v2551
        %2553 = vmatmul.bf16.gmra.mxu0 %v1610
        %v2554 = vpop.f32.mrf.mxu0
        %v2555 = vadd.f32 %v2442, %v2554
        %v2556 = vpop.f32.mrf.mxu0
        %v2557 = vadd.f32 %v2444, %v2556
        %2558 = vmatmul.bf16.gmra.mxu0 %v1613
        %v2559 = vpop.f32.mrf.mxu0
        %v2560 = vadd.f32 %v2447, %v2559
        %v2561 = vpop.f32.mrf.mxu0
        %v2562 = vadd.f32 %v2449, %v2561
        %2563 = vmatmul.bf16.gmra.mxu0 %v1616
        %v2564 = vpop.f32.mrf.mxu0
        %v2565 = vadd.f32 %v2452, %v2564
        %v2566 = vpop.f32.mrf.mxu0
        %v2567 = vadd.f32 %v2454, %v2566
        %2568 = vmatmul.bf16.gmra.mxu0 %v1619
        %v2569 = vpop.f32.mrf.mxu0
        %v2570 = vadd.f32 %v2457, %v2569
        %v2571 = vpop.f32.mrf.mxu0
        %v2572 = vadd.f32 %v2459, %v2571
        %2573 = vmatmul.bf16.gmra.mxu0 %v1622
        %v2574 = vpop.f32.mrf.mxu0
        %v2575 = vadd.f32 %v2462, %v2574
        %v2576 = vpop.f32.mrf.mxu0
        %v2577 = vadd.f32 %v2464, %v2576
        %2578 = vmatmul.bf16.gmra.mxu0 %v1625
        %v2579 = vpop.f32.mrf.mxu0
        %v2580 = vadd.f32 %v2467, %v2579
        %v2581 = vpop.f32.mrf.mxu0
        %v2582 = vadd.f32 %v2469, %v2581
        %2583 = vmatmul.bf16.gmra.mxu0 %v1628
        %v2584 = vpop.f32.mrf.mxu0
        %v2585 = vadd.f32 %v2472, %v2584
        %v2586 = vpop.f32.mrf.mxu0
        %v2587 = vadd.f32 %v2474, %v2586
        %2588 = vmatmul.bf16.gmra.mxu0 %v1631
        %v2589 = vpop.f32.mrf.mxu0
        %v2590 = vadd.f32 %v2477, %v2589
        %v2591 = vpop.f32.mrf.mxu0
        %v2592 = vadd.f32 %v2479, %v2591
        %2593 = vmatmul.bf16.gmra.mxu0 %v1634
        %v2594 = vpop.f32.mrf.mxu0
        %v2595 = vadd.f32 %v2482, %v2594
        %v2596 = vpop.f32.mrf.mxu0
        %v2597 = vadd.f32 %v2484, %v2596
        %2598 = vmatmul.bf16.gmra.mxu0 %v1637
        %v2599 = vpop.f32.mrf.mxu0
        %v2600 = vadd.f32 %v2487, %v2599
        %v2601 = vpop.f32.mrf.mxu0
        %v2602 = vadd.f32 %v2489, %v2601
        %2603 = vmatmul.bf16.gmra.mxu0 %v1640
        %v2604 = vpop.f32.mrf.mxu0
        %v2605 = vadd.f32 %v2492, %v2604
        %v2606 = vpop.f32.mrf.mxu0
        %v2607 = vadd.f32 %v2494, %v2606
        %2608 = vmatmul.bf16.gmra.mxu0 %v1643
        %v2609 = vpop.f32.mrf.mxu0
        %v2610 = vadd.f32 %v2497, %v2609
        %v2611 = vpop.f32.mrf.mxu0
        %v2612 = vadd.f32 %v2499, %v2611
        %2613 = vmatmul.bf16.gmra.mxu0 %v1646
        %v2614 = vpop.f32.mrf.mxu0
        %v2615 = vadd.f32 %v2502, %v2614
        %v2616 = vpop.f32.mrf.mxu0
        %v2617 = vadd.f32 %v2504, %v2616
        %2618 = vmatmul.bf16.gmra.mxu0 %v1649
        %v2619 = vpop.f32.mrf.mxu0
        %v2620 = vadd.f32 %v2507, %v2619
        %v2621 = vpop.f32.mrf.mxu0
        %v2622 = vadd.f32 %v2509, %v2621
        %2623 = vmatmul.bf16.gmra.mxu0 %v1652
        %v2624 = vpop.f32.mrf.mxu0
        %v2625 = vadd.f32 %v2512, %v2624
        %v2626 = vpop.f32.mrf.mxu0
        %v2627 = vadd.f32 %v2514, %v2626
        %2628 = vmatmul.bf16.gmra.mxu0 %v1655
        %v2629 = vpop.f32.mrf.mxu0
        %v2630 = vadd.f32 %v2517, %v2629
        %v2631 = vpop.f32.mrf.mxu0
        %v2632 = vadd.f32 %v2519, %v2631
        %2633 = vmatmul.bf16.gmra.mxu0 %v1658
        %v2634 = vpop.f32.mrf.mxu0
        %v2635 = vadd.f32 %v2522, %v2634
        %v2636 = vpop.f32.mrf.mxu0
        %v2637 = vadd.f32 %v2524, %v2636
        %2638 = vmatmul.bf16.gmra.mxu0 %v1661
        %v2639 = vpop.f32.mrf.mxu0
        %v2640 = vadd.f32 %v2527, %v2639
        %v2641 = vpop.f32.mrf.mxu0
        %2642 = vdwg.mxu0
        %2643 = vst [vmem:[#allocation3] sm:$0xff] %v2201
        %2644 = vst [vmem:[#allocation3 + $0x8] sm:$0xff] %v2540
        %2645 = vst [vmem:[#allocation3 + $0x10] sm:$0xff] %v2203
        %2646 = vst [vmem:[#allocation3 + $0x18] sm:$0xff] %v2542
        %2647 = vst [vmem:[#allocation3 + $0x20] sm:$0xff] %v2206
        %2648 = vst [vmem:[#allocation3 + $0x28] sm:$0xff] %v2545
        %2649 = vst [vmem:[#allocation3 + $0x30] sm:$0xff] %v2208
        %2650 = vst [vmem:[#allocation3 + $0x38] sm:$0xff] %v2547
        %2651 = vst [vmem:[#allocation3 + $0x40] sm:$0xff] %v2211
        %2652 = vst [vmem:[#allocation3 + $0x48] sm:$0xff] %v2550
        %2653 = vst [vmem:[#allocation3 + $0x50] sm:$0xff] %v2213
        %2654 = vst [vmem:[#allocation3 + $0x58] sm:$0xff] %v2552
        %2655 = vst [vmem:[#allocation3 + $0x60] sm:$0xff] %v2216
        %2656 = vst [vmem:[#allocation3 + $0x68] sm:$0xff] %v2555
        %2657 = vst [vmem:[#allocation3 + $0x70] sm:$0xff] %v2218
        %2658 = vst [vmem:[#allocation3 + $0x78] sm:$0xff] %v2557
        %2659 = vst [vmem:[#allocation3 + $0x80] sm:$0xff] %v2221
        %2660 = vst [vmem:[#allocation3 + $0x88] sm:$0xff] %v2560
        %2661 = vst [vmem:[#allocation3 + $0x90] sm:$0xff] %v2223
        %2662 = vst [vmem:[#allocation3 + $0x98] sm:$0xff] %v2562
        %2663 = vst [vmem:[#allocation3 + $0xa0] sm:$0xff] %v2226
        %2664 = vst [vmem:[#allocation3 + $0xa8] sm:$0xff] %v2565
        %2665 = vst [vmem:[#allocation3 + $0xb0] sm:$0xff] %v2228
        %2666 = vst [vmem:[#allocation3 + $0xb8] sm:$0xff] %v2567
        %2667 = vst [vmem:[#allocation3 + $0xc0] sm:$0xff] %v2231
        %2668 = vst [vmem:[#allocation3 + $0xc8] sm:$0xff] %v2570
        %2669 = vst [vmem:[#allocation3 + $0xd0] sm:$0xff] %v2233
        %2670 = vst [vmem:[#allocation3 + $0xd8] sm:$0xff] %v2572
        %2671 = vst [vmem:[#allocation3 + $0xe0] sm:$0xff] %v2236
        %2672 = vst [vmem:[#allocation3 + $0xe8] sm:$0xff] %v2575
        %2673 = vst [vmem:[#allocation3 + $0xf0] sm:$0xff] %v2238
        %2674 = vst [vmem:[#allocation3 + $0xf8] sm:$0xff] %v2577
        %2675 = vst [vmem:[#allocation3 + $0x100] sm:$0xff] %v2241
        %2676 = vst [vmem:[#allocation3 + $0x108] sm:$0xff] %v2580
        %2677 = vst [vmem:[#allocation3 + $0x110] sm:$0xff] %v2243
        %2678 = vst [vmem:[#allocation3 + $0x118] sm:$0xff] %v2582
        %2679 = vst [vmem:[#allocation3 + $0x120] sm:$0xff] %v2246
        %2680 = vst [vmem:[#allocation3 + $0x128] sm:$0xff] %v2585
        %2681 = vst [vmem:[#allocation3 + $0x130] sm:$0xff] %v2248
        %2682 = vst [vmem:[#allocation3 + $0x138] sm:$0xff] %v2587
        %2683 = vst [vmem:[#allocation3 + $0x140] sm:$0xff] %v2251
        %2684 = vst [vmem:[#allocation3 + $0x148] sm:$0xff] %v2590
        %2685 = vst [vmem:[#allocation3 + $0x150] sm:$0xff] %v2253
        %2686 = vst [vmem:[#allocation3 + $0x158] sm:$0xff] %v2592
        %2687 = vst [vmem:[#allocation3 + $0x160] sm:$0xff] %v2256
        %2688 = vst [vmem:[#allocation3 + $0x168] sm:$0xff] %v2595
        %2689 = vst [vmem:[#allocation3 + $0x170] sm:$0xff] %v2258
        %2690 = vst [vmem:[#allocation3 + $0x178] sm:$0xff] %v2597
        %2691 = vst [vmem:[#allocation3 + $0x180] sm:$0xff] %v2261
        %2692 = vst [vmem:[#allocation3 + $0x188] sm:$0xff] %v2600
        %2693 = vst [vmem:[#allocation3 + $0x190] sm:$0xff] %v2263
        %2694 = vst [vmem:[#allocation3 + $0x198] sm:$0xff] %v2602
        %2695 = vst [vmem:[#allocation3 + $0x1a0] sm:$0xff] %v2266
        %2696 = vst [vmem:[#allocation3 + $0x1a8] sm:$0xff] %v2605
        %2697 = vst [vmem:[#allocation3 + $0x1b0] sm:$0xff] %v2268
        %2698 = vst [vmem:[#allocation3 + $0x1b8] sm:$0xff] %v2607
        %2699 = vst [vmem:[#allocation3 + $0x1c0] sm:$0xff] %v2271
        %2700 = vst [vmem:[#allocation3 + $0x1c8] sm:$0xff] %v2610
        %2701 = vst [vmem:[#allocation3 + $0x1d0] sm:$0xff] %v2273
        %2702 = vst [vmem:[#allocation3 + $0x1d8] sm:$0xff] %v2612
        %2703 = vst [vmem:[#allocation3 + $0x1e0] sm:$0xff] %v2276
        %2704 = vst [vmem:[#allocation3 + $0x1e8] sm:$0xff] %v2615
        %2705 = vst [vmem:[#allocation3 + $0x1f0] sm:$0xff] %v2278
        %2706 = vst [vmem:[#allocation3 + $0x1f8] sm:$0xff] %v2617
        %2707 = vst [vmem:[#allocation3 + $0x200] sm:$0xff] %v2281
        %2708 = vst [vmem:[#allocation3 + $0x208] sm:$0xff] %v2620
        %2709 = vst [vmem:[#allocation3 + $0x210] sm:$0xff] %v2283
        %2710 = vst [vmem:[#allocation3 + $0x218] sm:$0xff] %v2622
        %2711 = vst [vmem:[#allocation3 + $0x220] sm:$0xff] %v2286
        %2712 = vst [vmem:[#allocation3 + $0x228] sm:$0xff] %v2625
        %2713 = vst [vmem:[#allocation3 + $0x230] sm:$0xff] %v2288
        %2714 = vst [vmem:[#allocation3 + $0x238] sm:$0xff] %v2627
        %2715 = vst [vmem:[#allocation3 + $0x240] sm:$0xff] %v2291
        %2716 = vst [vmem:[#allocation3 + $0x248] sm:$0xff] %v2630
        %2717 = vst [vmem:[#allocation3 + $0x250] sm:$0xff] %v2293
        %2718 = vst [vmem:[#allocation3 + $0x258] sm:$0xff] %v2632
        %2719 = vst [vmem:[#allocation3 + $0x260] sm:$0xff] %v2296
        %2720 = vst [vmem:[#allocation3 + $0x268] sm:$0xff] %v2635
        %2721 = vst [vmem:[#allocation3 + $0x270] sm:$0xff] %v2298
        %2722 = vst [vmem:[#allocation3 + $0x278] sm:$0xff] %v2637
        %2723 = vst [vmem:[#allocation3 + $0x280] sm:$0xf] %v2301
        %2724 = vst [vmem:[#allocation3 + $0x288] sm:$0xf] %v2640
        %v2725 = vld [vmem:[#allocation3] sm:$0xff]
        %v2726 = vld [vmem:[#allocation3 + $0x8] sm:$0xff]
        %v2727 = vld [vmem:[#allocation3 + $0x10] sm:$0xff]
        %v2728 = vld [vmem:[#allocation3 + $0x18] sm:$0xff]
        %v2729 = vld [vmem:[#allocation3 + $0x20] sm:$0xff]
        %v2730 = vld [vmem:[#allocation3 + $0x28] sm:$0xff]
        %v2731 = vld [vmem:[#allocation3 + $0x30] sm:$0xff]
        %v2732 = vld [vmem:[#allocation3 + $0x38] sm:$0xff]
        %v2733 = vld [vmem:[#allocation3 + $0x40] sm:$0xff]
        %v2734 = vld [vmem:[#allocation3 + $0x48] sm:$0xff]
        %v2735 = vld [vmem:[#allocation3 + $0x50] sm:$0xff]
        %v2736 = vld [vmem:[#allocation3 + $0x58] sm:$0xff]
        %v2737 = vld [vmem:[#allocation3 + $0x60] sm:$0xff]
        %v2738 = vld [vmem:[#allocation3 + $0x68] sm:$0xff]
        %v2739 = vld [vmem:[#allocation3 + $0x70] sm:$0xff]
        %v2740 = vld [vmem:[#allocation3 + $0x78] sm:$0xff]
        %v2741 = vld [vmem:[#allocation3 + $0x80] sm:$0xff]
        %v2742 = vld [vmem:[#allocation3 + $0x88] sm:$0xff]
        %v2743 = vld [vmem:[#allocation3 + $0x90] sm:$0xff]
        %v2744 = vld [vmem:[#allocation3 + $0x98] sm:$0xff]
        %v2745 = vld [vmem:[#allocation3 + $0xa0] sm:$0xff]
        %v2746 = vld [vmem:[#allocation3 + $0xa8] sm:$0xff]
        %v2747 = vld [vmem:[#allocation3 + $0xb0] sm:$0xff]
        %v2748 = vld [vmem:[#allocation3 + $0xb8] sm:$0xff]
        %v2749 = vld [vmem:[#allocation3 + $0xc0] sm:$0xff]
        %v2750 = vld [vmem:[#allocation3 + $0xc8] sm:$0xff]
        %v2751 = vld [vmem:[#allocation3 + $0xd0] sm:$0xff]
        %v2752 = vld [vmem:[#allocation3 + $0xd8] sm:$0xff]
        %v2753 = vld [vmem:[#allocation3 + $0xe0] sm:$0xff]
        %v2754 = vld [vmem:[#allocation3 + $0xe8] sm:$0xff]
        %v2755 = vld [vmem:[#allocation3 + $0xf0] sm:$0xff]
        %v2756 = vld [vmem:[#allocation3 + $0xf8] sm:$0xff]
        %v2757 = vld [vmem:[#allocation3 + $0x100] sm:$0xff]
        %v2758 = vld [vmem:[#allocation3 + $0x108] sm:$0xff]
        %v2759 = vld [vmem:[#allocation3 + $0x110] sm:$0xff]
        %v2760 = vld [vmem:[#allocation3 + $0x118] sm:$0xff]
        %v2761 = vld [vmem:[#allocation3 + $0x120] sm:$0xff]
        %v2762 = vld [vmem:[#allocation3 + $0x128] sm:$0xff]
        %v2763 = vld [vmem:[#allocation3 + $0x130] sm:$0xff]
        %v2764 = vld [vmem:[#allocation3 + $0x138] sm:$0xff]
        %v2765 = vld [vmem:[#allocation3 + $0x140] sm:$0xff]
        %v2766 = vld [vmem:[#allocation3 + $0x148] sm:$0xff]
        %v2767 = vld [vmem:[#allocation3 + $0x150] sm:$0xff]
        %v2768 = vld [vmem:[#allocation3 + $0x158] sm:$0xff]
        %v2769 = vld [vmem:[#allocation3 + $0x160] sm:$0xff]
        %v2770 = vld [vmem:[#allocation3 + $0x168] sm:$0xff]
        %v2771 = vld [vmem:[#allocation3 + $0x170] sm:$0xff]
        %v2772 = vld [vmem:[#allocation3 + $0x178] sm:$0xff]
        %v2773 = vld [vmem:[#allocation3 + $0x180] sm:$0xff]
        %v2774 = vld [vmem:[#allocation3 + $0x188] sm:$0xff]
        %v2775 = vld [vmem:[#allocation3 + $0x190] sm:$0xff]
        %v2776 = vld [vmem:[#allocation3 + $0x198] sm:$0xff]
        %v2777 = vld [vmem:[#allocation3 + $0x1a0] sm:$0xff]
        %v2778 = vld [vmem:[#allocation3 + $0x1a8] sm:$0xff]
        %v2779 = vld [vmem:[#allocation3 + $0x1b0] sm:$0xff]
        %v2780 = vld [vmem:[#allocation3 + $0x1b8] sm:$0xff]
        %v2781 = vld [vmem:[#allocation3 + $0x1c0] sm:$0xff]
        %v2782 = vld [vmem:[#allocation3 + $0x1c8] sm:$0xff]
        %v2783 = vld [vmem:[#allocation3 + $0x1d0] sm:$0xff]
        %v2784 = vld [vmem:[#allocation3 + $0x1d8] sm:$0xff]
        %v2785 = vld [vmem:[#allocation3 + $0x1e0] sm:$0xff]
        %v2786 = vld [vmem:[#allocation3 + $0x1e8] sm:$0xff]
        %v2787 = vld [vmem:[#allocation3 + $0x1f0] sm:$0xff]
        %v2788 = vld [vmem:[#allocation3 + $0x1f8] sm:$0xff]
        %v2789 = vld [vmem:[#allocation3 + $0x200] sm:$0xff]
        %v2790 = vld [vmem:[#allocation3 + $0x208] sm:$0xff]
        %v2791 = vld [vmem:[#allocation3 + $0x210] sm:$0xff]
        %v2792 = vld [vmem:[#allocation3 + $0x218] sm:$0xff]
        %v2793 = vld [vmem:[#allocation3 + $0x220] sm:$0xff]
        %v2794 = vld [vmem:[#allocation3 + $0x228] sm:$0xff]
        %v2795 = vld [vmem:[#allocation3 + $0x230] sm:$0xff]
        %v2796 = vld [vmem:[#allocation3 + $0x238] sm:$0xff]
        %2797 = vst [vmem:[#allocation4] sm:$0xff] %v2725
        %2798 = vst [vmem:[#allocation4 + $0x8] sm:$0xff] %v2726
        %2799 = vst [vmem:[#allocation4 + $0x10] sm:$0xff] %v2727
        %2800 = vst [vmem:[#allocation4 + $0x18] sm:$0xff] %v2728
        %2801 = vst [vmem:[#allocation4 + $0x20] sm:$0xff] %v2729
        %2802 = vst [vmem:[#allocation4 + $0x28] sm:$0xff] %v2730
        %2803 = vst [vmem:[#allocation4 + $0x30] sm:$0xff] %v2731
        %2804 = vst [vmem:[#allocation4 + $0x38] sm:$0xff] %v2732
        %2805 = vst [vmem:[#allocation4 + $0x40] sm:$0xff] %v2733
        %2806 = vst [vmem:[#allocation4 + $0x48] sm:$0xff] %v2734
        %2807 = vst [vmem:[#allocation4 + $0x50] sm:$0xff] %v2735
        %2808 = vst [vmem:[#allocation4 + $0x58] sm:$0xff] %v2736
        %2809 = vst [vmem:[#allocation4 + $0x60] sm:$0xff] %v2737
        %2810 = vst [vmem:[#allocation4 + $0x68] sm:$0xff] %v2738
        %2811 = vst [vmem:[#allocation4 + $0x70] sm:$0xff] %v2739
        %2812 = vst [vmem:[#allocation4 + $0x78] sm:$0xff] %v2740
        %2813 = vst [vmem:[#allocation4 + $0x80] sm:$0xff] %v2741
        %2814 = vst [vmem:[#allocation4 + $0x88] sm:$0xff] %v2742
        %2815 = vst [vmem:[#allocation4 + $0x90] sm:$0xff] %v2743
        %2816 = vst [vmem:[#allocation4 + $0x98] sm:$0xff] %v2744
        %2817 = vst [vmem:[#allocation4 + $0xa0] sm:$0xff] %v2745
        %2818 = vst [vmem:[#allocation4 + $0xa8] sm:$0xff] %v2746
        %2819 = vst [vmem:[#allocation4 + $0xb0] sm:$0xff] %v2747
        %2820 = vst [vmem:[#allocation4 + $0xb8] sm:$0xff] %v2748
        %2821 = vst [vmem:[#allocation4 + $0xc0] sm:$0xff] %v2749
        %2822 = vst [vmem:[#allocation4 + $0xc8] sm:$0xff] %v2750
        %2823 = vst [vmem:[#allocation4 + $0xd0] sm:$0xff] %v2751
        %2824 = vst [vmem:[#allocation4 + $0xd8] sm:$0xff] %v2752
        %2825 = vst [vmem:[#allocation4 + $0xe0] sm:$0xff] %v2753
        %2826 = vst [vmem:[#allocation4 + $0xe8] sm:$0xff] %v2754
        %2827 = vst [vmem:[#allocation4 + $0xf0] sm:$0xff] %v2755
        %2828 = vst [vmem:[#allocation4 + $0xf8] sm:$0xff] %v2756
        %2829 = vst [vmem:[#allocation4 + $0x100] sm:$0xff] %v2757
        %2830 = vst [vmem:[#allocation4 + $0x108] sm:$0xff] %v2758
        %2831 = vst [vmem:[#allocation4 + $0x110] sm:$0xff] %v2759
        %2832 = vst [vmem:[#allocation4 + $0x118] sm:$0xff] %v2760
        %2833 = vst [vmem:[#allocation4 + $0x120] sm:$0xff] %v2761
        %2834 = vst [vmem:[#allocation4 + $0x128] sm:$0xff] %v2762
        %2835 = vst [vmem:[#allocation4 + $0x130] sm:$0xff] %v2763
        %2836 = vst [vmem:[#allocation4 + $0x138] sm:$0xff] %v2764
        %2837 = vst [vmem:[#allocation4 + $0x140] sm:$0xff] %v2765
        %2838 = vst [vmem:[#allocation4 + $0x148] sm:$0xff] %v2766
        %2839 = vst [vmem:[#allocation4 + $0x150] sm:$0xff] %v2767
        %2840 = vst [vmem:[#allocation4 + $0x158] sm:$0xff] %v2768
        %2841 = vst [vmem:[#allocation4 + $0x160] sm:$0xff] %v2769
        %2842 = vst [vmem:[#allocation4 + $0x168] sm:$0xff] %v2770
        %2843 = vst [vmem:[#allocation4 + $0x170] sm:$0xff] %v2771
        %2844 = vst [vmem:[#allocation4 + $0x178] sm:$0xff] %v2772
        %2845 = vst [vmem:[#allocation4 + $0x180] sm:$0xff] %v2773
        %2846 = vst [vmem:[#allocation4 + $0x188] sm:$0xff] %v2774
        %2847 = vst [vmem:[#allocation4 + $0x190] sm:$0xff] %v2775
        %2848 = vst [vmem:[#allocation4 + $0x198] sm:$0xff] %v2776
        %2849 = vst [vmem:[#allocation4 + $0x1a0] sm:$0xff] %v2777
        %2850 = vst [vmem:[#allocation4 + $0x1a8] sm:$0xff] %v2778
        %2851 = vst [vmem:[#allocation4 + $0x1b0] sm:$0xff] %v2779
        %2852 = vst [vmem:[#allocation4 + $0x1b8] sm:$0xff] %v2780
        %2853 = vst [vmem:[#allocation4 + $0x1c0] sm:$0xff] %v2781
        %2854 = vst [vmem:[#allocation4 + $0x1c8] sm:$0xff] %v2782
        %2855 = vst [vmem:[#allocation4 + $0x1d0] sm:$0xff] %v2783
        %2856 = vst [vmem:[#allocation4 + $0x1d8] sm:$0xff] %v2784
        %2857 = vst [vmem:[#allocation4 + $0x1e0] sm:$0xff] %v2785
        %2858 = vst [vmem:[#allocation4 + $0x1e8] sm:$0xff] %v2786
        %2859 = vst [vmem:[#allocation4 + $0x1f0] sm:$0xff] %v2787
        %2860 = vst [vmem:[#allocation4 + $0x1f8] sm:$0xff] %v2788
        %2861 = vst [vmem:[#allocation4 + $0x200] sm:$0xff] %v2789
        %2862 = vst [vmem:[#allocation4 + $0x208] sm:$0xff] %v2790
        %2863 = vst [vmem:[#allocation4 + $0x210] sm:$0xff] %v2791
        %2864 = vst [vmem:[#allocation4 + $0x218] sm:$0xff] %v2792
        %2865 = vst [vmem:[#allocation4 + $0x220] sm:$0xff] %v2793
        %2866 = vst [vmem:[#allocation4 + $0x228] sm:$0xff] %v2794
        %2867 = vst [vmem:[#allocation4 + $0x230] sm:$0xff] %v2795
        %2868 = vst [vmem:[#allocation4 + $0x238] sm:$0xff] %v2796
        %v2869 = vld [vmem:[#allocation2] sm:$0xff]
        %v2870 = vld [vmem:[#allocation2 + $0x8] sm:$0xf]
        %v2871 = vld [vmem:[#allocation2 + $0xc] sm:$0xff]
        %v2872 = vld [vmem:[#allocation2 + $0x14] sm:$0xf]
        %v2873 = vld [vmem:[#allocation2 + $0x18] sm:$0xff]
        %v2874 = vld [vmem:[#allocation2 + $0x20] sm:$0xf]
        %v2875 = vld [vmem:[#allocation2 + $0x24] sm:$0xff]
        %v2876 = vld [vmem:[#allocation2 + $0x2c] sm:$0xf]
        %v2877 = vld [vmem:[#allocation2 + $0x30] sm:$0xff]
        %v2878 = vld [vmem:[#allocation2 + $0x38] sm:$0xf]
        %v2879 = vld [vmem:[#allocation2 + $0x3c] sm:$0xff]
        %v2880 = vld [vmem:[#allocation2 + $0x44] sm:$0xf]
        %v2881 = vld [vmem:[#allocation2 + $0x48] sm:$0xff]
        %v2882 = vld [vmem:[#allocation2 + $0x50] sm:$0xf]
        %v2883 = vld [vmem:[#allocation2 + $0x54] sm:$0xff]
        %v2884 = vld [vmem:[#allocation2 + $0x5c] sm:$0xf]
        %v2885 = vld [vmem:[#allocation2 + $0x60] sm:$0xff]
        %v2886 = vld [vmem:[#allocation2 + $0x68] sm:$0xf]
        %v2887 = vld [vmem:[#allocation2 + $0x6c] sm:$0xff]
        %v2888 = vld [vmem:[#allocation2 + $0x74] sm:$0xf]
        %v2889 = vld [vmem:[#allocation2 + $0x78] sm:$0xff]
        %v2890 = vld [vmem:[#allocation2 + $0x80] sm:$0xf]
        %v2891 = vld [vmem:[#allocation2 + $0x84] sm:$0xff]
        %v2892 = vld [vmem:[#allocation2 + $0x8c] sm:$0xf]
        %v2893 = vld [vmem:[#allocation2 + $0x90] sm:$0xff]
        %v2894 = vld [vmem:[#allocation2 + $0x98] sm:$0xf]
        %v2895 = vld [vmem:[#allocation2 + $0x9c] sm:$0xff]
        %v2896 = vld [vmem:[#allocation2 + $0xa4] sm:$0xf]
        %v2897 = vld [vmem:[#allocation2 + $0xa8] sm:$0xff]
        %v2898 = vld [vmem:[#allocation2 + $0xb0] sm:$0xf]
        %v2899 = vld [vmem:[#allocation2 + $0xb4] sm:$0xff]
        %v2900 = vld [vmem:[#allocation2 + $0xbc] sm:$0xf]
        %v2901 = vld [vmem:[#allocation2 + $0xc0] sm:$0xff]
        %v2902 = vld [vmem:[#allocation2 + $0xc8] sm:$0xf]
        %v2903 = vld [vmem:[#allocation2 + $0xcc] sm:$0xff]
        %v2904 = vld [vmem:[#allocation2 + $0xd4] sm:$0xf]
        %v2905 = vld [vmem:[#allocation2 + $0xd8] sm:$0xff]
        %v2906 = vld [vmem:[#allocation2 + $0xe0] sm:$0xf]
        %v2907 = vld [vmem:[#allocation2 + $0xe4] sm:$0xff]
        %v2908 = vld [vmem:[#allocation2 + $0xec] sm:$0xf]
        %v2909 = vld [vmem:[#allocation2 + $0xf0] sm:$0xff]
        %v2910 = vld [vmem:[#allocation2 + $0xf8] sm:$0xf]
        %v2911 = vld [vmem:[#allocation2 + $0xfc] sm:$0xff]
        %v2912 = vld [vmem:[#allocation2 + $0x104] sm:$0xf]
        %v2913 = vld [vmem:[#allocation2 + $0x108] sm:$0xff]
        %v2914 = vld [vmem:[#allocation2 + $0x110] sm:$0xf]
        %v2915 = vld [vmem:[#allocation2 + $0x114] sm:$0xff]
        %v2916 = vld [vmem:[#allocation2 + $0x11c] sm:$0xf]
        %v2917 = vld [vmem:[#allocation2 + $0x120] sm:$0xff]
        %v2918 = vld [vmem:[#allocation2 + $0x128] sm:$0xf]
        %v2919 = vld [vmem:[#allocation2 + $0x12c] sm:$0xff]
        %v2920 = vld [vmem:[#allocation2 + $0x134] sm:$0xf]
        %v2921 = vld [vmem:[#allocation2 + $0x138] sm:$0xff]
        %v2922 = vld [vmem:[#allocation2 + $0x140] sm:$0xf]
        %v2923 = vld [vmem:[#allocation2 + $0x144] sm:$0xff]
        %v2924 = vld [vmem:[#allocation2 + $0x14c] sm:$0xf]
        %v2925 = vld [vmem:[#allocation2 + $0x150] sm:$0xff]
        %v2926 = vld [vmem:[#allocation2 + $0x158] sm:$0xf]
        %v2927 = vld [vmem:[#allocation2 + $0x15c] sm:$0xff]
        %v2928 = vld [vmem:[#allocation2 + $0x164] sm:$0xf]
        %v2929 = vld [vmem:[#allocation2 + $0x168] sm:$0xff]
        %v2930 = vld [vmem:[#allocation2 + $0x170] sm:$0xf]
        %v2931 = vld [vmem:[#allocation2 + $0x174] sm:$0xff]
        %v2932 = vld [vmem:[#allocation2 + $0x17c] sm:$0xf]
        %v2933 = vld [vmem:[#allocation2 + $0x180] sm:$0xff]
        %v2934 = vld [vmem:[#allocation2 + $0x188] sm:$0xf]
        %v2935 = vld [vmem:[#allocation2 + $0x18c] sm:$0xff]
        %v2936 = vld [vmem:[#allocation2 + $0x194] sm:$0xf]
        %v2937 = vld [vmem:[#allocation2 + $0x198] sm:$0xff]
        %v2938 = vld [vmem:[#allocation2 + $0x1a0] sm:$0xf]
        %v2939 = vld [vmem:[#allocation2 + $0x1a4] sm:$0xff]
        %v2940 = vld [vmem:[#allocation2 + $0x1ac] sm:$0xf]
        %v2941 = vld [vmem:[#allocation2 + $0x1b0] sm:$0xff]
        %v2942 = vld [vmem:[#allocation2 + $0x1b8] sm:$0xf]
        %v2943 = vld [vmem:[#allocation2 + $0x1bc] sm:$0xff]
        %v2944 = vld [vmem:[#allocation2 + $0x1c4] sm:$0xf]
        %v2945 = vld [vmem:[#allocation2 + $0x1c8] sm:$0xff]
        %v2946 = vld [vmem:[#allocation2 + $0x1d0] sm:$0xf]
        %v2947 = vld [vmem:[#allocation2 + $0x1d4] sm:$0xff]
        %v2948 = vld [vmem:[#allocation2 + $0x1dc] sm:$0xf]
        %v2949 = vld [vmem:[#allocation2 + $0x1e0] sm:$0x33]
        %v2950 = vld [vmem:[#allocation2 + $0x1e8] sm:$0x3]
        %s2951 = scalar_lea.vmem [#allocation8], 384
        %v2952 = vld [vmem:[%s2951] sm:$0xff]
        %v2953 = vld [vmem:[%s2951 + $0x8] sm:$0xff]
        %v2954 = vld [vmem:[%s2951 + $0x10] sm:$0xff]
        %v2955 = vld [vmem:[%s2951 + $0x18] sm:$0xff]
        %v2956 = vld [vmem:[%s2951 + $0x20] sm:$0xff]
        %v2957 = vld [vmem:[%s2951 + $0x28] sm:$0xff]
        %v2958 = vld [vmem:[%s2951 + $0x30] sm:$0xff]
        %v2959 = vld [vmem:[%s2951 + $0x38] sm:$0xff]
        %v2960 = vld [vmem:[%s2951 + $0x40] sm:$0xff]
        %v2961 = vld [vmem:[%s2951 + $0x48] sm:$0xff]
        %v2962 = vld [vmem:[%s2951 + $0x50] sm:$0xff]
        %v2963 = vld [vmem:[%s2951 + $0x58] sm:$0xff]
        %v2964 = vld [vmem:[%s2951 + $0x60] sm:$0xff]
        %v2965 = vld [vmem:[%s2951 + $0x68] sm:$0xff]
        %v2966 = vld [vmem:[%s2951 + $0x70] sm:$0xff]
        %v2967 = vld [vmem:[%s2951 + $0x78] sm:$0xff]
        %v2968 = vld [vmem:[%s2951 + $0x80] sm:$0xff]
        %v2969 = vld [vmem:[%s2951 + $0x88] sm:$0xff]
        %v2970 = vld [vmem:[%s2951 + $0x90] sm:$0xff]
        %v2971 = vld [vmem:[%s2951 + $0x98] sm:$0xff]
        %v2972 = vld [vmem:[%s2951 + $0xa0] sm:$0xff]
        %v2973 = vld [vmem:[%s2951 + $0xa8] sm:$0xff]
        %v2974 = vld [vmem:[%s2951 + $0xb0] sm:$0xff]
        %v2975 = vld [vmem:[%s2951 + $0xb8] sm:$0xff]
        %v2976 = vld [vmem:[%s2951 + $0xc0] sm:$0xff]
        %v2977 = vld [vmem:[%s2951 + $0xc8] sm:$0xff]
        %v2978 = vld [vmem:[%s2951 + $0xd0] sm:$0xff]
        %v2979 = vld [vmem:[%s2951 + $0xd8] sm:$0xff]
        %v2980 = vld [vmem:[%s2951 + $0xe0] sm:$0xff]
        %v2981 = vld [vmem:[%s2951 + $0xe8] sm:$0xff]
        %v2982 = vld [vmem:[%s2951 + $0xf0] sm:$0xff]
        %v2983 = vld [vmem:[%s2951 + $0xf8] sm:$0xff]
        %v2984 = vld [vmem:[%s2951 + $0x100] sm:$0xff]
        %v2985 = vld [vmem:[%s2951 + $0x108] sm:$0xff]
        %v2986 = vld [vmem:[%s2951 + $0x110] sm:$0xff]
        %v2987 = vld [vmem:[%s2951 + $0x118] sm:$0xff]
        %v2988 = vld [vmem:[%s2951 + $0x120] sm:$0xff]
        %v2989 = vld [vmem:[%s2951 + $0x128] sm:$0xff]
        %v2990 = vld [vmem:[%s2951 + $0x130] sm:$0xff]
        %v2991 = vld [vmem:[%s2951 + $0x138] sm:$0xff]
        %v2992 = vld [vmem:[%s2951 + $0x140] sm:$0xff]
        %v2993 = vld [vmem:[%s2951 + $0x148] sm:$0xff]
        %v2994 = vld [vmem:[%s2951 + $0x150] sm:$0xff]
        %v2995 = vld [vmem:[%s2951 + $0x158] sm:$0xff]
        %v2996 = vld [vmem:[%s2951 + $0x160] sm:$0xff]
        %v2997 = vld [vmem:[%s2951 + $0x168] sm:$0xff]
        %v2998 = vld [vmem:[%s2951 + $0x170] sm:$0xff]
        %v2999 = vld [vmem:[%s2951 + $0x178] sm:$0xff]
        %v3082 = vunpack.c.l.b16 %v2869
        %v3083 = vunpack.c.h.b16 %v2869
        %v3084 = vunpack.c.l.b16 %v2870
        %v3085 = vunpack.c.l.b16 %v2871
        %v3086 = vunpack.c.h.b16 %v2871
        %v3087 = vunpack.c.l.b16 %v2872
        %v3088 = vunpack.c.l.b16 %v2873
        %v3089 = vunpack.c.h.b16 %v2873
        %v3090 = vunpack.c.l.b16 %v2874
        %v3091 = vunpack.c.l.b16 %v2875
        %v3092 = vunpack.c.h.b16 %v2875
        %v3093 = vunpack.c.l.b16 %v2876
        %v3094 = vunpack.c.l.b16 %v2877
        %v3095 = vunpack.c.h.b16 %v2877
        %v3096 = vunpack.c.l.b16 %v2878
        %v3097 = vunpack.c.l.b16 %v2879
        %v3098 = vunpack.c.h.b16 %v2879
        %v3099 = vunpack.c.l.b16 %v2880
        %v3100 = vunpack.c.l.b16 %v2881
        %v3101 = vunpack.c.h.b16 %v2881
        %v3102 = vunpack.c.l.b16 %v2882
        %v3103 = vunpack.c.l.b16 %v2883
        %v3104 = vunpack.c.h.b16 %v2883
        %v3105 = vunpack.c.l.b16 %v2884
        %v3106 = vunpack.c.l.b16 %v2885
        %v3107 = vunpack.c.h.b16 %v2885
        %v3108 = vunpack.c.l.b16 %v2886
        %v3109 = vunpack.c.l.b16 %v2887
        %v3110 = vunpack.c.h.b16 %v2887
        %v3111 = vunpack.c.l.b16 %v2888
        %v3112 = vunpack.c.l.b16 %v2889
        %v3113 = vunpack.c.h.b16 %v2889
        %v3114 = vunpack.c.l.b16 %v2890
        %v3115 = vunpack.c.l.b16 %v2891
        %v3116 = vunpack.c.h.b16 %v2891
        %v3117 = vunpack.c.l.b16 %v2892
        %v3118 = vunpack.c.l.b16 %v2893
        %v3119 = vunpack.c.h.b16 %v2893
        %v3120 = vunpack.c.l.b16 %v2894
        %v3121 = vunpack.c.l.b16 %v2895
        %v3122 = vunpack.c.h.b16 %v2895
        %v3123 = vunpack.c.l.b16 %v2896
        %v3124 = vunpack.c.l.b16 %v2897
        %v3125 = vunpack.c.h.b16 %v2897
        %v3126 = vunpack.c.l.b16 %v2898
        %v3127 = vunpack.c.l.b16 %v2899
        %v3128 = vunpack.c.h.b16 %v2899
        %v3129 = vunpack.c.l.b16 %v2900
        %v3130 = vunpack.c.l.b16 %v2901
        %v3131 = vunpack.c.h.b16 %v2901
        %v3132 = vunpack.c.l.b16 %v2902
        %v3133 = vunpack.c.l.b16 %v2903
        %v3134 = vunpack.c.h.b16 %v2903
        %v3135 = vunpack.c.l.b16 %v2904
        %v3136 = vunpack.c.l.b16 %v2905
        %v3137 = vunpack.c.h.b16 %v2905
        %v3138 = vunpack.c.l.b16 %v2906
        %v3139 = vunpack.c.l.b16 %v2907
        %v3140 = vunpack.c.h.b16 %v2907
        %v3141 = vunpack.c.l.b16 %v2908
        %v3142 = vunpack.c.l.b16 %v2909
        %v3143 = vunpack.c.h.b16 %v2909
        %v3144 = vunpack.c.l.b16 %v2910
        %v3145 = vunpack.c.l.b16 %v2911
        %v3146 = vunpack.c.h.b16 %v2911
        %v3147 = vunpack.c.l.b16 %v2912
        %v3148 = vunpack.c.l.b16 %v2913
        %v3149 = vunpack.c.h.b16 %v2913
        %v3150 = vunpack.c.l.b16 %v2914
        %v3151 = vunpack.c.l.b16 %v2915
        %v3152 = vunpack.c.h.b16 %v2915
        %v3153 = vunpack.c.l.b16 %v2916
        %v3154 = vunpack.c.l.b16 %v2917
        %v3155 = vunpack.c.h.b16 %v2917
        %v3156 = vunpack.c.l.b16 %v2918
        %v3157 = vunpack.c.l.b16 %v2919
        %v3158 = vunpack.c.h.b16 %v2919
        %v3159 = vunpack.c.l.b16 %v2920
        %v3160 = vunpack.c.l.b16 %v2921
        %v3161 = vunpack.c.h.b16 %v2921
        %v3162 = vunpack.c.l.b16 %v2922
        %v3163 = vunpack.c.l.b16 %v2923
        %v3164 = vunpack.c.h.b16 %v2923
        %v3165 = vunpack.c.l.b16 %v2924
        %v3166 = vunpack.c.l.b16 %v2925
        %v3167 = vunpack.c.h.b16 %v2925
        %v3168 = vunpack.c.l.b16 %v2926
        %v3169 = vunpack.c.l.b16 %v2927
        %v3170 = vunpack.c.h.b16 %v2927
        %v3171 = vunpack.c.l.b16 %v2928
        %v3172 = vunpack.c.l.b16 %v2929
        %v3173 = vunpack.c.h.b16 %v2929
        %v3174 = vunpack.c.l.b16 %v2930
        %v3175 = vunpack.c.l.b16 %v2931
        %v3176 = vunpack.c.h.b16 %v2931
        %v3177 = vunpack.c.l.b16 %v2932
        %v3178 = vunpack.c.l.b16 %v2933
        %v3179 = vunpack.c.h.b16 %v2933
        %v3180 = vunpack.c.l.b16 %v2934
        %v3181 = vunpack.c.l.b16 %v2935
        %v3182 = vunpack.c.h.b16 %v2935
        %v3183 = vunpack.c.l.b16 %v2936
        %v3184 = vunpack.c.l.b16 %v2937
        %v3185 = vunpack.c.h.b16 %v2937
        %v3186 = vunpack.c.l.b16 %v2938
        %v3187 = vunpack.c.l.b16 %v2939
        %v3188 = vunpack.c.h.b16 %v2939
        %v3189 = vunpack.c.l.b16 %v2940
        %v3190 = vunpack.c.l.b16 %v2941
        %v3191 = vunpack.c.h.b16 %v2941
        %v3192 = vunpack.c.l.b16 %v2942
        %v3193 = vunpack.c.l.b16 %v2943
        %v3194 = vunpack.c.h.b16 %v2943
        %v3195 = vunpack.c.l.b16 %v2944
        %v3196 = vunpack.c.l.b16 %v2945
        %v3197 = vunpack.c.h.b16 %v2945
        %v3198 = vunpack.c.l.b16 %v2946
        %v3199 = vunpack.c.l.b16 %v2947
        %v3200 = vunpack.c.h.b16 %v2947
        %v3201 = vunpack.c.l.b16 %v2948
        %v3202 = vunpack.c.l.b16 %v2949
        %v3203 = vunpack.c.h.b16 %v2949
        %v3204 = vunpack.c.l.b16 %v2950
        %v3205 = vpack.c.b16 %v3085, %v3082
        %v3206 = vpack.c.b16 %v3086, %v3083
        %v3207 = vpack.c.b16 %v3087, %v3084
        %v3208 = vpack.c.b16 %v3091, %v3088
        %v3209 = vpack.c.b16 %v3092, %v3089
        %v3210 = vpack.c.b16 %v3093, %v3090
        %v3211 = vpack.c.b16 %v3097, %v3094
        %v3212 = vpack.c.b16 %v3098, %v3095
        %v3213 = vpack.c.b16 %v3099, %v3096
        %v3214 = vpack.c.b16 %v3103, %v3100
        %v3215 = vpack.c.b16 %v3104, %v3101
        %v3216 = vpack.c.b16 %v3105, %v3102
        %v3217 = vpack.c.b16 %v3109, %v3106
        %v3218 = vpack.c.b16 %v3110, %v3107
        %v3219 = vpack.c.b16 %v3111, %v3108
        %v3220 = vpack.c.b16 %v3115, %v3112
        %v3221 = vpack.c.b16 %v3116, %v3113
        %v3222 = vpack.c.b16 %v3117, %v3114
        %v3223 = vpack.c.b16 %v3121, %v3118
        %v3224 = vpack.c.b16 %v3122, %v3119
        %v3225 = vpack.c.b16 %v3123, %v3120
        %v3226 = vpack.c.b16 %v3127, %v3124
        %v3227 = vpack.c.b16 %v3128, %v3125
        %v3228 = vpack.c.b16 %v3129, %v3126
        %v3229 = vpack.c.b16 %v3133, %v3130
        %v3230 = vpack.c.b16 %v3134, %v3131
        %v3231 = vpack.c.b16 %v3135, %v3132
        %v3232 = vpack.c.b16 %v3139, %v3136
        %v3233 = vpack.c.b16 %v3140, %v3137
        %v3234 = vpack.c.b16 %v3141, %v3138
        %v3235 = vpack.c.b16 %v3145, %v3142
        %v3236 = vpack.c.b16 %v3146, %v3143
        %v3237 = vpack.c.b16 %v3147, %v3144
        %v3238 = vpack.c.b16 %v3151, %v3148
        %v3239 = vpack.c.b16 %v3152, %v3149
        %v3240 = vpack.c.b16 %v3153, %v3150
        %v3241 = vpack.c.b16 %v3157, %v3154
        %v3242 = vpack.c.b16 %v3158, %v3155
        %v3243 = vpack.c.b16 %v3159, %v3156
        %v3244 = vpack.c.b16 %v3163, %v3160
        %v3245 = vpack.c.b16 %v3164, %v3161
        %v3246 = vpack.c.b16 %v3165, %v3162
        %v3247 = vpack.c.b16 %v3169, %v3166
        %v3248 = vpack.c.b16 %v3170, %v3167
        %v3249 = vpack.c.b16 %v3171, %v3168
        %v3250 = vpack.c.b16 %v3175, %v3172
        %v3251 = vpack.c.b16 %v3176, %v3173
        %v3252 = vpack.c.b16 %v3177, %v3174
        %v3253 = vpack.c.b16 %v3181, %v3178
        %v3254 = vpack.c.b16 %v3182, %v3179
        %v3255 = vpack.c.b16 %v3183, %v3180
        %v3256 = vpack.c.b16 %v3187, %v3184
        %v3257 = vpack.c.b16 %v3188, %v3185
        %v3258 = vpack.c.b16 %v3189, %v3186
        %v3259 = vpack.c.b16 %v3193, %v3190
        %v3260 = vpack.c.b16 %v3194, %v3191
        %v3261 = vpack.c.b16 %v3195, %v3192
        %v3262 = vpack.c.b16 %v3199, %v3196
        %v3263 = vpack.c.b16 %v3200, %v3197
        %v3264 = vpack.c.b16 %v3201, %v3198
        %v3265 = vpack.c.b16 %v3202, %v3202
        %v3266 = vpack.c.b16 %v3203, %v3203
        %v3267 = vpack.c.b16 %v3204, %v3204
        %v3379 = vunpack.c.l.b16 %v2952
        %v3380 = vunpack.c.h.b16 %v2952
        %v3381 = vunpack.c.l.b16 %v2953
        %v3382 = vunpack.c.h.b16 %v2953
        %v3383 = vunpack.c.l.b16 %v2954
        %v3384 = vunpack.c.h.b16 %v2954
        %v3385 = vunpack.c.l.b16 %v2955
        %v3386 = vunpack.c.h.b16 %v2955
        %v3387 = vunpack.c.l.b16 %v2956
        %v3388 = vunpack.c.h.b16 %v2956
        %v3389 = vunpack.c.l.b16 %v2957
        %v3390 = vunpack.c.h.b16 %v2957
        %v3391 = vunpack.c.l.b16 %v2958
        %v3392 = vunpack.c.h.b16 %v2958
        %v3393 = vunpack.c.l.b16 %v2959
        %v3394 = vunpack.c.h.b16 %v2959
        %v3395 = vunpack.c.l.b16 %v2960
        %v3396 = vunpack.c.h.b16 %v2960
        %v3397 = vunpack.c.l.b16 %v2961
        %v3398 = vunpack.c.h.b16 %v2961
        %v3399 = vunpack.c.l.b16 %v2962
        %v3400 = vunpack.c.h.b16 %v2962
        %v3401 = vunpack.c.l.b16 %v2963
        %v3402 = vunpack.c.h.b16 %v2963
        %v3403 = vunpack.c.l.b16 %v2964
        %v3404 = vunpack.c.h.b16 %v2964
        %v3405 = vunpack.c.l.b16 %v2965
        %v3406 = vunpack.c.h.b16 %v2965
        %v3407 = vunpack.c.l.b16 %v2966
        %v3408 = vunpack.c.h.b16 %v2966
        %v3409 = vunpack.c.l.b16 %v2967
        %v3410 = vunpack.c.h.b16 %v2967
        %v3411 = vunpack.c.l.b16 %v2968
        %v3412 = vunpack.c.h.b16 %v2968
        %v3413 = vunpack.c.l.b16 %v2969
        %v3414 = vunpack.c.h.b16 %v2969
        %v3415 = vunpack.c.l.b16 %v2970
        %v3416 = vunpack.c.h.b16 %v2970
        %v3417 = vunpack.c.l.b16 %v2971
        %v3418 = vunpack.c.h.b16 %v2971
        %v3419 = vunpack.c.l.b16 %v2972
        %v3420 = vunpack.c.h.b16 %v2972
        %v3421 = vunpack.c.l.b16 %v2973
        %v3422 = vunpack.c.h.b16 %v2973
        %v3423 = vunpack.c.l.b16 %v2974
        %v3424 = vunpack.c.h.b16 %v2974
        %v3425 = vunpack.c.l.b16 %v2975
        %v3426 = vunpack.c.h.b16 %v2975
        %v3427 = vunpack.c.l.b16 %v2976
        %v3428 = vunpack.c.h.b16 %v2976
        %v3429 = vunpack.c.l.b16 %v2977
        %v3430 = vunpack.c.h.b16 %v2977
        %v3431 = vunpack.c.l.b16 %v2978
        %v3432 = vunpack.c.h.b16 %v2978
        %v3433 = vunpack.c.l.b16 %v2979
        %v3434 = vunpack.c.h.b16 %v2979
        %v3435 = vunpack.c.l.b16 %v2980
        %v3436 = vunpack.c.h.b16 %v2980
        %v3437 = vunpack.c.l.b16 %v2981
        %v3438 = vunpack.c.h.b16 %v2981
        %v3439 = vunpack.c.l.b16 %v2982
        %v3440 = vunpack.c.h.b16 %v2982
        %v3441 = vunpack.c.l.b16 %v2983
        %v3442 = vunpack.c.h.b16 %v2983
        %v3443 = vunpack.c.l.b16 %v2984
        %v3444 = vunpack.c.h.b16 %v2984
        %v3445 = vunpack.c.l.b16 %v2985
        %v3446 = vunpack.c.h.b16 %v2985
        %v3447 = vunpack.c.l.b16 %v2986
        %v3448 = vunpack.c.h.b16 %v2986
        %v3449 = vunpack.c.l.b16 %v2987
        %v3450 = vunpack.c.h.b16 %v2987
        %v3451 = vunpack.c.l.b16 %v2988
        %v3452 = vunpack.c.h.b16 %v2988
        %v3453 = vunpack.c.l.b16 %v2989
        %v3454 = vunpack.c.h.b16 %v2989
        %v3455 = vunpack.c.l.b16 %v2990
        %v3456 = vunpack.c.h.b16 %v2990
        %v3457 = vunpack.c.l.b16 %v2991
        %v3458 = vunpack.c.h.b16 %v2991
        %v3459 = vunpack.c.l.b16 %v2992
        %v3460 = vunpack.c.h.b16 %v2992
        %v3461 = vunpack.c.l.b16 %v2993
        %v3462 = vunpack.c.h.b16 %v2993
        %v3463 = vunpack.c.l.b16 %v2994
        %v3464 = vunpack.c.h.b16 %v2994
        %v3465 = vunpack.c.l.b16 %v2995
        %v3466 = vunpack.c.h.b16 %v2995
        %v3467 = vunpack.c.l.b16 %v2996
        %v3468 = vunpack.c.h.b16 %v2996
        %v3469 = vunpack.c.l.b16 %v2997
        %v3470 = vunpack.c.h.b16 %v2997
        %v3471 = vunpack.c.l.b16 %v2998
        %v3472 = vunpack.c.h.b16 %v2998
        %v3473 = vunpack.c.l.b16 %v2999
        %v3474 = vunpack.c.h.b16 %v2999
        %v3475 = vpack.c.b16 %v3381, %v3379
        %v3476 = vpack.c.b16 %v3382, %v3380
        %v3477 = vpack.c.b16 %v3385, %v3383
        %v3478 = vpack.c.b16 %v3386, %v3384
        %v3479 = vpack.c.b16 %v3389, %v3387
        %v3480 = vpack.c.b16 %v3390, %v3388
        %v3481 = vpack.c.b16 %v3393, %v3391
        %v3482 = vpack.c.b16 %v3394, %v3392
        %v3483 = vpack.c.b16 %v3397, %v3395
        %v3484 = vpack.c.b16 %v3398, %v3396
        %v3485 = vpack.c.b16 %v3401, %v3399
        %v3486 = vpack.c.b16 %v3402, %v3400
        %v3487 = vpack.c.b16 %v3405, %v3403
        %v3488 = vpack.c.b16 %v3406, %v3404
        %v3489 = vpack.c.b16 %v3409, %v3407
        %v3490 = vpack.c.b16 %v3410, %v3408
        %v3491 = vpack.c.b16 %v3413, %v3411
        %v3492 = vpack.c.b16 %v3414, %v3412
        %v3493 = vpack.c.b16 %v3417, %v3415
        %v3494 = vpack.c.b16 %v3418, %v3416
        %v3495 = vpack.c.b16 %v3421, %v3419
        %v3496 = vpack.c.b16 %v3422, %v3420
        %v3497 = vpack.c.b16 %v3425, %v3423
        %v3498 = vpack.c.b16 %v3426, %v3424
        %v3499 = vpack.c.b16 %v3429, %v3427
        %v3500 = vpack.c.b16 %v3430, %v3428
        %v3501 = vpack.c.b16 %v3433, %v3431
        %v3502 = vpack.c.b16 %v3434, %v3432
        %v3503 = vpack.c.b16 %v3437, %v3435
        %v3504 = vpack.c.b16 %v3438, %v3436
        %v3505 = vpack.c.b16 %v3441, %v3439
        %v3506 = vpack.c.b16 %v3442, %v3440
        %v3507 = vpack.c.b16 %v3445, %v3443
        %v3508 = vpack.c.b16 %v3446, %v3444
        %v3509 = vpack.c.b16 %v3449, %v3447
        %v3510 = vpack.c.b16 %v3450, %v3448
        %v3511 = vpack.c.b16 %v3453, %v3451
        %v3512 = vpack.c.b16 %v3454, %v3452
        %v3513 = vpack.c.b16 %v3457, %v3455
        %v3514 = vpack.c.b16 %v3458, %v3456
        %v3515 = vpack.c.b16 %v3461, %v3459
        %v3516 = vpack.c.b16 %v3462, %v3460
        %v3517 = vpack.c.b16 %v3465, %v3463
        %v3518 = vpack.c.b16 %v3466, %v3464
        %v3519 = vpack.c.b16 %v3469, %v3467
        %v3520 = vpack.c.b16 %v3470, %v3468
        %v3521 = vpack.c.b16 %v3473, %v3471
        %v3522 = vpack.c.b16 %v3474, %v3472
        %3571 = vmatpush.bf16.msra.mxu0 %v3489
        %3572 = vmatpush.bf16.msra.mxu0 %v3487
        %3573 = vmatpush.bf16.msra.mxu0 %v3485
        %3574 = vmatpush.bf16.msra.mxu0 %v3483
        %3575 = vmatpush.bf16.msra.mxu0 %v3481
        %3576 = vmatpush.bf16.msra.mxu0 %v3479
        %3577 = vmatpush.bf16.msra.mxu0 %v3477
        %3578 = vmatpush.bf16.msra.mxu0 %v3475
        %3579 = vmatmul.bf16.gmra.mxu0 %v3205
        %v3580 = vpop.f32.mrf.mxu0
        %v3581 = vadd.f32 0.0, %v3580
        %v3582 = vpop.f32.mrf.mxu0
        %v3583 = vadd.f32 0.0, %v3582
        %3584 = vmatmul.bf16.gmra.mxu0 %v3208
        %v3585 = vpop.f32.mrf.mxu0
        %v3586 = vadd.f32 0.0, %v3585
        %v3587 = vpop.f32.mrf.mxu0
        %v3588 = vadd.f32 0.0, %v3587
        %3589 = vmatmul.bf16.gmra.mxu0 %v3211
        %v3590 = vpop.f32.mrf.mxu0
        %v3591 = vadd.f32 0.0, %v3590
        %v3592 = vpop.f32.mrf.mxu0
        %v3593 = vadd.f32 0.0, %v3592
        %3594 = vmatmul.bf16.gmra.mxu0 %v3214
        %v3595 = vpop.f32.mrf.mxu0
        %v3596 = vadd.f32 0.0, %v3595
        %v3597 = vpop.f32.mrf.mxu0
        %v3598 = vadd.f32 0.0, %v3597
        %3599 = vmatmul.bf16.gmra.mxu0 %v3217
        %v3600 = vpop.f32.mrf.mxu0
        %v3601 = vadd.f32 0.0, %v3600
        %v3602 = vpop.f32.mrf.mxu0
        %v3603 = vadd.f32 0.0, %v3602
        %3604 = vmatmul.bf16.gmra.mxu0 %v3220
        %v3605 = vpop.f32.mrf.mxu0
        %v3606 = vadd.f32 0.0, %v3605
        %v3607 = vpop.f32.mrf.mxu0
        %v3608 = vadd.f32 0.0, %v3607
        %3609 = vmatmul.bf16.gmra.mxu0 %v3223
        %v3610 = vpop.f32.mrf.mxu0
        %v3611 = vadd.f32 0.0, %v3610
        %v3612 = vpop.f32.mrf.mxu0
        %v3613 = vadd.f32 0.0, %v3612
        %3614 = vmatmul.bf16.gmra.mxu0 %v3226
        %v3615 = vpop.f32.mrf.mxu0
        %v3616 = vadd.f32 0.0, %v3615
        %v3617 = vpop.f32.mrf.mxu0
        %v3618 = vadd.f32 0.0, %v3617
        %3619 = vmatmul.bf16.gmra.mxu0 %v3229
        %v3620 = vpop.f32.mrf.mxu0
        %v3621 = vadd.f32 0.0, %v3620
        %v3622 = vpop.f32.mrf.mxu0
        %v3623 = vadd.f32 0.0, %v3622
        %3624 = vmatmul.bf16.gmra.mxu0 %v3232
        %v3625 = vpop.f32.mrf.mxu0
        %v3626 = vadd.f32 0.0, %v3625
        %v3627 = vpop.f32.mrf.mxu0
        %v3628 = vadd.f32 0.0, %v3627
        %3629 = vmatmul.bf16.gmra.mxu0 %v3235
        %v3630 = vpop.f32.mrf.mxu0
        %v3631 = vadd.f32 0.0, %v3630
        %v3632 = vpop.f32.mrf.mxu0
        %v3633 = vadd.f32 0.0, %v3632
        %3634 = vmatmul.bf16.gmra.mxu0 %v3238
        %v3635 = vpop.f32.mrf.mxu0
        %v3636 = vadd.f32 0.0, %v3635
        %v3637 = vpop.f32.mrf.mxu0
        %v3638 = vadd.f32 0.0, %v3637
        %3639 = vmatmul.bf16.gmra.mxu0 %v3241
        %v3640 = vpop.f32.mrf.mxu0
        %v3641 = vadd.f32 0.0, %v3640
        %v3642 = vpop.f32.mrf.mxu0
        %v3643 = vadd.f32 0.0, %v3642
        %3644 = vmatmul.bf16.gmra.mxu0 %v3244
        %v3645 = vpop.f32.mrf.mxu0
        %v3646 = vadd.f32 0.0, %v3645
        %v3647 = vpop.f32.mrf.mxu0
        %v3648 = vadd.f32 0.0, %v3647
        %3649 = vmatmul.bf16.gmra.mxu0 %v3247
        %v3650 = vpop.f32.mrf.mxu0
        %v3651 = vadd.f32 0.0, %v3650
        %v3652 = vpop.f32.mrf.mxu0
        %v3653 = vadd.f32 0.0, %v3652
        %3654 = vmatmul.bf16.gmra.mxu0 %v3250
        %v3655 = vpop.f32.mrf.mxu0
        %v3656 = vadd.f32 0.0, %v3655
        %v3657 = vpop.f32.mrf.mxu0
        %v3658 = vadd.f32 0.0, %v3657
        %3659 = vmatmul.bf16.gmra.mxu0 %v3253
        %v3660 = vpop.f32.mrf.mxu0
        %v3661 = vadd.f32 0.0, %v3660
        %v3662 = vpop.f32.mrf.mxu0
        %v3663 = vadd.f32 0.0, %v3662
        %3664 = vmatmul.bf16.gmra.mxu0 %v3256
        %v3665 = vpop.f32.mrf.mxu0
        %v3666 = vadd.f32 0.0, %v3665
        %v3667 = vpop.f32.mrf.mxu0
        %v3668 = vadd.f32 0.0, %v3667
        %3669 = vmatmul.bf16.gmra.mxu0 %v3259
        %v3670 = vpop.f32.mrf.mxu0
        %v3671 = vadd.f32 0.0, %v3670
        %v3672 = vpop.f32.mrf.mxu0
        %v3673 = vadd.f32 0.0, %v3672
        %3674 = vmatmul.bf16.gmra.mxu0 %v3262
        %v3675 = vpop.f32.mrf.mxu0
        %v3676 = vadd.f32 0.0, %v3675
        %v3677 = vpop.f32.mrf.mxu0
        %v3678 = vadd.f32 0.0, %v3677
        %3679 = vmatmul.bf16.gmra.mxu0 %v3265
        %v3680 = vpop.f32.mrf.mxu0
        %v3681 = vadd.f32 0.0, %v3680
        %v3682 = vpop.f32.mrf.mxu0
        %3683 = vdwg.mxu0
        %3684 = vmatpush.bf16.msra.mxu0 %v3505
        %3685 = vmatpush.bf16.msra.mxu0 %v3503
        %3686 = vmatpush.bf16.msra.mxu0 %v3501
        %3687 = vmatpush.bf16.msra.mxu0 %v3499
        %3688 = vmatpush.bf16.msra.mxu0 %v3497
        %3689 = vmatpush.bf16.msra.mxu0 %v3495
        %3690 = vmatpush.bf16.msra.mxu0 %v3493
        %3691 = vmatpush.bf16.msra.mxu0 %v3491
        %3692 = vmatmul.bf16.gmra.mxu0 %v3206
        %v3693 = vpop.f32.mrf.mxu0
        %v3694 = vadd.f32 %v3581, %v3693
        %v3695 = vpop.f32.mrf.mxu0
        %v3696 = vadd.f32 %v3583, %v3695
        %3697 = vmatmul.bf16.gmra.mxu0 %v3209
        %v3698 = vpop.f32.mrf.mxu0
        %v3699 = vadd.f32 %v3586, %v3698
        %v3700 = vpop.f32.mrf.mxu0
        %v3701 = vadd.f32 %v3588, %v3700
        %3702 = vmatmul.bf16.gmra.mxu0 %v3212
        %v3703 = vpop.f32.mrf.mxu0
        %v3704 = vadd.f32 %v3591, %v3703
        %v3705 = vpop.f32.mrf.mxu0
        %v3706 = vadd.f32 %v3593, %v3705
        %3707 = vmatmul.bf16.gmra.mxu0 %v3215
        %v3708 = vpop.f32.mrf.mxu0
        %v3709 = vadd.f32 %v3596, %v3708
        %v3710 = vpop.f32.mrf.mxu0
        %v3711 = vadd.f32 %v3598, %v3710
        %3712 = vmatmul.bf16.gmra.mxu0 %v3218
        %v3713 = vpop.f32.mrf.mxu0
        %v3714 = vadd.f32 %v3601, %v3713
        %v3715 = vpop.f32.mrf.mxu0
        %v3716 = vadd.f32 %v3603, %v3715
        %3717 = vmatmul.bf16.gmra.mxu0 %v3221
        %v3718 = vpop.f32.mrf.mxu0
        %v3719 = vadd.f32 %v3606, %v3718
        %v3720 = vpop.f32.mrf.mxu0
        %v3721 = vadd.f32 %v3608, %v3720
        %3722 = vmatmul.bf16.gmra.mxu0 %v3224
        %v3723 = vpop.f32.mrf.mxu0
        %v3724 = vadd.f32 %v3611, %v3723
        %v3725 = vpop.f32.mrf.mxu0
        %v3726 = vadd.f32 %v3613, %v3725
        %3727 = vmatmul.bf16.gmra.mxu0 %v3227
        %v3728 = vpop.f32.mrf.mxu0
        %v3729 = vadd.f32 %v3616, %v3728
        %v3730 = vpop.f32.mrf.mxu0
        %v3731 = vadd.f32 %v3618, %v3730
        %3732 = vmatmul.bf16.gmra.mxu0 %v3230
        %v3733 = vpop.f32.mrf.mxu0
        %v3734 = vadd.f32 %v3621, %v3733
        %v3735 = vpop.f32.mrf.mxu0
        %v3736 = vadd.f32 %v3623, %v3735
        %3737 = vmatmul.bf16.gmra.mxu0 %v3233
        %v3738 = vpop.f32.mrf.mxu0
        %v3739 = vadd.f32 %v3626, %v3738
        %v3740 = vpop.f32.mrf.mxu0
        %v3741 = vadd.f32 %v3628, %v3740
        %3742 = vmatmul.bf16.gmra.mxu0 %v3236
        %v3743 = vpop.f32.mrf.mxu0
        %v3744 = vadd.f32 %v3631, %v3743
        %v3745 = vpop.f32.mrf.mxu0
        %v3746 = vadd.f32 %v3633, %v3745
        %3747 = vmatmul.bf16.gmra.mxu0 %v3239
        %v3748 = vpop.f32.mrf.mxu0
        %v3749 = vadd.f32 %v3636, %v3748
        %v3750 = vpop.f32.mrf.mxu0
        %v3751 = vadd.f32 %v3638, %v3750
        %3752 = vmatmul.bf16.gmra.mxu0 %v3242
        %v3753 = vpop.f32.mrf.mxu0
        %v3754 = vadd.f32 %v3641, %v3753
        %v3755 = vpop.f32.mrf.mxu0
        %v3756 = vadd.f32 %v3643, %v3755
        %3757 = vmatmul.bf16.gmra.mxu0 %v3245
        %v3758 = vpop.f32.mrf.mxu0
        %v3759 = vadd.f32 %v3646, %v3758
        %v3760 = vpop.f32.mrf.mxu0
        %v3761 = vadd.f32 %v3648, %v3760
        %3762 = vmatmul.bf16.gmra.mxu0 %v3248
        %v3763 = vpop.f32.mrf.mxu0
        %v3764 = vadd.f32 %v3651, %v3763
        %v3765 = vpop.f32.mrf.mxu0
        %v3766 = vadd.f32 %v3653, %v3765
        %3767 = vmatmul.bf16.gmra.mxu0 %v3251
        %v3768 = vpop.f32.mrf.mxu0
        %v3769 = vadd.f32 %v3656, %v3768
        %v3770 = vpop.f32.mrf.mxu0
        %v3771 = vadd.f32 %v3658, %v3770
        %3772 = vmatmul.bf16.gmra.mxu0 %v3254
        %v3773 = vpop.f32.mrf.mxu0
        %v3774 = vadd.f32 %v3661, %v3773
        %v3775 = vpop.f32.mrf.mxu0
        %v3776 = vadd.f32 %v3663, %v3775
        %3777 = vmatmul.bf16.gmra.mxu0 %v3257
        %v3778 = vpop.f32.mrf.mxu0
        %v3779 = vadd.f32 %v3666, %v3778
        %v3780 = vpop.f32.mrf.mxu0
        %v3781 = vadd.f32 %v3668, %v3780
        %3782 = vmatmul.bf16.gmra.mxu0 %v3260
        %v3783 = vpop.f32.mrf.mxu0
        %v3784 = vadd.f32 %v3671, %v3783
        %v3785 = vpop.f32.mrf.mxu0
        %v3786 = vadd.f32 %v3673, %v3785
        %3787 = vmatmul.bf16.gmra.mxu0 %v3263
        %v3788 = vpop.f32.mrf.mxu0
        %v3789 = vadd.f32 %v3676, %v3788
        %v3790 = vpop.f32.mrf.mxu0
        %v3791 = vadd.f32 %v3678, %v3790
        %3792 = vmatmul.bf16.gmra.mxu0 %v3266
        %v3793 = vpop.f32.mrf.mxu0
        %v3794 = vadd.f32 %v3681, %v3793
        %v3795 = vpop.f32.mrf.mxu0
        %3796 = vdwg.mxu0
        %3797 = vmatpush.bf16.msra.mxu0 %v3521
        %3798 = vmatpush.bf16.msra.mxu0 %v3519
        %3799 = vmatpush.bf16.msra.mxu0 %v3517
        %3800 = vmatpush.bf16.msra.mxu0 %v3515
        %3801 = vmatpush.bf16.msra.mxu0 %v3513
        %3802 = vmatpush.bf16.msra.mxu0 %v3511
        %3803 = vmatpush.bf16.msra.mxu0 %v3509
        %3804 = vmatpush.bf16.msra.mxu0 %v3507
        %3805 = vmatmul.bf16.gmra.mxu0 %v3207
        %v3806 = vpop.f32.mrf.mxu0
        %v3807 = vadd.f32 %v3694, %v3806
        %v3808 = vpop.f32.mrf.mxu0
        %v3809 = vadd.f32 %v3696, %v3808
        %3810 = vmatmul.bf16.gmra.mxu0 %v3210
        %v3811 = vpop.f32.mrf.mxu0
        %v3812 = vadd.f32 %v3699, %v3811
        %v3813 = vpop.f32.mrf.mxu0
        %v3814 = vadd.f32 %v3701, %v3813
        %3815 = vmatmul.bf16.gmra.mxu0 %v3213
        %v3816 = vpop.f32.mrf.mxu0
        %v3817 = vadd.f32 %v3704, %v3816
        %v3818 = vpop.f32.mrf.mxu0
        %v3819 = vadd.f32 %v3706, %v3818
        %3820 = vmatmul.bf16.gmra.mxu0 %v3216
        %v3821 = vpop.f32.mrf.mxu0
        %v3822 = vadd.f32 %v3709, %v3821
        %v3823 = vpop.f32.mrf.mxu0
        %v3824 = vadd.f32 %v3711, %v3823
        %3825 = vmatmul.bf16.gmra.mxu0 %v3219
        %v3826 = vpop.f32.mrf.mxu0
        %v3827 = vadd.f32 %v3714, %v3826
        %v3828 = vpop.f32.mrf.mxu0
        %v3829 = vadd.f32 %v3716, %v3828
        %3830 = vmatmul.bf16.gmra.mxu0 %v3222
        %v3831 = vpop.f32.mrf.mxu0
        %v3832 = vadd.f32 %v3719, %v3831
        %v3833 = vpop.f32.mrf.mxu0
        %v3834 = vadd.f32 %v3721, %v3833
        %3835 = vmatmul.bf16.gmra.mxu0 %v3225
        %v3836 = vpop.f32.mrf.mxu0
        %v3837 = vadd.f32 %v3724, %v3836
        %v3838 = vpop.f32.mrf.mxu0
        %v3839 = vadd.f32 %v3726, %v3838
        %3840 = vmatmul.bf16.gmra.mxu0 %v3228
        %v3841 = vpop.f32.mrf.mxu0
        %v3842 = vadd.f32 %v3729, %v3841
        %v3843 = vpop.f32.mrf.mxu0
        %v3844 = vadd.f32 %v3731, %v3843
        %3845 = vmatmul.bf16.gmra.mxu0 %v3231
        %v3846 = vpop.f32.mrf.mxu0
        %v3847 = vadd.f32 %v3734, %v3846
        %v3848 = vpop.f32.mrf.mxu0
        %v3849 = vadd.f32 %v3736, %v3848
        %3850 = vmatmul.bf16.gmra.mxu0 %v3234
        %v3851 = vpop.f32.mrf.mxu0
        %v3852 = vadd.f32 %v3739, %v3851
        %v3853 = vpop.f32.mrf.mxu0
        %v3854 = vadd.f32 %v3741, %v3853
        %3855 = vmatmul.bf16.gmra.mxu0 %v3237
        %v3856 = vpop.f32.mrf.mxu0
        %v3857 = vadd.f32 %v3744, %v3856
        %v3858 = vpop.f32.mrf.mxu0
        %v3859 = vadd.f32 %v3746, %v3858
        %3860 = vmatmul.bf16.gmra.mxu0 %v3240
        %v3861 = vpop.f32.mrf.mxu0
        %v3862 = vadd.f32 %v3749, %v3861
        %v3863 = vpop.f32.mrf.mxu0
        %v3864 = vadd.f32 %v3751, %v3863
        %3865 = vmatmul.bf16.gmra.mxu0 %v3243
        %v3866 = vpop.f32.mrf.mxu0
        %v3867 = vadd.f32 %v3754, %v3866
        %v3868 = vpop.f32.mrf.mxu0
        %v3869 = vadd.f32 %v3756, %v3868
        %3870 = vmatmul.bf16.gmra.mxu0 %v3246
        %v3871 = vpop.f32.mrf.mxu0
        %v3872 = vadd.f32 %v3759, %v3871
        %v3873 = vpop.f32.mrf.mxu0
        %v3874 = vadd.f32 %v3761, %v3873
        %3875 = vmatmul.bf16.gmra.mxu0 %v3249
        %v3876 = vpop.f32.mrf.mxu0
        %v3877 = vadd.f32 %v3764, %v3876
        %v3878 = vpop.f32.mrf.mxu0
        %v3879 = vadd.f32 %v3766, %v3878
        %3880 = vmatmul.bf16.gmra.mxu0 %v3252
        %v3881 = vpop.f32.mrf.mxu0
        %v3882 = vadd.f32 %v3769, %v3881
        %v3883 = vpop.f32.mrf.mxu0
        %v3884 = vadd.f32 %v3771, %v3883
        %3885 = vmatmul.bf16.gmra.mxu0 %v3255
        %v3886 = vpop.f32.mrf.mxu0
        %v3887 = vadd.f32 %v3774, %v3886
        %v3888 = vpop.f32.mrf.mxu0
        %v3889 = vadd.f32 %v3776, %v3888
        %3890 = vmatmul.bf16.gmra.mxu0 %v3258
        %v3891 = vpop.f32.mrf.mxu0
        %v3892 = vadd.f32 %v3779, %v3891
        %v3893 = vpop.f32.mrf.mxu0
        %v3894 = vadd.f32 %v3781, %v3893
        %3895 = vmatmul.bf16.gmra.mxu0 %v3261
        %v3896 = vpop.f32.mrf.mxu0
        %v3897 = vadd.f32 %v3784, %v3896
        %v3898 = vpop.f32.mrf.mxu0
        %v3899 = vadd.f32 %v3786, %v3898
        %3900 = vmatmul.bf16.gmra.mxu0 %v3264
        %v3901 = vpop.f32.mrf.mxu0
        %v3902 = vadd.f32 %v3789, %v3901
        %v3903 = vpop.f32.mrf.mxu0
        %v3904 = vadd.f32 %v3791, %v3903
        %3905 = vmatmul.bf16.gmra.mxu0 %v3267
        %v3906 = vpop.f32.mrf.mxu0
        %v3907 = vadd.f32 %v3794, %v3906
        %v3908 = vpop.f32.mrf.mxu0
        %3909 = vdwg.mxu0
        %3910 = vmatpush.bf16.msra.mxu0 %v3490
        %3911 = vmatpush.bf16.msra.mxu0 %v3488
        %3912 = vmatpush.bf16.msra.mxu0 %v3486
        %3913 = vmatpush.bf16.msra.mxu0 %v3484
        %3914 = vmatpush.bf16.msra.mxu0 %v3482
        %3915 = vmatpush.bf16.msra.mxu0 %v3480
        %3916 = vmatpush.bf16.msra.mxu0 %v3478
        %3917 = vmatpush.bf16.msra.mxu0 %v3476
        %3918 = vmatmul.bf16.gmra.mxu0 %v3205
        %v3919 = vpop.f32.mrf.mxu0
        %v3920 = vadd.f32 0.0, %v3919
        %v3921 = vpop.f32.mrf.mxu0
        %v3922 = vadd.f32 0.0, %v3921
        %3923 = vmatmul.bf16.gmra.mxu0 %v3208
        %v3924 = vpop.f32.mrf.mxu0
        %v3925 = vadd.f32 0.0, %v3924
        %v3926 = vpop.f32.mrf.mxu0
        %v3927 = vadd.f32 0.0, %v3926
        %3928 = vmatmul.bf16.gmra.mxu0 %v3211
        %v3929 = vpop.f32.mrf.mxu0
        %v3930 = vadd.f32 0.0, %v3929
        %v3931 = vpop.f32.mrf.mxu0
        %v3932 = vadd.f32 0.0, %v3931
        %3933 = vmatmul.bf16.gmra.mxu0 %v3214
        %v3934 = vpop.f32.mrf.mxu0
        %v3935 = vadd.f32 0.0, %v3934
        %v3936 = vpop.f32.mrf.mxu0
        %v3937 = vadd.f32 0.0, %v3936
        %3938 = vmatmul.bf16.gmra.mxu0 %v3217
        %v3939 = vpop.f32.mrf.mxu0
        %v3940 = vadd.f32 0.0, %v3939
        %v3941 = vpop.f32.mrf.mxu0
        %v3942 = vadd.f32 0.0, %v3941
        %3943 = vmatmul.bf16.gmra.mxu0 %v3220
        %v3944 = vpop.f32.mrf.mxu0
        %v3945 = vadd.f32 0.0, %v3944
        %v3946 = vpop.f32.mrf.mxu0
        %v3947 = vadd.f32 0.0, %v3946
        %3948 = vmatmul.bf16.gmra.mxu0 %v3223
        %v3949 = vpop.f32.mrf.mxu0
        %v3950 = vadd.f32 0.0, %v3949
        %v3951 = vpop.f32.mrf.mxu0
        %v3952 = vadd.f32 0.0, %v3951
        %3953 = vmatmul.bf16.gmra.mxu0 %v3226
        %v3954 = vpop.f32.mrf.mxu0
        %v3955 = vadd.f32 0.0, %v3954
        %v3956 = vpop.f32.mrf.mxu0
        %v3957 = vadd.f32 0.0, %v3956
        %3958 = vmatmul.bf16.gmra.mxu0 %v3229
        %v3959 = vpop.f32.mrf.mxu0
        %v3960 = vadd.f32 0.0, %v3959
        %v3961 = vpop.f32.mrf.mxu0
        %v3962 = vadd.f32 0.0, %v3961
        %3963 = vmatmul.bf16.gmra.mxu0 %v3232
        %v3964 = vpop.f32.mrf.mxu0
        %v3965 = vadd.f32 0.0, %v3964
        %v3966 = vpop.f32.mrf.mxu0
        %v3967 = vadd.f32 0.0, %v3966
        %3968 = vmatmul.bf16.gmra.mxu0 %v3235
        %v3969 = vpop.f32.mrf.mxu0
        %v3970 = vadd.f32 0.0, %v3969
        %v3971 = vpop.f32.mrf.mxu0
        %v3972 = vadd.f32 0.0, %v3971
        %3973 = vmatmul.bf16.gmra.mxu0 %v3238
        %v3974 = vpop.f32.mrf.mxu0
        %v3975 = vadd.f32 0.0, %v3974
        %v3976 = vpop.f32.mrf.mxu0
        %v3977 = vadd.f32 0.0, %v3976
        %3978 = vmatmul.bf16.gmra.mxu0 %v3241
        %v3979 = vpop.f32.mrf.mxu0
        %v3980 = vadd.f32 0.0, %v3979
        %v3981 = vpop.f32.mrf.mxu0
        %v3982 = vadd.f32 0.0, %v3981
        %3983 = vmatmul.bf16.gmra.mxu0 %v3244
        %v3984 = vpop.f32.mrf.mxu0
        %v3985 = vadd.f32 0.0, %v3984
        %v3986 = vpop.f32.mrf.mxu0
        %v3987 = vadd.f32 0.0, %v3986
        %3988 = vmatmul.bf16.gmra.mxu0 %v3247
        %v3989 = vpop.f32.mrf.mxu0
        %v3990 = vadd.f32 0.0, %v3989
        %v3991 = vpop.f32.mrf.mxu0
        %v3992 = vadd.f32 0.0, %v3991
        %3993 = vmatmul.bf16.gmra.mxu0 %v3250
        %v3994 = vpop.f32.mrf.mxu0
        %v3995 = vadd.f32 0.0, %v3994
        %v3996 = vpop.f32.mrf.mxu0
        %v3997 = vadd.f32 0.0, %v3996
        %3998 = vmatmul.bf16.gmra.mxu0 %v3253
        %v3999 = vpop.f32.mrf.mxu0
        %v4000 = vadd.f32 0.0, %v3999
        %v4001 = vpop.f32.mrf.mxu0
        %v4002 = vadd.f32 0.0, %v4001
        %4003 = vmatmul.bf16.gmra.mxu0 %v3256
        %v4004 = vpop.f32.mrf.mxu0
        %v4005 = vadd.f32 0.0, %v4004
        %v4006 = vpop.f32.mrf.mxu0
        %v4007 = vadd.f32 0.0, %v4006
        %4008 = vmatmul.bf16.gmra.mxu0 %v3259
        %v4009 = vpop.f32.mrf.mxu0
        %v4010 = vadd.f32 0.0, %v4009
        %v4011 = vpop.f32.mrf.mxu0
        %v4012 = vadd.f32 0.0, %v4011
        %4013 = vmatmul.bf16.gmra.mxu0 %v3262
        %v4014 = vpop.f32.mrf.mxu0
        %v4015 = vadd.f32 0.0, %v4014
        %v4016 = vpop.f32.mrf.mxu0
        %v4017 = vadd.f32 0.0, %v4016
        %4018 = vmatmul.bf16.gmra.mxu0 %v3265
        %v4019 = vpop.f32.mrf.mxu0
        %v4020 = vadd.f32 0.0, %v4019
        %v4021 = vpop.f32.mrf.mxu0
        %4022 = vdwg.mxu0
        %4023 = vmatpush.bf16.msra.mxu0 %v3506
        %4024 = vmatpush.bf16.msra.mxu0 %v3504
        %4025 = vmatpush.bf16.msra.mxu0 %v3502
        %4026 = vmatpush.bf16.msra.mxu0 %v3500
        %4027 = vmatpush.bf16.msra.mxu0 %v3498
        %4028 = vmatpush.bf16.msra.mxu0 %v3496
        %4029 = vmatpush.bf16.msra.mxu0 %v3494
        %4030 = vmatpush.bf16.msra.mxu0 %v3492
        %4031 = vmatmul.bf16.gmra.mxu0 %v3206
        %v4032 = vpop.f32.mrf.mxu0
        %v4033 = vadd.f32 %v3920, %v4032
        %v4034 = vpop.f32.mrf.mxu0
        %v4035 = vadd.f32 %v3922, %v4034
        %4036 = vmatmul.bf16.gmra.mxu0 %v3209
        %v4037 = vpop.f32.mrf.mxu0
        %v4038 = vadd.f32 %v3925, %v4037
        %v4039 = vpop.f32.mrf.mxu0
        %v4040 = vadd.f32 %v3927, %v4039
        %4041 = vmatmul.bf16.gmra.mxu0 %v3212
        %v4042 = vpop.f32.mrf.mxu0
        %v4043 = vadd.f32 %v3930, %v4042
        %v4044 = vpop.f32.mrf.mxu0
        %v4045 = vadd.f32 %v3932, %v4044
        %4046 = vmatmul.bf16.gmra.mxu0 %v3215
        %v4047 = vpop.f32.mrf.mxu0
        %v4048 = vadd.f32 %v3935, %v4047
        %v4049 = vpop.f32.mrf.mxu0
        %v4050 = vadd.f32 %v3937, %v4049
        %4051 = vmatmul.bf16.gmra.mxu0 %v3218
        %v4052 = vpop.f32.mrf.mxu0
        %v4053 = vadd.f32 %v3940, %v4052
        %v4054 = vpop.f32.mrf.mxu0
        %v4055 = vadd.f32 %v3942, %v4054
        %4056 = vmatmul.bf16.gmra.mxu0 %v3221
        %v4057 = vpop.f32.mrf.mxu0
        %v4058 = vadd.f32 %v3945, %v4057
        %v4059 = vpop.f32.mrf.mxu0
        %v4060 = vadd.f32 %v3947, %v4059
        %4061 = vmatmul.bf16.gmra.mxu0 %v3224
        %v4062 = vpop.f32.mrf.mxu0
        %v4063 = vadd.f32 %v3950, %v4062
        %v4064 = vpop.f32.mrf.mxu0
        %v4065 = vadd.f32 %v3952, %v4064
        %4066 = vmatmul.bf16.gmra.mxu0 %v3227
        %v4067 = vpop.f32.mrf.mxu0
        %v4068 = vadd.f32 %v3955, %v4067
        %v4069 = vpop.f32.mrf.mxu0
        %v4070 = vadd.f32 %v3957, %v4069
        %4071 = vmatmul.bf16.gmra.mxu0 %v3230
        %v4072 = vpop.f32.mrf.mxu0
        %v4073 = vadd.f32 %v3960, %v4072
        %v4074 = vpop.f32.mrf.mxu0
        %v4075 = vadd.f32 %v3962, %v4074
        %4076 = vmatmul.bf16.gmra.mxu0 %v3233
        %v4077 = vpop.f32.mrf.mxu0
        %v4078 = vadd.f32 %v3965, %v4077
        %v4079 = vpop.f32.mrf.mxu0
        %v4080 = vadd.f32 %v3967, %v4079
        %4081 = vmatmul.bf16.gmra.mxu0 %v3236
        %v4082 = vpop.f32.mrf.mxu0
        %v4083 = vadd.f32 %v3970, %v4082
        %v4084 = vpop.f32.mrf.mxu0
        %v4085 = vadd.f32 %v3972, %v4084
        %4086 = vmatmul.bf16.gmra.mxu0 %v3239
        %v4087 = vpop.f32.mrf.mxu0
        %v4088 = vadd.f32 %v3975, %v4087
        %v4089 = vpop.f32.mrf.mxu0
        %v4090 = vadd.f32 %v3977, %v4089
        %4091 = vmatmul.bf16.gmra.mxu0 %v3242
        %v4092 = vpop.f32.mrf.mxu0
        %v4093 = vadd.f32 %v3980, %v4092
        %v4094 = vpop.f32.mrf.mxu0
        %v4095 = vadd.f32 %v3982, %v4094
        %4096 = vmatmul.bf16.gmra.mxu0 %v3245
        %v4097 = vpop.f32.mrf.mxu0
        %v4098 = vadd.f32 %v3985, %v4097
        %v4099 = vpop.f32.mrf.mxu0
        %v4100 = vadd.f32 %v3987, %v4099
        %4101 = vmatmul.bf16.gmra.mxu0 %v3248
        %v4102 = vpop.f32.mrf.mxu0
        %v4103 = vadd.f32 %v3990, %v4102
        %v4104 = vpop.f32.mrf.mxu0
        %v4105 = vadd.f32 %v3992, %v4104
        %4106 = vmatmul.bf16.gmra.mxu0 %v3251
        %v4107 = vpop.f32.mrf.mxu0
        %v4108 = vadd.f32 %v3995, %v4107
        %v4109 = vpop.f32.mrf.mxu0
        %v4110 = vadd.f32 %v3997, %v4109
        %4111 = vmatmul.bf16.gmra.mxu0 %v3254
        %v4112 = vpop.f32.mrf.mxu0
        %v4113 = vadd.f32 %v4000, %v4112
        %v4114 = vpop.f32.mrf.mxu0
        %v4115 = vadd.f32 %v4002, %v4114
        %4116 = vmatmul.bf16.gmra.mxu0 %v3257
        %v4117 = vpop.f32.mrf.mxu0
        %v4118 = vadd.f32 %v4005, %v4117
        %v4119 = vpop.f32.mrf.mxu0
        %v4120 = vadd.f32 %v4007, %v4119
        %4121 = vmatmul.bf16.gmra.mxu0 %v3260
        %v4122 = vpop.f32.mrf.mxu0
        %v4123 = vadd.f32 %v4010, %v4122
        %v4124 = vpop.f32.mrf.mxu0
        %v4125 = vadd.f32 %v4012, %v4124
        %4126 = vmatmul.bf16.gmra.mxu0 %v3263
        %v4127 = vpop.f32.mrf.mxu0
        %v4128 = vadd.f32 %v4015, %v4127
        %v4129 = vpop.f32.mrf.mxu0
        %v4130 = vadd.f32 %v4017, %v4129
        %4131 = vmatmul.bf16.gmra.mxu0 %v3266
        %v4132 = vpop.f32.mrf.mxu0
        %v4133 = vadd.f32 %v4020, %v4132
        %v4134 = vpop.f32.mrf.mxu0
        %4135 = vdwg.mxu0
        %4136 = vmatpush.bf16.msra.mxu0 %v3522
        %4137 = vmatpush.bf16.msra.mxu0 %v3520
        %4138 = vmatpush.bf16.msra.mxu0 %v3518
        %4139 = vmatpush.bf16.msra.mxu0 %v3516
        %4140 = vmatpush.bf16.msra.mxu0 %v3514
        %4141 = vmatpush.bf16.msra.mxu0 %v3512
        %4142 = vmatpush.bf16.msra.mxu0 %v3510
        %4143 = vmatpush.bf16.msra.mxu0 %v3508
        %4144 = vmatmul.bf16.gmra.mxu0 %v3207
        %v4145 = vpop.f32.mrf.mxu0
        %v4146 = vadd.f32 %v4033, %v4145
        %v4147 = vpop.f32.mrf.mxu0
        %v4148 = vadd.f32 %v4035, %v4147
        %4149 = vmatmul.bf16.gmra.mxu0 %v3210
        %v4150 = vpop.f32.mrf.mxu0
        %v4151 = vadd.f32 %v4038, %v4150
        %v4152 = vpop.f32.mrf.mxu0
        %v4153 = vadd.f32 %v4040, %v4152
        %4154 = vmatmul.bf16.gmra.mxu0 %v3213
        %v4155 = vpop.f32.mrf.mxu0
        %v4156 = vadd.f32 %v4043, %v4155
        %v4157 = vpop.f32.mrf.mxu0
        %v4158 = vadd.f32 %v4045, %v4157
        %4159 = vmatmul.bf16.gmra.mxu0 %v3216
        %v4160 = vpop.f32.mrf.mxu0
        %v4161 = vadd.f32 %v4048, %v4160
        %v4162 = vpop.f32.mrf.mxu0
        %v4163 = vadd.f32 %v4050, %v4162
        %4164 = vmatmul.bf16.gmra.mxu0 %v3219
        %v4165 = vpop.f32.mrf.mxu0
        %v4166 = vadd.f32 %v4053, %v4165
        %v4167 = vpop.f32.mrf.mxu0
        %v4168 = vadd.f32 %v4055, %v4167
        %4169 = vmatmul.bf16.gmra.mxu0 %v3222
        %v4170 = vpop.f32.mrf.mxu0
        %v4171 = vadd.f32 %v4058, %v4170
        %v4172 = vpop.f32.mrf.mxu0
        %v4173 = vadd.f32 %v4060, %v4172
        %4174 = vmatmul.bf16.gmra.mxu0 %v3225
        %v4175 = vpop.f32.mrf.mxu0
        %v4176 = vadd.f32 %v4063, %v4175
        %v4177 = vpop.f32.mrf.mxu0
        %v4178 = vadd.f32 %v4065, %v4177
        %4179 = vmatmul.bf16.gmra.mxu0 %v3228
        %v4180 = vpop.f32.mrf.mxu0
        %v4181 = vadd.f32 %v4068, %v4180
        %v4182 = vpop.f32.mrf.mxu0
        %v4183 = vadd.f32 %v4070, %v4182
        %4184 = vmatmul.bf16.gmra.mxu0 %v3231
        %v4185 = vpop.f32.mrf.mxu0
        %v4186 = vadd.f32 %v4073, %v4185
        %v4187 = vpop.f32.mrf.mxu0
        %v4188 = vadd.f32 %v4075, %v4187
        %4189 = vmatmul.bf16.gmra.mxu0 %v3234
        %v4190 = vpop.f32.mrf.mxu0
        %v4191 = vadd.f32 %v4078, %v4190
        %v4192 = vpop.f32.mrf.mxu0
        %v4193 = vadd.f32 %v4080, %v4192
        %4194 = vmatmul.bf16.gmra.mxu0 %v3237
        %v4195 = vpop.f32.mrf.mxu0
        %v4196 = vadd.f32 %v4083, %v4195
        %v4197 = vpop.f32.mrf.mxu0
        %v4198 = vadd.f32 %v4085, %v4197
        %4199 = vmatmul.bf16.gmra.mxu0 %v3240
        %v4200 = vpop.f32.mrf.mxu0
        %v4201 = vadd.f32 %v4088, %v4200
        %v4202 = vpop.f32.mrf.mxu0
        %v4203 = vadd.f32 %v4090, %v4202
        %4204 = vmatmul.bf16.gmra.mxu0 %v3243
        %v4205 = vpop.f32.mrf.mxu0
        %v4206 = vadd.f32 %v4093, %v4205
        %v4207 = vpop.f32.mrf.mxu0
        %v4208 = vadd.f32 %v4095, %v4207
        %4209 = vmatmul.bf16.gmra.mxu0 %v3246
        %v4210 = vpop.f32.mrf.mxu0
        %v4211 = vadd.f32 %v4098, %v4210
        %v4212 = vpop.f32.mrf.mxu0
        %v4213 = vadd.f32 %v4100, %v4212
        %4214 = vmatmul.bf16.gmra.mxu0 %v3249
        %v4215 = vpop.f32.mrf.mxu0
        %v4216 = vadd.f32 %v4103, %v4215
        %v4217 = vpop.f32.mrf.mxu0
        %v4218 = vadd.f32 %v4105, %v4217
        %4219 = vmatmul.bf16.gmra.mxu0 %v3252
        %v4220 = vpop.f32.mrf.mxu0
        %v4221 = vadd.f32 %v4108, %v4220
        %v4222 = vpop.f32.mrf.mxu0
        %v4223 = vadd.f32 %v4110, %v4222
        %4224 = vmatmul.bf16.gmra.mxu0 %v3255
        %v4225 = vpop.f32.mrf.mxu0
        %v4226 = vadd.f32 %v4113, %v4225
        %v4227 = vpop.f32.mrf.mxu0
        %v4228 = vadd.f32 %v4115, %v4227
        %4229 = vmatmul.bf16.gmra.mxu0 %v3258
        %v4230 = vpop.f32.mrf.mxu0
        %v4231 = vadd.f32 %v4118, %v4230
        %v4232 = vpop.f32.mrf.mxu0
        %v4233 = vadd.f32 %v4120, %v4232
        %4234 = vmatmul.bf16.gmra.mxu0 %v3261
        %v4235 = vpop.f32.mrf.mxu0
        %v4236 = vadd.f32 %v4123, %v4235
        %v4237 = vpop.f32.mrf.mxu0
        %v4238 = vadd.f32 %v4125, %v4237
        %4239 = vmatmul.bf16.gmra.mxu0 %v3264
        %v4240 = vpop.f32.mrf.mxu0
        %v4241 = vadd.f32 %v4128, %v4240
        %v4242 = vpop.f32.mrf.mxu0
        %v4243 = vadd.f32 %v4130, %v4242
        %4244 = vmatmul.bf16.gmra.mxu0 %v3267
        %v4245 = vpop.f32.mrf.mxu0
        %v4246 = vadd.f32 %v4133, %v4245
        %v4247 = vpop.f32.mrf.mxu0
        %4248 = vdwg.mxu0
        %4249 = vst [vmem:[#allocation3] sm:$0xff] %v3807
        %4250 = vst [vmem:[#allocation3 + $0x8] sm:$0xff] %v4146
        %4251 = vst [vmem:[#allocation3 + $0x10] sm:$0xff] %v3809
        %4252 = vst [vmem:[#allocation3 + $0x18] sm:$0xff] %v4148
        %4253 = vst [vmem:[#allocation3 + $0x20] sm:$0xff] %v3812
        %4254 = vst [vmem:[#allocation3 + $0x28] sm:$0xff] %v4151
        %4255 = vst [vmem:[#allocation3 + $0x30] sm:$0xff] %v3814
        %4256 = vst [vmem:[#allocation3 + $0x38] sm:$0xff] %v4153
        %4257 = vst [vmem:[#allocation3 + $0x40] sm:$0xff] %v3817
        %4258 = vst [vmem:[#allocation3 + $0x48] sm:$0xff] %v4156
        %4259 = vst [vmem:[#allocation3 + $0x50] sm:$0xff] %v3819
        %4260 = vst [vmem:[#allocation3 + $0x58] sm:$0xff] %v4158
        %4261 = vst [vmem:[#allocation3 + $0x60] sm:$0xff] %v3822
        %4262 = vst [vmem:[#allocation3 + $0x68] sm:$0xff] %v4161
        %4263 = vst [vmem:[#allocation3 + $0x70] sm:$0xff] %v3824
        %4264 = vst [vmem:[#allocation3 + $0x78] sm:$0xff] %v4163
        %4265 = vst [vmem:[#allocation3 + $0x80] sm:$0xff] %v3827
        %4266 = vst [vmem:[#allocation3 + $0x88] sm:$0xff] %v4166
        %4267 = vst [vmem:[#allocation3 + $0x90] sm:$0xff] %v3829
        %4268 = vst [vmem:[#allocation3 + $0x98] sm:$0xff] %v4168
        %4269 = vst [vmem:[#allocation3 + $0xa0] sm:$0xff] %v3832
        %4270 = vst [vmem:[#allocation3 + $0xa8] sm:$0xff] %v4171
        %4271 = vst [vmem:[#allocation3 + $0xb0] sm:$0xff] %v3834
        %4272 = vst [vmem:[#allocation3 + $0xb8] sm:$0xff] %v4173
        %4273 = vst [vmem:[#allocation3 + $0xc0] sm:$0xff] %v3837
        %4274 = vst [vmem:[#allocation3 + $0xc8] sm:$0xff] %v4176
        %4275 = vst [vmem:[#allocation3 + $0xd0] sm:$0xff] %v3839
        %4276 = vst [vmem:[#allocation3 + $0xd8] sm:$0xff] %v4178
        %4277 = vst [vmem:[#allocation3 + $0xe0] sm:$0xff] %v3842
        %4278 = vst [vmem:[#allocation3 + $0xe8] sm:$0xff] %v4181
        %4279 = vst [vmem:[#allocation3 + $0xf0] sm:$0xff] %v3844
        %4280 = vst [vmem:[#allocation3 + $0xf8] sm:$0xff] %v4183
        %4281 = vst [vmem:[#allocation3 + $0x100] sm:$0xff] %v3847
        %4282 = vst [vmem:[#allocation3 + $0x108] sm:$0xff] %v4186
        %4283 = vst [vmem:[#allocation3 + $0x110] sm:$0xff] %v3849
        %4284 = vst [vmem:[#allocation3 + $0x118] sm:$0xff] %v4188
        %4285 = vst [vmem:[#allocation3 + $0x120] sm:$0xff] %v3852
        %4286 = vst [vmem:[#allocation3 + $0x128] sm:$0xff] %v4191
        %4287 = vst [vmem:[#allocation3 + $0x130] sm:$0xff] %v3854
        %4288 = vst [vmem:[#allocation3 + $0x138] sm:$0xff] %v4193
        %4289 = vst [vmem:[#allocation3 + $0x140] sm:$0xff] %v3857
        %4290 = vst [vmem:[#allocation3 + $0x148] sm:$0xff] %v4196
        %4291 = vst [vmem:[#allocation3 + $0x150] sm:$0xff] %v3859
        %4292 = vst [vmem:[#allocation3 + $0x158] sm:$0xff] %v4198
        %4293 = vst [vmem:[#allocation3 + $0x160] sm:$0xff] %v3862
        %4294 = vst [vmem:[#allocation3 + $0x168] sm:$0xff] %v4201
        %4295 = vst [vmem:[#allocation3 + $0x170] sm:$0xff] %v3864
        %4296 = vst [vmem:[#allocation3 + $0x178] sm:$0xff] %v4203
        %4297 = vst [vmem:[#allocation3 + $0x180] sm:$0xff] %v3867
        %4298 = vst [vmem:[#allocation3 + $0x188] sm:$0xff] %v4206
        %4299 = vst [vmem:[#allocation3 + $0x190] sm:$0xff] %v3869
        %4300 = vst [vmem:[#allocation3 + $0x198] sm:$0xff] %v4208
        %4301 = vst [vmem:[#allocation3 + $0x1a0] sm:$0xff] %v3872
        %4302 = vst [vmem:[#allocation3 + $0x1a8] sm:$0xff] %v4211
        %4303 = vst [vmem:[#allocation3 + $0x1b0] sm:$0xff] %v3874
        %4304 = vst [vmem:[#allocation3 + $0x1b8] sm:$0xff] %v4213
        %4305 = vst [vmem:[#allocation3 + $0x1c0] sm:$0xff] %v3877
        %4306 = vst [vmem:[#allocation3 + $0x1c8] sm:$0xff] %v4216
        %4307 = vst [vmem:[#allocation3 + $0x1d0] sm:$0xff] %v3879
        %4308 = vst [vmem:[#allocation3 + $0x1d8] sm:$0xff] %v4218
        %4309 = vst [vmem:[#allocation3 + $0x1e0] sm:$0xff] %v3882
        %4310 = vst [vmem:[#allocation3 + $0x1e8] sm:$0xff] %v4221
        %4311 = vst [vmem:[#allocation3 + $0x1f0] sm:$0xff] %v3884
        %4312 = vst [vmem:[#allocation3 + $0x1f8] sm:$0xff] %v4223
        %4313 = vst [vmem:[#allocation3 + $0x200] sm:$0xff] %v3887
        %4314 = vst [vmem:[#allocation3 + $0x208] sm:$0xff] %v4226
        %4315 = vst [vmem:[#allocation3 + $0x210] sm:$0xff] %v3889
        %4316 = vst [vmem:[#allocation3 + $0x218] sm:$0xff] %v4228
        %4317 = vst [vmem:[#allocation3 + $0x220] sm:$0xff] %v3892
        %4318 = vst [vmem:[#allocation3 + $0x228] sm:$0xff] %v4231
        %4319 = vst [vmem:[#allocation3 + $0x230] sm:$0xff] %v3894
        %4320 = vst [vmem:[#allocation3 + $0x238] sm:$0xff] %v4233
        %4321 = vst [vmem:[#allocation3 + $0x240] sm:$0xff] %v3897
        %4322 = vst [vmem:[#allocation3 + $0x248] sm:$0xff] %v4236
        %4323 = vst [vmem:[#allocation3 + $0x250] sm:$0xff] %v3899
        %4324 = vst [vmem:[#allocation3 + $0x258] sm:$0xff] %v4238
        %4325 = vst [vmem:[#allocation3 + $0x260] sm:$0xff] %v3902
        %4326 = vst [vmem:[#allocation3 + $0x268] sm:$0xff] %v4241
        %4327 = vst [vmem:[#allocation3 + $0x270] sm:$0xff] %v3904
        %4328 = vst [vmem:[#allocation3 + $0x278] sm:$0xff] %v4243
        %4329 = vst [vmem:[#allocation3 + $0x280] sm:$0xf] %v3907
        %4330 = vst [vmem:[#allocation3 + $0x288] sm:$0xf] %v4246
        %v4331 = vld [vmem:[#allocation3 + $0x20] sm:$0xfc]
        %v4332 = vld [vmem:[#allocation3 + $0x28] sm:$0xfc]
        %v4333 = vld [vmem:[#allocation3 + $0x30] sm:$0xff]
        %v4334 = vld [vmem:[#allocation3 + $0x38] sm:$0xff]
        %v4335 = vld [vmem:[#allocation3 + $0x40] sm:$0xff]
        %v4336 = vld [vmem:[#allocation3 + $0x48] sm:$0xff]
        %v4337 = vld [vmem:[#allocation3 + $0x50] sm:$0xff]
        %v4338 = vld [vmem:[#allocation3 + $0x58] sm:$0xff]
        %v4339 = vld [vmem:[#allocation3 + $0x60] sm:$0xff]
        %v4340 = vld [vmem:[#allocation3 + $0x68] sm:$0xff]
        %v4341 = vld [vmem:[#allocation3 + $0x70] sm:$0xff]
        %v4342 = vld [vmem:[#allocation3 + $0x78] sm:$0xff]
        %v4343 = vld [vmem:[#allocation3 + $0x80] sm:$0xff]
        %v4344 = vld [vmem:[#allocation3 + $0x88] sm:$0xff]
        %v4345 = vld [vmem:[#allocation3 + $0x90] sm:$0xff]
        %v4346 = vld [vmem:[#allocation3 + $0x98] sm:$0xff]
        %v4347 = vld [vmem:[#allocation3 + $0xa0] sm:$0xff]
        %v4348 = vld [vmem:[#allocation3 + $0xa8] sm:$0xff]
        %v4349 = vld [vmem:[#allocation3 + $0xb0] sm:$0xff]
        %v4350 = vld [vmem:[#allocation3 + $0xb8] sm:$0xff]
        %v4351 = vld [vmem:[#allocation3 + $0xc0] sm:$0xff]
        %v4352 = vld [vmem:[#allocation3 + $0xc8] sm:$0xff]
        %v4353 = vld [vmem:[#allocation3 + $0xd0] sm:$0xff]
        %v4354 = vld [vmem:[#allocation3 + $0xd8] sm:$0xff]
        %v4355 = vld [vmem:[#allocation3 + $0xe0] sm:$0xff]
        %v4356 = vld [vmem:[#allocation3 + $0xe8] sm:$0xff]
        %v4357 = vld [vmem:[#allocation3 + $0xf0] sm:$0xff]
        %v4358 = vld [vmem:[#allocation3 + $0xf8] sm:$0xff]
        %v4359 = vld [vmem:[#allocation3 + $0x100] sm:$0xff]
        %v4360 = vld [vmem:[#allocation3 + $0x108] sm:$0xff]
        %v4361 = vld [vmem:[#allocation3 + $0x110] sm:$0xff]
        %v4362 = vld [vmem:[#allocation3 + $0x118] sm:$0xff]
        %v4363 = vld [vmem:[#allocation3 + $0x120] sm:$0xff]
        %v4364 = vld [vmem:[#allocation3 + $0x128] sm:$0xff]
        %v4365 = vld [vmem:[#allocation3 + $0x130] sm:$0xff]
        %v4366 = vld [vmem:[#allocation3 + $0x138] sm:$0xff]
        %v4367 = vld [vmem:[#allocation3 + $0x140] sm:$0xff]
        %v4368 = vld [vmem:[#allocation3 + $0x148] sm:$0xff]
        %v4369 = vld [vmem:[#allocation3 + $0x150] sm:$0xff]
        %v4370 = vld [vmem:[#allocation3 + $0x158] sm:$0xff]
        %v4371 = vld [vmem:[#allocation3 + $0x160] sm:$0xff]
        %v4372 = vld [vmem:[#allocation3 + $0x168] sm:$0xff]
        %v4373 = vld [vmem:[#allocation3 + $0x170] sm:$0xff]
        %v4374 = vld [vmem:[#allocation3 + $0x178] sm:$0xff]
        %v4375 = vld [vmem:[#allocation3 + $0x180] sm:$0xff]
        %v4376 = vld [vmem:[#allocation3 + $0x188] sm:$0xff]
        %v4377 = vld [vmem:[#allocation3 + $0x190] sm:$0xff]
        %v4378 = vld [vmem:[#allocation3 + $0x198] sm:$0xff]
        %v4379 = vld [vmem:[#allocation3 + $0x1a0] sm:$0xff]
        %v4380 = vld [vmem:[#allocation3 + $0x1a8] sm:$0xff]
        %v4381 = vld [vmem:[#allocation3 + $0x1b0] sm:$0xff]
        %v4382 = vld [vmem:[#allocation3 + $0x1b8] sm:$0xff]
        %v4383 = vld [vmem:[#allocation3 + $0x1c0] sm:$0xff]
        %v4384 = vld [vmem:[#allocation3 + $0x1c8] sm:$0xff]
        %v4385 = vld [vmem:[#allocation3 + $0x1d0] sm:$0xff]
        %v4386 = vld [vmem:[#allocation3 + $0x1d8] sm:$0xff]
        %v4387 = vld [vmem:[#allocation3 + $0x1e0] sm:$0xff]
        %v4388 = vld [vmem:[#allocation3 + $0x1e8] sm:$0xff]
        %v4389 = vld [vmem:[#allocation3 + $0x1f0] sm:$0xff]
        %v4390 = vld [vmem:[#allocation3 + $0x1f8] sm:$0xff]
        %v4391 = vld [vmem:[#allocation3 + $0x200] sm:$0xff]
        %v4392 = vld [vmem:[#allocation3 + $0x208] sm:$0xff]
        %v4393 = vld [vmem:[#allocation3 + $0x210] sm:$0xff]
        %v4394 = vld [vmem:[#allocation3 + $0x218] sm:$0xff]
        %v4395 = vld [vmem:[#allocation3 + $0x220] sm:$0xff]
        %v4396 = vld [vmem:[#allocation3 + $0x228] sm:$0xff]
        %v4397 = vld [vmem:[#allocation3 + $0x230] sm:$0xff]
        %v4398 = vld [vmem:[#allocation3 + $0x238] sm:$0xff]
        %v4399 = vld [vmem:[#allocation3 + $0x240] sm:$0xff]
        %v4400 = vld [vmem:[#allocation3 + $0x248] sm:$0xff]
        %v4401 = vld [vmem:[#allocation3 + $0x250] sm:$0xff]
        %v4402 = vld [vmem:[#allocation3 + $0x258] sm:$0xff]
        %v4403 = vld [vmem:[#allocation3 + $0x260] sm:$0x3]
        %v4404 = vld [vmem:[#allocation3 + $0x268] sm:$0x3]
        %v4405 = vld [vmem:[#allocation4] sm:$0xff]
        %v4406 = vld [vmem:[#allocation4 + $0x8] sm:$0xff]
        %v4407 = vld [vmem:[#allocation4 + $0x10] sm:$0xff]
        %v4408 = vld [vmem:[#allocation4 + $0x18] sm:$0xff]
        %v4409 = vld [vmem:[#allocation4 + $0x20] sm:$0xff]
        %v4410 = vld [vmem:[#allocation4 + $0x28] sm:$0xff]
        %v4411 = vld [vmem:[#allocation4 + $0x30] sm:$0xff]
        %v4412 = vld [vmem:[#allocation4 + $0x38] sm:$0xff]
        %v4413 = vld [vmem:[#allocation4 + $0x40] sm:$0xff]
        %v4414 = vld [vmem:[#allocation4 + $0x48] sm:$0xff]
        %v4415 = vld [vmem:[#allocation4 + $0x50] sm:$0xff]
        %v4416 = vld [vmem:[#allocation4 + $0x58] sm:$0xff]
        %v4417 = vld [vmem:[#allocation4 + $0x60] sm:$0xff]
        %v4418 = vld [vmem:[#allocation4 + $0x68] sm:$0xff]
        %v4419 = vld [vmem:[#allocation4 + $0x70] sm:$0xff]
        %v4420 = vld [vmem:[#allocation4 + $0x78] sm:$0xff]
        %v4421 = vld [vmem:[#allocation4 + $0x80] sm:$0xff]
        %v4422 = vld [vmem:[#allocation4 + $0x88] sm:$0xff]
        %v4423 = vld [vmem:[#allocation4 + $0x90] sm:$0xff]
        %v4424 = vld [vmem:[#allocation4 + $0x98] sm:$0xff]
        %v4425 = vld [vmem:[#allocation4 + $0xa0] sm:$0xff]
        %v4426 = vld [vmem:[#allocation4 + $0xa8] sm:$0xff]
        %v4427 = vld [vmem:[#allocation4 + $0xb0] sm:$0xff]
        %v4428 = vld [vmem:[#allocation4 + $0xb8] sm:$0xff]
        %v4429 = vld [vmem:[#allocation4 + $0xc0] sm:$0xff]
        %v4430 = vld [vmem:[#allocation4 + $0xc8] sm:$0xff]
        %v4431 = vld [vmem:[#allocation4 + $0xd0] sm:$0xff]
        %v4432 = vld [vmem:[#allocation4 + $0xd8] sm:$0xff]
        %v4433 = vld [vmem:[#allocation4 + $0xe0] sm:$0xff]
        %v4434 = vld [vmem:[#allocation4 + $0xe8] sm:$0xff]
        %v4435 = vld [vmem:[#allocation4 + $0xf0] sm:$0xff]
        %v4436 = vld [vmem:[#allocation4 + $0xf8] sm:$0xff]
        %v4437 = vld [vmem:[#allocation4 + $0x100] sm:$0xff]
        %v4438 = vld [vmem:[#allocation4 + $0x108] sm:$0xff]
        %v4439 = vld [vmem:[#allocation4 + $0x110] sm:$0xff]
        %v4440 = vld [vmem:[#allocation4 + $0x118] sm:$0xff]
        %v4441 = vld [vmem:[#allocation4 + $0x120] sm:$0xff]
        %v4442 = vld [vmem:[#allocation4 + $0x128] sm:$0xff]
        %v4443 = vld [vmem:[#allocation4 + $0x130] sm:$0xff]
        %v4444 = vld [vmem:[#allocation4 + $0x138] sm:$0xff]
        %v4445 = vld [vmem:[#allocation4 + $0x140] sm:$0xff]
        %v4446 = vld [vmem:[#allocation4 + $0x148] sm:$0xff]
        %v4447 = vld [vmem:[#allocation4 + $0x150] sm:$0xff]
        %v4448 = vld [vmem:[#allocation4 + $0x158] sm:$0xff]
        %v4449 = vld [vmem:[#allocation4 + $0x160] sm:$0xff]
        %v4450 = vld [vmem:[#allocation4 + $0x168] sm:$0xff]
        %v4451 = vld [vmem:[#allocation4 + $0x170] sm:$0xff]
        %v4452 = vld [vmem:[#allocation4 + $0x178] sm:$0xff]
        %v4453 = vld [vmem:[#allocation4 + $0x180] sm:$0xff]
        %v4454 = vld [vmem:[#allocation4 + $0x188] sm:$0xff]
        %v4455 = vld [vmem:[#allocation4 + $0x190] sm:$0xff]
        %v4456 = vld [vmem:[#allocation4 + $0x198] sm:$0xff]
        %v4457 = vld [vmem:[#allocation4 + $0x1a0] sm:$0xff]
        %v4458 = vld [vmem:[#allocation4 + $0x1a8] sm:$0xff]
        %v4459 = vld [vmem:[#allocation4 + $0x1b0] sm:$0xff]
        %v4460 = vld [vmem:[#allocation4 + $0x1b8] sm:$0xff]
        %v4461 = vld [vmem:[#allocation4 + $0x1c0] sm:$0xff]
        %v4462 = vld [vmem:[#allocation4 + $0x1c8] sm:$0xff]
        %v4463 = vld [vmem:[#allocation4 + $0x1d0] sm:$0xff]
        %v4464 = vld [vmem:[#allocation4 + $0x1d8] sm:$0xff]
        %v4465 = vld [vmem:[#allocation4 + $0x1e0] sm:$0xff]
        %v4466 = vld [vmem:[#allocation4 + $0x1e8] sm:$0xff]
        %v4467 = vld [vmem:[#allocation4 + $0x1f0] sm:$0xff]
        %v4468 = vld [vmem:[#allocation4 + $0x1f8] sm:$0xff]
        %v4469 = vld [vmem:[#allocation4 + $0x200] sm:$0xff]
        %v4470 = vld [vmem:[#allocation4 + $0x208] sm:$0xff]
        %v4471 = vld [vmem:[#allocation4 + $0x210] sm:$0xff]
        %v4472 = vld [vmem:[#allocation4 + $0x218] sm:$0xff]
        %v4473 = vld [vmem:[#allocation4 + $0x220] sm:$0xff]
        %v4474 = vld [vmem:[#allocation4 + $0x228] sm:$0xff]
        %v4475 = vld [vmem:[#allocation4 + $0x230] sm:$0xff]
        %v4476 = vld [vmem:[#allocation4 + $0x238] sm:$0xff]
        %vm4551 = vcmask 1045504
        %v4552 = vrot.slane %v4331, 2
        %v4553 = vrot.slane %v4333, 2
        %v4554 = vsel %vm4551, %v4552, %v4553
        %v4555 = vrot.slane %v4332, 2
        %v4556 = vrot.slane %v4334, 2
        %v4557 = vsel %vm4551, %v4555, %v4556
        %v4558 = vrot.slane %v4335, 2
        %v4559 = vsel %vm4551, %v4553, %v4558
        %v4560 = vrot.slane %v4336, 2
        %v4561 = vsel %vm4551, %v4556, %v4560
        %v4562 = vrot.slane %v4337, 2
        %v4563 = vsel %vm4551, %v4558, %v4562
        %v4564 = vrot.slane %v4338, 2
        %v4565 = vsel %vm4551, %v4560, %v4564
        %v4566 = vrot.slane %v4339, 2
        %v4567 = vsel %vm4551, %v4562, %v4566
        %v4568 = vrot.slane %v4340, 2
        %v4569 = vsel %vm4551, %v4564, %v4568
        %v4570 = vrot.slane %v4341, 2
        %v4571 = vsel %vm4551, %v4566, %v4570
        %v4572 = vrot.slane %v4342, 2
        %v4573 = vsel %vm4551, %v4568, %v4572
        %v4574 = vrot.slane %v4343, 2
        %v4575 = vsel %vm4551, %v4570, %v4574
        %v4576 = vrot.slane %v4344, 2
        %v4577 = vsel %vm4551, %v4572, %v4576
        %v4578 = vrot.slane %v4345, 2
        %v4579 = vsel %vm4551, %v4574, %v4578
        %v4580 = vrot.slane %v4346, 2
        %v4581 = vsel %vm4551, %v4576, %v4580
        %v4582 = vrot.slane %v4347, 2
        %v4583 = vsel %vm4551, %v4578, %v4582
        %v4584 = vrot.slane %v4348, 2
        %v4585 = vsel %vm4551, %v4580, %v4584
        %v4586 = vrot.slane %v4349, 2
        %v4587 = vsel %vm4551, %v4582, %v4586
        %v4588 = vrot.slane %v4350, 2
        %v4589 = vsel %vm4551, %v4584, %v4588
        %v4590 = vrot.slane %v4351, 2
        %v4591 = vsel %vm4551, %v4586, %v4590
        %v4592 = vrot.slane %v4352, 2
        %v4593 = vsel %vm4551, %v4588, %v4592
        %v4594 = vrot.slane %v4353, 2
        %v4595 = vsel %vm4551, %v4590, %v4594
        %v4596 = vrot.slane %v4354, 2
        %v4597 = vsel %vm4551, %v4592, %v4596
        %v4598 = vrot.slane %v4355, 2
        %v4599 = vsel %vm4551, %v4594, %v4598
        %v4600 = vrot.slane %v4356, 2
        %v4601 = vsel %vm4551, %v4596, %v4600
        %v4602 = vrot.slane %v4357, 2
        %v4603 = vsel %vm4551, %v4598, %v4602
        %v4604 = vrot.slane %v4358, 2
        %v4605 = vsel %vm4551, %v4600, %v4604
        %v4606 = vrot.slane %v4359, 2
        %v4607 = vsel %vm4551, %v4602, %v4606
        %v4608 = vrot.slane %v4360, 2
        %v4609 = vsel %vm4551, %v4604, %v4608
        %v4610 = vrot.slane %v4361, 2
        %v4611 = vsel %vm4551, %v4606, %v4610
        %v4612 = vrot.slane %v4362, 2
        %v4613 = vsel %vm4551, %v4608, %v4612
        %v4614 = vrot.slane %v4363, 2
        %v4615 = vsel %vm4551, %v4610, %v4614
        %v4616 = vrot.slane %v4364, 2
        %v4617 = vsel %vm4551, %v4612, %v4616
        %v4618 = vrot.slane %v4365, 2
        %v4619 = vsel %vm4551, %v4614, %v4618
        %v4620 = vrot.slane %v4366, 2
        %v4621 = vsel %vm4551, %v4616, %v4620
        %v4622 = vrot.slane %v4367, 2
        %v4623 = vsel %vm4551, %v4618, %v4622
        %v4624 = vrot.slane %v4368, 2
        %v4625 = vsel %vm4551, %v4620, %v4624
        %v4626 = vrot.slane %v4369, 2
        %v4627 = vsel %vm4551, %v4622, %v4626
        %v4628 = vrot.slane %v4370, 2
        %v4629 = vsel %vm4551, %v4624, %v4628
        %v4630 = vrot.slane %v4371, 2
        %v4631 = vsel %vm4551, %v4626, %v4630
        %v4632 = vrot.slane %v4372, 2
        %v4633 = vsel %vm4551, %v4628, %v4632
        %v4634 = vrot.slane %v4373, 2
        %v4635 = vsel %vm4551, %v4630, %v4634
        %v4636 = vrot.slane %v4374, 2
        %v4637 = vsel %vm4551, %v4632, %v4636
        %v4638 = vrot.slane %v4375, 2
        %v4639 = vsel %vm4551, %v4634, %v4638
        %v4640 = vrot.slane %v4376, 2
        %v4641 = vsel %vm4551, %v4636, %v4640
        %v4642 = vrot.slane %v4377, 2
        %v4643 = vsel %vm4551, %v4638, %v4642
        %v4644 = vrot.slane %v4378, 2
        %v4645 = vsel %vm4551, %v4640, %v4644
        %v4646 = vrot.slane %v4379, 2
        %v4647 = vsel %vm4551, %v4642, %v4646
        %v4648 = vrot.slane %v4380, 2
        %v4649 = vsel %vm4551, %v4644, %v4648
        %v4650 = vrot.slane %v4381, 2
        %v4651 = vsel %vm4551, %v4646, %v4650
        %v4652 = vrot.slane %v4382, 2
        %v4653 = vsel %vm4551, %v4648, %v4652
        %v4654 = vrot.slane %v4383, 2
        %v4655 = vsel %vm4551, %v4650, %v4654
        %v4656 = vrot.slane %v4384, 2
        %v4657 = vsel %vm4551, %v4652, %v4656
        %v4658 = vrot.slane %v4385, 2
        %v4659 = vsel %vm4551, %v4654, %v4658
        %v4660 = vrot.slane %v4386, 2
        %v4661 = vsel %vm4551, %v4656, %v4660
        %v4662 = vrot.slane %v4387, 2
        %v4663 = vsel %vm4551, %v4658, %v4662
        %v4664 = vrot.slane %v4388, 2
        %v4665 = vsel %vm4551, %v4660, %v4664
        %v4666 = vrot.slane %v4389, 2
        %v4667 = vsel %vm4551, %v4662, %v4666
        %v4668 = vrot.slane %v4390, 2
        %v4669 = vsel %vm4551, %v4664, %v4668
        %v4670 = vrot.slane %v4391, 2
        %v4671 = vsel %vm4551, %v4666, %v4670
        %v4672 = vrot.slane %v4392, 2
        %v4673 = vsel %vm4551, %v4668, %v4672
        %v4674 = vrot.slane %v4393, 2
        %v4675 = vsel %vm4551, %v4670, %v4674
        %v4676 = vrot.slane %v4394, 2
        %v4677 = vsel %vm4551, %v4672, %v4676
        %v4678 = vrot.slane %v4395, 2
        %v4679 = vsel %vm4551, %v4674, %v4678
        %v4680 = vrot.slane %v4396, 2
        %v4681 = vsel %vm4551, %v4676, %v4680
        %v4682 = vrot.slane %v4397, 2
        %v4683 = vsel %vm4551, %v4678, %v4682
        %v4684 = vrot.slane %v4398, 2
        %v4685 = vsel %vm4551, %v4680, %v4684
        %v4686 = vrot.slane %v4399, 2
        %v4687 = vsel %vm4551, %v4682, %v4686
        %v4688 = vrot.slane %v4400, 2
        %v4689 = vsel %vm4551, %v4684, %v4688
        %v4690 = vrot.slane %v4401, 2
        %v4691 = vsel %vm4551, %v4686, %v4690
        %v4692 = vrot.slane %v4402, 2
        %v4693 = vsel %vm4551, %v4688, %v4692
        %v4694 = vrot.slane %v4403, 2
        %v4695 = vsel %vm4551, %v4690, %v4694
        %v4696 = vrot.slane %v4404, 2
        %v4697 = vsel %vm4551, %v4692, %v4696
        %v4770 = vadd.f32 %v4405, %v4554
        %v4771 = vadd.f32 %v4406, %v4557
        %v4772 = vadd.f32 %v4407, %v4559
        %v4773 = vadd.f32 %v4408, %v4561
        %v4774 = vadd.f32 %v4409, %v4563
        %v4775 = vadd.f32 %v4410, %v4565
        %v4776 = vadd.f32 %v4411, %v4567
        %v4777 = vadd.f32 %v4412, %v4569
        %v4778 = vadd.f32 %v4413, %v4571
        %v4779 = vadd.f32 %v4414, %v4573
        %v4780 = vadd.f32 %v4415, %v4575
        %v4781 = vadd.f32 %v4416, %v4577
        %v4782 = vadd.f32 %v4417, %v4579
        %v4783 = vadd.f32 %v4418, %v4581
        %v4784 = vadd.f32 %v4419, %v4583
        %v4785 = vadd.f32 %v4420, %v4585
        %v4786 = vadd.f32 %v4421, %v4587
        %v4787 = vadd.f32 %v4422, %v4589
        %v4788 = vadd.f32 %v4423, %v4591
        %v4789 = vadd.f32 %v4424, %v4593
        %v4790 = vadd.f32 %v4425, %v4595
        %v4791 = vadd.f32 %v4426, %v4597
        %v4792 = vadd.f32 %v4427, %v4599
        %v4793 = vadd.f32 %v4428, %v4601
        %v4794 = vadd.f32 %v4429, %v4603
        %v4795 = vadd.f32 %v4430, %v4605
        %v4796 = vadd.f32 %v4431, %v4607
        %v4797 = vadd.f32 %v4432, %v4609
        %v4798 = vadd.f32 %v4433, %v4611
        %v4799 = vadd.f32 %v4434, %v4613
        %v4800 = vadd.f32 %v4435, %v4615
        %v4801 = vadd.f32 %v4436, %v4617
        %v4802 = vadd.f32 %v4437, %v4619
        %v4803 = vadd.f32 %v4438, %v4621
        %v4804 = vadd.f32 %v4439, %v4623
        %v4805 = vadd.f32 %v4440, %v4625
        %v4806 = vadd.f32 %v4441, %v4627
        %v4807 = vadd.f32 %v4442, %v4629
        %v4808 = vadd.f32 %v4443, %v4631
        %v4809 = vadd.f32 %v4444, %v4633
        %v4810 = vadd.f32 %v4445, %v4635
        %v4811 = vadd.f32 %v4446, %v4637
        %v4812 = vadd.f32 %v4447, %v4639
        %v4813 = vadd.f32 %v4448, %v4641
        %v4814 = vadd.f32 %v4449, %v4643
        %v4815 = vadd.f32 %v4450, %v4645
        %v4816 = vadd.f32 %v4451, %v4647
        %v4817 = vadd.f32 %v4452, %v4649
        %v4818 = vadd.f32 %v4453, %v4651
        %v4819 = vadd.f32 %v4454, %v4653
        %v4820 = vadd.f32 %v4455, %v4655
        %v4821 = vadd.f32 %v4456, %v4657
        %v4822 = vadd.f32 %v4457, %v4659
        %v4823 = vadd.f32 %v4458, %v4661
        %v4824 = vadd.f32 %v4459, %v4663
        %v4825 = vadd.f32 %v4460, %v4665
        %v4826 = vadd.f32 %v4461, %v4667
        %v4827 = vadd.f32 %v4462, %v4669
        %v4828 = vadd.f32 %v4463, %v4671
        %v4829 = vadd.f32 %v4464, %v4673
        %v4830 = vadd.f32 %v4465, %v4675
        %v4831 = vadd.f32 %v4466, %v4677
        %v4832 = vadd.f32 %v4467, %v4679
        %v4833 = vadd.f32 %v4468, %v4681
        %v4834 = vadd.f32 %v4469, %v4683
        %v4835 = vadd.f32 %v4470, %v4685
        %v4836 = vadd.f32 %v4471, %v4687
        %v4837 = vadd.f32 %v4472, %v4689
        %v4838 = vadd.f32 %v4473, %v4691
        %v4839 = vadd.f32 %v4474, %v4693
        %v4840 = vadd.f32 %v4475, %v4695
        %v4841 = vadd.f32 %v4476, %v4697
        %4842 = vst [vmem:[#allocation4] sm:$0xff] %v4770
        %4843 = vst [vmem:[#allocation4 + $0x8] sm:$0xff] %v4771
        %4844 = vst [vmem:[#allocation4 + $0x10] sm:$0xff] %v4772
        %4845 = vst [vmem:[#allocation4 + $0x18] sm:$0xff] %v4773
        %4846 = vst [vmem:[#allocation4 + $0x20] sm:$0xff] %v4774
        %4847 = vst [vmem:[#allocation4 + $0x28] sm:$0xff] %v4775
        %4848 = vst [vmem:[#allocation4 + $0x30] sm:$0xff] %v4776
        %4849 = vst [vmem:[#allocation4 + $0x38] sm:$0xff] %v4777
        %4850 = vst [vmem:[#allocation4 + $0x40] sm:$0xff] %v4778
        %4851 = vst [vmem:[#allocation4 + $0x48] sm:$0xff] %v4779
        %4852 = vst [vmem:[#allocation4 + $0x50] sm:$0xff] %v4780
        %4853 = vst [vmem:[#allocation4 + $0x58] sm:$0xff] %v4781
        %4854 = vst [vmem:[#allocation4 + $0x60] sm:$0xff] %v4782
        %4855 = vst [vmem:[#allocation4 + $0x68] sm:$0xff] %v4783
        %4856 = vst [vmem:[#allocation4 + $0x70] sm:$0xff] %v4784
        %4857 = vst [vmem:[#allocation4 + $0x78] sm:$0xff] %v4785
        %4858 = vst [vmem:[#allocation4 + $0x80] sm:$0xff] %v4786
        %4859 = vst [vmem:[#allocation4 + $0x88] sm:$0xff] %v4787
        %4860 = vst [vmem:[#allocation4 + $0x90] sm:$0xff] %v4788
        %4861 = vst [vmem:[#allocation4 + $0x98] sm:$0xff] %v4789
        %4862 = vst [vmem:[#allocation4 + $0xa0] sm:$0xff] %v4790
        %4863 = vst [vmem:[#allocation4 + $0xa8] sm:$0xff] %v4791
        %4864 = vst [vmem:[#allocation4 + $0xb0] sm:$0xff] %v4792
        %4865 = vst [vmem:[#allocation4 + $0xb8] sm:$0xff] %v4793
        %4866 = vst [vmem:[#allocation4 + $0xc0] sm:$0xff] %v4794
        %4867 = vst [vmem:[#allocation4 + $0xc8] sm:$0xff] %v4795
        %4868 = vst [vmem:[#allocation4 + $0xd0] sm:$0xff] %v4796
        %4869 = vst [vmem:[#allocation4 + $0xd8] sm:$0xff] %v4797
        %4870 = vst [vmem:[#allocation4 + $0xe0] sm:$0xff] %v4798
        %4871 = vst [vmem:[#allocation4 + $0xe8] sm:$0xff] %v4799
        %4872 = vst [vmem:[#allocation4 + $0xf0] sm:$0xff] %v4800
        %4873 = vst [vmem:[#allocation4 + $0xf8] sm:$0xff] %v4801
        %4874 = vst [vmem:[#allocation4 + $0x100] sm:$0xff] %v4802
        %4875 = vst [vmem:[#allocation4 + $0x108] sm:$0xff] %v4803
        %4876 = vst [vmem:[#allocation4 + $0x110] sm:$0xff] %v4804
        %4877 = vst [vmem:[#allocation4 + $0x118] sm:$0xff] %v4805
        %4878 = vst [vmem:[#allocation4 + $0x120] sm:$0xff] %v4806
        %4879 = vst [vmem:[#allocation4 + $0x128] sm:$0xff] %v4807
        %4880 = vst [vmem:[#allocation4 + $0x130] sm:$0xff] %v4808
        %4881 = vst [vmem:[#allocation4 + $0x138] sm:$0xff] %v4809
        %4882 = vst [vmem:[#allocation4 + $0x140] sm:$0xff] %v4810
        %4883 = vst [vmem:[#allocation4 + $0x148] sm:$0xff] %v4811
        %4884 = vst [vmem:[#allocation4 + $0x150] sm:$0xff] %v4812
        %4885 = vst [vmem:[#allocation4 + $0x158] sm:$0xff] %v4813
        %4886 = vst [vmem:[#allocation4 + $0x160] sm:$0xff] %v4814
        %4887 = vst [vmem:[#allocation4 + $0x168] sm:$0xff] %v4815
        %4888 = vst [vmem:[#allocation4 + $0x170] sm:$0xff] %v4816
        %4889 = vst [vmem:[#allocation4 + $0x178] sm:$0xff] %v4817
        %4890 = vst [vmem:[#allocation4 + $0x180] sm:$0xff] %v4818
        %4891 = vst [vmem:[#allocation4 + $0x188] sm:$0xff] %v4819
        %4892 = vst [vmem:[#allocation4 + $0x190] sm:$0xff] %v4820
        %4893 = vst [vmem:[#allocation4 + $0x198] sm:$0xff] %v4821
        %4894 = vst [vmem:[#allocation4 + $0x1a0] sm:$0xff] %v4822
        %4895 = vst [vmem:[#allocation4 + $0x1a8] sm:$0xff] %v4823
        %4896 = vst [vmem:[#allocation4 + $0x1b0] sm:$0xff] %v4824
        %4897 = vst [vmem:[#allocation4 + $0x1b8] sm:$0xff] %v4825
        %4898 = vst [vmem:[#allocation4 + $0x1c0] sm:$0xff] %v4826
        %4899 = vst [vmem:[#allocation4 + $0x1c8] sm:$0xff] %v4827
        %4900 = vst [vmem:[#allocation4 + $0x1d0] sm:$0xff] %v4828
        %4901 = vst [vmem:[#allocation4 + $0x1d8] sm:$0xff] %v4829
        %4902 = vst [vmem:[#allocation4 + $0x1e0] sm:$0xff] %v4830
        %4903 = vst [vmem:[#allocation4 + $0x1e8] sm:$0xff] %v4831
        %4904 = vst [vmem:[#allocation4 + $0x1f0] sm:$0xff] %v4832
        %4905 = vst [vmem:[#allocation4 + $0x1f8] sm:$0xff] %v4833
        %4906 = vst [vmem:[#allocation4 + $0x200] sm:$0xff] %v4834
        %4907 = vst [vmem:[#allocation4 + $0x208] sm:$0xff] %v4835
        %4908 = vst [vmem:[#allocation4 + $0x210] sm:$0xff] %v4836
        %4909 = vst [vmem:[#allocation4 + $0x218] sm:$0xff] %v4837
        %4910 = vst [vmem:[#allocation4 + $0x220] sm:$0xff] %v4838
        %4911 = vst [vmem:[#allocation4 + $0x228] sm:$0xff] %v4839
        %4912 = vst [vmem:[#allocation4 + $0x230] sm:$0xff] %v4840
        %4913 = vst [vmem:[#allocation4 + $0x238] sm:$0xff] %v4841
        %v4914 = vld [vmem:[#allocation2] sm:$0xff]
        %v4915 = vld [vmem:[#allocation2 + $0x8] sm:$0xf]
        %v4916 = vld [vmem:[#allocation2 + $0xc] sm:$0xff]
        %v4917 = vld [vmem:[#allocation2 + $0x14] sm:$0xf]
        %v4918 = vld [vmem:[#allocation2 + $0x18] sm:$0xff]
        %v4919 = vld [vmem:[#allocation2 + $0x20] sm:$0xf]
        %v4920 = vld [vmem:[#allocation2 + $0x24] sm:$0xff]
        %v4921 = vld [vmem:[#allocation2 + $0x2c] sm:$0xf]
        %v4922 = vld [vmem:[#allocation2 + $0x30] sm:$0xff]
        %v4923 = vld [vmem:[#allocation2 + $0x38] sm:$0xf]
        %v4924 = vld [vmem:[#allocation2 + $0x3c] sm:$0xff]
        %v4925 = vld [vmem:[#allocation2 + $0x44] sm:$0xf]
        %v4926 = vld [vmem:[#allocation2 + $0x48] sm:$0xff]
        %v4927 = vld [vmem:[#allocation2 + $0x50] sm:$0xf]
        %v4928 = vld [vmem:[#allocation2 + $0x54] sm:$0xff]
        %v4929 = vld [vmem:[#allocation2 + $0x5c] sm:$0xf]
        %v4930 = vld [vmem:[#allocation2 + $0x60] sm:$0xff]
        %v4931 = vld [vmem:[#allocation2 + $0x68] sm:$0xf]
        %v4932 = vld [vmem:[#allocation2 + $0x6c] sm:$0xff]
        %v4933 = vld [vmem:[#allocation2 + $0x74] sm:$0xf]
        %v4934 = vld [vmem:[#allocation2 + $0x78] sm:$0xff]
        %v4935 = vld [vmem:[#allocation2 + $0x80] sm:$0xf]
        %v4936 = vld [vmem:[#allocation2 + $0x84] sm:$0xff]
        %v4937 = vld [vmem:[#allocation2 + $0x8c] sm:$0xf]
        %v4938 = vld [vmem:[#allocation2 + $0x90] sm:$0xff]
        %v4939 = vld [vmem:[#allocation2 + $0x98] sm:$0xf]
        %v4940 = vld [vmem:[#allocation2 + $0x9c] sm:$0xff]
        %v4941 = vld [vmem:[#allocation2 + $0xa4] sm:$0xf]
        %v4942 = vld [vmem:[#allocation2 + $0xa8] sm:$0xff]
        %v4943 = vld [vmem:[#allocation2 + $0xb0] sm:$0xf]
        %v4944 = vld [vmem:[#allocation2 + $0xb4] sm:$0xff]
        %v4945 = vld [vmem:[#allocation2 + $0xbc] sm:$0xf]
        %v4946 = vld [vmem:[#allocation2 + $0xc0] sm:$0xff]
        %v4947 = vld [vmem:[#allocation2 + $0xc8] sm:$0xf]
        %v4948 = vld [vmem:[#allocation2 + $0xcc] sm:$0xff]
        %v4949 = vld [vmem:[#allocation2 + $0xd4] sm:$0xf]
        %v4950 = vld [vmem:[#allocation2 + $0xd8] sm:$0xff]
        %v4951 = vld [vmem:[#allocation2 + $0xe0] sm:$0xf]
        %v4952 = vld [vmem:[#allocation2 + $0xe4] sm:$0xff]
        %v4953 = vld [vmem:[#allocation2 + $0xec] sm:$0xf]
        %v4954 = vld [vmem:[#allocation2 + $0xf0] sm:$0xff]
        %v4955 = vld [vmem:[#allocation2 + $0xf8] sm:$0xf]
        %v4956 = vld [vmem:[#allocation2 + $0xfc] sm:$0xff]
        %v4957 = vld [vmem:[#allocation2 + $0x104] sm:$0xf]
        %v4958 = vld [vmem:[#allocation2 + $0x108] sm:$0xff]
        %v4959 = vld [vmem:[#allocation2 + $0x110] sm:$0xf]
        %v4960 = vld [vmem:[#allocation2 + $0x114] sm:$0xff]
        %v4961 = vld [vmem:[#allocation2 + $0x11c] sm:$0xf]
        %v4962 = vld [vmem:[#allocation2 + $0x120] sm:$0xff]
        %v4963 = vld [vmem:[#allocation2 + $0x128] sm:$0xf]
        %v4964 = vld [vmem:[#allocation2 + $0x12c] sm:$0xff]
        %v4965 = vld [vmem:[#allocation2 + $0x134] sm:$0xf]
        %v4966 = vld [vmem:[#allocation2 + $0x138] sm:$0xff]
        %v4967 = vld [vmem:[#allocation2 + $0x140] sm:$0xf]
        %v4968 = vld [vmem:[#allocation2 + $0x144] sm:$0xff]
        %v4969 = vld [vmem:[#allocation2 + $0x14c] sm:$0xf]
        %v4970 = vld [vmem:[#allocation2 + $0x150] sm:$0xff]
        %v4971 = vld [vmem:[#allocation2 + $0x158] sm:$0xf]
        %v4972 = vld [vmem:[#allocation2 + $0x15c] sm:$0xff]
        %v4973 = vld [vmem:[#allocation2 + $0x164] sm:$0xf]
        %v4974 = vld [vmem:[#allocation2 + $0x168] sm:$0xff]
        %v4975 = vld [vmem:[#allocation2 + $0x170] sm:$0xf]
        %v4976 = vld [vmem:[#allocation2 + $0x174] sm:$0xff]
        %v4977 = vld [vmem:[#allocation2 + $0x17c] sm:$0xf]
        %v4978 = vld [vmem:[#allocation2 + $0x180] sm:$0xff]
        %v4979 = vld [vmem:[#allocation2 + $0x188] sm:$0xf]
        %v4980 = vld [vmem:[#allocation2 + $0x18c] sm:$0xff]
        %v4981 = vld [vmem:[#allocation2 + $0x194] sm:$0xf]
        %v4982 = vld [vmem:[#allocation2 + $0x198] sm:$0xff]
        %v4983 = vld [vmem:[#allocation2 + $0x1a0] sm:$0xf]
        %v4984 = vld [vmem:[#allocation2 + $0x1a4] sm:$0xff]
        %v4985 = vld [vmem:[#allocation2 + $0x1ac] sm:$0xf]
        %v4986 = vld [vmem:[#allocation2 + $0x1b0] sm:$0xff]
        %v4987 = vld [vmem:[#allocation2 + $0x1b8] sm:$0xf]
        %v4988 = vld [vmem:[#allocation2 + $0x1bc] sm:$0xff]
        %v4989 = vld [vmem:[#allocation2 + $0x1c4] sm:$0xf]
        %v4990 = vld [vmem:[#allocation2 + $0x1c8] sm:$0xff]
        %v4991 = vld [vmem:[#allocation2 + $0x1d0] sm:$0xf]
        %v4992 = vld [vmem:[#allocation2 + $0x1d4] sm:$0xff]
        %v4993 = vld [vmem:[#allocation2 + $0x1dc] sm:$0xf]
        %v4994 = vld [vmem:[#allocation2 + $0x1e0] sm:$0x33]
        %v4995 = vld [vmem:[#allocation2 + $0x1e8] sm:$0x3]
        %s4996 = scalar_lea.vmem [#allocation8], 768
        %v4997 = vld [vmem:[%s4996] sm:$0xff]
        %v4998 = vld [vmem:[%s4996 + $0x8] sm:$0xff]
        %v4999 = vld [vmem:[%s4996 + $0x10] sm:$0xff]
        %v5000 = vld [vmem:[%s4996 + $0x18] sm:$0xff]
        %v5001 = vld [vmem:[%s4996 + $0x20] sm:$0xff]
        %v5002 = vld [vmem:[%s4996 + $0x28] sm:$0xff]
        %v5003 = vld [vmem:[%s4996 + $0x30] sm:$0xff]
        %v5004 = vld [vmem:[%s4996 + $0x38] sm:$0xff]
        %v5005 = vld [vmem:[%s4996 + $0x40] sm:$0xff]
        %v5006 = vld [vmem:[%s4996 + $0x48] sm:$0xff]
        %v5007 = vld [vmem:[%s4996 + $0x50] sm:$0xff]
        %v5008 = vld [vmem:[%s4996 + $0x58] sm:$0xff]
        %v5009 = vld [vmem:[%s4996 + $0x60] sm:$0xff]
        %v5010 = vld [vmem:[%s4996 + $0x68] sm:$0xff]
        %v5011 = vld [vmem:[%s4996 + $0x70] sm:$0xff]
        %v5012 = vld [vmem:[%s4996 + $0x78] sm:$0xff]
        %v5013 = vld [vmem:[%s4996 + $0x80] sm:$0xff]
        %v5014 = vld [vmem:[%s4996 + $0x88] sm:$0xff]
        %v5015 = vld [vmem:[%s4996 + $0x90] sm:$0xff]
        %v5016 = vld [vmem:[%s4996 + $0x98] sm:$0xff]
        %v5017 = vld [vmem:[%s4996 + $0xa0] sm:$0xff]
        %v5018 = vld [vmem:[%s4996 + $0xa8] sm:$0xff]
        %v5019 = vld [vmem:[%s4996 + $0xb0] sm:$0xff]
        %v5020 = vld [vmem:[%s4996 + $0xb8] sm:$0xff]
        %v5021 = vld [vmem:[%s4996 + $0xc0] sm:$0xff]
        %v5022 = vld [vmem:[%s4996 + $0xc8] sm:$0xff]
        %v5023 = vld [vmem:[%s4996 + $0xd0] sm:$0xff]
        %v5024 = vld [vmem:[%s4996 + $0xd8] sm:$0xff]
        %v5025 = vld [vmem:[%s4996 + $0xe0] sm:$0xff]
        %v5026 = vld [vmem:[%s4996 + $0xe8] sm:$0xff]
        %v5027 = vld [vmem:[%s4996 + $0xf0] sm:$0xff]
        %v5028 = vld [vmem:[%s4996 + $0xf8] sm:$0xff]
        %v5029 = vld [vmem:[%s4996 + $0x100] sm:$0xff]
        %v5030 = vld [vmem:[%s4996 + $0x108] sm:$0xff]
        %v5031 = vld [vmem:[%s4996 + $0x110] sm:$0xff]
        %v5032 = vld [vmem:[%s4996 + $0x118] sm:$0xff]
        %v5033 = vld [vmem:[%s4996 + $0x120] sm:$0xff]
        %v5034 = vld [vmem:[%s4996 + $0x128] sm:$0xff]
        %v5035 = vld [vmem:[%s4996 + $0x130] sm:$0xff]
        %v5036 = vld [vmem:[%s4996 + $0x138] sm:$0xff]
        %v5037 = vld [vmem:[%s4996 + $0x140] sm:$0xff]
        %v5038 = vld [vmem:[%s4996 + $0x148] sm:$0xff]
        %v5039 = vld [vmem:[%s4996 + $0x150] sm:$0xff]
        %v5040 = vld [vmem:[%s4996 + $0x158] sm:$0xff]
        %v5041 = vld [vmem:[%s4996 + $0x160] sm:$0xff]
        %v5042 = vld [vmem:[%s4996 + $0x168] sm:$0xff]
        %v5043 = vld [vmem:[%s4996 + $0x170] sm:$0xff]
        %v5044 = vld [vmem:[%s4996 + $0x178] sm:$0xff]
        %v5127 = vunpack.c.l.b16 %v4914
        %v5128 = vunpack.c.h.b16 %v4914
        %v5129 = vunpack.c.l.b16 %v4915
        %v5130 = vunpack.c.l.b16 %v4916
        %v5131 = vunpack.c.h.b16 %v4916
        %v5132 = vunpack.c.l.b16 %v4917
        %v5133 = vunpack.c.l.b16 %v4918
        %v5134 = vunpack.c.h.b16 %v4918
        %v5135 = vunpack.c.l.b16 %v4919
        %v5136 = vunpack.c.l.b16 %v4920
        %v5137 = vunpack.c.h.b16 %v4920
        %v5138 = vunpack.c.l.b16 %v4921
        %v5139 = vunpack.c.l.b16 %v4922
        %v5140 = vunpack.c.h.b16 %v4922
        %v5141 = vunpack.c.l.b16 %v4923
        %v5142 = vunpack.c.l.b16 %v4924
        %v5143 = vunpack.c.h.b16 %v4924
        %v5144 = vunpack.c.l.b16 %v4925
        %v5145 = vunpack.c.l.b16 %v4926
        %v5146 = vunpack.c.h.b16 %v4926
        %v5147 = vunpack.c.l.b16 %v4927
        %v5148 = vunpack.c.l.b16 %v4928
        %v5149 = vunpack.c.h.b16 %v4928
        %v5150 = vunpack.c.l.b16 %v4929
        %v5151 = vunpack.c.l.b16 %v4930
        %v5152 = vunpack.c.h.b16 %v4930
        %v5153 = vunpack.c.l.b16 %v4931
        %v5154 = vunpack.c.l.b16 %v4932
        %v5155 = vunpack.c.h.b16 %v4932
        %v5156 = vunpack.c.l.b16 %v4933
        %v5157 = vunpack.c.l.b16 %v4934
        %v5158 = vunpack.c.h.b16 %v4934
        %v5159 = vunpack.c.l.b16 %v4935
        %v5160 = vunpack.c.l.b16 %v4936
        %v5161 = vunpack.c.h.b16 %v4936
        %v5162 = vunpack.c.l.b16 %v4937
        %v5163 = vunpack.c.l.b16 %v4938
        %v5164 = vunpack.c.h.b16 %v4938
        %v5165 = vunpack.c.l.b16 %v4939
        %v5166 = vunpack.c.l.b16 %v4940
        %v5167 = vunpack.c.h.b16 %v4940
        %v5168 = vunpack.c.l.b16 %v4941
        %v5169 = vunpack.c.l.b16 %v4942
        %v5170 = vunpack.c.h.b16 %v4942
        %v5171 = vunpack.c.l.b16 %v4943
        %v5172 = vunpack.c.l.b16 %v4944
        %v5173 = vunpack.c.h.b16 %v4944
        %v5174 = vunpack.c.l.b16 %v4945
        %v5175 = vunpack.c.l.b16 %v4946
        %v5176 = vunpack.c.h.b16 %v4946
        %v5177 = vunpack.c.l.b16 %v4947
        %v5178 = vunpack.c.l.b16 %v4948
        %v5179 = vunpack.c.h.b16 %v4948
        %v5180 = vunpack.c.l.b16 %v4949
        %v5181 = vunpack.c.l.b16 %v4950
        %v5182 = vunpack.c.h.b16 %v4950
        %v5183 = vunpack.c.l.b16 %v4951
        %v5184 = vunpack.c.l.b16 %v4952
        %v5185 = vunpack.c.h.b16 %v4952
        %v5186 = vunpack.c.l.b16 %v4953
        %v5187 = vunpack.c.l.b16 %v4954
        %v5188 = vunpack.c.h.b16 %v4954
        %v5189 = vunpack.c.l.b16 %v4955
        %v5190 = vunpack.c.l.b16 %v4956
        %v5191 = vunpack.c.h.b16 %v4956
        %v5192 = vunpack.c.l.b16 %v4957
        %v5193 = vunpack.c.l.b16 %v4958
        %v5194 = vunpack.c.h.b16 %v4958
        %v5195 = vunpack.c.l.b16 %v4959
        %v5196 = vunpack.c.l.b16 %v4960
        %v5197 = vunpack.c.h.b16 %v4960
        %v5198 = vunpack.c.l.b16 %v4961
        %v5199 = vunpack.c.l.b16 %v4962
        %v5200 = vunpack.c.h.b16 %v4962
        %v5201 = vunpack.c.l.b16 %v4963
        %v5202 = vunpack.c.l.b16 %v4964
        %v5203 = vunpack.c.h.b16 %v4964
        %v5204 = vunpack.c.l.b16 %v4965
        %v5205 = vunpack.c.l.b16 %v4966
        %v5206 = vunpack.c.h.b16 %v4966
        %v5207 = vunpack.c.l.b16 %v4967
        %v5208 = vunpack.c.l.b16 %v4968
        %v5209 = vunpack.c.h.b16 %v4968
        %v5210 = vunpack.c.l.b16 %v4969
        %v5211 = vunpack.c.l.b16 %v4970
        %v5212 = vunpack.c.h.b16 %v4970
        %v5213 = vunpack.c.l.b16 %v4971
        %v5214 = vunpack.c.l.b16 %v4972
        %v5215 = vunpack.c.h.b16 %v4972
        %v5216 = vunpack.c.l.b16 %v4973
        %v5217 = vunpack.c.l.b16 %v4974
        %v5218 = vunpack.c.h.b16 %v4974
        %v5219 = vunpack.c.l.b16 %v4975
        %v5220 = vunpack.c.l.b16 %v4976
        %v5221 = vunpack.c.h.b16 %v4976
        %v5222 = vunpack.c.l.b16 %v4977
        %v5223 = vunpack.c.l.b16 %v4978
        %v5224 = vunpack.c.h.b16 %v4978
        %v5225 = vunpack.c.l.b16 %v4979
        %v5226 = vunpack.c.l.b16 %v4980
        %v5227 = vunpack.c.h.b16 %v4980
        %v5228 = vunpack.c.l.b16 %v4981
        %v5229 = vunpack.c.l.b16 %v4982
        %v5230 = vunpack.c.h.b16 %v4982
        %v5231 = vunpack.c.l.b16 %v4983
        %v5232 = vunpack.c.l.b16 %v4984
        %v5233 = vunpack.c.h.b16 %v4984
        %v5234 = vunpack.c.l.b16 %v4985
        %v5235 = vunpack.c.l.b16 %v4986
        %v5236 = vunpack.c.h.b16 %v4986
        %v5237 = vunpack.c.l.b16 %v4987
        %v5238 = vunpack.c.l.b16 %v4988
        %v5239 = vunpack.c.h.b16 %v4988
        %v5240 = vunpack.c.l.b16 %v4989
        %v5241 = vunpack.c.l.b16 %v4990
        %v5242 = vunpack.c.h.b16 %v4990
        %v5243 = vunpack.c.l.b16 %v4991
        %v5244 = vunpack.c.l.b16 %v4992
        %v5245 = vunpack.c.h.b16 %v4992
        %v5246 = vunpack.c.l.b16 %v4993
        %v5247 = vunpack.c.l.b16 %v4994
        %v5248 = vunpack.c.h.b16 %v4994
        %v5249 = vunpack.c.l.b16 %v4995
        %v5250 = vpack.c.b16 %v5130, %v5127
        %v5251 = vpack.c.b16 %v5131, %v5128
        %v5252 = vpack.c.b16 %v5132, %v5129
        %v5253 = vpack.c.b16 %v5136, %v5133
        %v5254 = vpack.c.b16 %v5137, %v5134
        %v5255 = vpack.c.b16 %v5138, %v5135
        %v5256 = vpack.c.b16 %v5142, %v5139
        %v5257 = vpack.c.b16 %v5143, %v5140
        %v5258 = vpack.c.b16 %v5144, %v5141
        %v5259 = vpack.c.b16 %v5148, %v5145
        %v5260 = vpack.c.b16 %v5149, %v5146
        %v5261 = vpack.c.b16 %v5150, %v5147
        %v5262 = vpack.c.b16 %v5154, %v5151
        %v5263 = vpack.c.b16 %v5155, %v5152
        %v5264 = vpack.c.b16 %v5156, %v5153
        %v5265 = vpack.c.b16 %v5160, %v5157
        %v5266 = vpack.c.b16 %v5161, %v5158
        %v5267 = vpack.c.b16 %v5162, %v5159
        %v5268 = vpack.c.b16 %v5166, %v5163
        %v5269 = vpack.c.b16 %v5167, %v5164
        %v5270 = vpack.c.b16 %v5168, %v5165
        %v5271 = vpack.c.b16 %v5172, %v5169
        %v5272 = vpack.c.b16 %v5173, %v5170
        %v5273 = vpack.c.b16 %v5174, %v5171
        %v5274 = vpack.c.b16 %v5178, %v5175
        %v5275 = vpack.c.b16 %v5179, %v5176
        %v5276 = vpack.c.b16 %v5180, %v5177
        %v5277 = vpack.c.b16 %v5184, %v5181
        %v5278 = vpack.c.b16 %v5185, %v5182
        %v5279 = vpack.c.b16 %v5186, %v5183
        %v5280 = vpack.c.b16 %v5190, %v5187
        %v5281 = vpack.c.b16 %v5191, %v5188
        %v5282 = vpack.c.b16 %v5192, %v5189
        %v5283 = vpack.c.b16 %v5196, %v5193
        %v5284 = vpack.c.b16 %v5197, %v5194
        %v5285 = vpack.c.b16 %v5198, %v5195
        %v5286 = vpack.c.b16 %v5202, %v5199
        %v5287 = vpack.c.b16 %v5203, %v5200
        %v5288 = vpack.c.b16 %v5204, %v5201
        %v5289 = vpack.c.b16 %v5208, %v5205
        %v5290 = vpack.c.b16 %v5209, %v5206
        %v5291 = vpack.c.b16 %v5210, %v5207
        %v5292 = vpack.c.b16 %v5214, %v5211
        %v5293 = vpack.c.b16 %v5215, %v5212
        %v5294 = vpack.c.b16 %v5216, %v5213
        %v5295 = vpack.c.b16 %v5220, %v5217
        %v5296 = vpack.c.b16 %v5221, %v5218
        %v5297 = vpack.c.b16 %v5222, %v5219
        %v5298 = vpack.c.b16 %v5226, %v5223
        %v5299 = vpack.c.b16 %v5227, %v5224
        %v5300 = vpack.c.b16 %v5228, %v5225
        %v5301 = vpack.c.b16 %v5232, %v5229
        %v5302 = vpack.c.b16 %v5233, %v5230
        %v5303 = vpack.c.b16 %v5234, %v5231
        %v5304 = vpack.c.b16 %v5238, %v5235
        %v5305 = vpack.c.b16 %v5239, %v5236
        %v5306 = vpack.c.b16 %v5240, %v5237
        %v5307 = vpack.c.b16 %v5244, %v5241
        %v5308 = vpack.c.b16 %v5245, %v5242
        %v5309 = vpack.c.b16 %v5246, %v5243
        %v5310 = vpack.c.b16 %v5247, %v5247
        %v5311 = vpack.c.b16 %v5248, %v5248
        %v5312 = vpack.c.b16 %v5249, %v5249
        %v5424 = vunpack.c.l.b16 %v4997
        %v5425 = vunpack.c.h.b16 %v4997
        %v5426 = vunpack.c.l.b16 %v4998
        %v5427 = vunpack.c.h.b16 %v4998
        %v5428 = vunpack.c.l.b16 %v4999
        %v5429 = vunpack.c.h.b16 %v4999
        %v5430 = vunpack.c.l.b16 %v5000
        %v5431 = vunpack.c.h.b16 %v5000
        %v5432 = vunpack.c.l.b16 %v5001
        %v5433 = vunpack.c.h.b16 %v5001
        %v5434 = vunpack.c.l.b16 %v5002
        %v5435 = vunpack.c.h.b16 %v5002
        %v5436 = vunpack.c.l.b16 %v5003
        %v5437 = vunpack.c.h.b16 %v5003
        %v5438 = vunpack.c.l.b16 %v5004
        %v5439 = vunpack.c.h.b16 %v5004
        %v5440 = vunpack.c.l.b16 %v5005
        %v5441 = vunpack.c.h.b16 %v5005
        %v5442 = vunpack.c.l.b16 %v5006
        %v5443 = vunpack.c.h.b16 %v5006
        %v5444 = vunpack.c.l.b16 %v5007
        %v5445 = vunpack.c.h.b16 %v5007
        %v5446 = vunpack.c.l.b16 %v5008
        %v5447 = vunpack.c.h.b16 %v5008
        %v5448 = vunpack.c.l.b16 %v5009
        %v5449 = vunpack.c.h.b16 %v5009
        %v5450 = vunpack.c.l.b16 %v5010
        %v5451 = vunpack.c.h.b16 %v5010
        %v5452 = vunpack.c.l.b16 %v5011
        %v5453 = vunpack.c.h.b16 %v5011
        %v5454 = vunpack.c.l.b16 %v5012
        %v5455 = vunpack.c.h.b16 %v5012
        %v5456 = vunpack.c.l.b16 %v5013
        %v5457 = vunpack.c.h.b16 %v5013
        %v5458 = vunpack.c.l.b16 %v5014
        %v5459 = vunpack.c.h.b16 %v5014
        %v5460 = vunpack.c.l.b16 %v5015
        %v5461 = vunpack.c.h.b16 %v5015
        %v5462 = vunpack.c.l.b16 %v5016
        %v5463 = vunpack.c.h.b16 %v5016
        %v5464 = vunpack.c.l.b16 %v5017
        %v5465 = vunpack.c.h.b16 %v5017
        %v5466 = vunpack.c.l.b16 %v5018
        %v5467 = vunpack.c.h.b16 %v5018
        %v5468 = vunpack.c.l.b16 %v5019
        %v5469 = vunpack.c.h.b16 %v5019
        %v5470 = vunpack.c.l.b16 %v5020
        %v5471 = vunpack.c.h.b16 %v5020
        %v5472 = vunpack.c.l.b16 %v5021
        %v5473 = vunpack.c.h.b16 %v5021
        %v5474 = vunpack.c.l.b16 %v5022
        %v5475 = vunpack.c.h.b16 %v5022
        %v5476 = vunpack.c.l.b16 %v5023
        %v5477 = vunpack.c.h.b16 %v5023
        %v5478 = vunpack.c.l.b16 %v5024
        %v5479 = vunpack.c.h.b16 %v5024
        %v5480 = vunpack.c.l.b16 %v5025
        %v5481 = vunpack.c.h.b16 %v5025
        %v5482 = vunpack.c.l.b16 %v5026
        %v5483 = vunpack.c.h.b16 %v5026
        %v5484 = vunpack.c.l.b16 %v5027
        %v5485 = vunpack.c.h.b16 %v5027
        %v5486 = vunpack.c.l.b16 %v5028
        %v5487 = vunpack.c.h.b16 %v5028
        %v5488 = vunpack.c.l.b16 %v5029
        %v5489 = vunpack.c.h.b16 %v5029
        %v5490 = vunpack.c.l.b16 %v5030
        %v5491 = vunpack.c.h.b16 %v5030
        %v5492 = vunpack.c.l.b16 %v5031
        %v5493 = vunpack.c.h.b16 %v5031
        %v5494 = vunpack.c.l.b16 %v5032
        %v5495 = vunpack.c.h.b16 %v5032
        %v5496 = vunpack.c.l.b16 %v5033
        %v5497 = vunpack.c.h.b16 %v5033
        %v5498 = vunpack.c.l.b16 %v5034
        %v5499 = vunpack.c.h.b16 %v5034
        %v5500 = vunpack.c.l.b16 %v5035
        %v5501 = vunpack.c.h.b16 %v5035
        %v5502 = vunpack.c.l.b16 %v5036
        %v5503 = vunpack.c.h.b16 %v5036
        %v5504 = vunpack.c.l.b16 %v5037
        %v5505 = vunpack.c.h.b16 %v5037
        %v5506 = vunpack.c.l.b16 %v5038
        %v5507 = vunpack.c.h.b16 %v5038
        %v5508 = vunpack.c.l.b16 %v5039
        %v5509 = vunpack.c.h.b16 %v5039
        %v5510 = vunpack.c.l.b16 %v5040
        %v5511 = vunpack.c.h.b16 %v5040
        %v5512 = vunpack.c.l.b16 %v5041
        %v5513 = vunpack.c.h.b16 %v5041
        %v5514 = vunpack.c.l.b16 %v5042
        %v5515 = vunpack.c.h.b16 %v5042
        %v5516 = vunpack.c.l.b16 %v5043
        %v5517 = vunpack.c.h.b16 %v5043
        %v5518 = vunpack.c.l.b16 %v5044
        %v5519 = vunpack.c.h.b16 %v5044
        %v5520 = vpack.c.b16 %v5426, %v5424
        %v5521 = vpack.c.b16 %v5427, %v5425
        %v5522 = vpack.c.b16 %v5430, %v5428
        %v5523 = vpack.c.b16 %v5431, %v5429
        %v5524 = vpack.c.b16 %v5434, %v5432
        %v5525 = vpack.c.b16 %v5435, %v5433
        %v5526 = vpack.c.b16 %v5438, %v5436
        %v5527 = vpack.c.b16 %v5439, %v5437
        %v5528 = vpack.c.b16 %v5442, %v5440
        %v5529 = vpack.c.b16 %v5443, %v5441
        %v5530 = vpack.c.b16 %v5446, %v5444
        %v5531 = vpack.c.b16 %v5447, %v5445
        %v5532 = vpack.c.b16 %v5450, %v5448
        %v5533 = vpack.c.b16 %v5451, %v5449
        %v5534 = vpack.c.b16 %v5454, %v5452
        %v5535 = vpack.c.b16 %v5455, %v5453
        %v5536 = vpack.c.b16 %v5458, %v5456
        %v5537 = vpack.c.b16 %v5459, %v5457
        %v5538 = vpack.c.b16 %v5462, %v5460
        %v5539 = vpack.c.b16 %v5463, %v5461
        %v5540 = vpack.c.b16 %v5466, %v5464
        %v5541 = vpack.c.b16 %v5467, %v5465
        %v5542 = vpack.c.b16 %v5470, %v5468
        %v5543 = vpack.c.b16 %v5471, %v5469
        %v5544 = vpack.c.b16 %v5474, %v5472
        %v5545 = vpack.c.b16 %v5475, %v5473
        %v5546 = vpack.c.b16 %v5478, %v5476
        %v5547 = vpack.c.b16 %v5479, %v5477
        %v5548 = vpack.c.b16 %v5482, %v5480
        %v5549 = vpack.c.b16 %v5483, %v5481
        %v5550 = vpack.c.b16 %v5486, %v5484
        %v5551 = vpack.c.b16 %v5487, %v5485
        %v5552 = vpack.c.b16 %v5490, %v5488
        %v5553 = vpack.c.b16 %v5491, %v5489
        %v5554 = vpack.c.b16 %v5494, %v5492
        %v5555 = vpack.c.b16 %v5495, %v5493
        %v5556 = vpack.c.b16 %v5498, %v5496
        %v5557 = vpack.c.b16 %v5499, %v5497
        %v5558 = vpack.c.b16 %v5502, %v5500
        %v5559 = vpack.c.b16 %v5503, %v5501
        %v5560 = vpack.c.b16 %v5506, %v5504
        %v5561 = vpack.c.b16 %v5507, %v5505
        %v5562 = vpack.c.b16 %v5510, %v5508
        %v5563 = vpack.c.b16 %v5511, %v5509
        %v5564 = vpack.c.b16 %v5514, %v5512
        %v5565 = vpack.c.b16 %v5515, %v5513
        %v5566 = vpack.c.b16 %v5518, %v5516
        %v5567 = vpack.c.b16 %v5519, %v5517
        %5616 = vmatpush.bf16.msra.mxu0 %v5534
        %5617 = vmatpush.bf16.msra.mxu0 %v5532
        %5618 = vmatpush.bf16.msra.mxu0 %v5530
        %5619 = vmatpush.bf16.msra.mxu0 %v5528
        %5620 = vmatpush.bf16.msra.mxu0 %v5526
        %5621 = vmatpush.bf16.msra.mxu0 %v5524
        %5622 = vmatpush.bf16.msra.mxu0 %v5522
        %5623 = vmatpush.bf16.msra.mxu0 %v5520
        %5624 = vmatmul.bf16.gmra.mxu0 %v5250
        %v5625 = vpop.f32.mrf.mxu0
        %v5626 = vadd.f32 0.0, %v5625
        %v5627 = vpop.f32.mrf.mxu0
        %v5628 = vadd.f32 0.0, %v5627
        %5629 = vmatmul.bf16.gmra.mxu0 %v5253
        %v5630 = vpop.f32.mrf.mxu0
        %v5631 = vadd.f32 0.0, %v5630
        %v5632 = vpop.f32.mrf.mxu0
        %v5633 = vadd.f32 0.0, %v5632
        %5634 = vmatmul.bf16.gmra.mxu0 %v5256
        %v5635 = vpop.f32.mrf.mxu0
        %v5636 = vadd.f32 0.0, %v5635
        %v5637 = vpop.f32.mrf.mxu0
        %v5638 = vadd.f32 0.0, %v5637
        %5639 = vmatmul.bf16.gmra.mxu0 %v5259
        %v5640 = vpop.f32.mrf.mxu0
        %v5641 = vadd.f32 0.0, %v5640
        %v5642 = vpop.f32.mrf.mxu0
        %v5643 = vadd.f32 0.0, %v5642
        %5644 = vmatmul.bf16.gmra.mxu0 %v5262
        %v5645 = vpop.f32.mrf.mxu0
        %v5646 = vadd.f32 0.0, %v5645
        %v5647 = vpop.f32.mrf.mxu0
        %v5648 = vadd.f32 0.0, %v5647
        %5649 = vmatmul.bf16.gmra.mxu0 %v5265
        %v5650 = vpop.f32.mrf.mxu0
        %v5651 = vadd.f32 0.0, %v5650
        %v5652 = vpop.f32.mrf.mxu0
        %v5653 = vadd.f32 0.0, %v5652
        %5654 = vmatmul.bf16.gmra.mxu0 %v5268
        %v5655 = vpop.f32.mrf.mxu0
        %v5656 = vadd.f32 0.0, %v5655
        %v5657 = vpop.f32.mrf.mxu0
        %v5658 = vadd.f32 0.0, %v5657
        %5659 = vmatmul.bf16.gmra.mxu0 %v5271
        %v5660 = vpop.f32.mrf.mxu0
        %v5661 = vadd.f32 0.0, %v5660
        %v5662 = vpop.f32.mrf.mxu0
        %v5663 = vadd.f32 0.0, %v5662
        %5664 = vmatmul.bf16.gmra.mxu0 %v5274
        %v5665 = vpop.f32.mrf.mxu0
        %v5666 = vadd.f32 0.0, %v5665
        %v5667 = vpop.f32.mrf.mxu0
        %v5668 = vadd.f32 0.0, %v5667
        %5669 = vmatmul.bf16.gmra.mxu0 %v5277
        %v5670 = vpop.f32.mrf.mxu0
        %v5671 = vadd.f32 0.0, %v5670
        %v5672 = vpop.f32.mrf.mxu0
        %v5673 = vadd.f32 0.0, %v5672
        %5674 = vmatmul.bf16.gmra.mxu0 %v5280
        %v5675 = vpop.f32.mrf.mxu0
        %v5676 = vadd.f32 0.0, %v5675
        %v5677 = vpop.f32.mrf.mxu0
        %v5678 = vadd.f32 0.0, %v5677
        %5679 = vmatmul.bf16.gmra.mxu0 %v5283
        %v5680 = vpop.f32.mrf.mxu0
        %v5681 = vadd.f32 0.0, %v5680
        %v5682 = vpop.f32.mrf.mxu0
        %v5683 = vadd.f32 0.0, %v5682
        %5684 = vmatmul.bf16.gmra.mxu0 %v5286
        %v5685 = vpop.f32.mrf.mxu0
        %v5686 = vadd.f32 0.0, %v5685
        %v5687 = vpop.f32.mrf.mxu0
        %v5688 = vadd.f32 0.0, %v5687
        %5689 = vmatmul.bf16.gmra.mxu0 %v5289
        %v5690 = vpop.f32.mrf.mxu0
        %v5691 = vadd.f32 0.0, %v5690
        %v5692 = vpop.f32.mrf.mxu0
        %v5693 = vadd.f32 0.0, %v5692
        %5694 = vmatmul.bf16.gmra.mxu0 %v5292
        %v5695 = vpop.f32.mrf.mxu0
        %v5696 = vadd.f32 0.0, %v5695
        %v5697 = vpop.f32.mrf.mxu0
        %v5698 = vadd.f32 0.0, %v5697
        %5699 = vmatmul.bf16.gmra.mxu0 %v5295
        %v5700 = vpop.f32.mrf.mxu0
        %v5701 = vadd.f32 0.0, %v5700
        %v5702 = vpop.f32.mrf.mxu0
        %v5703 = vadd.f32 0.0, %v5702
        %5704 = vmatmul.bf16.gmra.mxu0 %v5298
        %v5705 = vpop.f32.mrf.mxu0
        %v5706 = vadd.f32 0.0, %v5705
        %v5707 = vpop.f32.mrf.mxu0
        %v5708 = vadd.f32 0.0, %v5707
        %5709 = vmatmul.bf16.gmra.mxu0 %v5301
        %v5710 = vpop.f32.mrf.mxu0
        %v5711 = vadd.f32 0.0, %v5710
        %v5712 = vpop.f32.mrf.mxu0
        %v5713 = vadd.f32 0.0, %v5712
        %5714 = vmatmul.bf16.gmra.mxu0 %v5304
        %v5715 = vpop.f32.mrf.mxu0
        %v5716 = vadd.f32 0.0, %v5715
        %v5717 = vpop.f32.mrf.mxu0
        %v5718 = vadd.f32 0.0, %v5717
        %5719 = vmatmul.bf16.gmra.mxu0 %v5307
        %v5720 = vpop.f32.mrf.mxu0
        %v5721 = vadd.f32 0.0, %v5720
        %v5722 = vpop.f32.mrf.mxu0
        %v5723 = vadd.f32 0.0, %v5722
        %5724 = vmatmul.bf16.gmra.mxu0 %v5310
        %v5725 = vpop.f32.mrf.mxu0
        %v5726 = vadd.f32 0.0, %v5725
        %v5727 = vpop.f32.mrf.mxu0
        %5728 = vdwg.mxu0
        %5729 = vmatpush.bf16.msra.mxu0 %v5550
        %5730 = vmatpush.bf16.msra.mxu0 %v5548
        %5731 = vmatpush.bf16.msra.mxu0 %v5546
        %5732 = vmatpush.bf16.msra.mxu0 %v5544
        %5733 = vmatpush.bf16.msra.mxu0 %v5542
        %5734 = vmatpush.bf16.msra.mxu0 %v5540
        %5735 = vmatpush.bf16.msra.mxu0 %v5538
        %5736 = vmatpush.bf16.msra.mxu0 %v5536
        %5737 = vmatmul.bf16.gmra.mxu0 %v5251
        %v5738 = vpop.f32.mrf.mxu0
        %v5739 = vadd.f32 %v5626, %v5738
        %v5740 = vpop.f32.mrf.mxu0
        %v5741 = vadd.f32 %v5628, %v5740
        %5742 = vmatmul.bf16.gmra.mxu0 %v5254
        %v5743 = vpop.f32.mrf.mxu0
        %v5744 = vadd.f32 %v5631, %v5743
        %v5745 = vpop.f32.mrf.mxu0
        %v5746 = vadd.f32 %v5633, %v5745
        %5747 = vmatmul.bf16.gmra.mxu0 %v5257
        %v5748 = vpop.f32.mrf.mxu0
        %v5749 = vadd.f32 %v5636, %v5748
        %v5750 = vpop.f32.mrf.mxu0
        %v5751 = vadd.f32 %v5638, %v5750
        %5752 = vmatmul.bf16.gmra.mxu0 %v5260
        %v5753 = vpop.f32.mrf.mxu0
        %v5754 = vadd.f32 %v5641, %v5753
        %v5755 = vpop.f32.mrf.mxu0
        %v5756 = vadd.f32 %v5643, %v5755
        %5757 = vmatmul.bf16.gmra.mxu0 %v5263
        %v5758 = vpop.f32.mrf.mxu0
        %v5759 = vadd.f32 %v5646, %v5758
        %v5760 = vpop.f32.mrf.mxu0
        %v5761 = vadd.f32 %v5648, %v5760
        %5762 = vmatmul.bf16.gmra.mxu0 %v5266
        %v5763 = vpop.f32.mrf.mxu0
        %v5764 = vadd.f32 %v5651, %v5763
        %v5765 = vpop.f32.mrf.mxu0
        %v5766 = vadd.f32 %v5653, %v5765
        %5767 = vmatmul.bf16.gmra.mxu0 %v5269
        %v5768 = vpop.f32.mrf.mxu0
        %v5769 = vadd.f32 %v5656, %v5768
        %v5770 = vpop.f32.mrf.mxu0
        %v5771 = vadd.f32 %v5658, %v5770
        %5772 = vmatmul.bf16.gmra.mxu0 %v5272
        %v5773 = vpop.f32.mrf.mxu0
        %v5774 = vadd.f32 %v5661, %v5773
        %v5775 = vpop.f32.mrf.mxu0
        %v5776 = vadd.f32 %v5663, %v5775
        %5777 = vmatmul.bf16.gmra.mxu0 %v5275
        %v5778 = vpop.f32.mrf.mxu0
        %v5779 = vadd.f32 %v5666, %v5778
        %v5780 = vpop.f32.mrf.mxu0
        %v5781 = vadd.f32 %v5668, %v5780
        %5782 = vmatmul.bf16.gmra.mxu0 %v5278
        %v5783 = vpop.f32.mrf.mxu0
        %v5784 = vadd.f32 %v5671, %v5783
        %v5785 = vpop.f32.mrf.mxu0
        %v5786 = vadd.f32 %v5673, %v5785
        %5787 = vmatmul.bf16.gmra.mxu0 %v5281
        %v5788 = vpop.f32.mrf.mxu0
        %v5789 = vadd.f32 %v5676, %v5788
        %v5790 = vpop.f32.mrf.mxu0
        %v5791 = vadd.f32 %v5678, %v5790
        %5792 = vmatmul.bf16.gmra.mxu0 %v5284
        %v5793 = vpop.f32.mrf.mxu0
        %v5794 = vadd.f32 %v5681, %v5793
        %v5795 = vpop.f32.mrf.mxu0
        %v5796 = vadd.f32 %v5683, %v5795
        %5797 = vmatmul.bf16.gmra.mxu0 %v5287
        %v5798 = vpop.f32.mrf.mxu0
        %v5799 = vadd.f32 %v5686, %v5798
        %v5800 = vpop.f32.mrf.mxu0
        %v5801 = vadd.f32 %v5688, %v5800
        %5802 = vmatmul.bf16.gmra.mxu0 %v5290
        %v5803 = vpop.f32.mrf.mxu0
        %v5804 = vadd.f32 %v5691, %v5803
        %v5805 = vpop.f32.mrf.mxu0
        %v5806 = vadd.f32 %v5693, %v5805
        %5807 = vmatmul.bf16.gmra.mxu0 %v5293
        %v5808 = vpop.f32.mrf.mxu0
        %v5809 = vadd.f32 %v5696, %v5808
        %v5810 = vpop.f32.mrf.mxu0
        %v5811 = vadd.f32 %v5698, %v5810
        %5812 = vmatmul.bf16.gmra.mxu0 %v5296
        %v5813 = vpop.f32.mrf.mxu0
        %v5814 = vadd.f32 %v5701, %v5813
        %v5815 = vpop.f32.mrf.mxu0
        %v5816 = vadd.f32 %v5703, %v5815
        %5817 = vmatmul.bf16.gmra.mxu0 %v5299
        %v5818 = vpop.f32.mrf.mxu0
        %v5819 = vadd.f32 %v5706, %v5818
        %v5820 = vpop.f32.mrf.mxu0
        %v5821 = vadd.f32 %v5708, %v5820
        %5822 = vmatmul.bf16.gmra.mxu0 %v5302
        %v5823 = vpop.f32.mrf.mxu0
        %v5824 = vadd.f32 %v5711, %v5823
        %v5825 = vpop.f32.mrf.mxu0
        %v5826 = vadd.f32 %v5713, %v5825
        %5827 = vmatmul.bf16.gmra.mxu0 %v5305
        %v5828 = vpop.f32.mrf.mxu0
        %v5829 = vadd.f32 %v5716, %v5828
        %v5830 = vpop.f32.mrf.mxu0
        %v5831 = vadd.f32 %v5718, %v5830
        %5832 = vmatmul.bf16.gmra.mxu0 %v5308
        %v5833 = vpop.f32.mrf.mxu0
        %v5834 = vadd.f32 %v5721, %v5833
        %v5835 = vpop.f32.mrf.mxu0
        %v5836 = vadd.f32 %v5723, %v5835
        %5837 = vmatmul.bf16.gmra.mxu0 %v5311
        %v5838 = vpop.f32.mrf.mxu0
        %v5839 = vadd.f32 %v5726, %v5838
        %v5840 = vpop.f32.mrf.mxu0
        %5841 = vdwg.mxu0
        %5842 = vmatpush.bf16.msra.mxu0 %v5566
        %5843 = vmatpush.bf16.msra.mxu0 %v5564
        %5844 = vmatpush.bf16.msra.mxu0 %v5562
        %5845 = vmatpush.bf16.msra.mxu0 %v5560
        %5846 = vmatpush.bf16.msra.mxu0 %v5558
        %5847 = vmatpush.bf16.msra.mxu0 %v5556
        %5848 = vmatpush.bf16.msra.mxu0 %v5554
        %5849 = vmatpush.bf16.msra.mxu0 %v5552
        %5850 = vmatmul.bf16.gmra.mxu0 %v5252
        %v5851 = vpop.f32.mrf.mxu0
        %v5852 = vadd.f32 %v5739, %v5851
        %v5853 = vpop.f32.mrf.mxu0
        %v5854 = vadd.f32 %v5741, %v5853
        %5855 = vmatmul.bf16.gmra.mxu0 %v5255
        %v5856 = vpop.f32.mrf.mxu0
        %v5857 = vadd.f32 %v5744, %v5856
        %v5858 = vpop.f32.mrf.mxu0
        %v5859 = vadd.f32 %v5746, %v5858
        %5860 = vmatmul.bf16.gmra.mxu0 %v5258
        %v5861 = vpop.f32.mrf.mxu0
        %v5862 = vadd.f32 %v5749, %v5861
        %v5863 = vpop.f32.mrf.mxu0
        %v5864 = vadd.f32 %v5751, %v5863
        %5865 = vmatmul.bf16.gmra.mxu0 %v5261
        %v5866 = vpop.f32.mrf.mxu0
        %v5867 = vadd.f32 %v5754, %v5866
        %v5868 = vpop.f32.mrf.mxu0
        %v5869 = vadd.f32 %v5756, %v5868
        %5870 = vmatmul.bf16.gmra.mxu0 %v5264
        %v5871 = vpop.f32.mrf.mxu0
        %v5872 = vadd.f32 %v5759, %v5871
        %v5873 = vpop.f32.mrf.mxu0
        %v5874 = vadd.f32 %v5761, %v5873
        %5875 = vmatmul.bf16.gmra.mxu0 %v5267
        %v5876 = vpop.f32.mrf.mxu0
        %v5877 = vadd.f32 %v5764, %v5876
        %v5878 = vpop.f32.mrf.mxu0
        %v5879 = vadd.f32 %v5766, %v5878
        %5880 = vmatmul.bf16.gmra.mxu0 %v5270
        %v5881 = vpop.f32.mrf.mxu0
        %v5882 = vadd.f32 %v5769, %v5881
        %v5883 = vpop.f32.mrf.mxu0
        %v5884 = vadd.f32 %v5771, %v5883
        %5885 = vmatmul.bf16.gmra.mxu0 %v5273
        %v5886 = vpop.f32.mrf.mxu0
        %v5887 = vadd.f32 %v5774, %v5886
        %v5888 = vpop.f32.mrf.mxu0
        %v5889 = vadd.f32 %v5776, %v5888
        %5890 = vmatmul.bf16.gmra.mxu0 %v5276
        %v5891 = vpop.f32.mrf.mxu0
        %v5892 = vadd.f32 %v5779, %v5891
        %v5893 = vpop.f32.mrf.mxu0
        %v5894 = vadd.f32 %v5781, %v5893
        %5895 = vmatmul.bf16.gmra.mxu0 %v5279
        %v5896 = vpop.f32.mrf.mxu0
        %v5897 = vadd.f32 %v5784, %v5896
        %v5898 = vpop.f32.mrf.mxu0
        %v5899 = vadd.f32 %v5786, %v5898
        %5900 = vmatmul.bf16.gmra.mxu0 %v5282
        %v5901 = vpop.f32.mrf.mxu0
        %v5902 = vadd.f32 %v5789, %v5901
        %v5903 = vpop.f32.mrf.mxu0
        %v5904 = vadd.f32 %v5791, %v5903
        %5905 = vmatmul.bf16.gmra.mxu0 %v5285
        %v5906 = vpop.f32.mrf.mxu0
        %v5907 = vadd.f32 %v5794, %v5906
        %v5908 = vpop.f32.mrf.mxu0
        %v5909 = vadd.f32 %v5796, %v5908
        %5910 = vmatmul.bf16.gmra.mxu0 %v5288
        %v5911 = vpop.f32.mrf.mxu0
        %v5912 = vadd.f32 %v5799, %v5911
        %v5913 = vpop.f32.mrf.mxu0
        %v5914 = vadd.f32 %v5801, %v5913
        %5915 = vmatmul.bf16.gmra.mxu0 %v5291
        %v5916 = vpop.f32.mrf.mxu0
        %v5917 = vadd.f32 %v5804, %v5916
        %v5918 = vpop.f32.mrf.mxu0
        %v5919 = vadd.f32 %v5806, %v5918
        %5920 = vmatmul.bf16.gmra.mxu0 %v5294
        %v5921 = vpop.f32.mrf.mxu0
        %v5922 = vadd.f32 %v5809, %v5921
        %v5923 = vpop.f32.mrf.mxu0
        %v5924 = vadd.f32 %v5811, %v5923
        %5925 = vmatmul.bf16.gmra.mxu0 %v5297
        %v5926 = vpop.f32.mrf.mxu0
        %v5927 = vadd.f32 %v5814, %v5926
        %v5928 = vpop.f32.mrf.mxu0
        %v5929 = vadd.f32 %v5816, %v5928
        %5930 = vmatmul.bf16.gmra.mxu0 %v5300
        %v5931 = vpop.f32.mrf.mxu0
        %v5932 = vadd.f32 %v5819, %v5931
        %v5933 = vpop.f32.mrf.mxu0
        %v5934 = vadd.f32 %v5821, %v5933
        %5935 = vmatmul.bf16.gmra.mxu0 %v5303
        %v5936 = vpop.f32.mrf.mxu0
        %v5937 = vadd.f32 %v5824, %v5936
        %v5938 = vpop.f32.mrf.mxu0
        %v5939 = vadd.f32 %v5826, %v5938
        %5940 = vmatmul.bf16.gmra.mxu0 %v5306
        %v5941 = vpop.f32.mrf.mxu0
        %v5942 = vadd.f32 %v5829, %v5941
        %v5943 = vpop.f32.mrf.mxu0
        %v5944 = vadd.f32 %v5831, %v5943
        %5945 = vmatmul.bf16.gmra.mxu0 %v5309
        %v5946 = vpop.f32.mrf.mxu0
        %v5947 = vadd.f32 %v5834, %v5946
        %v5948 = vpop.f32.mrf.mxu0
        %v5949 = vadd.f32 %v5836, %v5948
        %5950 = vmatmul.bf16.gmra.mxu0 %v5312
        %v5951 = vpop.f32.mrf.mxu0
        %v5952 = vadd.f32 %v5839, %v5951
        %v5953 = vpop.f32.mrf.mxu0
        %5954 = vdwg.mxu0
        %5955 = vmatpush.bf16.msra.mxu0 %v5535
        %5956 = vmatpush.bf16.msra.mxu0 %v5533
        %5957 = vmatpush.bf16.msra.mxu0 %v5531
        %5958 = vmatpush.bf16.msra.mxu0 %v5529
        %5959 = vmatpush.bf16.msra.mxu0 %v5527
        %5960 = vmatpush.bf16.msra.mxu0 %v5525
        %5961 = vmatpush.bf16.msra.mxu0 %v5523
        %5962 = vmatpush.bf16.msra.mxu0 %v5521
        %5963 = vmatmul.bf16.gmra.mxu0 %v5250
        %v5964 = vpop.f32.mrf.mxu0
        %v5965 = vadd.f32 0.0, %v5964
        %v5966 = vpop.f32.mrf.mxu0
        %v5967 = vadd.f32 0.0, %v5966
        %5968 = vmatmul.bf16.gmra.mxu0 %v5253
        %v5969 = vpop.f32.mrf.mxu0
        %v5970 = vadd.f32 0.0, %v5969
        %v5971 = vpop.f32.mrf.mxu0
        %v5972 = vadd.f32 0.0, %v5971
        %5973 = vmatmul.bf16.gmra.mxu0 %v5256
        %v5974 = vpop.f32.mrf.mxu0
        %v5975 = vadd.f32 0.0, %v5974
        %v5976 = vpop.f32.mrf.mxu0
        %v5977 = vadd.f32 0.0, %v5976
        %5978 = vmatmul.bf16.gmra.mxu0 %v5259
        %v5979 = vpop.f32.mrf.mxu0
        %v5980 = vadd.f32 0.0, %v5979
        %v5981 = vpop.f32.mrf.mxu0
        %v5982 = vadd.f32 0.0, %v5981
        %5983 = vmatmul.bf16.gmra.mxu0 %v5262
        %v5984 = vpop.f32.mrf.mxu0
        %v5985 = vadd.f32 0.0, %v5984
        %v5986 = vpop.f32.mrf.mxu0
        %v5987 = vadd.f32 0.0, %v5986
        %5988 = vmatmul.bf16.gmra.mxu0 %v5265
        %v5989 = vpop.f32.mrf.mxu0
        %v5990 = vadd.f32 0.0, %v5989
        %v5991 = vpop.f32.mrf.mxu0
        %v5992 = vadd.f32 0.0, %v5991
        %5993 = vmatmul.bf16.gmra.mxu0 %v5268
        %v5994 = vpop.f32.mrf.mxu0
        %v5995 = vadd.f32 0.0, %v5994
        %v5996 = vpop.f32.mrf.mxu0
        %v5997 = vadd.f32 0.0, %v5996
        %5998 = vmatmul.bf16.gmra.mxu0 %v5271
        %v5999 = vpop.f32.mrf.mxu0
        %v6000 = vadd.f32 0.0, %v5999
        %v6001 = vpop.f32.mrf.mxu0
        %v6002 = vadd.f32 0.0, %v6001
        %6003 = vmatmul.bf16.gmra.mxu0 %v5274
        %v6004 = vpop.f32.mrf.mxu0
        %v6005 = vadd.f32 0.0, %v6004
        %v6006 = vpop.f32.mrf.mxu0
        %v6007 = vadd.f32 0.0, %v6006
        %6008 = vmatmul.bf16.gmra.mxu0 %v5277
        %v6009 = vpop.f32.mrf.mxu0
        %v6010 = vadd.f32 0.0, %v6009
        %v6011 = vpop.f32.mrf.mxu0
        %v6012 = vadd.f32 0.0, %v6011
        %6013 = vmatmul.bf16.gmra.mxu0 %v5280
        %v6014 = vpop.f32.mrf.mxu0
        %v6015 = vadd.f32 0.0, %v6014
        %v6016 = vpop.f32.mrf.mxu0
        %v6017 = vadd.f32 0.0, %v6016
        %6018 = vmatmul.bf16.gmra.mxu0 %v5283
        %v6019 = vpop.f32.mrf.mxu0
        %v6020 = vadd.f32 0.0, %v6019
        %v6021 = vpop.f32.mrf.mxu0
        %v6022 = vadd.f32 0.0, %v6021
        %6023 = vmatmul.bf16.gmra.mxu0 %v5286
        %v6024 = vpop.f32.mrf.mxu0
        %v6025 = vadd.f32 0.0, %v6024
        %v6026 = vpop.f32.mrf.mxu0
        %v6027 = vadd.f32 0.0, %v6026
        %6028 = vmatmul.bf16.gmra.mxu0 %v5289
        %v6029 = vpop.f32.mrf.mxu0
        %v6030 = vadd.f32 0.0, %v6029
        %v6031 = vpop.f32.mrf.mxu0
        %v6032 = vadd.f32 0.0, %v6031
        %6033 = vmatmul.bf16.gmra.mxu0 %v5292
        %v6034 = vpop.f32.mrf.mxu0
        %v6035 = vadd.f32 0.0, %v6034
        %v6036 = vpop.f32.mrf.mxu0
        %v6037 = vadd.f32 0.0, %v6036
        %6038 = vmatmul.bf16.gmra.mxu0 %v5295
        %v6039 = vpop.f32.mrf.mxu0
        %v6040 = vadd.f32 0.0, %v6039
        %v6041 = vpop.f32.mrf.mxu0
        %v6042 = vadd.f32 0.0, %v6041
        %6043 = vmatmul.bf16.gmra.mxu0 %v5298
        %v6044 = vpop.f32.mrf.mxu0
        %v6045 = vadd.f32 0.0, %v6044
        %v6046 = vpop.f32.mrf.mxu0
        %v6047 = vadd.f32 0.0, %v6046
        %6048 = vmatmul.bf16.gmra.mxu0 %v5301
        %v6049 = vpop.f32.mrf.mxu0
        %v6050 = vadd.f32 0.0, %v6049
        %v6051 = vpop.f32.mrf.mxu0
        %v6052 = vadd.f32 0.0, %v6051
        %6053 = vmatmul.bf16.gmra.mxu0 %v5304
        %v6054 = vpop.f32.mrf.mxu0
        %v6055 = vadd.f32 0.0, %v6054
        %v6056 = vpop.f32.mrf.mxu0
        %v6057 = vadd.f32 0.0, %v6056
        %6058 = vmatmul.bf16.gmra.mxu0 %v5307
        %v6059 = vpop.f32.mrf.mxu0
        %v6060 = vadd.f32 0.0, %v6059
        %v6061 = vpop.f32.mrf.mxu0
        %v6062 = vadd.f32 0.0, %v6061
        %6063 = vmatmul.bf16.gmra.mxu0 %v5310
        %v6064 = vpop.f32.mrf.mxu0
        %v6065 = vadd.f32 0.0, %v6064
        %v6066 = vpop.f32.mrf.mxu0
        %6067 = vdwg.mxu0
        %6068 = vmatpush.bf16.msra.mxu0 %v5551
        %6069 = vmatpush.bf16.msra.mxu0 %v5549
        %6070 = vmatpush.bf16.msra.mxu0 %v5547
        %6071 = vmatpush.bf16.msra.mxu0 %v5545
        %6072 = vmatpush.bf16.msra.mxu0 %v5543
        %6073 = vmatpush.bf16.msra.mxu0 %v5541
        %6074 = vmatpush.bf16.msra.mxu0 %v5539
        %6075 = vmatpush.bf16.msra.mxu0 %v5537
        %6076 = vmatmul.bf16.gmra.mxu0 %v5251
        %v6077 = vpop.f32.mrf.mxu0
        %v6078 = vadd.f32 %v5965, %v6077
        %v6079 = vpop.f32.mrf.mxu0
        %v6080 = vadd.f32 %v5967, %v6079
        %6081 = vmatmul.bf16.gmra.mxu0 %v5254
        %v6082 = vpop.f32.mrf.mxu0
        %v6083 = vadd.f32 %v5970, %v6082
        %v6084 = vpop.f32.mrf.mxu0
        %v6085 = vadd.f32 %v5972, %v6084
        %6086 = vmatmul.bf16.gmra.mxu0 %v5257
        %v6087 = vpop.f32.mrf.mxu0
        %v6088 = vadd.f32 %v5975, %v6087
        %v6089 = vpop.f32.mrf.mxu0
        %v6090 = vadd.f32 %v5977, %v6089
        %6091 = vmatmul.bf16.gmra.mxu0 %v5260
        %v6092 = vpop.f32.mrf.mxu0
        %v6093 = vadd.f32 %v5980, %v6092
        %v6094 = vpop.f32.mrf.mxu0
        %v6095 = vadd.f32 %v5982, %v6094
        %6096 = vmatmul.bf16.gmra.mxu0 %v5263
        %v6097 = vpop.f32.mrf.mxu0
        %v6098 = vadd.f32 %v5985, %v6097
        %v6099 = vpop.f32.mrf.mxu0
        %v6100 = vadd.f32 %v5987, %v6099
        %6101 = vmatmul.bf16.gmra.mxu0 %v5266
        %v6102 = vpop.f32.mrf.mxu0
        %v6103 = vadd.f32 %v5990, %v6102
        %v6104 = vpop.f32.mrf.mxu0
        %v6105 = vadd.f32 %v5992, %v6104
        %6106 = vmatmul.bf16.gmra.mxu0 %v5269
        %v6107 = vpop.f32.mrf.mxu0
        %v6108 = vadd.f32 %v5995, %v6107
        %v6109 = vpop.f32.mrf.mxu0
        %v6110 = vadd.f32 %v5997, %v6109
        %6111 = vmatmul.bf16.gmra.mxu0 %v5272
        %v6112 = vpop.f32.mrf.mxu0
        %v6113 = vadd.f32 %v6000, %v6112
        %v6114 = vpop.f32.mrf.mxu0
        %v6115 = vadd.f32 %v6002, %v6114
        %6116 = vmatmul.bf16.gmra.mxu0 %v5275
        %v6117 = vpop.f32.mrf.mxu0
        %v6118 = vadd.f32 %v6005, %v6117
        %v6119 = vpop.f32.mrf.mxu0
        %v6120 = vadd.f32 %v6007, %v6119
        %6121 = vmatmul.bf16.gmra.mxu0 %v5278
        %v6122 = vpop.f32.mrf.mxu0
        %v6123 = vadd.f32 %v6010, %v6122
        %v6124 = vpop.f32.mrf.mxu0
        %v6125 = vadd.f32 %v6012, %v6124
        %6126 = vmatmul.bf16.gmra.mxu0 %v5281
        %v6127 = vpop.f32.mrf.mxu0
        %v6128 = vadd.f32 %v6015, %v6127
        %v6129 = vpop.f32.mrf.mxu0
        %v6130 = vadd.f32 %v6017, %v6129
        %6131 = vmatmul.bf16.gmra.mxu0 %v5284
        %v6132 = vpop.f32.mrf.mxu0
        %v6133 = vadd.f32 %v6020, %v6132
        %v6134 = vpop.f32.mrf.mxu0
        %v6135 = vadd.f32 %v6022, %v6134
        %6136 = vmatmul.bf16.gmra.mxu0 %v5287
        %v6137 = vpop.f32.mrf.mxu0
        %v6138 = vadd.f32 %v6025, %v6137
        %v6139 = vpop.f32.mrf.mxu0
        %v6140 = vadd.f32 %v6027, %v6139
        %6141 = vmatmul.bf16.gmra.mxu0 %v5290
        %v6142 = vpop.f32.mrf.mxu0
        %v6143 = vadd.f32 %v6030, %v6142
        %v6144 = vpop.f32.mrf.mxu0
        %v6145 = vadd.f32 %v6032, %v6144
        %6146 = vmatmul.bf16.gmra.mxu0 %v5293
        %v6147 = vpop.f32.mrf.mxu0
        %v6148 = vadd.f32 %v6035, %v6147
        %v6149 = vpop.f32.mrf.mxu0
        %v6150 = vadd.f32 %v6037, %v6149
        %6151 = vmatmul.bf16.gmra.mxu0 %v5296
        %v6152 = vpop.f32.mrf.mxu0
        %v6153 = vadd.f32 %v6040, %v6152
        %v6154 = vpop.f32.mrf.mxu0
        %v6155 = vadd.f32 %v6042, %v6154
        %6156 = vmatmul.bf16.gmra.mxu0 %v5299
        %v6157 = vpop.f32.mrf.mxu0
        %v6158 = vadd.f32 %v6045, %v6157
        %v6159 = vpop.f32.mrf.mxu0
        %v6160 = vadd.f32 %v6047, %v6159
        %6161 = vmatmul.bf16.gmra.mxu0 %v5302
        %v6162 = vpop.f32.mrf.mxu0
        %v6163 = vadd.f32 %v6050, %v6162
        %v6164 = vpop.f32.mrf.mxu0
        %v6165 = vadd.f32 %v6052, %v6164
        %6166 = vmatmul.bf16.gmra.mxu0 %v5305
        %v6167 = vpop.f32.mrf.mxu0
        %v6168 = vadd.f32 %v6055, %v6167
        %v6169 = vpop.f32.mrf.mxu0
        %v6170 = vadd.f32 %v6057, %v6169
        %6171 = vmatmul.bf16.gmra.mxu0 %v5308
        %v6172 = vpop.f32.mrf.mxu0
        %v6173 = vadd.f32 %v6060, %v6172
        %v6174 = vpop.f32.mrf.mxu0
        %v6175 = vadd.f32 %v6062, %v6174
        %6176 = vmatmul.bf16.gmra.mxu0 %v5311
        %v6177 = vpop.f32.mrf.mxu0
        %v6178 = vadd.f32 %v6065, %v6177
        %v6179 = vpop.f32.mrf.mxu0
        %6180 = vdwg.mxu0
        %6181 = vmatpush.bf16.msra.mxu0 %v5567
        %6182 = vmatpush.bf16.msra.mxu0 %v5565
        %6183 = vmatpush.bf16.msra.mxu0 %v5563
        %6184 = vmatpush.bf16.msra.mxu0 %v5561
        %6185 = vmatpush.bf16.msra.mxu0 %v5559
        %6186 = vmatpush.bf16.msra.mxu0 %v5557
        %6187 = vmatpush.bf16.msra.mxu0 %v5555
        %6188 = vmatpush.bf16.msra.mxu0 %v5553
        %6189 = vmatmul.bf16.gmra.mxu0 %v5252
        %v6190 = vpop.f32.mrf.mxu0
        %v6191 = vadd.f32 %v6078, %v6190
        %v6192 = vpop.f32.mrf.mxu0
        %v6193 = vadd.f32 %v6080, %v6192
        %6194 = vmatmul.bf16.gmra.mxu0 %v5255
        %v6195 = vpop.f32.mrf.mxu0
        %v6196 = vadd.f32 %v6083, %v6195
        %v6197 = vpop.f32.mrf.mxu0
        %v6198 = vadd.f32 %v6085, %v6197
        %6199 = vmatmul.bf16.gmra.mxu0 %v5258
        %v6200 = vpop.f32.mrf.mxu0
        %v6201 = vadd.f32 %v6088, %v6200
        %v6202 = vpop.f32.mrf.mxu0
        %v6203 = vadd.f32 %v6090, %v6202
        %6204 = vmatmul.bf16.gmra.mxu0 %v5261
        %v6205 = vpop.f32.mrf.mxu0
        %v6206 = vadd.f32 %v6093, %v6205
        %v6207 = vpop.f32.mrf.mxu0
        %v6208 = vadd.f32 %v6095, %v6207
        %6209 = vmatmul.bf16.gmra.mxu0 %v5264
        %v6210 = vpop.f32.mrf.mxu0
        %v6211 = vadd.f32 %v6098, %v6210
        %v6212 = vpop.f32.mrf.mxu0
        %v6213 = vadd.f32 %v6100, %v6212
        %6214 = vmatmul.bf16.gmra.mxu0 %v5267
        %v6215 = vpop.f32.mrf.mxu0
        %v6216 = vadd.f32 %v6103, %v6215
        %v6217 = vpop.f32.mrf.mxu0
        %v6218 = vadd.f32 %v6105, %v6217
        %6219 = vmatmul.bf16.gmra.mxu0 %v5270
        %v6220 = vpop.f32.mrf.mxu0
        %v6221 = vadd.f32 %v6108, %v6220
        %v6222 = vpop.f32.mrf.mxu0
        %v6223 = vadd.f32 %v6110, %v6222
        %6224 = vmatmul.bf16.gmra.mxu0 %v5273
        %v6225 = vpop.f32.mrf.mxu0
        %v6226 = vadd.f32 %v6113, %v6225
        %v6227 = vpop.f32.mrf.mxu0
        %v6228 = vadd.f32 %v6115, %v6227
        %6229 = vmatmul.bf16.gmra.mxu0 %v5276
        %v6230 = vpop.f32.mrf.mxu0
        %v6231 = vadd.f32 %v6118, %v6230
        %v6232 = vpop.f32.mrf.mxu0
        %v6233 = vadd.f32 %v6120, %v6232
        %6234 = vmatmul.bf16.gmra.mxu0 %v5279
        %v6235 = vpop.f32.mrf.mxu0
        %v6236 = vadd.f32 %v6123, %v6235
        %v6237 = vpop.f32.mrf.mxu0
        %v6238 = vadd.f32 %v6125, %v6237
        %6239 = vmatmul.bf16.gmra.mxu0 %v5282
        %v6240 = vpop.f32.mrf.mxu0
        %v6241 = vadd.f32 %v6128, %v6240
        %v6242 = vpop.f32.mrf.mxu0
        %v6243 = vadd.f32 %v6130, %v6242
        %6244 = vmatmul.bf16.gmra.mxu0 %v5285
        %v6245 = vpop.f32.mrf.mxu0
        %v6246 = vadd.f32 %v6133, %v6245
        %v6247 = vpop.f32.mrf.mxu0
        %v6248 = vadd.f32 %v6135, %v6247
        %6249 = vmatmul.bf16.gmra.mxu0 %v5288
        %v6250 = vpop.f32.mrf.mxu0
        %v6251 = vadd.f32 %v6138, %v6250
        %v6252 = vpop.f32.mrf.mxu0
        %v6253 = vadd.f32 %v6140, %v6252
        %6254 = vmatmul.bf16.gmra.mxu0 %v5291
        %v6255 = vpop.f32.mrf.mxu0
        %v6256 = vadd.f32 %v6143, %v6255
        %v6257 = vpop.f32.mrf.mxu0
        %v6258 = vadd.f32 %v6145, %v6257
        %6259 = vmatmul.bf16.gmra.mxu0 %v5294
        %v6260 = vpop.f32.mrf.mxu0
        %v6261 = vadd.f32 %v6148, %v6260
        %v6262 = vpop.f32.mrf.mxu0
        %v6263 = vadd.f32 %v6150, %v6262
        %6264 = vmatmul.bf16.gmra.mxu0 %v5297
        %v6265 = vpop.f32.mrf.mxu0
        %v6266 = vadd.f32 %v6153, %v6265
        %v6267 = vpop.f32.mrf.mxu0
        %v6268 = vadd.f32 %v6155, %v6267
        %6269 = vmatmul.bf16.gmra.mxu0 %v5300
        %v6270 = vpop.f32.mrf.mxu0
        %v6271 = vadd.f32 %v6158, %v6270
        %v6272 = vpop.f32.mrf.mxu0
        %v6273 = vadd.f32 %v6160, %v6272
        %6274 = vmatmul.bf16.gmra.mxu0 %v5303
        %v6275 = vpop.f32.mrf.mxu0
        %v6276 = vadd.f32 %v6163, %v6275
        %v6277 = vpop.f32.mrf.mxu0
        %v6278 = vadd.f32 %v6165, %v6277
        %6279 = vmatmul.bf16.gmra.mxu0 %v5306
        %v6280 = vpop.f32.mrf.mxu0
        %v6281 = vadd.f32 %v6168, %v6280
        %v6282 = vpop.f32.mrf.mxu0
        %v6283 = vadd.f32 %v6170, %v6282
        %6284 = vmatmul.bf16.gmra.mxu0 %v5309
        %v6285 = vpop.f32.mrf.mxu0
        %v6286 = vadd.f32 %v6173, %v6285
        %v6287 = vpop.f32.mrf.mxu0
        %v6288 = vadd.f32 %v6175, %v6287
        %6289 = vmatmul.bf16.gmra.mxu0 %v5312
        %v6290 = vpop.f32.mrf.mxu0
        %v6291 = vadd.f32 %v6178, %v6290
        %v6292 = vpop.f32.mrf.mxu0
        %6293 = vdwg.mxu0
        %6294 = vst [vmem:[#allocation3] sm:$0xff] %v5852
        %6295 = vst [vmem:[#allocation3 + $0x8] sm:$0xff] %v6191
        %6296 = vst [vmem:[#allocation3 + $0x10] sm:$0xff] %v5854
        %6297 = vst [vmem:[#allocation3 + $0x18] sm:$0xff] %v6193
        %6298 = vst [vmem:[#allocation3 + $0x20] sm:$0xff] %v5857
        %6299 = vst [vmem:[#allocation3 + $0x28] sm:$0xff] %v6196
        %6300 = vst [vmem:[#allocation3 + $0x30] sm:$0xff] %v5859
        %6301 = vst [vmem:[#allocation3 + $0x38] sm:$0xff] %v6198
        %6302 = vst [vmem:[#allocation3 + $0x40] sm:$0xff] %v5862
        %6303 = vst [vmem:[#allocation3 + $0x48] sm:$0xff] %v6201
        %6304 = vst [vmem:[#allocation3 + $0x50] sm:$0xff] %v5864
        %6305 = vst [vmem:[#allocation3 + $0x58] sm:$0xff] %v6203
        %6306 = vst [vmem:[#allocation3 + $0x60] sm:$0xff] %v5867
        %6307 = vst [vmem:[#allocation3 + $0x68] sm:$0xff] %v6206
        %6308 = vst [vmem:[#allocation3 + $0x70] sm:$0xff] %v5869
        %6309 = vst [vmem:[#allocation3 + $0x78] sm:$0xff] %v6208
        %6310 = vst [vmem:[#allocation3 + $0x80] sm:$0xff] %v5872
        %6311 = vst [vmem:[#allocation3 + $0x88] sm:$0xff] %v6211
        %6312 = vst [vmem:[#allocation3 + $0x90] sm:$0xff] %v5874
        %6313 = vst [vmem:[#allocation3 + $0x98] sm:$0xff] %v6213
        %6314 = vst [vmem:[#allocation3 + $0xa0] sm:$0xff] %v5877
        %6315 = vst [vmem:[#allocation3 + $0xa8] sm:$0xff] %v6216
        %6316 = vst [vmem:[#allocation3 + $0xb0] sm:$0xff] %v5879
        %6317 = vst [vmem:[#allocation3 + $0xb8] sm:$0xff] %v6218
        %6318 = vst [vmem:[#allocation3 + $0xc0] sm:$0xff] %v5882
        %6319 = vst [vmem:[#allocation3 + $0xc8] sm:$0xff] %v6221
        %6320 = vst [vmem:[#allocation3 + $0xd0] sm:$0xff] %v5884
        %6321 = vst [vmem:[#allocation3 + $0xd8] sm:$0xff] %v6223
        %6322 = vst [vmem:[#allocation3 + $0xe0] sm:$0xff] %v5887
        %6323 = vst [vmem:[#allocation3 + $0xe8] sm:$0xff] %v6226
        %6324 = vst [vmem:[#allocation3 + $0xf0] sm:$0xff] %v5889
        %6325 = vst [vmem:[#allocation3 + $0xf8] sm:$0xff] %v6228
        %6326 = vst [vmem:[#allocation3 + $0x100] sm:$0xff] %v5892
        %6327 = vst [vmem:[#allocation3 + $0x108] sm:$0xff] %v6231
        %6328 = vst [vmem:[#allocation3 + $0x110] sm:$0xff] %v5894
        %6329 = vst [vmem:[#allocation3 + $0x118] sm:$0xff] %v6233
        %6330 = vst [vmem:[#allocation3 + $0x120] sm:$0xff] %v5897
        %6331 = vst [vmem:[#allocation3 + $0x128] sm:$0xff] %v6236
        %6332 = vst [vmem:[#allocation3 + $0x130] sm:$0xff] %v5899
        %6333 = vst [vmem:[#allocation3 + $0x138] sm:$0xff] %v6238
        %6334 = vst [vmem:[#allocation3 + $0x140] sm:$0xff] %v5902
        %6335 = vst [vmem:[#allocation3 + $0x148] sm:$0xff] %v6241
        %6336 = vst [vmem:[#allocation3 + $0x150] sm:$0xff] %v5904
        %6337 = vst [vmem:[#allocation3 + $0x158] sm:$0xff] %v6243
        %6338 = vst [vmem:[#allocation3 + $0x160] sm:$0xff] %v5907
        %6339 = vst [vmem:[#allocation3 + $0x168] sm:$0xff] %v6246
        %6340 = vst [vmem:[#allocation3 + $0x170] sm:$0xff] %v5909
        %6341 = vst [vmem:[#allocation3 + $0x178] sm:$0xff] %v6248
        %6342 = vst [vmem:[#allocation3 + $0x180] sm:$0xff] %v5912
        %6343 = vst [vmem:[#allocation3 + $0x188] sm:$0xff] %v6251
        %6344 = vst [vmem:[#allocation3 + $0x190] sm:$0xff] %v5914
        %6345 = vst [vmem:[#allocation3 + $0x198] sm:$0xff] %v6253
        %6346 = vst [vmem:[#allocation3 + $0x1a0] sm:$0xff] %v5917
        %6347 = vst [vmem:[#allocation3 + $0x1a8] sm:$0xff] %v6256
        %6348 = vst [vmem:[#allocation3 + $0x1b0] sm:$0xff] %v5919
        %6349 = vst [vmem:[#allocation3 + $0x1b8] sm:$0xff] %v6258
        %6350 = vst [vmem:[#allocation3 + $0x1c0] sm:$0xff] %v5922
        %6351 = vst [vmem:[#allocation3 + $0x1c8] sm:$0xff] %v6261
        %6352 = vst [vmem:[#allocation3 + $0x1d0] sm:$0xff] %v5924
        %6353 = vst [vmem:[#allocation3 + $0x1d8] sm:$0xff] %v6263
        %6354 = vst [vmem:[#allocation3 + $0x1e0] sm:$0xff] %v5927
        %6355 = vst [vmem:[#allocation3 + $0x1e8] sm:$0xff] %v6266
        %6356 = vst [vmem:[#allocation3 + $0x1f0] sm:$0xff] %v5929
        %6357 = vst [vmem:[#allocation3 + $0x1f8] sm:$0xff] %v6268
        %6358 = vst [vmem:[#allocation3 + $0x200] sm:$0xff] %v5932
        %6359 = vst [vmem:[#allocation3 + $0x208] sm:$0xff] %v6271
        %6360 = vst [vmem:[#allocation3 + $0x210] sm:$0xff] %v5934
        %6361 = vst [vmem:[#allocation3 + $0x218] sm:$0xff] %v6273
        %6362 = vst [vmem:[#allocation3 + $0x220] sm:$0xff] %v5937
        %6363 = vst [vmem:[#allocation3 + $0x228] sm:$0xff] %v6276
        %6364 = vst [vmem:[#allocation3 + $0x230] sm:$0xff] %v5939
        %6365 = vst [vmem:[#allocation3 + $0x238] sm:$0xff] %v6278
        %6366 = vst [vmem:[#allocation3 + $0x240] sm:$0xff] %v5942
        %6367 = vst [vmem:[#allocation3 + $0x248] sm:$0xff] %v6281
        %6368 = vst [vmem:[#allocation3 + $0x250] sm:$0xff] %v5944
        %6369 = vst [vmem:[#allocation3 + $0x258] sm:$0xff] %v6283
        %6370 = vst [vmem:[#allocation3 + $0x260] sm:$0xff] %v5947
        %6371 = vst [vmem:[#allocation3 + $0x268] sm:$0xff] %v6286
        %6372 = vst [vmem:[#allocation3 + $0x270] sm:$0xff] %v5949
        %6373 = vst [vmem:[#allocation3 + $0x278] sm:$0xff] %v6288
        %6374 = vst [vmem:[#allocation3 + $0x280] sm:$0xf] %v5952
        %6375 = vst [vmem:[#allocation3 + $0x288] sm:$0xf] %v6291
        %v6376 = vld [vmem:[#allocation3 + $0x40] sm:$0xf0]
        %v6377 = vld [vmem:[#allocation3 + $0x48] sm:$0xf0]
        %v6378 = vld [vmem:[#allocation3 + $0x50] sm:$0xff]
        %v6379 = vld [vmem:[#allocation3 + $0x58] sm:$0xff]
        %v6380 = vld [vmem:[#allocation3 + $0x60] sm:$0xff]
        %v6381 = vld [vmem:[#allocation3 + $0x68] sm:$0xff]
        %v6382 = vld [vmem:[#allocation3 + $0x70] sm:$0xff]
        %v6383 = vld [vmem:[#allocation3 + $0x78] sm:$0xff]
        %v6384 = vld [vmem:[#allocation3 + $0x80] sm:$0xff]
        %v6385 = vld [vmem:[#allocation3 + $0x88] sm:$0xff]
        %v6386 = vld [vmem:[#allocation3 + $0x90] sm:$0xff]
        %v6387 = vld [vmem:[#allocation3 + $0x98] sm:$0xff]
        %v6388 = vld [vmem:[#allocation3 + $0xa0] sm:$0xff]
        %v6389 = vld [vmem:[#allocation3 + $0xa8] sm:$0xff]
        %v6390 = vld [vmem:[#allocation3 + $0xb0] sm:$0xff]
        %v6391 = vld [vmem:[#allocation3 + $0xb8] sm:$0xff]
        %v6392 = vld [vmem:[#allocation3 + $0xc0] sm:$0xff]
        %v6393 = vld [vmem:[#allocation3 + $0xc8] sm:$0xff]
        %v6394 = vld [vmem:[#allocation3 + $0xd0] sm:$0xff]
        %v6395 = vld [vmem:[#allocation3 + $0xd8] sm:$0xff]
        %v6396 = vld [vmem:[#allocation3 + $0xe0] sm:$0xff]
        %v6397 = vld [vmem:[#allocation3 + $0xe8] sm:$0xff]
        %v6398 = vld [vmem:[#allocation3 + $0xf0] sm:$0xff]
        %v6399 = vld [vmem:[#allocation3 + $0xf8] sm:$0xff]
        %v6400 = vld [vmem:[#allocation3 + $0x100] sm:$0xff]
        %v6401 = vld [vmem:[#allocation3 + $0x108] sm:$0xff]
        %v6402 = vld [vmem:[#allocation3 + $0x110] sm:$0xff]
        %v6403 = vld [vmem:[#allocation3 + $0x118] sm:$0xff]
        %v6404 = vld [vmem:[#allocation3 + $0x120] sm:$0xff]
        %v6405 = vld [vmem:[#allocation3 + $0x128] sm:$0xff]
        %v6406 = vld [vmem:[#allocation3 + $0x130] sm:$0xff]
        %v6407 = vld [vmem:[#allocation3 + $0x138] sm:$0xff]
        %v6408 = vld [vmem:[#allocation3 + $0x140] sm:$0xff]
        %v6409 = vld [vmem:[#allocation3 + $0x148] sm:$0xff]
        %v6410 = vld [vmem:[#allocation3 + $0x150] sm:$0xff]
        %v6411 = vld [vmem:[#allocation3 + $0x158] sm:$0xff]
        %v6412 = vld [vmem:[#allocation3 + $0x160] sm:$0xff]
        %v6413 = vld [vmem:[#allocation3 + $0x168] sm:$0xff]
        %v6414 = vld [vmem:[#allocation3 + $0x170] sm:$0xff]
        %v6415 = vld [vmem:[#allocation3 + $0x178] sm:$0xff]
        %v6416 = vld [vmem:[#allocation3 + $0x180] sm:$0xff]
        %v6417 = vld [vmem:[#allocation3 + $0x188] sm:$0xff]
        %v6418 = vld [vmem:[#allocation3 + $0x190] sm:$0xff]
        %v6419 = vld [vmem:[#allocation3 + $0x198] sm:$0xff]
        %v6420 = vld [vmem:[#allocation3 + $0x1a0] sm:$0xff]
        %v6421 = vld [vmem:[#allocation3 + $0x1a8] sm:$0xff]
        %v6422 = vld [vmem:[#allocation3 + $0x1b0] sm:$0xff]
        %v6423 = vld [vmem:[#allocation3 + $0x1b8] sm:$0xff]
        %v6424 = vld [vmem:[#allocation3 + $0x1c0] sm:$0xff]
        %v6425 = vld [vmem:[#allocation3 + $0x1c8] sm:$0xff]
        %v6426 = vld [vmem:[#allocation3 + $0x1d0] sm:$0xff]
        %v6427 = vld [vmem:[#allocation3 + $0x1d8] sm:$0xff]
        %v6428 = vld [vmem:[#allocation3 + $0x1e0] sm:$0xff]
        %v6429 = vld [vmem:[#allocation3 + $0x1e8] sm:$0xff]
        %v6430 = vld [vmem:[#allocation3 + $0x1f0] sm:$0xff]
        %v6431 = vld [vmem:[#allocation3 + $0x1f8] sm:$0xff]
        %v6432 = vld [vmem:[#allocation3 + $0x200] sm:$0xff]
        %v6433 = vld [vmem:[#allocation3 + $0x208] sm:$0xff]
        %v6434 = vld [vmem:[#allocation3 + $0x210] sm:$0xff]
        %v6435 = vld [vmem:[#allocation3 + $0x218] sm:$0xff]
        %v6436 = vld [vmem:[#allocation3 + $0x220] sm:$0xff]
        %v6437 = vld [vmem:[#allocation3 + $0x228] sm:$0xff]
        %v6438 = vld [vmem:[#allocation3 + $0x230] sm:$0xff]
        %v6439 = vld [vmem:[#allocation3 + $0x238] sm:$0xff]
        %v6440 = vld [vmem:[#allocation3 + $0x240] sm:$0xff]
        %v6441 = vld [vmem:[#allocation3 + $0x248] sm:$0xff]
        %v6442 = vld [vmem:[#allocation3 + $0x250] sm:$0xff]
        %v6443 = vld [vmem:[#allocation3 + $0x258] sm:$0xff]
        %v6444 = vld [vmem:[#allocation3 + $0x260] sm:$0xff]
        %v6445 = vld [vmem:[#allocation3 + $0x268] sm:$0xff]
        %v6446 = vld [vmem:[#allocation3 + $0x270] sm:$0xff]
        %v6447 = vld [vmem:[#allocation3 + $0x278] sm:$0xff]
        %v6448 = vld [vmem:[#allocation3 + $0x280] sm:$0xf]
        %v6449 = vld [vmem:[#allocation3 + $0x288] sm:$0xf]
        %v6450 = vld [vmem:[#allocation4] sm:$0xff]
        %v6451 = vld [vmem:[#allocation4 + $0x8] sm:$0xff]
        %v6452 = vld [vmem:[#allocation4 + $0x10] sm:$0xff]
        %v6453 = vld [vmem:[#allocation4 + $0x18] sm:$0xff]
        %v6454 = vld [vmem:[#allocation4 + $0x20] sm:$0xff]
        %v6455 = vld [vmem:[#allocation4 + $0x28] sm:$0xff]
        %v6456 = vld [vmem:[#allocation4 + $0x30] sm:$0xff]
        %v6457 = vld [vmem:[#allocation4 + $0x38] sm:$0xff]
        %v6458 = vld [vmem:[#allocation4 + $0x40] sm:$0xff]
        %v6459 = vld [vmem:[#allocation4 + $0x48] sm:$0xff]
        %v6460 = vld [vmem:[#allocation4 + $0x50] sm:$0xff]
        %v6461 = vld [vmem:[#allocation4 + $0x58] sm:$0xff]
        %v6462 = vld [vmem:[#allocation4 + $0x60] sm:$0xff]
        %v6463 = vld [vmem:[#allocation4 + $0x68] sm:$0xff]
        %v6464 = vld [vmem:[#allocation4 + $0x70] sm:$0xff]
        %v6465 = vld [vmem:[#allocation4 + $0x78] sm:$0xff]
        %v6466 = vld [vmem:[#allocation4 + $0x80] sm:$0xff]
        %v6467 = vld [vmem:[#allocation4 + $0x88] sm:$0xff]
        %v6468 = vld [vmem:[#allocation4 + $0x90] sm:$0xff]
        %v6469 = vld [vmem:[#allocation4 + $0x98] sm:$0xff]
        %v6470 = vld [vmem:[#allocation4 + $0xa0] sm:$0xff]
        %v6471 = vld [vmem:[#allocation4 + $0xa8] sm:$0xff]
        %v6472 = vld [vmem:[#allocation4 + $0xb0] sm:$0xff]
        %v6473 = vld [vmem:[#allocation4 + $0xb8] sm:$0xff]
        %v6474 = vld [vmem:[#allocation4 + $0xc0] sm:$0xff]
        %v6475 = vld [vmem:[#allocation4 + $0xc8] sm:$0xff]
        %v6476 = vld [vmem:[#allocation4 + $0xd0] sm:$0xff]
        %v6477 = vld [vmem:[#allocation4 + $0xd8] sm:$0xff]
        %v6478 = vld [vmem:[#allocation4 + $0xe0] sm:$0xff]
        %v6479 = vld [vmem:[#allocation4 + $0xe8] sm:$0xff]
        %v6480 = vld [vmem:[#allocation4 + $0xf0] sm:$0xff]
        %v6481 = vld [vmem:[#allocation4 + $0xf8] sm:$0xff]
        %v6482 = vld [vmem:[#allocation4 + $0x100] sm:$0xff]
        %v6483 = vld [vmem:[#allocation4 + $0x108] sm:$0xff]
        %v6484 = vld [vmem:[#allocation4 + $0x110] sm:$0xff]
        %v6485 = vld [vmem:[#allocation4 + $0x118] sm:$0xff]
        %v6486 = vld [vmem:[#allocation4 + $0x120] sm:$0xff]
        %v6487 = vld [vmem:[#allocation4 + $0x128] sm:$0xff]
        %v6488 = vld [vmem:[#allocation4 + $0x130] sm:$0xff]
        %v6489 = vld [vmem:[#allocation4 + $0x138] sm:$0xff]
        %v6490 = vld [vmem:[#allocation4 + $0x140] sm:$0xff]
        %v6491 = vld [vmem:[#allocation4 + $0x148] sm:$0xff]
        %v6492 = vld [vmem:[#allocation4 + $0x150] sm:$0xff]
        %v6493 = vld [vmem:[#allocation4 + $0x158] sm:$0xff]
        %v6494 = vld [vmem:[#allocation4 + $0x160] sm:$0xff]
        %v6495 = vld [vmem:[#allocation4 + $0x168] sm:$0xff]
        %v6496 = vld [vmem:[#allocation4 + $0x170] sm:$0xff]
        %v6497 = vld [vmem:[#allocation4 + $0x178] sm:$0xff]
        %v6498 = vld [vmem:[#allocation4 + $0x180] sm:$0xff]
        %v6499 = vld [vmem:[#allocation4 + $0x188] sm:$0xff]
        %v6500 = vld [vmem:[#allocation4 + $0x190] sm:$0xff]
        %v6501 = vld [vmem:[#allocation4 + $0x198] sm:$0xff]
        %v6502 = vld [vmem:[#allocation4 + $0x1a0] sm:$0xff]
        %v6503 = vld [vmem:[#allocation4 + $0x1a8] sm:$0xff]
        %v6504 = vld [vmem:[#allocation4 + $0x1b0] sm:$0xff]
        %v6505 = vld [vmem:[#allocation4 + $0x1b8] sm:$0xff]
        %v6506 = vld [vmem:[#allocation4 + $0x1c0] sm:$0xff]
        %v6507 = vld [vmem:[#allocation4 + $0x1c8] sm:$0xff]
        %v6508 = vld [vmem:[#allocation4 + $0x1d0] sm:$0xff]
        %v6509 = vld [vmem:[#allocation4 + $0x1d8] sm:$0xff]
        %v6510 = vld [vmem:[#allocation4 + $0x1e0] sm:$0xff]
        %v6511 = vld [vmem:[#allocation4 + $0x1e8] sm:$0xff]
        %v6512 = vld [vmem:[#allocation4 + $0x1f0] sm:$0xff]
        %v6513 = vld [vmem:[#allocation4 + $0x1f8] sm:$0xff]
        %v6514 = vld [vmem:[#allocation4 + $0x200] sm:$0xff]
        %v6515 = vld [vmem:[#allocation4 + $0x208] sm:$0xff]
        %v6516 = vld [vmem:[#allocation4 + $0x210] sm:$0xff]
        %v6517 = vld [vmem:[#allocation4 + $0x218] sm:$0xff]
        %v6518 = vld [vmem:[#allocation4 + $0x220] sm:$0xff]
        %v6519 = vld [vmem:[#allocation4 + $0x228] sm:$0xff]
        %v6520 = vld [vmem:[#allocation4 + $0x230] sm:$0xff]
        %v6521 = vld [vmem:[#allocation4 + $0x238] sm:$0xff]
        %vm6596 = vcmask 1043456
        %v6597 = vrot.slane %v6376, 4
        %v6598 = vrot.slane %v6378, 4
        %v6599 = vsel %vm6596, %v6597, %v6598
        %v6600 = vrot.slane %v6377, 4
        %v6601 = vrot.slane %v6379, 4
        %v6602 = vsel %vm6596, %v6600, %v6601
        %v6603 = vrot.slane %v6380, 4
        %v6604 = vsel %vm6596, %v6598, %v6603
        %v6605 = vrot.slane %v6381, 4
        %v6606 = vsel %vm6596, %v6601, %v6605
        %v6607 = vrot.slane %v6382, 4
        %v6608 = vsel %vm6596, %v6603, %v6607
        %v6609 = vrot.slane %v6383, 4
        %v6610 = vsel %vm6596, %v6605, %v6609
        %v6611 = vrot.slane %v6384, 4
        %v6612 = vsel %vm6596, %v6607, %v6611
        %v6613 = vrot.slane %v6385, 4
        %v6614 = vsel %vm6596, %v6609, %v6613
        %v6615 = vrot.slane %v6386, 4
        %v6616 = vsel %vm6596, %v6611, %v6615
        %v6617 = vrot.slane %v6387, 4
        %v6618 = vsel %vm6596, %v6613, %v6617
        %v6619 = vrot.slane %v6388, 4
        %v6620 = vsel %vm6596, %v6615, %v6619
        %v6621 = vrot.slane %v6389, 4
        %v6622 = vsel %vm6596, %v6617, %v6621
        %v6623 = vrot.slane %v6390, 4
        %v6624 = vsel %vm6596, %v6619, %v6623
        %v6625 = vrot.slane %v6391, 4
        %v6626 = vsel %vm6596, %v6621, %v6625
        %v6627 = vrot.slane %v6392, 4
        %v6628 = vsel %vm6596, %v6623, %v6627
        %v6629 = vrot.slane %v6393, 4
        %v6630 = vsel %vm6596, %v6625, %v6629
        %v6631 = vrot.slane %v6394, 4
        %v6632 = vsel %vm6596, %v6627, %v6631
        %v6633 = vrot.slane %v6395, 4
        %v6634 = vsel %vm6596, %v6629, %v6633
        %v6635 = vrot.slane %v6396, 4
        %v6636 = vsel %vm6596, %v6631, %v6635
        %v6637 = vrot.slane %v6397, 4
        %v6638 = vsel %vm6596, %v6633, %v6637
        %v6639 = vrot.slane %v6398, 4
        %v6640 = vsel %vm6596, %v6635, %v6639
        %v6641 = vrot.slane %v6399, 4
        %v6642 = vsel %vm6596, %v6637, %v6641
        %v6643 = vrot.slane %v6400, 4
        %v6644 = vsel %vm6596, %v6639, %v6643
        %v6645 = vrot.slane %v6401, 4
        %v6646 = vsel %vm6596, %v6641, %v6645
        %v6647 = vrot.slane %v6402, 4
        %v6648 = vsel %vm6596, %v6643, %v6647
        %v6649 = vrot.slane %v6403, 4
        %v6650 = vsel %vm6596, %v6645, %v6649
        %v6651 = vrot.slane %v6404, 4
        %v6652 = vsel %vm6596, %v6647, %v6651
        %v6653 = vrot.slane %v6405, 4
        %v6654 = vsel %vm6596, %v6649, %v6653
        %v6655 = vrot.slane %v6406, 4
        %v6656 = vsel %vm6596, %v6651, %v6655
        %v6657 = vrot.slane %v6407, 4
        %v6658 = vsel %vm6596, %v6653, %v6657
        %v6659 = vrot.slane %v6408, 4
        %v6660 = vsel %vm6596, %v6655, %v6659
        %v6661 = vrot.slane %v6409, 4
        %v6662 = vsel %vm6596, %v6657, %v6661
        %v6663 = vrot.slane %v6410, 4
        %v6664 = vsel %vm6596, %v6659, %v6663
        %v6665 = vrot.slane %v6411, 4
        %v6666 = vsel %vm6596, %v6661, %v6665
        %v6667 = vrot.slane %v6412, 4
        %v6668 = vsel %vm6596, %v6663, %v6667
        %v6669 = vrot.slane %v6413, 4
        %v6670 = vsel %vm6596, %v6665, %v6669
        %v6671 = vrot.slane %v6414, 4
        %v6672 = vsel %vm6596, %v6667, %v6671
        %v6673 = vrot.slane %v6415, 4
        %v6674 = vsel %vm6596, %v6669, %v6673
        %v6675 = vrot.slane %v6416, 4
        %v6676 = vsel %vm6596, %v6671, %v6675
        %v6677 = vrot.slane %v6417, 4
        %v6678 = vsel %vm6596, %v6673, %v6677
        %v6679 = vrot.slane %v6418, 4
        %v6680 = vsel %vm6596, %v6675, %v6679
        %v6681 = vrot.slane %v6419, 4
        %v6682 = vsel %vm6596, %v6677, %v6681
        %v6683 = vrot.slane %v6420, 4
        %v6684 = vsel %vm6596, %v6679, %v6683
        %v6685 = vrot.slane %v6421, 4
        %v6686 = vsel %vm6596, %v6681, %v6685
        %v6687 = vrot.slane %v6422, 4
        %v6688 = vsel %vm6596, %v6683, %v6687
        %v6689 = vrot.slane %v6423, 4
        %v6690 = vsel %vm6596, %v6685, %v6689
        %v6691 = vrot.slane %v6424, 4
        %v6692 = vsel %vm6596, %v6687, %v6691
        %v6693 = vrot.slane %v6425, 4
        %v6694 = vsel %vm6596, %v6689, %v6693
        %v6695 = vrot.slane %v6426, 4
        %v6696 = vsel %vm6596, %v6691, %v6695
        %v6697 = vrot.slane %v6427, 4
        %v6698 = vsel %vm6596, %v6693, %v6697
        %v6699 = vrot.slane %v6428, 4
        %v6700 = vsel %vm6596, %v6695, %v6699
        %v6701 = vrot.slane %v6429, 4
        %v6702 = vsel %vm6596, %v6697, %v6701
        %v6703 = vrot.slane %v6430, 4
        %v6704 = vsel %vm6596, %v6699, %v6703
        %v6705 = vrot.slane %v6431, 4
        %v6706 = vsel %vm6596, %v6701, %v6705
        %v6707 = vrot.slane %v6432, 4
        %v6708 = vsel %vm6596, %v6703, %v6707
        %v6709 = vrot.slane %v6433, 4
        %v6710 = vsel %vm6596, %v6705, %v6709
        %v6711 = vrot.slane %v6434, 4
        %v6712 = vsel %vm6596, %v6707, %v6711
        %v6713 = vrot.slane %v6435, 4
        %v6714 = vsel %vm6596, %v6709, %v6713
        %v6715 = vrot.slane %v6436, 4
        %v6716 = vsel %vm6596, %v6711, %v6715
        %v6717 = vrot.slane %v6437, 4
        %v6718 = vsel %vm6596, %v6713, %v6717
        %v6719 = vrot.slane %v6438, 4
        %v6720 = vsel %vm6596, %v6715, %v6719
        %v6721 = vrot.slane %v6439, 4
        %v6722 = vsel %vm6596, %v6717, %v6721
        %v6723 = vrot.slane %v6440, 4
        %v6724 = vsel %vm6596, %v6719, %v6723
        %v6725 = vrot.slane %v6441, 4
        %v6726 = vsel %vm6596, %v6721, %v6725
        %v6727 = vrot.slane %v6442, 4
        %v6728 = vsel %vm6596, %v6723, %v6727
        %v6729 = vrot.slane %v6443, 4
        %v6730 = vsel %vm6596, %v6725, %v6729
        %v6731 = vrot.slane %v6444, 4
        %v6732 = vsel %vm6596, %v6727, %v6731
        %v6733 = vrot.slane %v6445, 4
        %v6734 = vsel %vm6596, %v6729, %v6733
        %v6735 = vrot.slane %v6446, 4
        %v6736 = vsel %vm6596, %v6731, %v6735
        %v6737 = vrot.slane %v6447, 4
        %v6738 = vsel %vm6596, %v6733, %v6737
        %v6739 = vrot.slane %v6448, 4
        %v6740 = vsel %vm6596, %v6735, %v6739
        %v6741 = vrot.slane %v6449, 4
        %v6742 = vsel %vm6596, %v6737, %v6741
        %v6815 = vadd.f32 %v6450, %v6599
        %v6816 = vadd.f32 %v6451, %v6602
        %v6817 = vadd.f32 %v6452, %v6604
        %v6818 = vadd.f32 %v6453, %v6606
        %v6819 = vadd.f32 %v6454, %v6608
        %v6820 = vadd.f32 %v6455, %v6610
        %v6821 = vadd.f32 %v6456, %v6612
        %v6822 = vadd.f32 %v6457, %v6614
        %v6823 = vadd.f32 %v6458, %v6616
        %v6824 = vadd.f32 %v6459, %v6618
        %v6825 = vadd.f32 %v6460, %v6620
        %v6826 = vadd.f32 %v6461, %v6622
        %v6827 = vadd.f32 %v6462, %v6624
        %v6828 = vadd.f32 %v6463, %v6626
        %v6829 = vadd.f32 %v6464, %v6628
        %v6830 = vadd.f32 %v6465, %v6630
        %v6831 = vadd.f32 %v6466, %v6632
        %v6832 = vadd.f32 %v6467, %v6634
        %v6833 = vadd.f32 %v6468, %v6636
        %v6834 = vadd.f32 %v6469, %v6638
        %v6835 = vadd.f32 %v6470, %v6640
        %v6836 = vadd.f32 %v6471, %v6642
        %v6837 = vadd.f32 %v6472, %v6644
        %v6838 = vadd.f32 %v6473, %v6646
        %v6839 = vadd.f32 %v6474, %v6648
        %v6840 = vadd.f32 %v6475, %v6650
        %v6841 = vadd.f32 %v6476, %v6652
        %v6842 = vadd.f32 %v6477, %v6654
        %v6843 = vadd.f32 %v6478, %v6656
        %v6844 = vadd.f32 %v6479, %v6658
        %v6845 = vadd.f32 %v6480, %v6660
        %v6846 = vadd.f32 %v6481, %v6662
        %v6847 = vadd.f32 %v6482, %v6664
        %v6848 = vadd.f32 %v6483, %v6666
        %v6849 = vadd.f32 %v6484, %v6668
        %v6850 = vadd.f32 %v6485, %v6670
        %v6851 = vadd.f32 %v6486, %v6672
        %v6852 = vadd.f32 %v6487, %v6674
        %v6853 = vadd.f32 %v6488, %v6676
        %v6854 = vadd.f32 %v6489, %v6678
        %v6855 = vadd.f32 %v6490, %v6680
        %v6856 = vadd.f32 %v6491, %v6682
        %v6857 = vadd.f32 %v6492, %v6684
        %v6858 = vadd.f32 %v6493, %v6686
        %v6859 = vadd.f32 %v6494, %v6688
        %v6860 = vadd.f32 %v6495, %v6690
        %v6861 = vadd.f32 %v6496, %v6692
        %v6862 = vadd.f32 %v6497, %v6694
        %v6863 = vadd.f32 %v6498, %v6696
        %v6864 = vadd.f32 %v6499, %v6698
        %v6865 = vadd.f32 %v6500, %v6700
        %v6866 = vadd.f32 %v6501, %v6702
        %v6867 = vadd.f32 %v6502, %v6704
        %v6868 = vadd.f32 %v6503, %v6706
        %v6869 = vadd.f32 %v6504, %v6708
        %v6870 = vadd.f32 %v6505, %v6710
        %v6871 = vadd.f32 %v6506, %v6712
        %v6872 = vadd.f32 %v6507, %v6714
        %v6873 = vadd.f32 %v6508, %v6716
        %v6874 = vadd.f32 %v6509, %v6718
        %v6875 = vadd.f32 %v6510, %v6720
        %v6876 = vadd.f32 %v6511, %v6722
        %v6877 = vadd.f32 %v6512, %v6724
        %v6878 = vadd.f32 %v6513, %v6726
        %v6879 = vadd.f32 %v6514, %v6728
        %v6880 = vadd.f32 %v6515, %v6730
        %v6881 = vadd.f32 %v6516, %v6732
        %v6882 = vadd.f32 %v6517, %v6734
        %v6883 = vadd.f32 %v6518, %v6736
        %v6884 = vadd.f32 %v6519, %v6738
        %v6885 = vadd.f32 %v6520, %v6740
        %v6886 = vadd.f32 %v6521, %v6742
        %6887 = vst [vmem:[#allocation4] sm:$0xff] %v6815
        %6888 = vst [vmem:[#allocation4 + $0x8] sm:$0xff] %v6816
        %6889 = vst [vmem:[#allocation4 + $0x10] sm:$0xff] %v6817
        %6890 = vst [vmem:[#allocation4 + $0x18] sm:$0xff] %v6818
        %6891 = vst [vmem:[#allocation4 + $0x20] sm:$0xff] %v6819
        %6892 = vst [vmem:[#allocation4 + $0x28] sm:$0xff] %v6820
        %6893 = vst [vmem:[#allocation4 + $0x30] sm:$0xff] %v6821
        %6894 = vst [vmem:[#allocation4 + $0x38] sm:$0xff] %v6822
        %6895 = vst [vmem:[#allocation4 + $0x40] sm:$0xff] %v6823
        %6896 = vst [vmem:[#allocation4 + $0x48] sm:$0xff] %v6824
        %6897 = vst [vmem:[#allocation4 + $0x50] sm:$0xff] %v6825
        %6898 = vst [vmem:[#allocation4 + $0x58] sm:$0xff] %v6826
        %6899 = vst [vmem:[#allocation4 + $0x60] sm:$0xff] %v6827
        %6900 = vst [vmem:[#allocation4 + $0x68] sm:$0xff] %v6828
        %6901 = vst [vmem:[#allocation4 + $0x70] sm:$0xff] %v6829
        %6902 = vst [vmem:[#allocation4 + $0x78] sm:$0xff] %v6830
        %6903 = vst [vmem:[#allocation4 + $0x80] sm:$0xff] %v6831
        %6904 = vst [vmem:[#allocation4 + $0x88] sm:$0xff] %v6832
        %6905 = vst [vmem:[#allocation4 + $0x90] sm:$0xff] %v6833
        %6906 = vst [vmem:[#allocation4 + $0x98] sm:$0xff] %v6834
        %6907 = vst [vmem:[#allocation4 + $0xa0] sm:$0xff] %v6835
        %6908 = vst [vmem:[#allocation4 + $0xa8] sm:$0xff] %v6836
        %6909 = vst [vmem:[#allocation4 + $0xb0] sm:$0xff] %v6837
        %6910 = vst [vmem:[#allocation4 + $0xb8] sm:$0xff] %v6838
        %6911 = vst [vmem:[#allocation4 + $0xc0] sm:$0xff] %v6839
        %6912 = vst [vmem:[#allocation4 + $0xc8] sm:$0xff] %v6840
        %6913 = vst [vmem:[#allocation4 + $0xd0] sm:$0xff] %v6841
        %6914 = vst [vmem:[#allocation4 + $0xd8] sm:$0xff] %v6842
        %6915 = vst [vmem:[#allocation4 + $0xe0] sm:$0xff] %v6843
        %6916 = vst [vmem:[#allocation4 + $0xe8] sm:$0xff] %v6844
        %6917 = vst [vmem:[#allocation4 + $0xf0] sm:$0xff] %v6845
        %6918 = vst [vmem:[#allocation4 + $0xf8] sm:$0xff] %v6846
        %6919 = vst [vmem:[#allocation4 + $0x100] sm:$0xff] %v6847
        %6920 = vst [vmem:[#allocation4 + $0x108] sm:$0xff] %v6848
        %6921 = vst [vmem:[#allocation4 + $0x110] sm:$0xff] %v6849
        %6922 = vst [vmem:[#allocation4 + $0x118] sm:$0xff] %v6850
        %6923 = vst [vmem:[#allocation4 + $0x120] sm:$0xff] %v6851
        %6924 = vst [vmem:[#allocation4 + $0x128] sm:$0xff] %v6852
        %6925 = vst [vmem:[#allocation4 + $0x130] sm:$0xff] %v6853
        %6926 = vst [vmem:[#allocation4 + $0x138] sm:$0xff] %v6854
        %6927 = vst [vmem:[#allocation4 + $0x140] sm:$0xff] %v6855
        %6928 = vst [vmem:[#allocation4 + $0x148] sm:$0xff] %v6856
        %6929 = vst [vmem:[#allocation4 + $0x150] sm:$0xff] %v6857
        %6930 = vst [vmem:[#allocation4 + $0x158] sm:$0xff] %v6858
        %6931 = vst [vmem:[#allocation4 + $0x160] sm:$0xff] %v6859
        %6932 = vst [vmem:[#allocation4 + $0x168] sm:$0xff] %v6860
        %6933 = vst [vmem:[#allocation4 + $0x170] sm:$0xff] %v6861
        %6934 = vst [vmem:[#allocation4 + $0x178] sm:$0xff] %v6862
        %6935 = vst [vmem:[#allocation4 + $0x180] sm:$0xff] %v6863
        %6936 = vst [vmem:[#allocation4 + $0x188] sm:$0xff] %v6864
        %6937 = vst [vmem:[#allocation4 + $0x190] sm:$0xff] %v6865
        %6938 = vst [vmem:[#allocation4 + $0x198] sm:$0xff] %v6866
        %6939 = vst [vmem:[#allocation4 + $0x1a0] sm:$0xff] %v6867
        %6940 = vst [vmem:[#allocation4 + $0x1a8] sm:$0xff] %v6868
        %6941 = vst [vmem:[#allocation4 + $0x1b0] sm:$0xff] %v6869
        %6942 = vst [vmem:[#allocation4 + $0x1b8] sm:$0xff] %v6870
        %6943 = vst [vmem:[#allocation4 + $0x1c0] sm:$0xff] %v6871
        %6944 = vst [vmem:[#allocation4 + $0x1c8] sm:$0xff] %v6872
        %6945 = vst [vmem:[#allocation4 + $0x1d0] sm:$0xff] %v6873
        %6946 = vst [vmem:[#allocation4 + $0x1d8] sm:$0xff] %v6874
        %6947 = vst [vmem:[#allocation4 + $0x1e0] sm:$0xff] %v6875
        %6948 = vst [vmem:[#allocation4 + $0x1e8] sm:$0xff] %v6876
        %6949 = vst [vmem:[#allocation4 + $0x1f0] sm:$0xff] %v6877
        %6950 = vst [vmem:[#allocation4 + $0x1f8] sm:$0xff] %v6878
        %6951 = vst [vmem:[#allocation4 + $0x200] sm:$0xff] %v6879
        %6952 = vst [vmem:[#allocation4 + $0x208] sm:$0xff] %v6880
        %6953 = vst [vmem:[#allocation4 + $0x210] sm:$0xff] %v6881
        %6954 = vst [vmem:[#allocation4 + $0x218] sm:$0xff] %v6882
        %6955 = vst [vmem:[#allocation4 + $0x220] sm:$0xff] %v6883
        %6956 = vst [vmem:[#allocation4 + $0x228] sm:$0xff] %v6884
        %6957 = vst [vmem:[#allocation4 + $0x230] sm:$0xff] %v6885
        %6958 = vst [vmem:[#allocation4 + $0x238] sm:$0xff] %v6886
        %v6959 = vld [vmem:[#allocation4] sm:$0xff]
        %v6960 = vld [vmem:[#allocation4 + $0x8] sm:$0xff]
        %v6961 = vld [vmem:[#allocation4 + $0x10] sm:$0xff]
        %v6962 = vld [vmem:[#allocation4 + $0x18] sm:$0xff]
        %v6963 = vld [vmem:[#allocation4 + $0x20] sm:$0xff]
        %v6964 = vld [vmem:[#allocation4 + $0x28] sm:$0xff]
        %v6965 = vld [vmem:[#allocation4 + $0x30] sm:$0xff]
        %v6966 = vld [vmem:[#allocation4 + $0x38] sm:$0xff]
        %v6967 = vld [vmem:[#allocation4 + $0x40] sm:$0xff]
        %v6968 = vld [vmem:[#allocation4 + $0x48] sm:$0xff]
        %v6969 = vld [vmem:[#allocation4 + $0x50] sm:$0xff]
        %v6970 = vld [vmem:[#allocation4 + $0x58] sm:$0xff]
        %v6971 = vld [vmem:[#allocation4 + $0x60] sm:$0xff]
        %v6972 = vld [vmem:[#allocation4 + $0x68] sm:$0xff]
        %v6973 = vld [vmem:[#allocation4 + $0x70] sm:$0xff]
        %v6974 = vld [vmem:[#allocation4 + $0x78] sm:$0xff]
        %v6975 = vld [vmem:[#allocation4 + $0x80] sm:$0xff]
        %v6976 = vld [vmem:[#allocation4 + $0x88] sm:$0xff]
        %v6977 = vld [vmem:[#allocation4 + $0x90] sm:$0xff]
        %v6978 = vld [vmem:[#allocation4 + $0x98] sm:$0xff]
        %v6979 = vld [vmem:[#allocation4 + $0xa0] sm:$0xff]
        %v6980 = vld [vmem:[#allocation4 + $0xa8] sm:$0xff]
        %v6981 = vld [vmem:[#allocation4 + $0xb0] sm:$0xff]
        %v6982 = vld [vmem:[#allocation4 + $0xb8] sm:$0xff]
        %v6983 = vld [vmem:[#allocation4 + $0xc0] sm:$0xff]
        %v6984 = vld [vmem:[#allocation4 + $0xc8] sm:$0xff]
        %v6985 = vld [vmem:[#allocation4 + $0xd0] sm:$0xff]
        %v6986 = vld [vmem:[#allocation4 + $0xd8] sm:$0xff]
        %v6987 = vld [vmem:[#allocation4 + $0xe0] sm:$0xff]
        %v6988 = vld [vmem:[#allocation4 + $0xe8] sm:$0xff]
        %v6989 = vld [vmem:[#allocation4 + $0xf0] sm:$0xff]
        %v6990 = vld [vmem:[#allocation4 + $0xf8] sm:$0xff]
        %v6991 = vld [vmem:[#allocation4 + $0x100] sm:$0xff]
        %v6992 = vld [vmem:[#allocation4 + $0x108] sm:$0xff]
        %v6993 = vld [vmem:[#allocation4 + $0x110] sm:$0xff]
        %v6994 = vld [vmem:[#allocation4 + $0x118] sm:$0xff]
        %v6995 = vld [vmem:[#allocation4 + $0x120] sm:$0xff]
        %v6996 = vld [vmem:[#allocation4 + $0x128] sm:$0xff]
        %v6997 = vld [vmem:[#allocation4 + $0x130] sm:$0xff]
        %v6998 = vld [vmem:[#allocation4 + $0x138] sm:$0xff]
        %v6999 = vld [vmem:[#allocation4 + $0x140] sm:$0xff]
        %v7000 = vld [vmem:[#allocation4 + $0x148] sm:$0xff]
        %v7001 = vld [vmem:[#allocation4 + $0x150] sm:$0xff]
        %v7002 = vld [vmem:[#allocation4 + $0x158] sm:$0xff]
        %v7003 = vld [vmem:[#allocation4 + $0x160] sm:$0xff]
        %v7004 = vld [vmem:[#allocation4 + $0x168] sm:$0xff]
        %v7005 = vld [vmem:[#allocation4 + $0x170] sm:$0xff]
        %v7006 = vld [vmem:[#allocation4 + $0x178] sm:$0xff]
        %v7007 = vld [vmem:[#allocation4 + $0x180] sm:$0xff]
        %v7008 = vld [vmem:[#allocation4 + $0x188] sm:$0xff]
        %v7009 = vld [vmem:[#allocation4 + $0x190] sm:$0xff]
        %v7010 = vld [vmem:[#allocation4 + $0x198] sm:$0xff]
        %v7011 = vld [vmem:[#allocation4 + $0x1a0] sm:$0xff]
        %v7012 = vld [vmem:[#allocation4 + $0x1a8] sm:$0xff]
        %v7013 = vld [vmem:[#allocation4 + $0x1b0] sm:$0xff]
        %v7014 = vld [vmem:[#allocation4 + $0x1b8] sm:$0xff]
        %v7015 = vld [vmem:[#allocation4 + $0x1c0] sm:$0xff]
        %v7016 = vld [vmem:[#allocation4 + $0x1c8] sm:$0xff]
        %v7017 = vld [vmem:[#allocation4 + $0x1d0] sm:$0xff]
        %v7018 = vld [vmem:[#allocation4 + $0x1d8] sm:$0xff]
        %v7019 = vld [vmem:[#allocation4 + $0x1e0] sm:$0xff]
        %v7020 = vld [vmem:[#allocation4 + $0x1e8] sm:$0xff]
        %v7021 = vld [vmem:[#allocation4 + $0x1f0] sm:$0xff]
        %v7022 = vld [vmem:[#allocation4 + $0x1f8] sm:$0xff]
        %v7023 = vld [vmem:[#allocation4 + $0x200] sm:$0xff]
        %v7024 = vld [vmem:[#allocation4 + $0x208] sm:$0xff]
        %v7025 = vld [vmem:[#allocation4 + $0x210] sm:$0xff]
        %v7026 = vld [vmem:[#allocation4 + $0x218] sm:$0xff]
        %v7027 = vld [vmem:[#allocation4 + $0x220] sm:$0xff]
        %v7028 = vld [vmem:[#allocation4 + $0x228] sm:$0xff]
        %v7029 = vld [vmem:[#allocation4 + $0x230] sm:$0xff]
        %v7030 = vld [vmem:[#allocation4 + $0x238] sm:$0xff]
        %v7103 = vrot.slane %v6960, 6
        %v7104 = vrot.slane %v6962, 6
        %v7105 = vrot.slane %v6964, 6
        %v7106 = vrot.slane %v6966, 6
        %v7107 = vrot.slane %v6968, 6
        %v7108 = vrot.slane %v6970, 6
        %v7109 = vrot.slane %v6972, 6
        %v7110 = vrot.slane %v6974, 6
        %v7111 = vrot.slane %v6976, 6
        %v7112 = vrot.slane %v6978, 6
        %v7113 = vrot.slane %v6980, 6
        %v7114 = vrot.slane %v6982, 6
        %v7115 = vrot.slane %v6984, 6
        %v7116 = vrot.slane %v6986, 6
        %v7117 = vrot.slane %v6988, 6
        %v7118 = vrot.slane %v6990, 6
        %v7119 = vrot.slane %v6992, 6
        %v7120 = vrot.slane %v6994, 6
        %v7121 = vrot.slane %v6996, 6
        %v7122 = vrot.slane %v6998, 6
        %v7123 = vrot.slane %v7000, 6
        %v7124 = vrot.slane %v7002, 6
        %v7125 = vrot.slane %v7004, 6
        %v7126 = vrot.slane %v7006, 6
        %v7127 = vrot.slane %v7008, 6
        %v7128 = vrot.slane %v7010, 6
        %v7129 = vrot.slane %v7012, 6
        %v7130 = vrot.slane %v7014, 6
        %v7131 = vrot.slane %v7016, 6
        %v7132 = vrot.slane %v7018, 6
        %v7133 = vrot.slane %v7020, 6
        %v7134 = vrot.slane %v7022, 6
        %v7135 = vrot.slane %v7024, 6
        %v7136 = vrot.slane %v7026, 6
        %v7137 = vrot.slane %v7028, 6
        %v7138 = vrot.slane %v7030, 6
        %vm7139 = vcmask 1041408
        %v7140 = vsel %vm7139, %v6959, %v7103
        %vm7141 = vcmask 1043458
        %v7142 = vsel %vm7141, %v6959, %v7103
        %v7143 = vrot.slane %v7142, 2
        %vm7144 = vcmask 1045508
        %v7145 = vsel %vm7144, %v6959, %v7103
        %v7146 = vrot.slane %v7145, 4
        %v7147 = vsel %vm4551, %v7103, %v6959
        %v7148 = vrot.slane %v7147, 6
        %v7149 = vsel %vm7139, %v6961, %v7104
        %v7150 = vsel %vm7141, %v6961, %v7104
        %v7151 = vrot.slane %v7150, 2
        %v7152 = vsel %vm7144, %v6961, %v7104
        %v7153 = vrot.slane %v7152, 4
        %v7154 = vsel %vm4551, %v7104, %v6961
        %v7155 = vrot.slane %v7154, 6
        %v7156 = vsel %vm7141, %v6963, %v7105
        %v7157 = vrot.slane %v7156, 2
        %v7158 = vsel %vm7144, %v6963, %v7105
        %v7159 = vrot.slane %v7158, 4
        %v7160 = vsel %vm4551, %v7105, %v6963
        %v7161 = vrot.slane %v7160, 6
        %v7162 = vsel %vm7139, %v6965, %v7106
        %v7163 = vsel %vm7141, %v6965, %v7106
        %v7164 = vrot.slane %v7163, 2
        %v7165 = vsel %vm7144, %v6965, %v7106
        %v7166 = vrot.slane %v7165, 4
        %v7167 = vsel %vm4551, %v7106, %v6965
        %v7168 = vrot.slane %v7167, 6
        %v7169 = vsel %vm7139, %v6967, %v7107
        %v7170 = vsel %vm7144, %v6967, %v7107
        %v7171 = vrot.slane %v7170, 4
        %v7172 = vsel %vm4551, %v7107, %v6967
        %v7173 = vrot.slane %v7172, 6
        %v7174 = vsel %vm7139, %v6969, %v7108
        %v7175 = vsel %vm7141, %v6969, %v7108
        %v7176 = vrot.slane %v7175, 2
        %v7177 = vsel %vm7144, %v6969, %v7108
        %v7178 = vrot.slane %v7177, 4
        %v7179 = vsel %vm4551, %v7108, %v6969
        %v7180 = vrot.slane %v7179, 6
        %v7181 = vsel %vm7139, %v6971, %v7109
        %v7182 = vsel %vm7141, %v6971, %v7109
        %v7183 = vrot.slane %v7182, 2
        %v7184 = vsel %vm4551, %v7109, %v6971
        %v7185 = vrot.slane %v7184, 6
        %v7186 = vsel %vm7139, %v6973, %v7110
        %v7187 = vsel %vm7141, %v6973, %v7110
        %v7188 = vrot.slane %v7187, 2
        %v7189 = vsel %vm7144, %v6973, %v7110
        %v7190 = vrot.slane %v7189, 4
        %v7191 = vsel %vm4551, %v7110, %v6973
        %v7192 = vrot.slane %v7191, 6
        %v7193 = vsel %vm7139, %v6975, %v7111
        %v7194 = vsel %vm7141, %v6975, %v7111
        %v7195 = vrot.slane %v7194, 2
        %v7196 = vsel %vm7144, %v6975, %v7111
        %v7197 = vrot.slane %v7196, 4
        %v7198 = vsel %vm7139, %v6977, %v7112
        %v7199 = vsel %vm7141, %v6977, %v7112
        %v7200 = vrot.slane %v7199, 2
        %v7201 = vsel %vm7144, %v6977, %v7112
        %v7202 = vrot.slane %v7201, 4
        %v7203 = vsel %vm4551, %v7112, %v6977
        %v7204 = vrot.slane %v7203, 6
        %v7205 = vsel %vm7139, %v6979, %v7113
        %v7206 = vsel %vm7141, %v6979, %v7113
        %v7207 = vrot.slane %v7206, 2
        %v7208 = vsel %vm7144, %v6979, %v7113
        %v7209 = vrot.slane %v7208, 4
        %v7210 = vsel %vm4551, %v7113, %v6979
        %v7211 = vrot.slane %v7210, 6
        %v7212 = vsel %vm7141, %v6981, %v7114
        %v7213 = vrot.slane %v7212, 2
        %v7214 = vsel %vm7144, %v6981, %v7114
        %v7215 = vrot.slane %v7214, 4
        %v7216 = vsel %vm4551, %v7114, %v6981
        %v7217 = vrot.slane %v7216, 6
        %v7218 = vsel %vm7139, %v6983, %v7115
        %v7219 = vsel %vm7141, %v6983, %v7115
        %v7220 = vrot.slane %v7219, 2
        %v7221 = vsel %vm7144, %v6983, %v7115
        %v7222 = vrot.slane %v7221, 4
        %v7223 = vsel %vm4551, %v7115, %v6983
        %v7224 = vrot.slane %v7223, 6
        %v7225 = vsel %vm7139, %v6985, %v7116
        %v7226 = vsel %vm7144, %v6985, %v7116
        %v7227 = vrot.slane %v7226, 4
        %v7228 = vsel %vm4551, %v7116, %v6985
        %v7229 = vrot.slane %v7228, 6
        %v7230 = vsel %vm7139, %v6987, %v7117
        %v7231 = vsel %vm7141, %v6987, %v7117
        %v7232 = vrot.slane %v7231, 2
        %v7233 = vsel %vm7144, %v6987, %v7117
        %v7234 = vrot.slane %v7233, 4
        %v7235 = vsel %vm4551, %v7117, %v6987
        %v7236 = vrot.slane %v7235, 6
        %v7237 = vsel %vm7139, %v6989, %v7118
        %v7238 = vsel %vm7141, %v6989, %v7118
        %v7239 = vrot.slane %v7238, 2
        %v7240 = vsel %vm4551, %v7118, %v6989
        %v7241 = vrot.slane %v7240, 6
        %v7242 = vsel %vm7139, %v6991, %v7119
        %v7243 = vsel %vm7141, %v6991, %v7119
        %v7244 = vrot.slane %v7243, 2
        %v7245 = vsel %vm7144, %v6991, %v7119
        %v7246 = vrot.slane %v7245, 4
        %v7247 = vsel %vm4551, %v7119, %v6991
        %v7248 = vrot.slane %v7247, 6
        %v7249 = vsel %vm7139, %v6993, %v7120
        %v7250 = vsel %vm7141, %v6993, %v7120
        %v7251 = vrot.slane %v7250, 2
        %v7252 = vsel %vm7144, %v6993, %v7120
        %v7253 = vrot.slane %v7252, 4
        %v7254 = vsel %vm7139, %v6995, %v7121
        %v7255 = vsel %vm7141, %v6995, %v7121
        %v7256 = vrot.slane %v7255, 2
        %v7257 = vsel %vm7144, %v6995, %v7121
        %v7258 = vrot.slane %v7257, 4
        %v7259 = vsel %vm4551, %v7121, %v6995
        %v7260 = vrot.slane %v7259, 6
        %v7261 = vsel %vm7139, %v6997, %v7122
        %v7262 = vsel %vm7141, %v6997, %v7122
        %v7263 = vrot.slane %v7262, 2
        %v7264 = vsel %vm7144, %v6997, %v7122
        %v7265 = vrot.slane %v7264, 4
        %v7266 = vsel %vm4551, %v7122, %v6997
        %v7267 = vrot.slane %v7266, 6
        %v7268 = vsel %vm7141, %v6999, %v7123
        %v7269 = vrot.slane %v7268, 2
        %v7270 = vsel %vm7144, %v6999, %v7123
        %v7271 = vrot.slane %v7270, 4
        %v7272 = vsel %vm4551, %v7123, %v6999
        %v7273 = vrot.slane %v7272, 6
        %v7274 = vsel %vm7139, %v7001, %v7124
        %v7275 = vsel %vm7141, %v7001, %v7124
        %v7276 = vrot.slane %v7275, 2
        %v7277 = vsel %vm7144, %v7001, %v7124
        %v7278 = vrot.slane %v7277, 4
        %v7279 = vsel %vm4551, %v7124, %v7001
        %v7280 = vrot.slane %v7279, 6
        %v7281 = vsel %vm7139, %v7003, %v7125
        %v7282 = vsel %vm7144, %v7003, %v7125
        %v7283 = vrot.slane %v7282, 4
        %v7284 = vsel %vm4551, %v7125, %v7003
        %v7285 = vrot.slane %v7284, 6
        %v7286 = vsel %vm7139, %v7005, %v7126
        %v7287 = vsel %vm7141, %v7005, %v7126
        %v7288 = vrot.slane %v7287, 2
        %v7289 = vsel %vm7144, %v7005, %v7126
        %v7290 = vrot.slane %v7289, 4
        %v7291 = vsel %vm4551, %v7126, %v7005
        %v7292 = vrot.slane %v7291, 6
        %v7293 = vsel %vm7139, %v7007, %v7127
        %v7294 = vsel %vm7141, %v7007, %v7127
        %v7295 = vrot.slane %v7294, 2
        %v7296 = vsel %vm4551, %v7127, %v7007
        %v7297 = vrot.slane %v7296, 6
        %v7298 = vsel %vm7139, %v7009, %v7128
        %v7299 = vsel %vm7141, %v7009, %v7128
        %v7300 = vrot.slane %v7299, 2
        %v7301 = vsel %vm7144, %v7009, %v7128
        %v7302 = vrot.slane %v7301, 4
        %v7303 = vsel %vm4551, %v7128, %v7009
        %v7304 = vrot.slane %v7303, 6
        %v7305 = vsel %vm7139, %v7011, %v7129
        %v7306 = vsel %vm7141, %v7011, %v7129
        %v7307 = vrot.slane %v7306, 2
        %v7308 = vsel %vm7144, %v7011, %v7129
        %v7309 = vrot.slane %v7308, 4
        %v7310 = vsel %vm7139, %v7013, %v7130
        %v7311 = vsel %vm7141, %v7013, %v7130
        %v7312 = vrot.slane %v7311, 2
        %v7313 = vsel %vm7144, %v7013, %v7130
        %v7314 = vrot.slane %v7313, 4
        %v7315 = vsel %vm4551, %v7130, %v7013
        %v7316 = vrot.slane %v7315, 6
        %v7317 = vsel %vm7139, %v7015, %v7131
        %v7318 = vsel %vm7141, %v7015, %v7131
        %v7319 = vrot.slane %v7318, 2
        %v7320 = vsel %vm7144, %v7015, %v7131
        %v7321 = vrot.slane %v7320, 4
        %v7322 = vsel %vm4551, %v7131, %v7015
        %v7323 = vrot.slane %v7322, 6
        %v7324 = vsel %vm7141, %v7017, %v7132
        %v7325 = vrot.slane %v7324, 2
        %v7326 = vsel %vm7144, %v7017, %v7132
        %v7327 = vrot.slane %v7326, 4
        %v7328 = vsel %vm4551, %v7132, %v7017
        %v7329 = vrot.slane %v7328, 6
        %v7330 = vsel %vm7139, %v7019, %v7133
        %v7331 = vsel %vm7141, %v7019, %v7133
        %v7332 = vrot.slane %v7331, 2
        %v7333 = vsel %vm7144, %v7019, %v7133
        %v7334 = vrot.slane %v7333, 4
        %v7335 = vsel %vm4551, %v7133, %v7019
        %v7336 = vrot.slane %v7335, 6
        %v7337 = vsel %vm7139, %v7021, %v7134
        %v7338 = vsel %vm7144, %v7021, %v7134
        %v7339 = vrot.slane %v7338, 4
        %v7340 = vsel %vm4551, %v7134, %v7021
        %v7341 = vrot.slane %v7340, 6
        %v7342 = vsel %vm7139, %v7023, %v7135
        %v7343 = vsel %vm7141, %v7023, %v7135
        %v7344 = vrot.slane %v7343, 2
        %v7345 = vsel %vm7144, %v7023, %v7135
        %v7346 = vrot.slane %v7345, 4
        %v7347 = vsel %vm4551, %v7135, %v7023
        %v7348 = vrot.slane %v7347, 6
        %v7349 = vsel %vm7139, %v7025, %v7136
        %v7350 = vsel %vm7141, %v7025, %v7136
        %v7351 = vrot.slane %v7350, 2
        %v7352 = vsel %vm4551, %v7136, %v7025
        %v7353 = vrot.slane %v7352, 6
        %v7354 = vsel %vm7139, %v7027, %v7137
        %v7355 = vsel %vm7141, %v7027, %v7137
        %v7356 = vrot.slane %v7355, 2
        %v7357 = vsel %vm7144, %v7027, %v7137
        %v7358 = vrot.slane %v7357, 4
        %v7359 = vsel %vm4551, %v7137, %v7027
        %v7360 = vrot.slane %v7359, 6
        %v7361 = vsel %vm7139, %v7029, %v7138
        %v7362 = vsel %vm7141, %v7029, %v7138
        %v7363 = vrot.slane %v7362, 2
        %v7364 = vsel %vm7144, %v7029, %v7138
        %v7365 = vrot.slane %v7364, 4
        %v7494 = vmul.f32 %v7140, %v7140
        %v7495 = vmul.f32 %v7143, %v7143
        %v7496 = vmul.f32 %v7146, %v7146
        %v7497 = vmul.f32 %v7148, %v7148
        %v7498 = vmul.f32 %v7149, %v7149
        %v7499 = vmul.f32 %v7151, %v7151
        %v7500 = vmul.f32 %v7153, %v7153
        %v7501 = vmul.f32 %v7155, %v7155
        %v7502 = vmul.f32 %v7157, %v7157
        %v7503 = vmul.f32 %v7159, %v7159
        %v7504 = vmul.f32 %v7161, %v7161
        %v7505 = vmul.f32 %v7162, %v7162
        %v7506 = vmul.f32 %v7164, %v7164
        %v7507 = vmul.f32 %v7166, %v7166
        %v7508 = vmul.f32 %v7168, %v7168
        %v7509 = vmul.f32 %v7169, %v7169
        %v7510 = vmul.f32 %v7171, %v7171
        %v7511 = vmul.f32 %v7173, %v7173
        %v7512 = vmul.f32 %v7174, %v7174
        %v7513 = vmul.f32 %v7176, %v7176
        %v7514 = vmul.f32 %v7178, %v7178
        %v7515 = vmul.f32 %v7180, %v7180
        %v7516 = vmul.f32 %v7181, %v7181
        %v7517 = vmul.f32 %v7183, %v7183
        %v7518 = vmul.f32 %v7185, %v7185
        %v7519 = vmul.f32 %v7186, %v7186
        %v7520 = vmul.f32 %v7188, %v7188
        %v7521 = vmul.f32 %v7190, %v7190
        %v7522 = vmul.f32 %v7192, %v7192
        %v7523 = vmul.f32 %v7193, %v7193
        %v7524 = vmul.f32 %v7195, %v7195
        %v7525 = vmul.f32 %v7197, %v7197
        %v7526 = vmul.f32 %v7198, %v7198
        %v7527 = vmul.f32 %v7200, %v7200
        %v7528 = vmul.f32 %v7202, %v7202
        %v7529 = vmul.f32 %v7204, %v7204
        %v7530 = vmul.f32 %v7205, %v7205
        %v7531 = vmul.f32 %v7207, %v7207
        %v7532 = vmul.f32 %v7209, %v7209
        %v7533 = vmul.f32 %v7211, %v7211
        %v7534 = vmul.f32 %v7213, %v7213
        %v7535 = vmul.f32 %v7215, %v7215
        %v7536 = vmul.f32 %v7217, %v7217
        %v7537 = vmul.f32 %v7218, %v7218
        %v7538 = vmul.f32 %v7220, %v7220
        %v7539 = vmul.f32 %v7222, %v7222
        %v7540 = vmul.f32 %v7224, %v7224
        %v7541 = vmul.f32 %v7225, %v7225
        %v7542 = vmul.f32 %v7227, %v7227
        %v7543 = vmul.f32 %v7229, %v7229
        %v7544 = vmul.f32 %v7230, %v7230
        %v7545 = vmul.f32 %v7232, %v7232
        %v7546 = vmul.f32 %v7234, %v7234
        %v7547 = vmul.f32 %v7236, %v7236
        %v7548 = vmul.f32 %v7237, %v7237
        %v7549 = vmul.f32 %v7239, %v7239
        %v7550 = vmul.f32 %v7241, %v7241
        %v7551 = vmul.f32 %v7242, %v7242
        %v7552 = vmul.f32 %v7244, %v7244
        %v7553 = vmul.f32 %v7246, %v7246
        %v7554 = vmul.f32 %v7248, %v7248
        %v7555 = vmul.f32 %v7249, %v7249
        %v7556 = vmul.f32 %v7251, %v7251
        %v7557 = vmul.f32 %v7253, %v7253
        %v7558 = vmul.f32 %v7254, %v7254
        %v7559 = vmul.f32 %v7256, %v7256
        %v7560 = vmul.f32 %v7258, %v7258
        %v7561 = vmul.f32 %v7260, %v7260
        %v7562 = vmul.f32 %v7261, %v7261
        %v7563 = vmul.f32 %v7263, %v7263
        %v7564 = vmul.f32 %v7265, %v7265
        %v7565 = vmul.f32 %v7267, %v7267
        %v7566 = vmul.f32 %v7269, %v7269
        %v7567 = vmul.f32 %v7271, %v7271
        %v7568 = vmul.f32 %v7273, %v7273
        %v7569 = vmul.f32 %v7274, %v7274
        %v7570 = vmul.f32 %v7276, %v7276
        %v7571 = vmul.f32 %v7278, %v7278
        %v7572 = vmul.f32 %v7280, %v7280
        %v7573 = vmul.f32 %v7281, %v7281
        %v7574 = vmul.f32 %v7283, %v7283
        %v7575 = vmul.f32 %v7285, %v7285
        %v7576 = vmul.f32 %v7286, %v7286
        %v7577 = vmul.f32 %v7288, %v7288
        %v7578 = vmul.f32 %v7290, %v7290
        %v7579 = vmul.f32 %v7292, %v7292
        %v7580 = vmul.f32 %v7293, %v7293
        %v7581 = vmul.f32 %v7295, %v7295
        %v7582 = vmul.f32 %v7297, %v7297
        %v7583 = vmul.f32 %v7298, %v7298
        %v7584 = vmul.f32 %v7300, %v7300
        %v7585 = vmul.f32 %v7302, %v7302
        %v7586 = vmul.f32 %v7304, %v7304
        %v7587 = vmul.f32 %v7305, %v7305
        %v7588 = vmul.f32 %v7307, %v7307
        %v7589 = vmul.f32 %v7309, %v7309
        %v7590 = vmul.f32 %v7310, %v7310
        %v7591 = vmul.f32 %v7312, %v7312
        %v7592 = vmul.f32 %v7314, %v7314
        %v7593 = vmul.f32 %v7316, %v7316
        %v7594 = vmul.f32 %v7317, %v7317
        %v7595 = vmul.f32 %v7319, %v7319
        %v7596 = vmul.f32 %v7321, %v7321
        %v7597 = vmul.f32 %v7323, %v7323
        %v7598 = vmul.f32 %v7325, %v7325
        %v7599 = vmul.f32 %v7327, %v7327
        %v7600 = vmul.f32 %v7329, %v7329
        %v7601 = vmul.f32 %v7330, %v7330
        %v7602 = vmul.f32 %v7332, %v7332
        %v7603 = vmul.f32 %v7334, %v7334
        %v7604 = vmul.f32 %v7336, %v7336
        %v7605 = vmul.f32 %v7337, %v7337
        %v7606 = vmul.f32 %v7339, %v7339
        %v7607 = vmul.f32 %v7341, %v7341
        %v7608 = vmul.f32 %v7342, %v7342
        %v7609 = vmul.f32 %v7344, %v7344
        %v7610 = vmul.f32 %v7346, %v7346
        %v7611 = vmul.f32 %v7348, %v7348
        %v7612 = vmul.f32 %v7349, %v7349
        %v7613 = vmul.f32 %v7351, %v7351
        %v7614 = vmul.f32 %v7353, %v7353
        %v7615 = vmul.f32 %v7354, %v7354
        %v7616 = vmul.f32 %v7356, %v7356
        %v7617 = vmul.f32 %v7358, %v7358
        %v7618 = vmul.f32 %v7360, %v7360
        %v7619 = vmul.f32 %v7361, %v7361
        %v7620 = vmul.f32 %v7363, %v7363
        %v7621 = vmul.f32 %v7365, %v7365
        %7750 = vst [vmem:[#allocation1] ss:$4 sm:$0xff] %v7494
        %s7751 = scalar_lea.vmem [#allocation1], 1
        %7752 = vst [vmem:[%s7751] ss:$4 sm:$0xff] %v7495
        %s7753 = scalar_lea.vmem [#allocation1], 2
        %7754 = vst [vmem:[%s7753] ss:$4 sm:$0xff] %v7496
        %s7755 = scalar_lea.vmem [#allocation1], 3
        %7756 = vst [vmem:[%s7755] ss:$4 sm:$0xff] %v7497
        %s7757 = scalar_lea.vmem [#allocation1], 32
        %7758 = vst [vmem:[%s7757] ss:$4 sm:$0xff] %v7498
        %s7759 = scalar_lea.vmem [#allocation1], 33
        %7760 = vst [vmem:[%s7759] ss:$4 sm:$0xff] %v7499
        %s7761 = scalar_lea.vmem [#allocation1], 34
        %7762 = vst [vmem:[%s7761] ss:$4 sm:$0xff] %v7500
        %s7763 = scalar_lea.vmem [#allocation1], 35
        %7764 = vst [vmem:[%s7763] ss:$4 sm:$0xff] %v7501
        %v7765 = vld.sshfl [vmem:[#allocation1] sm:$0xff pattern:$0x73625140]
        %v7766 = vld.sshfl [vmem:[#allocation1 + $0x8] sm:$0xff pattern:$0x73625140]
        %v7767 = vld.sshfl [vmem:[#allocation1 + $0x20] sm:$0xff pattern:$0x73625140]
        %v7768 = vld.sshfl [vmem:[#allocation1 + $0x28] sm:$0xff pattern:$0x73625140]
        %7769 = vst [vmem:[#allocation1] ss:$4 sm:$0xff] %v7502
        %7770 = vst [vmem:[%s7751] ss:$4 sm:$0xff] %v7503
        %7771 = vst [vmem:[%s7753] ss:$4 sm:$0xff] %v7504
        %7772 = vst [vmem:[%s7755] ss:$4 sm:$0xff] %v7505
        %7773 = vst [vmem:[%s7757] ss:$4 sm:$0xff] %v7506
        %7774 = vst [vmem:[%s7759] ss:$4 sm:$0xff] %v7507
        %7775 = vst [vmem:[%s7761] ss:$4 sm:$0xff] %v7508
        %7776 = vst [vmem:[%s7763] ss:$4 sm:$0xff] %v7509
        %v7777 = vld.sshfl [vmem:[#allocation1] sm:$0xff pattern:$0x73625140]
        %v7778 = vld.sshfl [vmem:[#allocation1 + $0x8] sm:$0xff pattern:$0x73625140]
        %v7779 = vld.sshfl [vmem:[#allocation1 + $0x20] sm:$0xff pattern:$0x73625140]
        %v7780 = vld.sshfl [vmem:[#allocation1 + $0x28] sm:$0xff pattern:$0x73625140]
        %7781 = vst [vmem:[#allocation1] ss:$4 sm:$0xff] %v7510
        %7782 = vst [vmem:[%s7751] ss:$4 sm:$0xff] %v7511
        %7783 = vst [vmem:[%s7753] ss:$4 sm:$0xff] %v7512
        %7784 = vst [vmem:[%s7755] ss:$4 sm:$0xff] %v7513
        %7785 = vst [vmem:[%s7757] ss:$4 sm:$0xff] %v7514
        %7786 = vst [vmem:[%s7759] ss:$4 sm:$0xff] %v7515
        %7787 = vst [vmem:[%s7761] ss:$4 sm:$0xff] %v7516
        %7788 = vst [vmem:[%s7763] ss:$4 sm:$0xff] %v7517
        %v7789 = vld.sshfl [vmem:[#allocation1] sm:$0xff pattern:$0x73625140]
        %v7790 = vld.sshfl [vmem:[#allocation1 + $0x8] sm:$0xff pattern:$0x73625140]
        %v7791 = vld.sshfl [vmem:[#allocation1 + $0x20] sm:$0xff pattern:$0x73625140]
        %v7792 = vld.sshfl [vmem:[#allocation1 + $0x28] sm:$0xff pattern:$0x73625140]
        %7793 = vst [vmem:[#allocation1] ss:$4 sm:$0xff] %v7518
        %7794 = vst [vmem:[%s7751] ss:$4 sm:$0xff] %v7519
        %7795 = vst [vmem:[%s7753] ss:$4 sm:$0xff] %v7520
        %7796 = vst [vmem:[%s7755] ss:$4 sm:$0xff] %v7521
        %7797 = vst [vmem:[%s7757] ss:$4 sm:$0xff] %v7522
        %7798 = vst [vmem:[%s7759] ss:$4 sm:$0xff] %v7523
        %7799 = vst [vmem:[%s7761] ss:$4 sm:$0xff] %v7524
        %7800 = vst [vmem:[%s7763] ss:$4 sm:$0xff] %v7525
        %v7801 = vld.sshfl [vmem:[#allocation1] sm:$0xff pattern:$0x73625140]
        %v7802 = vld.sshfl [vmem:[#allocation1 + $0x8] sm:$0xff pattern:$0x73625140]
        %v7803 = vld.sshfl [vmem:[#allocation1 + $0x20] sm:$0xff pattern:$0x73625140]
        %v7804 = vld.sshfl [vmem:[#allocation1 + $0x28] sm:$0xff pattern:$0x73625140]
        %7805 = vst [vmem:[#allocation1] ss:$4 sm:$0xff] %v7526
        %7806 = vst [vmem:[%s7751] ss:$4 sm:$0xff] %v7527
        %7807 = vst [vmem:[%s7753] ss:$4 sm:$0xff] %v7528
        %7808 = vst [vmem:[%s7755] ss:$4 sm:$0xff] %v7529
        %7809 = vst [vmem:[%s7757] ss:$4 sm:$0xff] %v7530
        %7810 = vst [vmem:[%s7759] ss:$4 sm:$0xff] %v7531
        %7811 = vst [vmem:[%s7761] ss:$4 sm:$0xff] %v7532
        %7812 = vst [vmem:[%s7763] ss:$4 sm:$0xff] %v7533
        %v7813 = vld.sshfl [vmem:[#allocation1] sm:$0xff pattern:$0x73625140]
        %v7814 = vld.sshfl [vmem:[#allocation1 + $0x8] sm:$0xff pattern:$0x73625140]
        %v7815 = vld.sshfl [vmem:[#allocation1 + $0x20] sm:$0xff pattern:$0x73625140]
        %v7816 = vld.sshfl [vmem:[#allocation1 + $0x28] sm:$0xff pattern:$0x73625140]
        %7817 = vst [vmem:[#allocation1] ss:$4 sm:$0xff] %v7534
        %7818 = vst [vmem:[%s7751] ss:$4 sm:$0xff] %v7535
        %7819 = vst [vmem:[%s7753] ss:$4 sm:$0xff] %v7536
        %7820 = vst [vmem:[%s7755] ss:$4 sm:$0xff] %v7537
        %7821 = vst [vmem:[%s7757] ss:$4 sm:$0xff] %v7538
        %7822 = vst [vmem:[%s7759] ss:$4 sm:$0xff] %v7539
        %7823 = vst [vmem:[%s7761] ss:$4 sm:$0xff] %v7540
        %7824 = vst [vmem:[%s7763] ss:$4 sm:$0xff] %v7541
        %v7825 = vld.sshfl [vmem:[#allocation1] sm:$0xff pattern:$0x73625140]
        %v7826 = vld.sshfl [vmem:[#allocation1 + $0x8] sm:$0xff pattern:$0x73625140]
        %v7827 = vld.sshfl [vmem:[#allocation1 + $0x20] sm:$0xff pattern:$0x73625140]
        %v7828 = vld.sshfl [vmem:[#allocation1 + $0x28] sm:$0xff pattern:$0x73625140]
        %7829 = vst [vmem:[#allocation1] ss:$4 sm:$0xff] %v7542
        %7830 = vst [vmem:[%s7751] ss:$4 sm:$0xff] %v7543
        %7831 = vst [vmem:[%s7753] ss:$4 sm:$0xff] %v7544
        %7832 = vst [vmem:[%s7755] ss:$4 sm:$0xff] %v7545
        %7833 = vst [vmem:[%s7757] ss:$4 sm:$0xff] %v7546
        %7834 = vst [vmem:[%s7759] ss:$4 sm:$0xff] %v7547
        %7835 = vst [vmem:[%s7761] ss:$4 sm:$0xff] %v7548
        %7836 = vst [vmem:[%s7763] ss:$4 sm:$0xff] %v7549
        %v7837 = vld.sshfl [vmem:[#allocation1] sm:$0xff pattern:$0x73625140]
        %v7838 = vld.sshfl [vmem:[#allocation1 + $0x8] sm:$0xff pattern:$0x73625140]
        %v7839 = vld.sshfl [vmem:[#allocation1 + $0x20] sm:$0xff pattern:$0x73625140]
        %v7840 = vld.sshfl [vmem:[#allocation1 + $0x28] sm:$0xff pattern:$0x73625140]
        %7841 = vst [vmem:[#allocation1] ss:$4 sm:$0xff] %v7550
        %7842 = vst [vmem:[%s7751] ss:$4 sm:$0xff] %v7551
        %7843 = vst [vmem:[%s7753] ss:$4 sm:$0xff] %v7552
        %7844 = vst [vmem:[%s7755] ss:$4 sm:$0xff] %v7553
        %7845 = vst [vmem:[%s7757] ss:$4 sm:$0xff] %v7554
        %7846 = vst [vmem:[%s7759] ss:$4 sm:$0xff] %v7555
        %7847 = vst [vmem:[%s7761] ss:$4 sm:$0xff] %v7556
        %7848 = vst [vmem:[%s7763] ss:$4 sm:$0xff] %v7557
        %v7849 = vld.sshfl [vmem:[#allocation1] sm:$0xff pattern:$0x73625140]
        %v7850 = vld.sshfl [vmem:[#allocation1 + $0x8] sm:$0xff pattern:$0x73625140]
        %v7851 = vld.sshfl [vmem:[#allocation1 + $0x20] sm:$0xff pattern:$0x73625140]
        %v7852 = vld.sshfl [vmem:[#allocation1 + $0x28] sm:$0xff pattern:$0x73625140]
        %7853 = vst [vmem:[#allocation1] ss:$4 sm:$0xff] %v7558
        %7854 = vst [vmem:[%s7751] ss:$4 sm:$0xff] %v7559
        %7855 = vst [vmem:[%s7753] ss:$4 sm:$0xff] %v7560
        %7856 = vst [vmem:[%s7755] ss:$4 sm:$0xff] %v7561
        %7857 = vst [vmem:[%s7757] ss:$4 sm:$0xff] %v7562
        %7858 = vst [vmem:[%s7759] ss:$4 sm:$0xff] %v7563
        %7859 = vst [vmem:[%s7761] ss:$4 sm:$0xff] %v7564
        %7860 = vst [vmem:[%s7763] ss:$4 sm:$0xff] %v7565
        %v7861 = vld.sshfl [vmem:[#allocation1] sm:$0xff pattern:$0x73625140]
        %v7862 = vld.sshfl [vmem:[#allocation1 + $0x8] sm:$0xff pattern:$0x73625140]
        %v7863 = vld.sshfl [vmem:[#allocation1 + $0x20] sm:$0xff pattern:$0x73625140]
        %v7864 = vld.sshfl [vmem:[#allocation1 + $0x28] sm:$0xff pattern:$0x73625140]
        %7865 = vst [vmem:[#allocation1] ss:$4 sm:$0xff] %v7566
        %7866 = vst [vmem:[%s7751] ss:$4 sm:$0xff] %v7567
        %7867 = vst [vmem:[%s7753] ss:$4 sm:$0xff] %v7568
        %7868 = vst [vmem:[%s7755] ss:$4 sm:$0xff] %v7569
        %7869 = vst [vmem:[%s7757] ss:$4 sm:$0xff] %v7570
        %7870 = vst [vmem:[%s7759] ss:$4 sm:$0xff] %v7571
        %7871 = vst [vmem:[%s7761] ss:$4 sm:$0xff] %v7572
        %7872 = vst [vmem:[%s7763] ss:$4 sm:$0xff] %v7573
        %v7873 = vld.sshfl [vmem:[#allocation1] sm:$0xff pattern:$0x73625140]
        %v7874 = vld.sshfl [vmem:[#allocation1 + $0x8] sm:$0xff pattern:$0x73625140]
        %v7875 = vld.sshfl [vmem:[#allocation1 + $0x20] sm:$0xff pattern:$0x73625140]
        %v7876 = vld.sshfl [vmem:[#allocation1 + $0x28] sm:$0xff pattern:$0x73625140]
        %7877 = vst [vmem:[#allocation1] ss:$4 sm:$0xff] %v7574
        %7878 = vst [vmem:[%s7751] ss:$4 sm:$0xff] %v7575
        %7879 = vst [vmem:[%s7753] ss:$4 sm:$0xff] %v7576
        %7880 = vst [vmem:[%s7755] ss:$4 sm:$0xff] %v7577
        %7881 = vst [vmem:[%s7757] ss:$4 sm:$0xff] %v7578
        %7882 = vst [vmem:[%s7759] ss:$4 sm:$0xff] %v7579
        %7883 = vst [vmem:[%s7761] ss:$4 sm:$0xff] %v7580
        %7884 = vst [vmem:[%s7763] ss:$4 sm:$0xff] %v7581
        %v7885 = vld.sshfl [vmem:[#allocation1] sm:$0xff pattern:$0x73625140]
        %v7886 = vld.sshfl [vmem:[#allocation1 + $0x8] sm:$0xff pattern:$0x73625140]
        %v7887 = vld.sshfl [vmem:[#allocation1 + $0x20] sm:$0xff pattern:$0x73625140]
        %v7888 = vld.sshfl [vmem:[#allocation1 + $0x28] sm:$0xff pattern:$0x73625140]
        %7889 = vst [vmem:[#allocation1] ss:$4 sm:$0xff] %v7582
        %7890 = vst [vmem:[%s7751] ss:$4 sm:$0xff] %v7583
        %7891 = vst [vmem:[%s7753] ss:$4 sm:$0xff] %v7584
        %7892 = vst [vmem:[%s7755] ss:$4 sm:$0xff] %v7585
        %7893 = vst [vmem:[%s7757] ss:$4 sm:$0xff] %v7586
        %7894 = vst [vmem:[%s7759] ss:$4 sm:$0xff] %v7587
        %7895 = vst [vmem:[%s7761] ss:$4 sm:$0xff] %v7588
        %7896 = vst [vmem:[%s7763] ss:$4 sm:$0xff] %v7589
        %v7897 = vld.sshfl [vmem:[#allocation1] sm:$0xff pattern:$0x73625140]
        %v7898 = vld.sshfl [vmem:[#allocation1 + $0x8] sm:$0xff pattern:$0x73625140]
        %v7899 = vld.sshfl [vmem:[#allocation1 + $0x20] sm:$0xff pattern:$0x73625140]
        %v7900 = vld.sshfl [vmem:[#allocation1 + $0x28] sm:$0xff pattern:$0x73625140]
        %7901 = vst [vmem:[#allocation1] ss:$4 sm:$0xff] %v7590
        %7902 = vst [vmem:[%s7751] ss:$4 sm:$0xff] %v7591
        %7903 = vst [vmem:[%s7753] ss:$4 sm:$0xff] %v7592
        %7904 = vst [vmem:[%s7755] ss:$4 sm:$0xff] %v7593
        %7905 = vst [vmem:[%s7757] ss:$4 sm:$0xff] %v7594
        %7906 = vst [vmem:[%s7759] ss:$4 sm:$0xff] %v7595
        %7907 = vst [vmem:[%s7761] ss:$4 sm:$0xff] %v7596
        %7908 = vst [vmem:[%s7763] ss:$4 sm:$0xff] %v7597
        %v7909 = vld.sshfl [vmem:[#allocation1] sm:$0xff pattern:$0x73625140]
        %v7910 = vld.sshfl [vmem:[#allocation1 + $0x8] sm:$0xff pattern:$0x73625140]
        %v7911 = vld.sshfl [vmem:[#allocation1 + $0x20] sm:$0xff pattern:$0x73625140]
        %v7912 = vld.sshfl [vmem:[#allocation1 + $0x28] sm:$0xff pattern:$0x73625140]
        %7913 = vst [vmem:[#allocation1] ss:$4 sm:$0xff] %v7598
        %7914 = vst [vmem:[%s7751] ss:$4 sm:$0xff] %v7599
        %7915 = vst [vmem:[%s7753] ss:$4 sm:$0xff] %v7600
        %7916 = vst [vmem:[%s7755] ss:$4 sm:$0xff] %v7601
        %7917 = vst [vmem:[%s7757] ss:$4 sm:$0xff] %v7602
        %7918 = vst [vmem:[%s7759] ss:$4 sm:$0xff] %v7603
        %7919 = vst [vmem:[%s7761] ss:$4 sm:$0xff] %v7604
        %7920 = vst [vmem:[%s7763] ss:$4 sm:$0xff] %v7605
        %v7921 = vld.sshfl [vmem:[#allocation1] sm:$0xff pattern:$0x73625140]
        %v7922 = vld.sshfl [vmem:[#allocation1 + $0x8] sm:$0xff pattern:$0x73625140]
        %v7923 = vld.sshfl [vmem:[#allocation1 + $0x20] sm:$0xff pattern:$0x73625140]
        %v7924 = vld.sshfl [vmem:[#allocation1 + $0x28] sm:$0xff pattern:$0x73625140]
        %7925 = vst [vmem:[#allocation1] ss:$4 sm:$0xff] %v7606
        %7926 = vst [vmem:[%s7751] ss:$4 sm:$0xff] %v7607
        %7927 = vst [vmem:[%s7753] ss:$4 sm:$0xff] %v7608
        %7928 = vst [vmem:[%s7755] ss:$4 sm:$0xff] %v7609
        %7929 = vst [vmem:[%s7757] ss:$4 sm:$0xff] %v7610
        %7930 = vst [vmem:[%s7759] ss:$4 sm:$0xff] %v7611
        %7931 = vst [vmem:[%s7761] ss:$4 sm:$0xff] %v7612
        %7932 = vst [vmem:[%s7763] ss:$4 sm:$0xff] %v7613
        %v7933 = vld.sshfl [vmem:[#allocation1] sm:$0xff pattern:$0x73625140]
        %v7934 = vld.sshfl [vmem:[#allocation1 + $0x8] sm:$0xff pattern:$0x73625140]
        %v7935 = vld.sshfl [vmem:[#allocation1 + $0x20] sm:$0xff pattern:$0x73625140]
        %v7936 = vld.sshfl [vmem:[#allocation1 + $0x28] sm:$0xff pattern:$0x73625140]
        %7937 = vst [vmem:[#allocation1] ss:$4 sm:$0xff] %v7614
        %7938 = vst [vmem:[%s7751] ss:$4 sm:$0xff] %v7615
        %7939 = vst [vmem:[%s7753] ss:$4 sm:$0xff] %v7616
        %7940 = vst [vmem:[%s7755] ss:$4 sm:$0xff] %v7617
        %7941 = vst [vmem:[%s7757] ss:$4 sm:$0xff] %v7618
        %7942 = vst [vmem:[%s7759] ss:$4 sm:$0xff] %v7619
        %7943 = vst [vmem:[%s7761] ss:$4 sm:$0xff] %v7620
        %7944 = vst [vmem:[%s7763] ss:$4 sm:$0xff] %v7621
        %v7945 = vld.sshfl [vmem:[#allocation1] sm:$0xff pattern:$0x73625140]
        %v7946 = vld.sshfl [vmem:[#allocation1 + $0x8] sm:$0xff pattern:$0x73625140]
        %v7947 = vld.sshfl [vmem:[#allocation1 + $0x20] sm:$0xff pattern:$0x73625140]
        %v7948 = vld.sshfl [vmem:[#allocation1 + $0x28] sm:$0xff pattern:$0x73625140]
        %v8013 = vadd.f32 %v7765, %v7766
        %v8014 = vadd.f32 %v8013, %v7767
        %v8015 = vadd.f32 %v8014, %v7768
        %v8016 = vadd.f32 %v8015, %v7777
        %v8017 = vadd.f32 %v8016, %v7778
        %v8018 = vadd.f32 %v8017, %v7779
        %v8019 = vadd.f32 %v8018, %v7780
        %v8020 = vadd.f32 %v8019, %v7789
        %v8021 = vadd.f32 %v8020, %v7790
        %v8022 = vadd.f32 %v8021, %v7791
        %v8023 = vadd.f32 %v8022, %v7792
        %v8024 = vadd.f32 %v8023, %v7801
        %v8025 = vadd.f32 %v8024, %v7802
        %v8026 = vadd.f32 %v8025, %v7803
        %v8027 = vadd.f32 %v8026, %v7804
        %v8028 = vadd.f32 %v8027, %v7813
        %v8029 = vadd.f32 %v8028, %v7814
        %v8030 = vadd.f32 %v8029, %v7815
        %v8031 = vadd.f32 %v8030, %v7816
        %v8032 = vadd.f32 %v8031, %v7825
        %v8033 = vadd.f32 %v8032, %v7826
        %v8034 = vadd.f32 %v8033, %v7827
        %v8035 = vadd.f32 %v8034, %v7828
        %v8036 = vadd.f32 %v8035, %v7837
        %v8037 = vadd.f32 %v8036, %v7838
        %v8038 = vadd.f32 %v8037, %v7839
        %v8039 = vadd.f32 %v8038, %v7840
        %v8040 = vadd.f32 %v8039, %v7849
        %v8041 = vadd.f32 %v8040, %v7850
        %v8042 = vadd.f32 %v8041, %v7851
        %v8043 = vadd.f32 %v8042, %v7852
        %v8044 = vadd.f32 %v8043, %v7861
        %v8045 = vadd.f32 %v8044, %v7862
        %v8046 = vadd.f32 %v8045, %v7863
        %v8047 = vadd.f32 %v8046, %v7864
        %v8048 = vadd.f32 %v8047, %v7873
        %v8049 = vadd.f32 %v8048, %v7874
        %v8050 = vadd.f32 %v8049, %v7875
        %v8051 = vadd.f32 %v8050, %v7876
        %v8052 = vadd.f32 %v8051, %v7885
        %v8053 = vadd.f32 %v8052, %v7886
        %v8054 = vadd.f32 %v8053, %v7887
        %v8055 = vadd.f32 %v8054, %v7888
        %v8056 = vadd.f32 %v8055, %v7897
        %v8057 = vadd.f32 %v8056, %v7898
        %v8058 = vadd.f32 %v8057, %v7899
        %v8059 = vadd.f32 %v8058, %v7900
        %v8060 = vadd.f32 %v8059, %v7909
        %v8061 = vadd.f32 %v8060, %v7910
        %v8062 = vadd.f32 %v8061, %v7911
        %v8063 = vadd.f32 %v8062, %v7912
        %v8064 = vadd.f32 %v8063, %v7921
        %v8065 = vadd.f32 %v8064, %v7922
        %v8066 = vadd.f32 %v8065, %v7923
        %v8067 = vadd.f32 %v8066, %v7924
        %v8068 = vadd.f32 %v8067, %v7933
        %v8069 = vadd.f32 %v8068, %v7934
        %v8070 = vadd.f32 %v8069, %v7935
        %v8071 = vadd.f32 %v8070, %v7936
        %v8072 = vadd.f32 %v8071, %v7945
        %v8073 = vadd.f32 %v8072, %v7946
        %v8074 = vadd.f32 %v8073, %v7947
        %v8075 = vadd.f32 %v8074, %v7948
        %8076 = vadd.xlane.f32.xlu0 %v8075
        %v8077 = vpop.xlane.xlu0 %8076
        %v8078 = vrot.slane %v8077, 4
        %v8079 = vadd.f32 %v8077, %v8078
        %v8080 = vrot.slane %v8079, 2
        %v8081 = vadd.f32 %v8079, %v8080
        %v8082 = vrot.slane %v8081, 1
        %v8083 = vadd.f32 %v8081, %v8082
        %s8084 = vtos %v8083
        %s8085 = sadd.f32 %s8084, 1e-05
        %v8086 = vstv %s8085
        %v8087 = vrsqrt.pop %v8086
        %v8088 = vmul.f32 %v8087, %v8086
        %v8089 = vmul.f32 %v8088, %v8087
        %v8090 = vmul.f32 0.5, %v8089
        %v8091 = vsub.f32 1.5, %v8090
        %v8092 = vmul.f32 %v8087, %v8091
        %vm8093 = vweird.f32 %v8086
        %vm8094 = vweird.f32 %v8087
        %vm8095 = vmor %vm8093, %vm8094
        %v8096 = vsel %vm8095, %v8087, %v8092
        %s8097 = vtos %v8096
        %s8098 = smul.f32 %s8097, 16.0
        %v8099 = vstv %s8098
        %v8100 = vmul.f32 %v7140, %v8099
        %v8101 = vmul.f32 %v7143, %v8099
        %v8102 = vmul.f32 %v7146, %v8099
        %v8103 = vmul.f32 %v7148, %v8099
        %v8104 = vmul.f32 %v7149, %v8099
        %v8105 = vmul.f32 %v7151, %v8099
        %v8106 = vmul.f32 %v7153, %v8099
        %v8107 = vmul.f32 %v7155, %v8099
        %v8108 = vmul.f32 %v7157, %v8099
        %v8109 = vmul.f32 %v7159, %v8099
        %v8110 = vmul.f32 %v7161, %v8099
        %v8111 = vmul.f32 %v7162, %v8099
        %v8112 = vmul.f32 %v7164, %v8099
        %v8113 = vmul.f32 %v7166, %v8099
        %v8114 = vmul.f32 %v7168, %v8099
        %v8115 = vmul.f32 %v7169, %v8099
        %v8116 = vmul.f32 %v7171, %v8099
        %v8117 = vmul.f32 %v7173, %v8099
        %v8118 = vmul.f32 %v7174, %v8099
        %v8119 = vmul.f32 %v7176, %v8099
        %v8120 = vmul.f32 %v7178, %v8099
        %v8121 = vmul.f32 %v7180, %v8099
        %v8122 = vmul.f32 %v7181, %v8099
        %v8123 = vmul.f32 %v7183, %v8099
        %v8124 = vmul.f32 %v7185, %v8099
        %v8125 = vmul.f32 %v7186, %v8099
        %v8126 = vmul.f32 %v7188, %v8099
        %v8127 = vmul.f32 %v7190, %v8099
        %v8128 = vmul.f32 %v7192, %v8099
        %v8129 = vmul.f32 %v7193, %v8099
        %v8130 = vmul.f32 %v7195, %v8099
        %v8131 = vmul.f32 %v7197, %v8099
        %v8132 = vmul.f32 %v7198, %v8099
        %v8133 = vmul.f32 %v7200, %v8099
        %v8134 = vmul.f32 %v7202, %v8099
        %v8135 = vmul.f32 %v7204, %v8099
        %v8136 = vmul.f32 %v7205, %v8099
        %v8137 = vmul.f32 %v7207, %v8099
        %v8138 = vmul.f32 %v7209, %v8099
        %v8139 = vmul.f32 %v7211, %v8099
        %v8140 = vmul.f32 %v7213, %v8099
        %v8141 = vmul.f32 %v7215, %v8099
        %v8142 = vmul.f32 %v7217, %v8099
        %v8143 = vmul.f32 %v7218, %v8099
        %v8144 = vmul.f32 %v7220, %v8099
        %v8145 = vmul.f32 %v7222, %v8099
        %v8146 = vmul.f32 %v7224, %v8099
        %v8147 = vmul.f32 %v7225, %v8099
        %v8148 = vmul.f32 %v7227, %v8099
        %v8149 = vmul.f32 %v7229, %v8099
        %v8150 = vmul.f32 %v7230, %v8099
        %v8151 = vmul.f32 %v7232, %v8099
        %v8152 = vmul.f32 %v7234, %v8099
        %v8153 = vmul.f32 %v7236, %v8099
        %v8154 = vmul.f32 %v7237, %v8099
        %v8155 = vmul.f32 %v7239, %v8099
        %v8156 = vmul.f32 %v7241, %v8099
        %v8157 = vmul.f32 %v7242, %v8099
        %v8158 = vmul.f32 %v7244, %v8099
        %v8159 = vmul.f32 %v7246, %v8099
        %v8160 = vmul.f32 %v7248, %v8099
        %v8161 = vmul.f32 %v7249, %v8099
        %v8162 = vmul.f32 %v7251, %v8099
        %v8163 = vmul.f32 %v7253, %v8099
        %v8164 = vmul.f32 %v7254, %v8099
        %v8165 = vmul.f32 %v7256, %v8099
        %v8166 = vmul.f32 %v7258, %v8099
        %v8167 = vmul.f32 %v7260, %v8099
        %v8168 = vmul.f32 %v7261, %v8099
        %v8169 = vmul.f32 %v7263, %v8099
        %v8170 = vmul.f32 %v7265, %v8099
        %v8171 = vmul.f32 %v7267, %v8099
        %v8172 = vmul.f32 %v7269, %v8099
        %v8173 = vmul.f32 %v7271, %v8099
        %v8174 = vmul.f32 %v7273, %v8099
        %v8175 = vmul.f32 %v7274, %v8099
        %v8176 = vmul.f32 %v7276, %v8099
        %v8177 = vmul.f32 %v7278, %v8099
        %v8178 = vmul.f32 %v7280, %v8099
        %v8179 = vmul.f32 %v7281, %v8099
        %v8180 = vmul.f32 %v7283, %v8099
        %v8181 = vmul.f32 %v7285, %v8099
        %v8182 = vmul.f32 %v7286, %v8099
        %v8183 = vmul.f32 %v7288, %v8099
        %v8184 = vmul.f32 %v7290, %v8099
        %v8185 = vmul.f32 %v7292, %v8099
        %v8186 = vmul.f32 %v7293, %v8099
        %v8187 = vmul.f32 %v7295, %v8099
        %v8188 = vmul.f32 %v7297, %v8099
        %v8189 = vmul.f32 %v7298, %v8099
        %v8190 = vmul.f32 %v7300, %v8099
        %v8191 = vmul.f32 %v7302, %v8099
        %v8192 = vmul.f32 %v7304, %v8099
        %v8193 = vmul.f32 %v7305, %v8099
        %v8194 = vmul.f32 %v7307, %v8099
        %v8195 = vmul.f32 %v7309, %v8099
        %v8196 = vmul.f32 %v7310, %v8099
        %v8197 = vmul.f32 %v7312, %v8099
        %v8198 = vmul.f32 %v7314, %v8099
        %v8199 = vmul.f32 %v7316, %v8099
        %v8200 = vmul.f32 %v7317, %v8099
        %v8201 = vmul.f32 %v7319, %v8099
        %v8202 = vmul.f32 %v7321, %v8099
        %v8203 = vmul.f32 %v7323, %v8099
        %v8204 = vmul.f32 %v7325, %v8099
        %v8205 = vmul.f32 %v7327, %v8099
        %v8206 = vmul.f32 %v7329, %v8099
        %v8207 = vmul.f32 %v7330, %v8099
        %v8208 = vmul.f32 %v7332, %v8099
        %v8209 = vmul.f32 %v7334, %v8099
        %v8210 = vmul.f32 %v7336, %v8099
        %v8211 = vmul.f32 %v7337, %v8099
        %v8212 = vmul.f32 %v7339, %v8099
        %v8213 = vmul.f32 %v7341, %v8099
        %v8214 = vmul.f32 %v7342, %v8099
        %v8215 = vmul.f32 %v7344, %v8099
        %v8216 = vmul.f32 %v7346, %v8099
        %v8217 = vmul.f32 %v7348, %v8099
        %v8218 = vmul.f32 %v7349, %v8099
        %v8219 = vmul.f32 %v7351, %v8099
        %v8220 = vmul.f32 %v7353, %v8099
        %v8221 = vmul.f32 %v7354, %v8099
        %v8222 = vmul.f32 %v7356, %v8099
        %v8223 = vmul.f32 %v7358, %v8099
        %v8224 = vmul.f32 %v7360, %v8099
        %v8225 = vmul.f32 %v7361, %v8099
        %v8226 = vmul.f32 %v7363, %v8099
        %v8227 = vmul.f32 %v7365, %v8099
        %8356 = vst [vmem:[#allocation1] ss:$4 sm:$0xff] %v8100
        %s8357 = scalar_lea.vmem [#allocation1], 1
        %8358 = vst [vmem:[%s8357] ss:$4 sm:$0xff] %v8101
        %s8359 = scalar_lea.vmem [#allocation1], 2
        %8360 = vst [vmem:[%s8359] ss:$4 sm:$0xff] %v8102
        %s8361 = scalar_lea.vmem [#allocation1], 3
        %8362 = vst [vmem:[%s8361] ss:$4 sm:$0xff] %v8103
        %s8363 = scalar_lea.vmem [#allocation1], 32
        %8364 = vst [vmem:[%s8363] ss:$4 sm:$0xff] %v8104
        %s8365 = scalar_lea.vmem [#allocation1], 33
        %8366 = vst [vmem:[%s8365] ss:$4 sm:$0xff] %v8105
        %s8367 = scalar_lea.vmem [#allocation1], 34
        %8368 = vst [vmem:[%s8367] ss:$4 sm:$0xff] %v8106
        %s8369 = scalar_lea.vmem [#allocation1], 35
        %8370 = vst [vmem:[%s8369] ss:$4 sm:$0xff] %v8107
        %v8371 = vld.sshfl [vmem:[#allocation1] sm:$0xff pattern:$0x73625140]
        %v8372 = vld.sshfl [vmem:[#allocation1 + $0x8] sm:$0xff pattern:$0x73625140]
        %v8373 = vld.sshfl [vmem:[#allocation1 + $0x20] sm:$0xff pattern:$0x73625140]
        %v8374 = vld.sshfl [vmem:[#allocation1 + $0x28] sm:$0xff pattern:$0x73625140]
        %8375 = vst [vmem:[#allocation1] ss:$4 sm:$0xff] %v8108
        %8376 = vst [vmem:[%s8357] ss:$4 sm:$0xff] %v8109
        %8377 = vst [vmem:[%s8359] ss:$4 sm:$0xff] %v8110
        %8378 = vst [vmem:[%s8361] ss:$4 sm:$0xff] %v8111
        %8379 = vst [vmem:[%s8363] ss:$4 sm:$0xff] %v8112
        %8380 = vst [vmem:[%s8365] ss:$4 sm:$0xff] %v8113
        %8381 = vst [vmem:[%s8367] ss:$4 sm:$0xff] %v8114
        %8382 = vst [vmem:[%s8369] ss:$4 sm:$0xff] %v8115
        %v8383 = vld.sshfl [vmem:[#allocation1] sm:$0xff pattern:$0x73625140]
        %v8384 = vld.sshfl [vmem:[#allocation1 + $0x8] sm:$0xff pattern:$0x73625140]
        %v8385 = vld.sshfl [vmem:[#allocation1 + $0x20] sm:$0xff pattern:$0x73625140]
        %v8386 = vld.sshfl [vmem:[#allocation1 + $0x28] sm:$0xff pattern:$0x73625140]
        %8387 = vst [vmem:[#allocation1] ss:$4 sm:$0xff] %v8116
        %8388 = vst [vmem:[%s8357] ss:$4 sm:$0xff] %v8117
        %8389 = vst [vmem:[%s8359] ss:$4 sm:$0xff] %v8118
        %8390 = vst [vmem:[%s8361] ss:$4 sm:$0xff] %v8119
        %8391 = vst [vmem:[%s8363] ss:$4 sm:$0xff] %v8120
        %8392 = vst [vmem:[%s8365] ss:$4 sm:$0xff] %v8121
        %8393 = vst [vmem:[%s8367] ss:$4 sm:$0xff] %v8122
        %8394 = vst [vmem:[%s8369] ss:$4 sm:$0xff] %v8123
        %v8395 = vld.sshfl [vmem:[#allocation1] sm:$0xff pattern:$0x73625140]
        %v8396 = vld.sshfl [vmem:[#allocation1 + $0x8] sm:$0xff pattern:$0x73625140]
        %v8397 = vld.sshfl [vmem:[#allocation1 + $0x20] sm:$0xff pattern:$0x73625140]
        %v8398 = vld.sshfl [vmem:[#allocation1 + $0x28] sm:$0xff pattern:$0x73625140]
        %8399 = vst [vmem:[#allocation1] ss:$4 sm:$0xff] %v8124
        %8400 = vst [vmem:[%s8357] ss:$4 sm:$0xff] %v8125
        %8401 = vst [vmem:[%s8359] ss:$4 sm:$0xff] %v8126
        %8402 = vst [vmem:[%s8361] ss:$4 sm:$0xff] %v8127
        %8403 = vst [vmem:[%s8363] ss:$4 sm:$0xff] %v8128
        %8404 = vst [vmem:[%s8365] ss:$4 sm:$0xff] %v8129
        %8405 = vst [vmem:[%s8367] ss:$4 sm:$0xff] %v8130
        %8406 = vst [vmem:[%s8369] ss:$4 sm:$0xff] %v8131
        %v8407 = vld.sshfl [vmem:[#allocation1] sm:$0xff pattern:$0x73625140]
        %v8408 = vld.sshfl [vmem:[#allocation1 + $0x8] sm:$0xff pattern:$0x73625140]
        %v8409 = vld.sshfl [vmem:[#allocation1 + $0x20] sm:$0xff pattern:$0x73625140]
        %v8410 = vld.sshfl [vmem:[#allocation1 + $0x28] sm:$0xff pattern:$0x73625140]
        %8411 = vst [vmem:[#allocation1] ss:$4 sm:$0xff] %v8132
        %8412 = vst [vmem:[%s8357] ss:$4 sm:$0xff] %v8133
        %8413 = vst [vmem:[%s8359] ss:$4 sm:$0xff] %v8134
        %8414 = vst [vmem:[%s8361] ss:$4 sm:$0xff] %v8135
        %8415 = vst [vmem:[%s8363] ss:$4 sm:$0xff] %v8136
        %8416 = vst [vmem:[%s8365] ss:$4 sm:$0xff] %v8137
        %8417 = vst [vmem:[%s8367] ss:$4 sm:$0xff] %v8138
        %8418 = vst [vmem:[%s8369] ss:$4 sm:$0xff] %v8139
        %v8419 = vld.sshfl [vmem:[#allocation1] sm:$0xff pattern:$0x73625140]
        %v8420 = vld.sshfl [vmem:[#allocation1 + $0x8] sm:$0xff pattern:$0x73625140]
        %v8421 = vld.sshfl [vmem:[#allocation1 + $0x20] sm:$0xff pattern:$0x73625140]
        %v8422 = vld.sshfl [vmem:[#allocation1 + $0x28] sm:$0xff pattern:$0x73625140]
        %8423 = vst [vmem:[#allocation1] ss:$4 sm:$0xff] %v8140
        %8424 = vst [vmem:[%s8357] ss:$4 sm:$0xff] %v8141
        %8425 = vst [vmem:[%s8359] ss:$4 sm:$0xff] %v8142
        %8426 = vst [vmem:[%s8361] ss:$4 sm:$0xff] %v8143
        %8427 = vst [vmem:[%s8363] ss:$4 sm:$0xff] %v8144
        %8428 = vst [vmem:[%s8365] ss:$4 sm:$0xff] %v8145
        %8429 = vst [vmem:[%s8367] ss:$4 sm:$0xff] %v8146
        %8430 = vst [vmem:[%s8369] ss:$4 sm:$0xff] %v8147
        %v8431 = vld.sshfl [vmem:[#allocation1] sm:$0xff pattern:$0x73625140]
        %v8432 = vld.sshfl [vmem:[#allocation1 + $0x8] sm:$0xff pattern:$0x73625140]
        %v8433 = vld.sshfl [vmem:[#allocation1 + $0x20] sm:$0xff pattern:$0x73625140]
        %v8434 = vld.sshfl [vmem:[#allocation1 + $0x28] sm:$0xff pattern:$0x73625140]
        %8435 = vst [vmem:[#allocation1] ss:$4 sm:$0xff] %v8148
        %8436 = vst [vmem:[%s8357] ss:$4 sm:$0xff] %v8149
        %8437 = vst [vmem:[%s8359] ss:$4 sm:$0xff] %v8150
        %8438 = vst [vmem:[%s8361] ss:$4 sm:$0xff] %v8151
        %8439 = vst [vmem:[%s8363] ss:$4 sm:$0xff] %v8152
        %8440 = vst [vmem:[%s8365] ss:$4 sm:$0xff] %v8153
        %8441 = vst [vmem:[%s8367] ss:$4 sm:$0xff] %v8154
        %8442 = vst [vmem:[%s8369] ss:$4 sm:$0xff] %v8155
        %v8443 = vld.sshfl [vmem:[#allocation1] sm:$0xff pattern:$0x73625140]
        %v8444 = vld.sshfl [vmem:[#allocation1 + $0x8] sm:$0xff pattern:$0x73625140]
        %v8445 = vld.sshfl [vmem:[#allocation1 + $0x20] sm:$0xff pattern:$0x73625140]
        %v8446 = vld.sshfl [vmem:[#allocation1 + $0x28] sm:$0xff pattern:$0x73625140]
        %8447 = vst [vmem:[#allocation1] ss:$4 sm:$0xff] %v8156
        %8448 = vst [vmem:[%s8357] ss:$4 sm:$0xff] %v8157
        %8449 = vst [vmem:[%s8359] ss:$4 sm:$0xff] %v8158
        %8450 = vst [vmem:[%s8361] ss:$4 sm:$0xff] %v8159
        %8451 = vst [vmem:[%s8363] ss:$4 sm:$0xff] %v8160
        %8452 = vst [vmem:[%s8365] ss:$4 sm:$0xff] %v8161
        %8453 = vst [vmem:[%s8367] ss:$4 sm:$0xff] %v8162
        %8454 = vst [vmem:[%s8369] ss:$4 sm:$0xff] %v8163
        %v8455 = vld.sshfl [vmem:[#allocation1] sm:$0xff pattern:$0x73625140]
        %v8456 = vld.sshfl [vmem:[#allocation1 + $0x8] sm:$0xff pattern:$0x73625140]
        %v8457 = vld.sshfl [vmem:[#allocation1 + $0x20] sm:$0xff pattern:$0x73625140]
        %v8458 = vld.sshfl [vmem:[#allocation1 + $0x28] sm:$0xff pattern:$0x73625140]
        %8459 = vst [vmem:[#allocation1] ss:$4 sm:$0xff] %v8164
        %8460 = vst [vmem:[%s8357] ss:$4 sm:$0xff] %v8165
        %8461 = vst [vmem:[%s8359] ss:$4 sm:$0xff] %v8166
        %8462 = vst [vmem:[%s8361] ss:$4 sm:$0xff] %v8167
        %8463 = vst [vmem:[%s8363] ss:$4 sm:$0xff] %v8168
        %8464 = vst [vmem:[%s8365] ss:$4 sm:$0xff] %v8169
        %8465 = vst [vmem:[%s8367] ss:$4 sm:$0xff] %v8170
        %8466 = vst [vmem:[%s8369] ss:$4 sm:$0xff] %v8171
        %v8467 = vld.sshfl [vmem:[#allocation1] sm:$0xff pattern:$0x73625140]
        %v8468 = vld.sshfl [vmem:[#allocation1 + $0x8] sm:$0xff pattern:$0x73625140]
        %v8469 = vld.sshfl [vmem:[#allocation1 + $0x20] sm:$0xff pattern:$0x73625140]
        %v8470 = vld.sshfl [vmem:[#allocation1 + $0x28] sm:$0xff pattern:$0x73625140]
        %8471 = vst [vmem:[#allocation1] ss:$4 sm:$0xff] %v8172
        %8472 = vst [vmem:[%s8357] ss:$4 sm:$0xff] %v8173
        %8473 = vst [vmem:[%s8359] ss:$4 sm:$0xff] %v8174
        %8474 = vst [vmem:[%s8361] ss:$4 sm:$0xff] %v8175
        %8475 = vst [vmem:[%s8363] ss:$4 sm:$0xff] %v8176
        %8476 = vst [vmem:[%s8365] ss:$4 sm:$0xff] %v8177
        %8477 = vst [vmem:[%s8367] ss:$4 sm:$0xff] %v8178
        %8478 = vst [vmem:[%s8369] ss:$4 sm:$0xff] %v8179
        %v8479 = vld.sshfl [vmem:[#allocation1] sm:$0xff pattern:$0x73625140]
        %v8480 = vld.sshfl [vmem:[#allocation1 + $0x8] sm:$0xff pattern:$0x73625140]
        %v8481 = vld.sshfl [vmem:[#allocation1 + $0x20] sm:$0xff pattern:$0x73625140]
        %v8482 = vld.sshfl [vmem:[#allocation1 + $0x28] sm:$0xff pattern:$0x73625140]
        %8483 = vst [vmem:[#allocation1] ss:$4 sm:$0xff] %v8180
        %8484 = vst [vmem:[%s8357] ss:$4 sm:$0xff] %v8181
        %8485 = vst [vmem:[%s8359] ss:$4 sm:$0xff] %v8182
        %8486 = vst [vmem:[%s8361] ss:$4 sm:$0xff] %v8183
        %8487 = vst [vmem:[%s8363] ss:$4 sm:$0xff] %v8184
        %8488 = vst [vmem:[%s8365] ss:$4 sm:$0xff] %v8185
        %8489 = vst [vmem:[%s8367] ss:$4 sm:$0xff] %v8186
        %8490 = vst [vmem:[%s8369] ss:$4 sm:$0xff] %v8187
        %v8491 = vld.sshfl [vmem:[#allocation1] sm:$0xff pattern:$0x73625140]
        %v8492 = vld.sshfl [vmem:[#allocation1 + $0x8] sm:$0xff pattern:$0x73625140]
        %v8493 = vld.sshfl [vmem:[#allocation1 + $0x20] sm:$0xff pattern:$0x73625140]
        %v8494 = vld.sshfl [vmem:[#allocation1 + $0x28] sm:$0xff pattern:$0x73625140]
        %8495 = vst [vmem:[#allocation1] ss:$4 sm:$0xff] %v8188
        %8496 = vst [vmem:[%s8357] ss:$4 sm:$0xff] %v8189
        %8497 = vst [vmem:[%s8359] ss:$4 sm:$0xff] %v8190
        %8498 = vst [vmem:[%s8361] ss:$4 sm:$0xff] %v8191
        %8499 = vst [vmem:[%s8363] ss:$4 sm:$0xff] %v8192
        %8500 = vst [vmem:[%s8365] ss:$4 sm:$0xff] %v8193
        %8501 = vst [vmem:[%s8367] ss:$4 sm:$0xff] %v8194
        %8502 = vst [vmem:[%s8369] ss:$4 sm:$0xff] %v8195
        %v8503 = vld.sshfl [vmem:[#allocation1] sm:$0xff pattern:$0x73625140]
        %v8504 = vld.sshfl [vmem:[#allocation1 + $0x8] sm:$0xff pattern:$0x73625140]
        %v8505 = vld.sshfl [vmem:[#allocation1 + $0x20] sm:$0xff pattern:$0x73625140]
        %v8506 = vld.sshfl [vmem:[#allocation1 + $0x28] sm:$0xff pattern:$0x73625140]
        %8507 = vst [vmem:[#allocation1] ss:$4 sm:$0xff] %v8196
        %8508 = vst [vmem:[%s8357] ss:$4 sm:$0xff] %v8197
        %8509 = vst [vmem:[%s8359] ss:$4 sm:$0xff] %v8198
        %8510 = vst [vmem:[%s8361] ss:$4 sm:$0xff] %v8199
        %8511 = vst [vmem:[%s8363] ss:$4 sm:$0xff] %v8200
        %8512 = vst [vmem:[%s8365] ss:$4 sm:$0xff] %v8201
        %8513 = vst [vmem:[%s8367] ss:$4 sm:$0xff] %v8202
        %8514 = vst [vmem:[%s8369] ss:$4 sm:$0xff] %v8203
        %v8515 = vld.sshfl [vmem:[#allocation1] sm:$0xff pattern:$0x73625140]
        %v8516 = vld.sshfl [vmem:[#allocation1 + $0x8] sm:$0xff pattern:$0x73625140]
        %v8517 = vld.sshfl [vmem:[#allocation1 + $0x20] sm:$0xff pattern:$0x73625140]
        %v8518 = vld.sshfl [vmem:[#allocation1 + $0x28] sm:$0xff pattern:$0x73625140]
        %8519 = vst [vmem:[#allocation1] ss:$4 sm:$0xff] %v8204
        %8520 = vst [vmem:[%s8357] ss:$4 sm:$0xff] %v8205
        %8521 = vst [vmem:[%s8359] ss:$4 sm:$0xff] %v8206
        %8522 = vst [vmem:[%s8361] ss:$4 sm:$0xff] %v8207
        %8523 = vst [vmem:[%s8363] ss:$4 sm:$0xff] %v8208
        %8524 = vst [vmem:[%s8365] ss:$4 sm:$0xff] %v8209
        %8525 = vst [vmem:[%s8367] ss:$4 sm:$0xff] %v8210
        %8526 = vst [vmem:[%s8369] ss:$4 sm:$0xff] %v8211
        %v8527 = vld.sshfl [vmem:[#allocation1] sm:$0xff pattern:$0x73625140]
        %v8528 = vld.sshfl [vmem:[#allocation1 + $0x8] sm:$0xff pattern:$0x73625140]
        %v8529 = vld.sshfl [vmem:[#allocation1 + $0x20] sm:$0xff pattern:$0x73625140]
        %v8530 = vld.sshfl [vmem:[#allocation1 + $0x28] sm:$0xff pattern:$0x73625140]
        %8531 = vst [vmem:[#allocation1] ss:$4 sm:$0xff] %v8212
        %8532 = vst [vmem:[%s8357] ss:$4 sm:$0xff] %v8213
        %8533 = vst [vmem:[%s8359] ss:$4 sm:$0xff] %v8214
        %8534 = vst [vmem:[%s8361] ss:$4 sm:$0xff] %v8215
        %8535 = vst [vmem:[%s8363] ss:$4 sm:$0xff] %v8216
        %8536 = vst [vmem:[%s8365] ss:$4 sm:$0xff] %v8217
        %8537 = vst [vmem:[%s8367] ss:$4 sm:$0xff] %v8218
        %8538 = vst [vmem:[%s8369] ss:$4 sm:$0xff] %v8219
        %v8539 = vld.sshfl [vmem:[#allocation1] sm:$0xff pattern:$0x73625140]
        %v8540 = vld.sshfl [vmem:[#allocation1 + $0x8] sm:$0xff pattern:$0x73625140]
        %v8541 = vld.sshfl [vmem:[#allocation1 + $0x20] sm:$0xff pattern:$0x73625140]
        %v8542 = vld.sshfl [vmem:[#allocation1 + $0x28] sm:$0xff pattern:$0x73625140]
        %8543 = vst [vmem:[#allocation1] ss:$4 sm:$0xff] %v8220
        %8544 = vst [vmem:[%s8357] ss:$4 sm:$0xff] %v8221
        %8545 = vst [vmem:[%s8359] ss:$4 sm:$0xff] %v8222
        %8546 = vst [vmem:[%s8361] ss:$4 sm:$0xff] %v8223
        %8547 = vst [vmem:[%s8363] ss:$4 sm:$0xff] %v8224
        %8548 = vst [vmem:[%s8365] ss:$4 sm:$0xff] %v8225
        %8549 = vst [vmem:[%s8367] ss:$4 sm:$0xff] %v8226
        %8550 = vst [vmem:[%s8369] ss:$4 sm:$0xff] %v8227
        %v8551 = vld.sshfl [vmem:[#allocation1] sm:$0xff pattern:$0x73625140]
        %v8552 = vld.sshfl [vmem:[#allocation1 + $0x8] sm:$0xff pattern:$0x73625140]
        %v8553 = vld.sshfl [vmem:[#allocation1 + $0x20] sm:$0xff pattern:$0x73625140]
        %v8554 = vld.sshfl [vmem:[#allocation1 + $0x28] sm:$0xff pattern:$0x73625140]
        %8619 = vst [vmem:[%s180] sm:$0xff] %v8371
        %8620 = vst [vmem:[%s180 + $0x8] sm:$0xff] %v8372
        %8621 = vst [vmem:[%s180 + $0x10] sm:$0xff] %v8373
        %8622 = vst [vmem:[%s180 + $0x18] sm:$0xff] %v8374
        %8623 = vst [vmem:[%s180 + $0x20] sm:$0xff] %v8383
        %8624 = vst [vmem:[%s180 + $0x28] sm:$0xff] %v8384
        %8625 = vst [vmem:[%s180 + $0x30] sm:$0xff] %v8385
        %8626 = vst [vmem:[%s180 + $0x38] sm:$0xff] %v8386
        %8627 = vst [vmem:[%s180 + $0x40] sm:$0xff] %v8395
        %8628 = vst [vmem:[%s180 + $0x48] sm:$0xff] %v8396
        %8629 = vst [vmem:[%s180 + $0x50] sm:$0xff] %v8397
        %8630 = vst [vmem:[%s180 + $0x58] sm:$0xff] %v8398
        %8631 = vst [vmem:[%s180 + $0x60] sm:$0xff] %v8407
        %8632 = vst [vmem:[%s180 + $0x68] sm:$0xff] %v8408
        %8633 = vst [vmem:[%s180 + $0x70] sm:$0xff] %v8409
        %8634 = vst [vmem:[%s180 + $0x78] sm:$0xff] %v8410
        %8635 = vst [vmem:[%s180 + $0x80] sm:$0xff] %v8419
        %8636 = vst [vmem:[%s180 + $0x88] sm:$0xff] %v8420
        %8637 = vst [vmem:[%s180 + $0x90] sm:$0xff] %v8421
        %8638 = vst [vmem:[%s180 + $0x98] sm:$0xff] %v8422
        %8639 = vst [vmem:[%s180 + $0xa0] sm:$0xff] %v8431
        %8640 = vst [vmem:[%s180 + $0xa8] sm:$0xff] %v8432
        %8641 = vst [vmem:[%s180 + $0xb0] sm:$0xff] %v8433
        %8642 = vst [vmem:[%s180 + $0xb8] sm:$0xff] %v8434
        %8643 = vst [vmem:[%s180 + $0xc0] sm:$0xff] %v8443
        %8644 = vst [vmem:[%s180 + $0xc8] sm:$0xff] %v8444
        %8645 = vst [vmem:[%s180 + $0xd0] sm:$0xff] %v8445
        %8646 = vst [vmem:[%s180 + $0xd8] sm:$0xff] %v8446
        %8647 = vst [vmem:[%s180 + $0xe0] sm:$0xff] %v8455
        %8648 = vst [vmem:[%s180 + $0xe8] sm:$0xff] %v8456
        %8649 = vst [vmem:[%s180 + $0xf0] sm:$0xff] %v8457
        %8650 = vst [vmem:[%s180 + $0xf8] sm:$0xff] %v8458
        %8651 = vst [vmem:[%s180 + $0x100] sm:$0xff] %v8467
        %8652 = vst [vmem:[%s180 + $0x108] sm:$0xff] %v8468
        %8653 = vst [vmem:[%s180 + $0x110] sm:$0xff] %v8469
        %8654 = vst [vmem:[%s180 + $0x118] sm:$0xff] %v8470
        %8655 = vst [vmem:[%s180 + $0x120] sm:$0xff] %v8479
        %8656 = vst [vmem:[%s180 + $0x128] sm:$0xff] %v8480
        %8657 = vst [vmem:[%s180 + $0x130] sm:$0xff] %v8481
        %8658 = vst [vmem:[%s180 + $0x138] sm:$0xff] %v8482
        %8659 = vst [vmem:[%s180 + $0x140] sm:$0xff] %v8491
        %8660 = vst [vmem:[%s180 + $0x148] sm:$0xff] %v8492
        %8661 = vst [vmem:[%s180 + $0x150] sm:$0xff] %v8493
        %8662 = vst [vmem:[%s180 + $0x158] sm:$0xff] %v8494
        %8663 = vst [vmem:[%s180 + $0x160] sm:$0xff] %v8503
        %8664 = vst [vmem:[%s180 + $0x168] sm:$0xff] %v8504
        %8665 = vst [vmem:[%s180 + $0x170] sm:$0xff] %v8505
        %8666 = vst [vmem:[%s180 + $0x178] sm:$0xff] %v8506
        %8667 = vst [vmem:[%s180 + $0x180] sm:$0xff] %v8515
        %8668 = vst [vmem:[%s180 + $0x188] sm:$0xff] %v8516
        %8669 = vst [vmem:[%s180 + $0x190] sm:$0xff] %v8517
        %8670 = vst [vmem:[%s180 + $0x198] sm:$0xff] %v8518
        %8671 = vst [vmem:[%s180 + $0x1a0] sm:$0xff] %v8527
        %8672 = vst [vmem:[%s180 + $0x1a8] sm:$0xff] %v8528
        %8673 = vst [vmem:[%s180 + $0x1b0] sm:$0xff] %v8529
        %8674 = vst [vmem:[%s180 + $0x1b8] sm:$0xff] %v8530
        %8675 = vst [vmem:[%s180 + $0x1c0] sm:$0xff] %v8539
        %8676 = vst [vmem:[%s180 + $0x1c8] sm:$0xff] %v8540
        %8677 = vst [vmem:[%s180 + $0x1d0] sm:$0xff] %v8541
        %8678 = vst [vmem:[%s180 + $0x1d8] sm:$0xff] %v8542
        %8679 = vst [vmem:[%s180 + $0x1e0] sm:$0xff] %v8551
        %8680 = vst [vmem:[%s180 + $0x1e8] sm:$0xff] %v8552
        %8681 = vst [vmem:[%s180 + $0x1f0] sm:$0xff] %v8553
        %8682 = vst [vmem:[%s180 + $0x1f8] sm:$0xff] %v8554
        %s8683 = sand.u32 %s75, 1
        %s8684 = scalar_lea.sflag [#allocation7], %s8683
        %s8685 = sand.u32 %s75, 1
        %s8686 = smul.addr %s8685, 512
        %s8687 = scalar_lea.vmem [#allocation10], %s8686
        // Predicated region
        $region37: #{tpu_custom_call.1} parent=27 // pred_check
          %p8688 = pneg %p85
        $region38: #{tpu_custom_call.1} parent=27 // pred_check_branch
          %8690 = sbr.rel (%p8688) target = $region40
        $region39: #{tpu_custom_call.1} parent=27 // pred_region
          %8692 = vsyncadd %s8684, 0
          %s8693 = smul.addr %s20, 64
          %s8694 = smul.addr %s8693, 8
          %s8695 = scalar_lea.hbm %s2, %s8694
          %s8696 = sshll.u32 %s8687, 4
          %s8697 = int_to_ptr.vmem [resolvable:$true] %s8696
          %s8698 = sshll.u32 %s8695, 4
          %s8699 = int_to_ptr.hbm [resolvable:$true] %s8698
          %8704 = dma.vmem_to_hbm [thread:$0]  %s8697, 8192, %s8699, %s8684, 256, 256, 16
        $region40: #{tpu_custom_call.1} parent=27 // pred_fallthru
          _
      $region28: #{tpu_custom_call.1} parent=5 // pred_fallthru
        _
      %p8705 = scmp.le.s32.totalorder 2, %s15
      // Predicated region
      $region41: #{tpu_custom_call.1} parent=5 // pred_check
        %p8706 = pneg %p8705
      $region42: #{tpu_custom_call.1} parent=5 // pred_check_branch
        %8708 = sbr.rel (%p8706) target = $region44
      $region43: #{tpu_custom_call.1} parent=5 // pred_region
        %s8709 = ssub.s32 %s15, 2
        // Predicated region
        $region45: #{tpu_custom_call.1} parent=43 // pred_check
          %p8710 = pneg %p91
        $region46: #{tpu_custom_call.1} parent=43 // pred_check_branch
          %8712 = sbr.rel (%p8710) target = $region48
        $region47: #{tpu_custom_call.1} parent=43 // pred_region
          %s8713 = sand.u32 %s76, 1
          %s8714 = scalar_lea.sflag [#allocation7], %s8713
          %s8715 = sand.u32 %s76, 1
          %s8716 = smul.addr %s8715, 512
          %s8717 = scalar_lea.vmem [#allocation10], %s8716
          %8719 = dma.done %s8714, 8192
        $region48: #{tpu_custom_call.1} parent=43 // pred_fallthru
          _
      $region44: #{tpu_custom_call.1} parent=5 // pred_fallthru
        _
    $region6: #{tpu_custom_call.1} parent=1 // loop_footer
      %s19 = sadd.s32 1, %s15
    $region7: #{tpu_custom_call.1} parent=1 // loop_footer_branch
      %14 = sbr.rel target = $region3
    $region8: #{tpu_custom_call.1} parent=1 // loop_exit
      _
    %8720 = vsyncpa [#allocation6], 1
    %s8721 = scalar_lea.sflag [#allocation6], 1
    %8722 = vsyncpa %s8721, 1
    %8723 = vsyncpa [#allocation9], 1
    %8724 = vsyncpa [#allocation7], 1
    %s8725 = scalar_lea.sflag [#allocation7], 1
    %8726 = vsyncpa %s8725, 1

</llo_original>
